<compile_context>
chip_gen: v7x
topology: tpu7x:2x2x1
jax: 0.10.0
libtpu: 0.0.40
codegen_flags: <defaults>
</compile_context>

<pallas_src>
import functools

import jax
import jax.numpy as jnp
from jax import lax
from jax.experimental import pallas as pl
from jax.experimental.pallas import tpu as pltpu


def _round_up(x, m):
    return ((x + m - 1) // m) * m


def _cdiv(a, b):
    return -(-a // b)


def _vmem_limit_bytes():
    # Generation-aware scoped-VMEM limit: ~75% of physical, clamped to
    # [32 MiB, 96 MiB].  Falls back to 48 MiB (safe on every generation).
    try:
        cap = int(pltpu.get_tpu_info().vmem_capacity_bytes)
    except Exception:
        cap = 64 * 1024 * 1024
    return max(32 * 1024 * 1024, min(int(cap * 0.75), 96 * 1024 * 1024))


def _conv_bn_relu_kernel(x_ref, w_ref, s_ref, b_ref, o_ref, *acc_scratch,
                         k, stride, tile_oh, ow, c, fuse_taps, apply_relu):
    # x_ref: [H_alloc, W_pad, C]    zero-padded input image (bf16, resident per n)
    # w_ref: [k*k*C, O_blk]         mixed weight, (kh, kw, c)-major rows (bf16)
    # s_ref: [1, O_blk]             BN scale (f32, applied to the f32 accumulator)
    # b_ref: [1, O_blk]             BN bias  (f32)
    # o_ref: [tile_oh, OW, O_blk]   output tile
    t = pl.program_id(2)
    row_step = tile_oh * stride
    row0 = t * row_step
    if row_step % 8 == 0:
        row0 = pl.multiple_of(row0, 8)   # aligned sublane starts for tap loads
    o_blk = o_ref.shape[-1]
    tile_m = tile_oh * ow

    def tap(kh, kw):
        # Read the (kh, kw)-shifted window straight from the ref (no big slab value).
        if stride == 1:
            return x_ref[pl.ds(row0 + kh, tile_oh), pl.ds(kw, ow), :]
        xs = x_ref[pl.ds(row0 + kh, (tile_oh - 1) * stride + 1),
                   pl.ds(kw, (ow - 1) * stride + 1), :]
        # TODO(synk): pixel-unshuffle stride-2 convs in the wrapper so this
        # strided (sublane-gather) subsample path never runs.
        return lax.slice(xs, (0, 0, 0), xs.shape, (stride, stride, 1))

    if fuse_taps:
        # Fold all k*k taps into one MXU contraction of depth k*k*C.
        slab = jnp.concatenate(
            [tap(kh, kw) for kh in range(k) for kw in range(k)], axis=-1)
        acc = jnp.dot(slab.reshape(tile_m, k * k * c), w_ref[...],
                      preferred_element_type=jnp.float32)
    else:
        # C already fills the MXU depth: per-tap accumulation into VMEM scratch.
        acc_ref = acc_scratch[0]
        acc_ref[...] = jnp.zeros_like(acc_ref)
        for kh in range(k):
            for kw in range(k):
                wrow = (kh * k + kw) * c
                acc_ref[...] += jnp.dot(
                    tap(kh, kw).reshape(tile_m, c),
                    w_ref[pl.ds(wrow, c), :],
                    preferred_element_type=jnp.float32)
        acc = acc_ref[...]

    # BN (eval) epilogue on the f32 accumulator: scale, bias, ReLU.
    y = acc * s_ref[...] + b_ref[...]
    if apply_relu:
        y = jnp.maximum(y, 0.0)
    o_ref[...] = y.reshape(tile_oh, ow, o_blk).astype(o_ref.dtype)


def conv_bn_relu(x, params, member_id, *, stride, padding, relu=True, eps=1e-5,
                 target_tile_m=512, compute_dtype=jnp.bfloat16, out_dtype=None):
    bank = params["bank"]                        # [T, O, C, k, k]  SConv2d template bank
    coeffs = params["coeffs"]                    # [num_members, T] per-member mixing coeffs
    gamma = params["gamma"][member_id]           # [O]   SBatchNorm2d per-member params
    beta = params["beta"][member_id]             # [O]
    r_mean = params["running_mean"][member_id]   # [O]
    r_var = params["running_var"][member_id]     # [O]

    T, O, C, k, _ = bank.shape
    N, _, H, W = x.shape
    OH = (H + 2 * padding - k) // stride + 1
    OW = (W + 2 * padding - k) // stride + 1
    out_dtype = x.dtype if out_dtype is None else out_dtype

    # SConv2d: weight for this member = sum_t coeff[member_id, t] * bank[t]
    w = jnp.einsum("t,tocij->ocij", coeffs[member_id], bank).astype(jnp.float32)  # [O,C,k,k]

    # Fold BN (eval mode) into per-channel scale/bias.  Scale is applied to the
    # f32 accumulator inside the kernel (NOT folded into the bf16 weight).
    # TODO(synk): SBatchNorm2d training-mode batch statistics not implemented;
    # eval-mode (running-stats) normalization semantics are used.
    inv_std = lax.rsqrt(r_var.astype(jnp.float32) + eps)
    scale = gamma.astype(jnp.float32) * inv_std                                   # [O]
    bias = beta.astype(jnp.float32) - r_mean.astype(jnp.float32) * scale          # [O]

    # Output channels padded to 128 (lane-dense stores), tiled in <=256 blocks.
    O_pad = _round_up(O, 128)
    o_blk = O_pad if O_pad <= 256 else 256
    num_ob = O_pad // o_blk

    # Weight laid out [(kh, kw, C), O_pad] so the kernel can do one fused dot.
    w2d = jnp.transpose(w, (2, 3, 1, 0)).reshape(k * k * C, O)
    w2d = jnp.pad(w2d, ((0, 0), (0, O_pad - O))).astype(compute_dtype)
    scale2d = jnp.pad(scale, (0, O_pad - O)).reshape(1, O_pad).astype(jnp.float32)
    bias2d = jnp.pad(bias, (0, O_pad - O)).reshape(1, O_pad).astype(jnp.float32)

    # Row tiling: tile_m = tile_oh*OW ~ target, row starts sublane-aligned, and
    # enough grid steps that both TensorCores get pipelined work.
    tile_oh = max(1, min(OH, max(1, target_tile_m // max(OW, 1))))
    if tile_oh >= 8:
        tile_oh -= tile_oh % 8
    while (N * num_ob * _cdiv(OH, tile_oh) < 8 and tile_oh > 8
           and (tile_oh // 2) * OW >= 256):
        tile_oh //= 2
    num_t = _cdiv(OH, tile_oh)
    OH_pad = num_t * tile_oh

    # NCHW -> NHWC, zero-pad spatially (+ extra rows for padded output tiles), bf16.
    H_alloc = max(H + 2 * padding, (OH_pad - 1) * stride + k)
    W_pad = W + 2 * padding
    x_nhwc = jnp.transpose(x, (0, 2, 3, 1))
    x_nhwc = jnp.pad(
        x_nhwc,
        ((0, 0), (padding, H_alloc - H - padding), (padding, padding), (0, 0)),
    ).astype(compute_dtype)

    vmem_limit = _vmem_limit_bytes()

    def _call(fuse_taps, single_buffer_consts):
        kern = functools.partial(
            _conv_bn_relu_kernel, k=k, stride=stride, tile_oh=tile_oh, ow=OW,
            c=C, fuse_taps=fuse_taps, apply_relu=relu)
        scratch = ([] if fuse_taps
                   else [pltpu.VMEM((tile_oh * OW, o_blk), jnp.float32)])

        def const_spec(shape, imap):
            if single_buffer_consts:
                # Grid-invariant blocks: no point double-buffering them.
                return pl.BlockSpec(shape, imap, pipeline_mode=pl.Buffered(1))
            return pl.BlockSpec(shape, imap)

        return pl.pallas_call(
            kern,
            out_shape=jax.ShapeDtypeStruct((N, OH_pad, OW, O_pad), out_dtype),
            grid_spec=pltpu.PrefetchScalarGridSpec(
                num_scalar_prefetch=0,
                # t innermost so the image (per n) and weight (per ob) blocks
                # stay resident across row tiles.
                grid=(N, num_ob, num_t),
                in_specs=[
                    # TODO(synk): halo-tile input rows (overlapping windows) for
                    # very large feature maps instead of whole-image residency.
                    pl.BlockSpec((None, H_alloc, W_pad, C),
                                 lambda n, ob, t: (n, 0, 0, 0)),
                    const_spec((k * k * C, o_blk), lambda n, ob, t: (0, ob)),
                    const_spec((1, o_blk), lambda n, ob, t: (0, ob)),
                    const_spec((1, o_blk), lambda n, ob, t: (0, ob)),
                ],
                out_specs=pl.BlockSpec((None, tile_oh, OW, o_blk),
                                       lambda n, ob, t: (n, t, 0, ob)),
                scratch_shapes=scratch),
            compiler_params=pltpu.CompilerParams(
                dimension_semantics=("parallel", "parallel", "parallel"),
                vmem_limit_bytes=vmem_limit),
        )(x_nhwc, w2d, scale2d, bias2d)

    # Preferred config first; fall back (e.g. if pipeline_mode / fused concat is
    # unsupported by the installed JAX) so the kernel always runs.
    attempts = []
    for cfg in ((C < 256, num_ob == 1), (C < 256, False), (False, False)):
        if cfg not in attempts:
            attempts.append(cfg)
    out_pad, last_err = None, None
    for fuse_taps, single_buf in attempts:
        try:
            out_pad = _call(fuse_taps, single_buf)
            break
        except Exception as e:   # version / lowering fallback
            last_err = e
    if out_pad is None:
        raise last_err

    out = out_pad[:, :OH, :, :O]                 # drop OH / O padding
    return jnp.transpose(out, (0, 3, 1, 2))      # back to NCHW (PyTorch layout)


def reference(x, params, member_id, *, stride, padding, relu=True, eps=1e-5):
    # Pure-JAX reference mirroring PyTorch SConv2d -> SBatchNorm2d(eval) -> ReLU.
    bank, coeffs = params["bank"], params["coeffs"]
    w = jnp.einsum("t,tocij->ocij", coeffs[member_id], bank)
    out = lax.conv_general_dilated(
        x, w, (stride, stride), [(padding, padding), (padding, padding)],
        dimension_numbers=("NCHW", "OIHW", "NCHW"))
    g = params["gamma"][member_id][None, :, None, None]
    b = params["beta"][member_id][None, :, None, None]
    m = params["running_mean"][member_id][None, :, None, None]
    v = params["running_var"][member_id][None, :, None, None]
    out = (out - m) * lax.rsqrt(v + eps) * g + b
    if relu:
        out = jnp.maximum(out, 0.0)
    return out


if __name__ == "__main__":
    key = jax.random.PRNGKey(0)
    N, C, H, W = 2, 4, 16, 16            # batch, in_planes, spatial
    O, k, stride, padding = 8, 3, 1, 1   # out_planes, kernel_size, stride, padding
    T, num_members = 4, 3                # bank templates, ensemble members
    member_id = 1

    keys = jax.random.split(key, 7)
    x = jax.random.normal(keys[0], (N, C, H, W), jnp.float32)
    params = {
        "bank": 0.1 * jax.random.normal(keys[1], (T, O, C, k, k), jnp.float32),
        "coeffs": jax.random.normal(keys[2], (num_members, T), jnp.float32),
        "gamma": 1.0 + 0.1 * jax.random.normal(keys[3], (num_members, O), jnp.float32),
        "beta": 0.1 * jax.random.normal(keys[4], (num_members, O), jnp.float32),
        "running_mean": 0.1 * jax.random.normal(keys[5], (num_members, O), jnp.float32),
        "running_var": jnp.abs(jax.random.normal(keys[6], (num_members, O), jnp.float32)) + 0.5,
    }

    out = conv_bn_relu(x, params, member_id, stride=stride, padding=padding, relu=True)
    out = jax.block_until_ready(out)

    ref = reference(x, params, member_id, stride=stride, padding=padding, relu=True)
    assert out.shape == (N, O, H, W), out.shape
    err = float(jnp.max(jnp.abs(out - ref)))
    # bf16 MXU inputs (f32 accumulation, f32 BN epilogue) -> loose tolerance.
    assert jnp.allclose(out, ref, atol=5e-2, rtol=5e-2), err
    print("KERNEL_OK")
</pallas_src>

<mosaic_0001>
module attributes {stable_mosaic.version = 11 : i64} {
  func.func @_conv_bn_relu_kernel(%arg0: i32, %arg1: i32, %arg2: i32, %arg3: memref<1x18x18x4xbf16, #tpu.memory_space<vmem>>, %arg4: memref<36x128xbf16, #tpu.memory_space<vmem>>, %arg5: memref<1x128xf32, #tpu.memory_space<vmem>>, %arg6: memref<1x128xf32, #tpu.memory_space<vmem>>, %arg7: memref<1x16x16x128xf32, #tpu.memory_space<vmem>>) attributes {dimension_semantics = [#tpu.dimension_semantics<parallel>, #tpu.dimension_semantics<parallel>, #tpu.dimension_semantics<parallel>], iteration_bounds = array<i64: 2, 1, 1>, scalar_prefetch = 0 : i64, scratch_operands = 0 : i64, tpu.core_type = #tpu.core_type<tc>, window_params = [{transform_indices = @transform_0, window_bounds = array<i64: 1, 18, 18, 4>}, {pipeline_mode = #tpu.pipeline_mode<synchronous>, transform_indices = @transform_1, window_bounds = array<i64: 36, 128>}, {pipeline_mode = #tpu.pipeline_mode<synchronous>, transform_indices = @transform_2, window_bounds = array<i64: 1, 128>}, {pipeline_mode = #tpu.pipeline_mode<synchronous>, transform_indices = @transform_3, window_bounds = array<i64: 1, 128>}, {transform_indices = @transform_4, window_bounds = array<i64: 1, 16, 16, 128>}]} {
    %c16_i32 = arith.constant 16 : i32
    %0 = arith.muli %arg2, %c16_i32 : i32
    %1 = tpu.assume_multiple %0, 8 : i32
    %c0_i32 = arith.constant 0 : i32
    %2 = arith.addi %1, %c0_i32 : i32
    %c0 = arith.constant 0 : index
    %3 = arith.index_cast %2 : i32 to index
    %c0_0 = arith.constant 0 : index
    %c0_1 = arith.constant 0 : index
    %4 = vector.load %arg3[%c0, %3, %c0_0, %c0_1] : memref<1x18x18x4xbf16, #tpu.memory_space<vmem>>, vector<1x16x16x4xbf16>
    %5 = vector.shape_cast %4 : vector<1x16x16x4xbf16> to vector<16x16x4xbf16>
    %c0_i32_2 = arith.constant 0 : i32
    %6 = arith.addi %1, %c0_i32_2 : i32
    %c0_3 = arith.constant 0 : index
    %7 = arith.index_cast %6 : i32 to index
    %c1 = arith.constant 1 : index
    %c0_4 = arith.constant 0 : index
    %8 = vector.load %arg3[%c0_3, %7, %c1, %c0_4] : memref<1x18x18x4xbf16, #tpu.memory_space<vmem>>, vector<1x16x16x4xbf16>
    %9 = vector.shape_cast %8 : vector<1x16x16x4xbf16> to vector<16x16x4xbf16>
    %c0_i32_5 = arith.constant 0 : i32
    %10 = arith.addi %1, %c0_i32_5 : i32
    %c0_6 = arith.constant 0 : index
    %11 = arith.index_cast %10 : i32 to index
    %c2 = arith.constant 2 : index
    %c0_7 = arith.constant 0 : index
    %12 = vector.load %arg3[%c0_6, %11, %c2, %c0_7] : memref<1x18x18x4xbf16, #tpu.memory_space<vmem>>, vector<1x16x16x4xbf16>
    %13 = vector.shape_cast %12 : vector<1x16x16x4xbf16> to vector<16x16x4xbf16>
    %c1_i32 = arith.constant 1 : i32
    %14 = arith.addi %1, %c1_i32 : i32
    %c0_8 = arith.constant 0 : index
    %15 = arith.index_cast %14 : i32 to index
    %c0_9 = arith.constant 0 : index
    %c0_10 = arith.constant 0 : index
    %16 = vector.load %arg3[%c0_8, %15, %c0_9, %c0_10] : memref<1x18x18x4xbf16, #tpu.memory_space<vmem>>, vector<1x16x16x4xbf16>
    %17 = vector.shape_cast %16 : vector<1x16x16x4xbf16> to vector<16x16x4xbf16>
    %c1_i32_11 = arith.constant 1 : i32
    %18 = arith.addi %1, %c1_i32_11 : i32
    %c0_12 = arith.constant 0 : index
    %19 = arith.index_cast %18 : i32 to index
    %c1_13 = arith.constant 1 : index
    %c0_14 = arith.constant 0 : index
    %20 = vector.load %arg3[%c0_12, %19, %c1_13, %c0_14] : memref<1x18x18x4xbf16, #tpu.memory_space<vmem>>, vector<1x16x16x4xbf16>
    %21 = vector.shape_cast %20 : vector<1x16x16x4xbf16> to vector<16x16x4xbf16>
    %c1_i32_15 = arith.constant 1 : i32
    %22 = arith.addi %1, %c1_i32_15 : i32
    %c0_16 = arith.constant 0 : index
    %23 = arith.index_cast %22 : i32 to index
    %c2_17 = arith.constant 2 : index
    %c0_18 = arith.constant 0 : index
    %24 = vector.load %arg3[%c0_16, %23, %c2_17, %c0_18] : memref<1x18x18x4xbf16, #tpu.memory_space<vmem>>, vector<1x16x16x4xbf16>
    %25 = vector.shape_cast %24 : vector<1x16x16x4xbf16> to vector<16x16x4xbf16>
    %c2_i32 = arith.constant 2 : i32
    %26 = arith.addi %1, %c2_i32 : i32
    %c0_19 = arith.constant 0 : index
    %27 = arith.index_cast %26 : i32 to index
    %c0_20 = arith.constant 0 : index
    %c0_21 = arith.constant 0 : index
    %28 = vector.load %arg3[%c0_19, %27, %c0_20, %c0_21] : memref<1x18x18x4xbf16, #tpu.memory_space<vmem>>, vector<1x16x16x4xbf16>
    %29 = vector.shape_cast %28 : vector<1x16x16x4xbf16> to vector<16x16x4xbf16>
    %c2_i32_22 = arith.constant 2 : i32
    %30 = arith.addi %1, %c2_i32_22 : i32
    %c0_23 = arith.constant 0 : index
    %31 = arith.index_cast %30 : i32 to index
    %c1_24 = arith.constant 1 : index
    %c0_25 = arith.constant 0 : index
    %32 = vector.load %arg3[%c0_23, %31, %c1_24, %c0_25] : memref<1x18x18x4xbf16, #tpu.memory_space<vmem>>, vector<1x16x16x4xbf16>
    %33 = vector.shape_cast %32 : vector<1x16x16x4xbf16> to vector<16x16x4xbf16>
    %c2_i32_26 = arith.constant 2 : i32
    %34 = arith.addi %1, %c2_i32_26 : i32
    %c0_27 = arith.constant 0 : index
    %35 = arith.index_cast %34 : i32 to index
    %c2_28 = arith.constant 2 : index
    %c0_29 = arith.constant 0 : index
    %36 = vector.load %arg3[%c0_27, %35, %c2_28, %c0_29] : memref<1x18x18x4xbf16, #tpu.memory_space<vmem>>, vector<1x16x16x4xbf16>
    %37 = vector.shape_cast %36 : vector<1x16x16x4xbf16> to vector<16x16x4xbf16>
    %38 = tpu.concatenate %5, %9, %13, %17, %21, %25, %29, %33, %37 in 2 : vector<16x16x4xbf16>, vector<16x16x4xbf16>, vector<16x16x4xbf16>, vector<16x16x4xbf16>, vector<16x16x4xbf16>, vector<16x16x4xbf16>, vector<16x16x4xbf16>, vector<16x16x4xbf16>, vector<16x16x4xbf16> -> vector<16x16x36xbf16>
    %39 = vector.shape_cast %38 : vector<16x16x36xbf16> to vector<256x36xbf16>
    %c0_30 = arith.constant 0 : index
    %c0_31 = arith.constant 0 : index
    %40 = vector.load %arg4[%c0_30, %c0_31] : memref<36x128xbf16, #tpu.memory_space<vmem>>, vector<36x128xbf16>
    %cst = arith.constant dense<0.000000e+00> : vector<256x128xf32>
    %41 = tpu.matmul %39, %40, %cst {dimension_numbers = #tpu.dot_dimension_numbers<[1], [0], [0], [1], [0, 0, 1, 1], [], []>} : vector<256x36xbf16>, vector<36x128xbf16>, vector<256x128xf32> -> vector<256x128xf32>
    %c0_32 = arith.constant 0 : index
    %c0_33 = arith.constant 0 : index
    %42 = vector.load %arg5[%c0_32, %c0_33] : memref<1x128xf32, #tpu.memory_space<vmem>>, vector<1x128xf32>
    %43 = vector.broadcast %42 : vector<1x128xf32> to vector<256x128xf32>
    %44 = arith.mulf %41, %43 : vector<256x128xf32>
    %c0_34 = arith.constant 0 : index
    %c0_35 = arith.constant 0 : index
    %45 = vector.load %arg6[%c0_34, %c0_35] : memref<1x128xf32, #tpu.memory_space<vmem>>, vector<1x128xf32>
    %46 = vector.broadcast %45 : vector<1x128xf32> to vector<256x128xf32>
    %47 = arith.addf %44, %46 : vector<256x128xf32>
    %cst_36 = arith.constant 0.000000e+00 : f32
    %48 = vector.broadcast %cst_36 : f32 to vector<256x128xf32>
    %49 = arith.maximumf %47, %48 : vector<256x128xf32>
    %50 = vector.shape_cast %49 : vector<256x128xf32> to vector<16x16x128xf32>
    %c0_37 = arith.constant 0 : index
    %c0_38 = arith.constant 0 : index
    %c0_39 = arith.constant 0 : index
    %c0_40 = arith.constant 0 : index
    %51 = vector.load %arg7[%c0_37, %c0_38, %c0_39, %c0_40] : memref<1x16x16x128xf32, #tpu.memory_space<vmem>>, vector<1x16x16x128xf32>
    %52 = vector.shape_cast %51 : vector<1x16x16x128xf32> to vector<16x16x128xf32>
    %53 = vector.shape_cast %50 : vector<16x16x128xf32> to vector<1x16x16x128xf32>
    tpu.vector_store %arg7[%c0_37, %c0_38, %c0_39, %c0_40], %53 {strides = array<i32>} : memref<1x16x16x128xf32, #tpu.memory_space<vmem>>, vector<1x16x16x128xf32>,
    return
  }
  func.func @transform_0(%arg0: i32, %arg1: i32, %arg2: i32) -> (i32, i32, i32, i32) {
    %c0_i32 = arith.constant 0 : i32
    %c0_i32_0 = arith.constant 0 : i32
    %c0_i32_1 = arith.constant 0 : i32
    %c0_i32_2 = arith.constant 0 : i32
    return %arg0, %c0_i32, %c0_i32_0, %c0_i32_1 : i32, i32, i32, i32
  }
  func.func @transform_1(%arg0: i32, %arg1: i32, %arg2: i32) -> (i32, i32) {
    %c0_i32 = arith.constant 0 : i32
    %c0_i32_0 = arith.constant 0 : i32
    return %c0_i32, %arg1 : i32, i32
  }
  func.func @transform_2(%arg0: i32, %arg1: i32, %arg2: i32) -> (i32, i32) {
    %c0_i32 = arith.constant 0 : i32
    %c0_i32_0 = arith.constant 0 : i32
    return %c0_i32, %arg1 : i32, i32
  }
  func.func @transform_3(%arg0: i32, %arg1: i32, %arg2: i32) -> (i32, i32) {
    %c0_i32 = arith.constant 0 : i32
    %c0_i32_0 = arith.constant 0 : i32
    return %c0_i32, %arg1 : i32, i32
  }
  func.func @transform_4(%arg0: i32, %arg1: i32, %arg2: i32) -> (i32, i32, i32, i32) {
    %c0_i32 = arith.constant 0 : i32
    %c0_i32_0 = arith.constant 0 : i32
    return %arg0, %arg2, %c0_i32, %arg1 : i32, i32, i32, i32
  }
}

module attributes {stable_mosaic.version = 11 : i64} {
  func.func @_conv_bn_relu_kernel(%arg0: i32, %arg1: i32, %arg2: i32, %arg3: memref<1x18x18x4xbf16, #tpu.memory_space<vmem>>, %arg4: memref<36x128xbf16, #tpu.memory_space<vmem>>, %arg5: memref<1x128xf32, #tpu.memory_space<vmem>>, %arg6: memref<1x128xf32, #tpu.memory_space<vmem>>, %arg7: memref<1x16x16x128xf32, #tpu.memory_space<vmem>>) attributes {dimension_semantics = [#tpu.dimension_semantics<parallel>, #tpu.dimension_semantics<parallel>, #tpu.dimension_semantics<parallel>], iteration_bounds = array<i64: 2, 1, 1>, scalar_prefetch = 0 : i64, scratch_operands = 0 : i64, tpu.core_type = #tpu.core_type<tc>, window_params = [{transform_indices = @transform_0, window_bounds = array<i64: 1, 18, 18, 4>}, {transform_indices = @transform_1, window_bounds = array<i64: 36, 128>}, {transform_indices = @transform_2, window_bounds = array<i64: 1, 128>}, {transform_indices = @transform_3, window_bounds = array<i64: 1, 128>}, {transform_indices = @transform_4, window_bounds = array<i64: 1, 16, 16, 128>}]} {
    %c16_i32 = arith.constant 16 : i32
    %0 = arith.muli %arg2, %c16_i32 : i32
    %1 = tpu.assume_multiple %0, 8 : i32
    %c0_i32 = arith.constant 0 : i32
    %2 = arith.addi %1, %c0_i32 : i32
    %c0 = arith.constant 0 : index
    %3 = arith.index_cast %2 : i32 to index
    %c0_0 = arith.constant 0 : index
    %c0_1 = arith.constant 0 : index
    %4 = vector.load %arg3[%c0, %3, %c0_0, %c0_1] : memref<1x18x18x4xbf16, #tpu.memory_space<vmem>>, vector<1x16x16x4xbf16>
    %5 = vector.shape_cast %4 : vector<1x16x16x4xbf16> to vector<16x16x4xbf16>
    %c0_i32_2 = arith.constant 0 : i32
    %6 = arith.addi %1, %c0_i32_2 : i32
    %c0_3 = arith.constant 0 : index
    %7 = arith.index_cast %6 : i32 to index
    %c1 = arith.constant 1 : index
    %c0_4 = arith.constant 0 : index
    %8 = vector.load %arg3[%c0_3, %7, %c1, %c0_4] : memref<1x18x18x4xbf16, #tpu.memory_space<vmem>>, vector<1x16x16x4xbf16>
    %9 = vector.shape_cast %8 : vector<1x16x16x4xbf16> to vector<16x16x4xbf16>
    %c0_i32_5 = arith.constant 0 : i32
    %10 = arith.addi %1, %c0_i32_5 : i32
    %c0_6 = arith.constant 0 : index
    %11 = arith.index_cast %10 : i32 to index
    %c2 = arith.constant 2 : index
    %c0_7 = arith.constant 0 : index
    %12 = vector.load %arg3[%c0_6, %11, %c2, %c0_7] : memref<1x18x18x4xbf16, #tpu.memory_space<vmem>>, vector<1x16x16x4xbf16>
    %13 = vector.shape_cast %12 : vector<1x16x16x4xbf16> to vector<16x16x4xbf16>
    %c1_i32 = arith.constant 1 : i32
    %14 = arith.addi %1, %c1_i32 : i32
    %c0_8 = arith.constant 0 : index
    %15 = arith.index_cast %14 : i32 to index
    %c0_9 = arith.constant 0 : index
    %c0_10 = arith.constant 0 : index
    %16 = vector.load %arg3[%c0_8, %15, %c0_9, %c0_10] : memref<1x18x18x4xbf16, #tpu.memory_space<vmem>>, vector<1x16x16x4xbf16>
    %17 = vector.shape_cast %16 : vector<1x16x16x4xbf16> to vector<16x16x4xbf16>
    %c1_i32_11 = arith.constant 1 : i32
    %18 = arith.addi %1, %c1_i32_11 : i32
    %c0_12 = arith.constant 0 : index
    %19 = arith.index_cast %18 : i32 to index
    %c1_13 = arith.constant 1 : index
    %c0_14 = arith.constant 0 : index
    %20 = vector.load %arg3[%c0_12, %19, %c1_13, %c0_14] : memref<1x18x18x4xbf16, #tpu.memory_space<vmem>>, vector<1x16x16x4xbf16>
    %21 = vector.shape_cast %20 : vector<1x16x16x4xbf16> to vector<16x16x4xbf16>
    %c1_i32_15 = arith.constant 1 : i32
    %22 = arith.addi %1, %c1_i32_15 : i32
    %c0_16 = arith.constant 0 : index
    %23 = arith.index_cast %22 : i32 to index
    %c2_17 = arith.constant 2 : index
    %c0_18 = arith.constant 0 : index
    %24 = vector.load %arg3[%c0_16, %23, %c2_17, %c0_18] : memref<1x18x18x4xbf16, #tpu.memory_space<vmem>>, vector<1x16x16x4xbf16>
    %25 = vector.shape_cast %24 : vector<1x16x16x4xbf16> to vector<16x16x4xbf16>
    %c2_i32 = arith.constant 2 : i32
    %26 = arith.addi %1, %c2_i32 : i32
    %c0_19 = arith.constant 0 : index
    %27 = arith.index_cast %26 : i32 to index
    %c0_20 = arith.constant 0 : index
    %c0_21 = arith.constant 0 : index
    %28 = vector.load %arg3[%c0_19, %27, %c0_20, %c0_21] : memref<1x18x18x4xbf16, #tpu.memory_space<vmem>>, vector<1x16x16x4xbf16>
    %29 = vector.shape_cast %28 : vector<1x16x16x4xbf16> to vector<16x16x4xbf16>
    %c2_i32_22 = arith.constant 2 : i32
    %30 = arith.addi %1, %c2_i32_22 : i32
    %c0_23 = arith.constant 0 : index
    %31 = arith.index_cast %30 : i32 to index
    %c1_24 = arith.constant 1 : index
    %c0_25 = arith.constant 0 : index
    %32 = vector.load %arg3[%c0_23, %31, %c1_24, %c0_25] : memref<1x18x18x4xbf16, #tpu.memory_space<vmem>>, vector<1x16x16x4xbf16>
    %33 = vector.shape_cast %32 : vector<1x16x16x4xbf16> to vector<16x16x4xbf16>
    %c2_i32_26 = arith.constant 2 : i32
    %34 = arith.addi %1, %c2_i32_26 : i32
    %c0_27 = arith.constant 0 : index
    %35 = arith.index_cast %34 : i32 to index
    %c2_28 = arith.constant 2 : index
    %c0_29 = arith.constant 0 : index
    %36 = vector.load %arg3[%c0_27, %35, %c2_28, %c0_29] : memref<1x18x18x4xbf16, #tpu.memory_space<vmem>>, vector<1x16x16x4xbf16>
    %37 = vector.shape_cast %36 : vector<1x16x16x4xbf16> to vector<16x16x4xbf16>
    %38 = tpu.concatenate %5, %9, %13, %17, %21, %25, %29, %33, %37 in 2 : vector<16x16x4xbf16>, vector<16x16x4xbf16>, vector<16x16x4xbf16>, vector<16x16x4xbf16>, vector<16x16x4xbf16>, vector<16x16x4xbf16>, vector<16x16x4xbf16>, vector<16x16x4xbf16>, vector<16x16x4xbf16> -> vector<16x16x36xbf16>
    %39 = vector.shape_cast %38 : vector<16x16x36xbf16> to vector<256x36xbf16>
    %c0_30 = arith.constant 0 : index
    %c0_31 = arith.constant 0 : index
    %40 = vector.load %arg4[%c0_30, %c0_31] : memref<36x128xbf16, #tpu.memory_space<vmem>>, vector<36x128xbf16>
    %cst = arith.constant dense<0.000000e+00> : vector<256x128xf32>
    %41 = tpu.matmul %39, %40, %cst {dimension_numbers = #tpu.dot_dimension_numbers<[1], [0], [0], [1], [0, 0, 1, 1], [], []>} : vector<256x36xbf16>, vector<36x128xbf16>, vector<256x128xf32> -> vector<256x128xf32>
    %c0_32 = arith.constant 0 : index
    %c0_33 = arith.constant 0 : index
    %42 = vector.load %arg5[%c0_32, %c0_33] : memref<1x128xf32, #tpu.memory_space<vmem>>, vector<1x128xf32>
    %43 = vector.broadcast %42 : vector<1x128xf32> to vector<256x128xf32>
    %44 = arith.mulf %41, %43 : vector<256x128xf32>
    %c0_34 = arith.constant 0 : index
    %c0_35 = arith.constant 0 : index
    %45 = vector.load %arg6[%c0_34, %c0_35] : memref<1x128xf32, #tpu.memory_space<vmem>>, vector<1x128xf32>
    %46 = vector.broadcast %45 : vector<1x128xf32> to vector<256x128xf32>
    %47 = arith.addf %44, %46 : vector<256x128xf32>
    %cst_36 = arith.constant 0.000000e+00 : f32
    %48 = vector.broadcast %cst_36 : f32 to vector<256x128xf32>
    %49 = arith.maximumf %47, %48 : vector<256x128xf32>
    %50 = vector.shape_cast %49 : vector<256x128xf32> to vector<16x16x128xf32>
    %c0_37 = arith.constant 0 : index
    %c0_38 = arith.constant 0 : index
    %c0_39 = arith.constant 0 : index
    %c0_40 = arith.constant 0 : index
    %51 = vector.load %arg7[%c0_37, %c0_38, %c0_39, %c0_40] : memref<1x16x16x128xf32, #tpu.memory_space<vmem>>, vector<1x16x16x128xf32>
    %52 = vector.shape_cast %51 : vector<1x16x16x128xf32> to vector<16x16x128xf32>
    %53 = vector.shape_cast %50 : vector<16x16x128xf32> to vector<1x16x16x128xf32>
    tpu.vector_store %arg7[%c0_37, %c0_38, %c0_39, %c0_40], %53 {strides = array<i32>} : memref<1x16x16x128xf32, #tpu.memory_space<vmem>>, vector<1x16x16x128xf32>,
    return
  }
  func.func @transform_0(%arg0: i32, %arg1: i32, %arg2: i32) -> (i32, i32, i32, i32) {
    %c0_i32 = arith.constant 0 : i32
    %c0_i32_0 = arith.constant 0 : i32
    %c0_i32_1 = arith.constant 0 : i32
    %c0_i32_2 = arith.constant 0 : i32
    return %arg0, %c0_i32, %c0_i32_0, %c0_i32_1 : i32, i32, i32, i32
  }
  func.func @transform_1(%arg0: i32, %arg1: i32, %arg2: i32) -> (i32, i32) {
    %c0_i32 = arith.constant 0 : i32
    %c0_i32_0 = arith.constant 0 : i32
    return %c0_i32, %arg1 : i32, i32
  }
  func.func @transform_2(%arg0: i32, %arg1: i32, %arg2: i32) -> (i32, i32) {
    %c0_i32 = arith.constant 0 : i32
    %c0_i32_0 = arith.constant 0 : i32
    return %c0_i32, %arg1 : i32, i32
  }
  func.func @transform_3(%arg0: i32, %arg1: i32, %arg2: i32) -> (i32, i32) {
    %c0_i32 = arith.constant 0 : i32
    %c0_i32_0 = arith.constant 0 : i32
    return %c0_i32, %arg1 : i32, i32
  }
  func.func @transform_4(%arg0: i32, %arg1: i32, %arg2: i32) -> (i32, i32, i32, i32) {
    %c0_i32 = arith.constant 0 : i32
    %c0_i32_0 = arith.constant 0 : i32
    return %arg0, %arg2, %c0_i32, %arg1 : i32, i32, i32, i32
  }
}

module attributes {stable_mosaic.version = 11 : i64} {
  func.func @_conv_bn_relu_kernel(%arg0: i32, %arg1: i32, %arg2: i32, %arg3: memref<1x18x18x4xbf16, #tpu.memory_space<vmem>>, %arg4: memref<36x128xbf16, #tpu.memory_space<vmem>>, %arg5: memref<1x128xf32, #tpu.memory_space<vmem>>, %arg6: memref<1x128xf32, #tpu.memory_space<vmem>>, %arg7: memref<1x16x16x128xf32, #tpu.memory_space<vmem>>, %arg8: memref<256x128xf32, #tpu.memory_space<vmem>>) attributes {dimension_semantics = [#tpu.dimension_semantics<parallel>, #tpu.dimension_semantics<parallel>, #tpu.dimension_semantics<parallel>], iteration_bounds = array<i64: 2, 1, 1>, scalar_prefetch = 0 : i64, scratch_operands = 1 : i64, tpu.core_type = #tpu.core_type<tc>, window_params = [{transform_indices = @transform_0, window_bounds = array<i64: 1, 18, 18, 4>}, {transform_indices = @transform_1, window_bounds = array<i64: 36, 128>}, {transform_indices = @transform_2, window_bounds = array<i64: 1, 128>}, {transform_indices = @transform_3, window_bounds = array<i64: 1, 128>}, {transform_indices = @transform_4, window_bounds = array<i64: 1, 16, 16, 128>}]} {
    %c16_i32 = arith.constant 16 : i32
    %0 = arith.muli %arg2, %c16_i32 : i32
    %1 = tpu.assume_multiple %0, 8 : i32
    %cst = arith.constant 0.000000e+00 : f32
    %2 = vector.broadcast %cst : f32 to vector<256x128xf32>
    %c0 = arith.constant 0 : index
    %c0_0 = arith.constant 0 : index
    %3 = vector.load %arg8[%c0, %c0_0] : memref<256x128xf32, #tpu.memory_space<vmem>>, vector<256x128xf32>
    tpu.vector_store %arg8[%c0, %c0_0], %2 {strides = array<i32>} : memref<256x128xf32, #tpu.memory_space<vmem>>, vector<256x128xf32>,
    %c0_1 = arith.constant 0 : index
    %c0_2 = arith.constant 0 : index
    %4 = vector.load %arg8[%c0_1, %c0_2] : memref<256x128xf32, #tpu.memory_space<vmem>>, vector<256x128xf32>
    %c0_i32 = arith.constant 0 : i32
    %5 = arith.addi %1, %c0_i32 : i32
    %c0_3 = arith.constant 0 : index
    %6 = arith.index_cast %5 : i32 to index
    %c0_4 = arith.constant 0 : index
    %c0_5 = arith.constant 0 : index
    %7 = vector.load %arg3[%c0_3, %6, %c0_4, %c0_5] : memref<1x18x18x4xbf16, #tpu.memory_space<vmem>>, vector<1x16x16x4xbf16>
    %8 = vector.shape_cast %7 : vector<1x16x16x4xbf16> to vector<16x16x4xbf16>
    %9 = vector.shape_cast %8 : vector<16x16x4xbf16> to vector<256x4xbf16>
    %c0_6 = arith.constant 0 : index
    %c0_7 = arith.constant 0 : index
    %10 = vector.load %arg4[%c0_6, %c0_7] : memref<36x128xbf16, #tpu.memory_space<vmem>>, vector<4x128xbf16>
    %cst_8 = arith.constant dense<0.000000e+00> : vector<256x128xf32>
    %11 = tpu.matmul %9, %10, %cst_8 {dimension_numbers = #tpu.dot_dimension_numbers<[1], [0], [0], [1], [0, 0, 1, 1], [], []>} : vector<256x4xbf16>, vector<4x128xbf16>, vector<256x128xf32> -> vector<256x128xf32>
    %12 = arith.addf %4, %11 : vector<256x128xf32>
    %c0_9 = arith.constant 0 : index
    %c0_10 = arith.constant 0 : index
    %13 = vector.load %arg8[%c0_9, %c0_10] : memref<256x128xf32, #tpu.memory_space<vmem>>, vector<256x128xf32>
    tpu.vector_store %arg8[%c0_9, %c0_10], %12 {strides = array<i32>} : memref<256x128xf32, #tpu.memory_space<vmem>>, vector<256x128xf32>,
    %c0_11 = arith.constant 0 : index
    %c0_12 = arith.constant 0 : index
    %14 = vector.load %arg8[%c0_11, %c0_12] : memref<256x128xf32, #tpu.memory_space<vmem>>, vector<256x128xf32>
    %c0_i32_13 = arith.constant 0 : i32
    %15 = arith.addi %1, %c0_i32_13 : i32
    %c0_14 = arith.constant 0 : index
    %16 = arith.index_cast %15 : i32 to index
    %c1 = arith.constant 1 : index
    %c0_15 = arith.constant 0 : index
    %17 = vector.load %arg3[%c0_14, %16, %c1, %c0_15] : memref<1x18x18x4xbf16, #tpu.memory_space<vmem>>, vector<1x16x16x4xbf16>
    %18 = vector.shape_cast %17 : vector<1x16x16x4xbf16> to vector<16x16x4xbf16>
    %19 = vector.shape_cast %18 : vector<16x16x4xbf16> to vector<256x4xbf16>
    %c4 = arith.constant 4 : index
    %c0_16 = arith.constant 0 : index
    %20 = vector.load %arg4[%c4, %c0_16] : memref<36x128xbf16, #tpu.memory_space<vmem>>, vector<4x128xbf16>
    %cst_17 = arith.constant dense<0.000000e+00> : vector<256x128xf32>
    %21 = tpu.matmul %19, %20, %cst_17 {dimension_numbers = #tpu.dot_dimension_numbers<[1], [0], [0], [1], [0, 0, 1, 1], [], []>} : vector<256x4xbf16>, vector<4x128xbf16>, vector<256x128xf32> -> vector<256x128xf32>
    %22 = arith.addf %14, %21 : vector<256x128xf32>
    %c0_18 = arith.constant 0 : index
    %c0_19 = arith.constant 0 : index
    %23 = vector.load %arg8[%c0_18, %c0_19] : memref<256x128xf32, #tpu.memory_space<vmem>>, vector<256x128xf32>
    tpu.vector_store %arg8[%c0_18, %c0_19], %22 {strides = array<i32>} : memref<256x128xf32, #tpu.memory_space<vmem>>, vector<256x128xf32>,
    %c0_20 = arith.constant 0 : index
    %c0_21 = arith.constant 0 : index
    %24 = vector.load %arg8[%c0_20, %c0_21] : memref<256x128xf32, #tpu.memory_space<vmem>>, vector<256x128xf32>
    %c0_i32_22 = arith.constant 0 : i32
    %25 = arith.addi %1, %c0_i32_22 : i32
    %c0_23 = arith.constant 0 : index
    %26 = arith.index_cast %25 : i32 to index
    %c2 = arith.constant 2 : index
    %c0_24 = arith.constant 0 : index
    %27 = vector.load %arg3[%c0_23, %26, %c2, %c0_24] : memref<1x18x18x4xbf16, #tpu.memory_space<vmem>>, vector<1x16x16x4xbf16>
    %28 = vector.shape_cast %27 : vector<1x16x16x4xbf16> to vector<16x16x4xbf16>
    %29 = vector.shape_cast %28 : vector<16x16x4xbf16> to vector<256x4xbf16>
    %c8 = arith.constant 8 : index
    %c0_25 = arith.constant 0 : index
    %30 = vector.load %arg4[%c8, %c0_25] : memref<36x128xbf16, #tpu.memory_space<vmem>>, vector<4x128xbf16>
    %cst_26 = arith.constant dense<0.000000e+00> : vector<256x128xf32>
    %31 = tpu.matmul %29, %30, %cst_26 {dimension_numbers = #tpu.dot_dimension_numbers<[1], [0], [0], [1], [0, 0, 1, 1], [], []>} : vector<256x4xbf16>, vector<4x128xbf16>, vector<256x128xf32> -> vector<256x128xf32>
    %32 = arith.addf %24, %31 : vector<256x128xf32>
    %c0_27 = arith.constant 0 : index
    %c0_28 = arith.constant 0 : index
    %33 = vector.load %arg8[%c0_27, %c0_28] : memref<256x128xf32, #tpu.memory_space<vmem>>, vector<256x128xf32>
    tpu.vector_store %arg8[%c0_27, %c0_28], %32 {strides = array<i32>} : memref<256x128xf32, #tpu.memory_space<vmem>>, vector<256x128xf32>,
    %c0_29 = arith.constant 0 : index
    %c0_30 = arith.constant 0 : index
    %34 = vector.load %arg8[%c0_29, %c0_30] : memref<256x128xf32, #tpu.memory_space<vmem>>, vector<256x128xf32>
    %c1_i32 = arith.constant 1 : i32
    %35 = arith.addi %1, %c1_i32 : i32
    %c0_31 = arith.constant 0 : index
    %36 = arith.index_cast %35 : i32 to index
    %c0_32 = arith.constant 0 : index
    %c0_33 = arith.constant 0 : index
    %37 = vector.load %arg3[%c0_31, %36, %c0_32, %c0_33] : memref<1x18x18x4xbf16, #tpu.memory_space<vmem>>, vector<1x16x16x4xbf16>
    %38 = vector.shape_cast %37 : vector<1x16x16x4xbf16> to vector<16x16x4xbf16>
    %39 = vector.shape_cast %38 : vector<16x16x4xbf16> to vector<256x4xbf16>
    %c12 = arith.constant 12 : index
    %c0_34 = arith.constant 0 : index
    %40 = vector.load %arg4[%c12, %c0_34] : memref<36x128xbf16, #tpu.memory_space<vmem>>, vector<4x128xbf16>
    %cst_35 = arith.constant dense<0.000000e+00> : vector<256x128xf32>
    %41 = tpu.matmul %39, %40, %cst_35 {dimension_numbers = #tpu.dot_dimension_numbers<[1], [0], [0], [1], [0, 0, 1, 1], [], []>} : vector<256x4xbf16>, vector<4x128xbf16>, vector<256x128xf32> -> vector<256x128xf32>
    %42 = arith.addf %34, %41 : vector<256x128xf32>
    %c0_36 = arith.constant 0 : index
    %c0_37 = arith.constant 0 : index
    %43 = vector.load %arg8[%c0_36, %c0_37] : memref<256x128xf32, #tpu.memory_space<vmem>>, vector<256x128xf32>
    tpu.vector_store %arg8[%c0_36, %c0_37], %42 {strides = array<i32>} : memref<256x128xf32, #tpu.memory_space<vmem>>, vector<256x128xf32>,
    %c0_38 = arith.constant 0 : index
    %c0_39 = arith.constant 0 : index
    %44 = vector.load %arg8[%c0_38, %c0_39] : memref<256x128xf32, #tpu.memory_space<vmem>>, vector<256x128xf32>
    %c1_i32_40 = arith.constant 1 : i32
    %45 = arith.addi %1, %c1_i32_40 : i32
    %c0_41 = arith.constant 0 : index
    %46 = arith.index_cast %45 : i32 to index
    %c1_42 = arith.constant 1 : index
    %c0_43 = arith.constant 0 : index
    %47 = vector.load %arg3[%c0_41, %46, %c1_42, %c0_43] : memref<1x18x18x4xbf16, #tpu.memory_space<vmem>>, vector<1x16x16x4xbf16>
    %48 = vector.shape_cast %47 : vector<1x16x16x4xbf16> to vector<16x16x4xbf16>
    %49 = vector.shape_cast %48 : vector<16x16x4xbf16> to vector<256x4xbf16>
    %c16 = arith.constant 16 : index
    %c0_44 = arith.constant 0 : index
    %50 = vector.load %arg4[%c16, %c0_44] : memref<36x128xbf16, #tpu.memory_space<vmem>>, vector<4x128xbf16>
    %cst_45 = arith.constant dense<0.000000e+00> : vector<256x128xf32>
    %51 = tpu.matmul %49, %50, %cst_45 {dimension_numbers = #tpu.dot_dimension_numbers<[1], [0], [0], [1], [0, 0, 1, 1], [], []>} : vector<256x4xbf16>, vector<4x128xbf16>, vector<256x128xf32> -> vector<256x128xf32>
    %52 = arith.addf %44, %51 : vector<256x128xf32>
    %c0_46 = arith.constant 0 : index
    %c0_47 = arith.constant 0 : index
    %53 = vector.load %arg8[%c0_46, %c0_47] : memref<256x128xf32, #tpu.memory_space<vmem>>, vector<256x128xf32>
    tpu.vector_store %arg8[%c0_46, %c0_47], %52 {strides = array<i32>} : memref<256x128xf32, #tpu.memory_space<vmem>>, vector<256x128xf32>,
    %c0_48 = arith.constant 0 : index
    %c0_49 = arith.constant 0 : index
    %54 = vector.load %arg8[%c0_48, %c0_49] : memref<256x128xf32, #tpu.memory_space<vmem>>, vector<256x128xf32>
    %c1_i32_50 = arith.constant 1 : i32
    %55 = arith.addi %1, %c1_i32_50 : i32
    %c0_51 = arith.constant 0 : index
    %56 = arith.index_cast %55 : i32 to index
    %c2_52 = arith.constant 2 : index
    %c0_53 = arith.constant 0 : index
    %57 = vector.load %arg3[%c0_51, %56, %c2_52, %c0_53] : memref<1x18x18x4xbf16, #tpu.memory_space<vmem>>, vector<1x16x16x4xbf16>
    %58 = vector.shape_cast %57 : vector<1x16x16x4xbf16> to vector<16x16x4xbf16>
    %59 = vector.shape_cast %58 : vector<16x16x4xbf16> to vector<256x4xbf16>
    %c20 = arith.constant 20 : index
    %c0_54 = arith.constant 0 : index
    %60 = vector.load %arg4[%c20, %c0_54] : memref<36x128xbf16, #tpu.memory_space<vmem>>, vector<4x128xbf16>
    %cst_55 = arith.constant dense<0.000000e+00> : vector<256x128xf32>
    %61 = tpu.matmul %59, %60, %cst_55 {dimension_numbers = #tpu.dot_dimension_numbers<[1], [0], [0], [1], [0, 0, 1, 1], [], []>} : vector<256x4xbf16>, vector<4x128xbf16>, vector<256x128xf32> -> vector<256x128xf32>
    %62 = arith.addf %54, %61 : vector<256x128xf32>
    %c0_56 = arith.constant 0 : index
    %c0_57 = arith.constant 0 : index
    %63 = vector.load %arg8[%c0_56, %c0_57] : memref<256x128xf32, #tpu.memory_space<vmem>>, vector<256x128xf32>
    tpu.vector_store %arg8[%c0_56, %c0_57], %62 {strides = array<i32>} : memref<256x128xf32, #tpu.memory_space<vmem>>, vector<256x128xf32>,
    %c0_58 = arith.constant 0 : index
    %c0_59 = arith.constant 0 : index
    %64 = vector.load %arg8[%c0_58, %c0_59] : memref<256x128xf32, #tpu.memory_space<vmem>>, vector<256x128xf32>
    %c2_i32 = arith.constant 2 : i32
    %65 = arith.addi %1, %c2_i32 : i32
    %c0_60 = arith.constant 0 : index
    %66 = arith.index_cast %65 : i32 to index
    %c0_61 = arith.constant 0 : index
    %c0_62 = arith.constant 0 : index
    %67 = vector.load %arg3[%c0_60, %66, %c0_61, %c0_62] : memref<1x18x18x4xbf16, #tpu.memory_space<vmem>>, vector<1x16x16x4xbf16>
    %68 = vector.shape_cast %67 : vector<1x16x16x4xbf16> to vector<16x16x4xbf16>
    %69 = vector.shape_cast %68 : vector<16x16x4xbf16> to vector<256x4xbf16>
    %c24 = arith.constant 24 : index
    %c0_63 = arith.constant 0 : index
    %70 = vector.load %arg4[%c24, %c0_63] : memref<36x128xbf16, #tpu.memory_space<vmem>>, vector<4x128xbf16>
    %cst_64 = arith.constant dense<0.000000e+00> : vector<256x128xf32>
    %71 = tpu.matmul %69, %70, %cst_64 {dimension_numbers = #tpu.dot_dimension_numbers<[1], [0], [0], [1], [0, 0, 1, 1], [], []>} : vector<256x4xbf16>, vector<4x128xbf16>, vector<256x128xf32> -> vector<256x128xf32>
    %72 = arith.addf %64, %71 : vector<256x128xf32>
    %c0_65 = arith.constant 0 : index
    %c0_66 = arith.constant 0 : index
    %73 = vector.load %arg8[%c0_65, %c0_66] : memref<256x128xf32, #tpu.memory_space<vmem>>, vector<256x128xf32>
    tpu.vector_store %arg8[%c0_65, %c0_66], %72 {strides = array<i32>} : memref<256x128xf32, #tpu.memory_space<vmem>>, vector<256x128xf32>,
    %c0_67 = arith.constant 0 : index
    %c0_68 = arith.constant 0 : index
    %74 = vector.load %arg8[%c0_67, %c0_68] : memref<256x128xf32, #tpu.memory_space<vmem>>, vector<256x128xf32>
    %c2_i32_69 = arith.constant 2 : i32
    %75 = arith.addi %1, %c2_i32_69 : i32
    %c0_70 = arith.constant 0 : index
    %76 = arith.index_cast %75 : i32 to index
    %c1_71 = arith.constant 1 : index
    %c0_72 = arith.constant 0 : index
    %77 = vector.load %arg3[%c0_70, %76, %c1_71, %c0_72] : memref<1x18x18x4xbf16, #tpu.memory_space<vmem>>, vector<1x16x16x4xbf16>
    %78 = vector.shape_cast %77 : vector<1x16x16x4xbf16> to vector<16x16x4xbf16>
    %79 = vector.shape_cast %78 : vector<16x16x4xbf16> to vector<256x4xbf16>
    %c28 = arith.constant 28 : index
    %c0_73 = arith.constant 0 : index
    %80 = vector.load %arg4[%c28, %c0_73] : memref<36x128xbf16, #tpu.memory_space<vmem>>, vector<4x128xbf16>
    %cst_74 = arith.constant dense<0.000000e+00> : vector<256x128xf32>
    %81 = tpu.matmul %79, %80, %cst_74 {dimension_numbers = #tpu.dot_dimension_numbers<[1], [0], [0], [1], [0, 0, 1, 1], [], []>} : vector<256x4xbf16>, vector<4x128xbf16>, vector<256x128xf32> -> vector<256x128xf32>
    %82 = arith.addf %74, %81 : vector<256x128xf32>
    %c0_75 = arith.constant 0 : index
    %c0_76 = arith.constant 0 : index
    %83 = vector.load %arg8[%c0_75, %c0_76] : memref<256x128xf32, #tpu.memory_space<vmem>>, vector<256x128xf32>
    tpu.vector_store %arg8[%c0_75, %c0_76], %82 {strides = array<i32>} : memref<256x128xf32, #tpu.memory_space<vmem>>, vector<256x128xf32>,
    %c0_77 = arith.constant 0 : index
    %c0_78 = arith.constant 0 : index
    %84 = vector.load %arg8[%c0_77, %c0_78] : memref<256x128xf32, #tpu.memory_space<vmem>>, vector<256x128xf32>
    %c2_i32_79 = arith.constant 2 : i32
    %85 = arith.addi %1, %c2_i32_79 : i32
    %c0_80 = arith.constant 0 : index
    %86 = arith.index_cast %85 : i32 to index
    %c2_81 = arith.constant 2 : index
    %c0_82 = arith.constant 0 : index
    %87 = vector.load %arg3[%c0_80, %86, %c2_81, %c0_82] : memref<1x18x18x4xbf16, #tpu.memory_space<vmem>>, vector<1x16x16x4xbf16>
    %88 = vector.shape_cast %87 : vector<1x16x16x4xbf16> to vector<16x16x4xbf16>
    %89 = vector.shape_cast %88 : vector<16x16x4xbf16> to vector<256x4xbf16>
    %c32 = arith.constant 32 : index
    %c0_83 = arith.constant 0 : index
    %90 = vector.load %arg4[%c32, %c0_83] : memref<36x128xbf16, #tpu.memory_space<vmem>>, vector<4x128xbf16>
    %cst_84 = arith.constant dense<0.000000e+00> : vector<256x128xf32>
    %91 = tpu.matmul %89, %90, %cst_84 {dimension_numbers = #tpu.dot_dimension_numbers<[1], [0], [0], [1], [0, 0, 1, 1], [], []>} : vector<256x4xbf16>, vector<4x128xbf16>, vector<256x128xf32> -> vector<256x128xf32>
    %92 = arith.addf %84, %91 : vector<256x128xf32>
    %c0_85 = arith.constant 0 : index
    %c0_86 = arith.constant 0 : index
    %93 = vector.load %arg8[%c0_85, %c0_86] : memref<256x128xf32, #tpu.memory_space<vmem>>, vector<256x128xf32>
    tpu.vector_store %arg8[%c0_85, %c0_86], %92 {strides = array<i32>} : memref<256x128xf32, #tpu.memory_space<vmem>>, vector<256x128xf32>,
    %c0_87 = arith.constant 0 : index
    %c0_88 = arith.constant 0 : index
    %94 = vector.load %arg8[%c0_87, %c0_88] : memref<256x128xf32, #tpu.memory_space<vmem>>, vector<256x128xf32>
    %c0_89 = arith.constant 0 : index
    %c0_90 = arith.constant 0 : index
    %95 = vector.load %arg5[%c0_89, %c0_90] : memref<1x128xf32, #tpu.memory_space<vmem>>, vector<1x128xf32>
    %96 = vector.broadcast %95 : vector<1x128xf32> to vector<256x128xf32>
    %97 = arith.mulf %94, %96 : vector<256x128xf32>
    %c0_91 = arith.constant 0 : index
    %c0_92 = arith.constant 0 : index
    %98 = vector.load %arg6[%c0_91, %c0_92] : memref<1x128xf32, #tpu.memory_space<vmem>>, vector<1x128xf32>
    %99 = vector.broadcast %98 : vector<1x128xf32> to vector<256x128xf32>
    %100 = arith.addf %97, %99 : vector<256x128xf32>
    %cst_93 = arith.constant 0.000000e+00 : f32
    %101 = vector.broadcast %cst_93 : f32 to vector<256x128xf32>
    %102 = arith.maximumf %100, %101 : vector<256x128xf32>
    %103 = vector.shape_cast %102 : vector<256x128xf32> to vector<16x16x128xf32>
    %c0_94 = arith.constant 0 : index
    %c0_95 = arith.constant 0 : index
    %c0_96 = arith.constant 0 : index
    %c0_97 = arith.constant 0 : index
    %104 = vector.load %arg7[%c0_94, %c0_95, %c0_96, %c0_97] : memref<1x16x16x128xf32, #tpu.memory_space<vmem>>, vector<1x16x16x128xf32>
    %105 = vector.shape_cast %104 : vector<1x16x16x128xf32> to vector<16x16x128xf32>
    %106 = vector.shape_cast %103 : vector<16x16x128xf32> to vector<1x16x16x128xf32>
    tpu.vector_store %arg7[%c0_94, %c0_95, %c0_96, %c0_97], %106 {strides = array<i32>} : memref<1x16x16x128xf32, #tpu.memory_space<vmem>>, vector<1x16x16x128xf32>,
    return
  }
  func.func @transform_0(%arg0: i32, %arg1: i32, %arg2: i32) -> (i32, i32, i32, i32) {
    %c0_i32 = arith.constant 0 : i32
    %c0_i32_0 = arith.constant 0 : i32
    %c0_i32_1 = arith.constant 0 : i32
    %c0_i32_2 = arith.constant 0 : i32
    return %arg0, %c0_i32, %c0_i32_0, %c0_i32_1 : i32, i32, i32, i32
  }
  func.func @transform_1(%arg0: i32, %arg1: i32, %arg2: i32) -> (i32, i32) {
    %c0_i32 = arith.constant 0 : i32
    %c0_i32_0 = arith.constant 0 : i32
    return %c0_i32, %arg1 : i32, i32
  }
  func.func @transform_2(%arg0: i32, %arg1: i32, %arg2: i32) -> (i32, i32) {
    %c0_i32 = arith.constant 0 : i32
    %c0_i32_0 = arith.constant 0 : i32
    return %c0_i32, %arg1 : i32, i32
  }
  func.func @transform_3(%arg0: i32, %arg1: i32, %arg2: i32) -> (i32, i32) {
    %c0_i32 = arith.constant 0 : i32
    %c0_i32_0 = arith.constant 0 : i32
    return %c0_i32, %arg1 : i32, i32
  }
  func.func @transform_4(%arg0: i32, %arg1: i32, %arg2: i32) -> (i32, i32, i32, i32) {
    %c0_i32 = arith.constant 0 : i32
    %c0_i32_0 = arith.constant 0 : i32
    return %arg0, %arg2, %c0_i32, %arg1 : i32, i32, i32, i32
  }
}

</mosaic_0001>

<llo_original>
// kernel: tpu_custom_call.1
$region0: #{tpu_custom_call.1}
  #allocation0 [shape = 'u32[]', space=smem, size = 0x4, offset = 0x4, fixed_abs, tag = 'smem constant byte address 0x4 - core index']
  #allocation1 [shape = 'u32[144,128]{1,0:T(1,128)}', space=vmem, size = 0x12000, scoped, tag = 'internal scratch']
  %s0 = inlined_call_operand.vmem [shape: bf16[2,18,18,4], index: 0, kind: input, shape index: {}]
  %s1 = inlined_call_operand.vmem [shape: bf16[36,128], index: 1, kind: input, shape index: {}]
  %s2 = inlined_call_operand.vmem [shape: f32[1,128], index: 2, kind: input, shape index: {}]
  %s3 = inlined_call_operand.vmem [shape: f32[1,128], index: 3, kind: input, shape index: {}]
  %s4 = inlined_call_operand.hbm [shape: f32[2,16,16,128], index: 4, kind: output, shape index: {}]
  %s5 = sld [smem:[#allocation0]]
  $region49: #{tpu_custom_call.1} parent=0
    _
  %s7 = ssub.s32 1, %s5
  %s8 = scalar_select 0, %s7, %s5
  $region1: #{tpu_custom_call.1} parent=0
    #allocation2 [shape = 'u8[262144]{0}', space=vmem, size = 0x40000, scoped, tag = 'output window, operand 0']
    #allocation3 [shape = 's32[2]{0}', space=sflag, size = 0x8, scoped, tag = 'scoped memory for tpu_custom_call.1']
    %9 = vsyncpa [#allocation3], 0
    %s10 = scalar_lea.sflag [#allocation3], 1
    %11 = vsyncpa %s10, 0
    loop: start=0, step=1, limit=4
    $region2: #{tpu_custom_call.1} parent=1 // loop_pre_header
      _
    $region3: #{tpu_custom_call.1} parent=1 // loop_header
      %s13 = sphi 0, %s17
      %p14 = scmp.ge.s32.totalorder %s13, 4
      %s20 = sphi 0, %s39
      %s21 = sphi 0, %s35
      %s22 = sphi 0, %s31
      %s23 = sphi 0, %s20
      %s24 = sphi 0, %s21
      %s25 = sphi 0, %s22
      %s26 = sphi 0, %s23
      %s27 = sphi 0, %s24
      %s28 = sphi 0, %s25
      %s42 = sphi 0, %s44
      %s45 = sphi 0, %s42
      %s46 = sphi 0, %s45
      %s62 = sphi 0, %s46
      %s68 = sphi 0, %s70
      %s71 = sphi 0, %s68
      %s72 = sphi 0, %s71
      %s88 = sphi 0, %s72
      %s94 = sphi 0, %s96
      %s97 = sphi 0, %s94
      %s98 = sphi 0, %s97
      %s114 = sphi 0, %s98
      %s120 = sphi 0, %s122
      %s123 = sphi 0, %s120
      %s124 = sphi 0, %s123
      %s140 = sphi 0, %s124
      %s150 = sphi 0, %s152
      %s153 = sphi 0, %s150
      %s154 = sphi 0, %s153
      %s170 = sphi 0, %s154
    $region4: #{tpu_custom_call.1} parent=1 // loop_header_branch
      %16 = sbr.rel (%p14) target = $region8
    $region5: #{tpu_custom_call.1} parent=1 // loop_body
      %s18 = ssub.s32 %s13, 1
      %s19 = ssub.s32 %s13, 2
      %s29 = sadd.s32 1, %s22
      %p30 = scmp.ge.s32.totalorder %s29, 1
      %s31 = scalar_select %p30, 0, %s29
      %s32 = sadd.s32 1, %s21
      %s33 = scalar_select %p30, %s32, %s21
      %p34 = scmp.ge.s32.totalorder %s33, 1
      %s35 = scalar_select %p34, 0, %s33
      %s36 = sadd.s32 1, %s20
      %s37 = scalar_select %p34, %s36, %s20
      %p38 = scmp.ge.s32.totalorder %s37, 2
      %s39 = scalar_select %p38, 0, %s37
      %s40 = ssub.s32 %s20, %s39
      %p41 = scmp.eq.s32.totalorder %s40, 0
      %s43 = sadd.s32 %s42, 1
      %s44 = scalar_select %p41, %s42, %s43
      %p47 = pneg %p41
      %p48 = scmp.eq.s32.totalorder %s13, 1
      %p49 = por %p47, %p48
      %p50 = scmp.ne.s32.totalorder %s42, %s45
      %p51 = scmp.eq.s32.totalorder %s13, 0
      %p52 = por %p50, %p51
      %p53 = scmp.ne.s32.totalorder %s42, %s45
      %p54 = scmp.eq.s32.totalorder %s18, 1
      %p55 = por %p53, %p54
      %p56 = scmp.ne.s32.totalorder %s45, %s46
      %p57 = scmp.eq.s32.totalorder %s18, 0
      %p58 = por %p56, %p57
      %p59 = scmp.ne.s32.totalorder %s45, %s46
      %p60 = scmp.eq.s32.totalorder %s19, 1
      %p61 = por %p59, %p60
      %p63 = scmp.ne.s32.totalorder %s46, %s62
      %p64 = scmp.eq.s32.totalorder %s19, 0
      %p65 = por %p63, %p64
      %s66 = ssub.s32 %s21, %s35
      %p67 = scmp.eq.s32.totalorder %s66, 0
      %s69 = sadd.s32 %s68, 1
      %s70 = scalar_select %p67, %s68, %s69
      %p73 = pneg %p67
      %p74 = scmp.eq.s32.totalorder %s13, 1
      %p75 = por %p73, %p74
      %p76 = scmp.ne.s32.totalorder %s68, %s71
      %p77 = scmp.eq.s32.totalorder %s13, 0
      %p78 = por %p76, %p77
      %p79 = scmp.ne.s32.totalorder %s68, %s71
      %p80 = scmp.eq.s32.totalorder %s18, 1
      %p81 = por %p79, %p80
      %p82 = scmp.ne.s32.totalorder %s71, %s72
      %p83 = scmp.eq.s32.totalorder %s18, 0
      %p84 = por %p82, %p83
      %p85 = scmp.ne.s32.totalorder %s71, %s72
      %p86 = scmp.eq.s32.totalorder %s19, 1
      %p87 = por %p85, %p86
      %p89 = scmp.ne.s32.totalorder %s72, %s88
      %p90 = scmp.eq.s32.totalorder %s19, 0
      %p91 = por %p89, %p90
      %s92 = ssub.s32 %s21, %s35
      %p93 = scmp.eq.s32.totalorder %s92, 0
      %s95 = sadd.s32 %s94, 1
      %s96 = scalar_select %p93, %s94, %s95
      %p99 = pneg %p93
      %p100 = scmp.eq.s32.totalorder %s13, 1
      %p101 = por %p99, %p100
      %p102 = scmp.ne.s32.totalorder %s94, %s97
      %p103 = scmp.eq.s32.totalorder %s13, 0
      %p104 = por %p102, %p103
      %p105 = scmp.ne.s32.totalorder %s94, %s97
      %p106 = scmp.eq.s32.totalorder %s18, 1
      %p107 = por %p105, %p106
      %p108 = scmp.ne.s32.totalorder %s97, %s98
      %p109 = scmp.eq.s32.totalorder %s18, 0
      %p110 = por %p108, %p109
      %p111 = scmp.ne.s32.totalorder %s97, %s98
      %p112 = scmp.eq.s32.totalorder %s19, 1
      %p113 = por %p111, %p112
      %p115 = scmp.ne.s32.totalorder %s98, %s114
      %p116 = scmp.eq.s32.totalorder %s19, 0
      %p117 = por %p115, %p116
      %s118 = ssub.s32 %s21, %s35
      %p119 = scmp.eq.s32.totalorder %s118, 0
      %s121 = sadd.s32 %s120, 1
      %s122 = scalar_select %p119, %s120, %s121
      %p125 = pneg %p119
      %p126 = scmp.eq.s32.totalorder %s13, 1
      %p127 = por %p125, %p126
      %p128 = scmp.ne.s32.totalorder %s120, %s123
      %p129 = scmp.eq.s32.totalorder %s13, 0
      %p130 = por %p128, %p129
      %p131 = scmp.ne.s32.totalorder %s120, %s123
      %p132 = scmp.eq.s32.totalorder %s18, 1
      %p133 = por %p131, %p132
      %p134 = scmp.ne.s32.totalorder %s123, %s124
      %p135 = scmp.eq.s32.totalorder %s18, 0
      %p136 = por %p134, %p135
      %p137 = scmp.ne.s32.totalorder %s123, %s124
      %p138 = scmp.eq.s32.totalorder %s19, 1
      %p139 = por %p137, %p138
      %p141 = scmp.ne.s32.totalorder %s124, %s140
      %p142 = scmp.eq.s32.totalorder %s19, 0
      %p143 = por %p141, %p142
      %s144 = ssub.s32 %s20, %s39
      %s145 = ssub.s32 %s22, %s31
      %s146 = sor.u32 %s144, %s145
      %s147 = ssub.s32 %s21, %s35
      %s148 = sor.u32 %s146, %s147
      %p149 = scmp.eq.s32.totalorder %s148, 0
      %s151 = sadd.s32 %s150, 1
      %s152 = scalar_select %p149, %s150, %s151
      %p155 = pneg %p149
      %p156 = scmp.eq.s32.totalorder %s13, 1
      %p157 = por %p155, %p156
      %p158 = scmp.ne.s32.totalorder %s150, %s153
      %p159 = scmp.eq.s32.totalorder %s13, 0
      %p160 = por %p158, %p159
      %p161 = scmp.ne.s32.totalorder %s150, %s153
      %p162 = scmp.eq.s32.totalorder %s18, 1
      %p163 = por %p161, %p162
      %p164 = scmp.ne.s32.totalorder %s153, %s154
      %p165 = scmp.eq.s32.totalorder %s18, 0
      %p166 = por %p164, %p165
      %p167 = scmp.ne.s32.totalorder %s153, %s154
      %p168 = scmp.eq.s32.totalorder %s19, 1
      %p169 = por %p167, %p168
      %p171 = scmp.ne.s32.totalorder %s154, %s170
      %p172 = scmp.eq.s32.totalorder %s19, 0
      %p173 = por %p171, %p172
      %p174 = scmp.le.s32.totalorder 1, %s13
      %p175 = scmp.lt.s32.totalorder %s13, 3
      %p176 = pnand %p174, %p175
      %p177 = pneg %p176
      // Predicated region
      $region9: #{tpu_custom_call.1} parent=5 // pred_check
        _
      $region10: #{tpu_custom_call.1} parent=5 // pred_check_branch
        %179 = sbr.rel (%p176) target = $region12
      $region11: #{tpu_custom_call.1} parent=5 // pred_region
        %s180 = ssub.s32 %s13, 1
        // Predicated region
        $region13: #{tpu_custom_call.1} parent=11 // pred_check
          %p181 = pneg %p84
        $region14: #{tpu_custom_call.1} parent=11 // pred_check_branch
          %183 = sbr.rel (%p181) target = $region16
        $region15: #{tpu_custom_call.1} parent=11 // pred_region
          %p184 = scmp.lt.s32.totalorder %s24, 0
          %s185 = scalar_select %p184, %s24, 0
          %s186 = smul.addr %s185, 4
          %s187 = scalar_lea.vmem %s1, %s186
        $region16: #{tpu_custom_call.1} parent=11 // pred_fallthru
          _
        // Predicated region
        $region17: #{tpu_custom_call.1} parent=11 // pred_check
          %p188 = pneg %p110
        $region18: #{tpu_custom_call.1} parent=11 // pred_check_branch
          %190 = sbr.rel (%p188) target = $region20
        $region19: #{tpu_custom_call.1} parent=11 // pred_region
          %p191 = scmp.lt.s32.totalorder %s24, 0
          %s192 = scalar_select %p191, %s24, 0
          %s193 = scalar_lea.vmem %s2, %s192
        $region20: #{tpu_custom_call.1} parent=11 // pred_fallthru
          _
        // Predicated region
        $region21: #{tpu_custom_call.1} parent=11 // pred_check
          %p194 = pneg %p136
        $region22: #{tpu_custom_call.1} parent=11 // pred_check_branch
          %196 = sbr.rel (%p194) target = $region24
        $region23: #{tpu_custom_call.1} parent=11 // pred_region
          %p197 = scmp.lt.s32.totalorder %s24, 0
          %s198 = scalar_select %p197, %s24, 0
          %s199 = scalar_lea.vmem %s3, %s198
        $region24: #{tpu_custom_call.1} parent=11 // pred_fallthru
          _
      $region12: #{tpu_custom_call.1} parent=5 // pred_fallthru
        _
      %p200 = scmp.lt.s32.totalorder %s13, 2
      // Predicated region
      $region25: #{tpu_custom_call.1} parent=5 // pred_check
        %p201 = pneg %p200
      $region26: #{tpu_custom_call.1} parent=5 // pred_check_branch
        %203 = sbr.rel (%p201) target = $region28
      $region27: #{tpu_custom_call.1} parent=5 // pred_region
        // Predicated region
        $region29: #{tpu_custom_call.1} parent=27 // pred_check
          %p204 = pneg %p52
        $region30: #{tpu_custom_call.1} parent=27 // pred_check_branch
          %206 = sbr.rel (%p204) target = $region32
        $region31: #{tpu_custom_call.1} parent=27 // pred_region
          %p207 = scmp.lt.s32.totalorder %s20, 1
          %s208 = scalar_select %p207, %s20, 1
          %s209 = smul.addr %s208, 54
          %s210 = smul.addr %s209, 4
          %s211 = scalar_lea.vmem %s0, %s210
        $region32: #{tpu_custom_call.1} parent=27 // pred_fallthru
          _
      $region28: #{tpu_custom_call.1} parent=5 // pred_fallthru
        _
      %p212 = scmp.le.s32.totalorder 1, %s13
      %p213 = scmp.lt.s32.totalorder %s13, 3
      %p214 = pnand %p212, %p213
      %p215 = pneg %p214
      // Predicated region
      $region33: #{tpu_custom_call.1} parent=5 // pred_check
        _
      $region34: #{tpu_custom_call.1} parent=5 // pred_check_branch
        %217 = sbr.rel (%p214) target = $region36
      $region35: #{tpu_custom_call.1} parent=5 // pred_region
        %s218 = ssub.s32 %s13, 1
        %p219 = scmp.lt.s32.totalorder %s23, 1
        %s220 = scalar_select %p219, %s23, 1
        %s221 = smul.addr %s220, 54
        %s222 = smul.addr %s221, 4
        %s223 = scalar_lea.vmem %s0, %s222
        %p224 = pneg %p58
        %p225 = pneg %p55
        %p226 = scmp.lt.s32.totalorder %s24, 0
        %s227 = scalar_select %p226, %s24, 0
        %s228 = smul.addr %s227, 4
        %s229 = scalar_lea.vmem %s1, %s228
        %p230 = pneg %p84
        %p231 = pneg %p81
        %p232 = scmp.lt.s32.totalorder %s24, 0
        %s233 = scalar_select %p232, %s24, 0
        %s234 = scalar_lea.vmem %s2, %s233
        %p235 = pneg %p110
        %p236 = pneg %p107
        %p237 = scmp.lt.s32.totalorder %s24, 0
        %s238 = scalar_select %p237, %s24, 0
        %s239 = scalar_lea.vmem %s3, %s238
        %p240 = pneg %p136
        %p241 = pneg %p133
        %p242 = pneg %p166
        %p243 = pneg %p163
        %s244 = sand.u32 %s153, 1
        %s245 = scalar_lea.sflag [#allocation3], %s244
        %s246 = sand.u32 %s153, 1
        %s247 = smul.addr %s246, 256
        %s248 = scalar_lea.vmem [#allocation2], %s247
        %p249 = scmp.lt.s32.totalorder %s23, 1
        %s250 = scalar_select %p249, %s23, 1
        %s251 = smul.addr %s250, 54
        %s252 = smul.addr %s251, 4
        %s253 = scalar_lea.vmem %s0, %s252
        %p254 = scmp.lt.s32.totalorder %s24, 0
        %s255 = scalar_select %p254, %s24, 0
        %s256 = smul.addr %s255, 4
        %s257 = scalar_lea.vmem %s1, %s256
        %p258 = scmp.lt.s32.totalorder %s24, 0
        %s259 = scalar_select %p258, %s24, 0
        %s260 = scalar_lea.vmem %s2, %s259
        %p261 = scmp.lt.s32.totalorder %s24, 0
        %s262 = scalar_select %p261, %s24, 0
        %s263 = scalar_lea.vmem %s3, %s262
        %s264 = smul.u32 16, %s25
        %s266 = smul.u32 %s25, 16
        %s267 = smul.u32 %s266, 3
        %s268 = smul.addr %s267, 4
        %s269 = scalar_lea.vmem %s253, %s268
        %v270 = vld [vmem:[%s269] sm:$0xf]
        %v271 = vld [vmem:[%s269 + $0x4] sm:$0xf]
        %v272 = vld [vmem:[%s269 + $0xc] sm:$0xf]
        %v273 = vld [vmem:[%s269 + $0x10] sm:$0xf]
        %v274 = vld [vmem:[%s269 + $0x18] sm:$0xf]
        %v275 = vld [vmem:[%s269 + $0x1c] sm:$0xf]
        %v276 = vld [vmem:[%s269 + $0x24] sm:$0xf]
        %v277 = vld [vmem:[%s269 + $0x28] sm:$0xf]
        %v278 = vld [vmem:[%s269 + $0x30] sm:$0xf]
        %v279 = vld [vmem:[%s269 + $0x34] sm:$0xf]
        %v280 = vld [vmem:[%s269 + $0x3c] sm:$0xf]
        %v281 = vld [vmem:[%s269 + $0x40] sm:$0xf]
        %v282 = vld [vmem:[%s269 + $0x48] sm:$0xf]
        %v283 = vld [vmem:[%s269 + $0x4c] sm:$0xf]
        %v284 = vld [vmem:[%s269 + $0x54] sm:$0xf]
        %v285 = vld [vmem:[%s269 + $0x58] sm:$0xf]
        %v286 = vld [vmem:[%s269 + $0x60] sm:$0xf]
        %v287 = vld [vmem:[%s269 + $0x64] sm:$0xf]
        %v288 = vld [vmem:[%s269 + $0x6c] sm:$0xf]
        %v289 = vld [vmem:[%s269 + $0x70] sm:$0xf]
        %v290 = vld [vmem:[%s269 + $0x78] sm:$0xf]
        %v291 = vld [vmem:[%s269 + $0x7c] sm:$0xf]
        %v292 = vld [vmem:[%s269 + $0x84] sm:$0xf]
        %v293 = vld [vmem:[%s269 + $0x88] sm:$0xf]
        %v294 = vld [vmem:[%s269 + $0x90] sm:$0xf]
        %v295 = vld [vmem:[%s269 + $0x94] sm:$0xf]
        %v296 = vld [vmem:[%s269 + $0x9c] sm:$0xf]
        %v297 = vld [vmem:[%s269 + $0xa0] sm:$0xf]
        %v298 = vld [vmem:[%s269 + $0xa8] sm:$0xf]
        %v299 = vld [vmem:[%s269 + $0xac] sm:$0xf]
        %v300 = vld [vmem:[%s269 + $0xb4] sm:$0xf]
        %v301 = vld [vmem:[%s269 + $0xb8] sm:$0xf]
        %v302 = vld [vmem:[%s269 + $0x8] sm:$0x1]
        %v303 = vld [vmem:[%s269 + $0x14] sm:$0x1]
        %v304 = vld [vmem:[%s269 + $0x20] sm:$0x1]
        %v305 = vld [vmem:[%s269 + $0x2c] sm:$0x1]
        %v306 = vld [vmem:[%s269 + $0x38] sm:$0x1]
        %v307 = vld [vmem:[%s269 + $0x44] sm:$0x1]
        %v308 = vld [vmem:[%s269 + $0x50] sm:$0x1]
        %v309 = vld [vmem:[%s269 + $0x5c] sm:$0x1]
        %v310 = vld [vmem:[%s269 + $0x68] sm:$0x1]
        %v311 = vld [vmem:[%s269 + $0x74] sm:$0x1]
        %v312 = vld [vmem:[%s269 + $0x80] sm:$0x1]
        %v313 = vld [vmem:[%s269 + $0x8c] sm:$0x1]
        %v314 = vld [vmem:[%s269 + $0x98] sm:$0x1]
        %v315 = vld [vmem:[%s269 + $0xa4] sm:$0x1]
        %v316 = vld [vmem:[%s269 + $0xb0] sm:$0x1]
        %v317 = vld [vmem:[%s269 + $0xbc] sm:$0x1]
        %v318 = vld [vmem:[%s269] sm:$0xe]
        %v319 = vld [vmem:[%s269 + $0xc] sm:$0xe]
        %v320 = vld [vmem:[%s269 + $0x18] sm:$0xe]
        %v321 = vld [vmem:[%s269 + $0x24] sm:$0xe]
        %v322 = vld [vmem:[%s269 + $0x30] sm:$0xe]
        %v323 = vld [vmem:[%s269 + $0x3c] sm:$0xe]
        %v324 = vld [vmem:[%s269 + $0x48] sm:$0xe]
        %v325 = vld [vmem:[%s269 + $0x54] sm:$0xe]
        %v326 = vld [vmem:[%s269 + $0x60] sm:$0xe]
        %v327 = vld [vmem:[%s269 + $0x6c] sm:$0xe]
        %v328 = vld [vmem:[%s269 + $0x78] sm:$0xe]
        %v329 = vld [vmem:[%s269 + $0x84] sm:$0xe]
        %v330 = vld [vmem:[%s269 + $0x90] sm:$0xe]
        %v331 = vld [vmem:[%s269 + $0x9c] sm:$0xe]
        %v332 = vld [vmem:[%s269 + $0xa8] sm:$0xe]
        %v333 = vld [vmem:[%s269 + $0xb4] sm:$0xe]
        %s334 = sadd.s32 %s266, 1
        %s335 = smul.u32 %s334, 3
        %s336 = smul.addr %s335, 4
        %s337 = scalar_lea.vmem %s253, %s336
        %v338 = vld [vmem:[%s337] sm:$0xf]
        %v339 = vld [vmem:[%s337 + $0x4] sm:$0xf]
        %v340 = vld [vmem:[%s337 + $0xc] sm:$0xf]
        %v341 = vld [vmem:[%s337 + $0x10] sm:$0xf]
        %v342 = vld [vmem:[%s337 + $0x18] sm:$0xf]
        %v343 = vld [vmem:[%s337 + $0x1c] sm:$0xf]
        %v344 = vld [vmem:[%s337 + $0x24] sm:$0xf]
        %v345 = vld [vmem:[%s337 + $0x28] sm:$0xf]
        %v346 = vld [vmem:[%s337 + $0x30] sm:$0xf]
        %v347 = vld [vmem:[%s337 + $0x34] sm:$0xf]
        %v348 = vld [vmem:[%s337 + $0x3c] sm:$0xf]
        %v349 = vld [vmem:[%s337 + $0x40] sm:$0xf]
        %v350 = vld [vmem:[%s337 + $0x48] sm:$0xf]
        %v351 = vld [vmem:[%s337 + $0x4c] sm:$0xf]
        %v352 = vld [vmem:[%s337 + $0x54] sm:$0xf]
        %v353 = vld [vmem:[%s337 + $0x58] sm:$0xf]
        %v354 = vld [vmem:[%s337 + $0x60] sm:$0xf]
        %v355 = vld [vmem:[%s337 + $0x64] sm:$0xf]
        %v356 = vld [vmem:[%s337 + $0x6c] sm:$0xf]
        %v357 = vld [vmem:[%s337 + $0x70] sm:$0xf]
        %v358 = vld [vmem:[%s337 + $0x78] sm:$0xf]
        %v359 = vld [vmem:[%s337 + $0x7c] sm:$0xf]
        %v360 = vld [vmem:[%s337 + $0x84] sm:$0xf]
        %v361 = vld [vmem:[%s337 + $0x88] sm:$0xf]
        %v362 = vld [vmem:[%s337 + $0x90] sm:$0xf]
        %v363 = vld [vmem:[%s337 + $0x94] sm:$0xf]
        %v364 = vld [vmem:[%s337 + $0x9c] sm:$0xf]
        %v365 = vld [vmem:[%s337 + $0xa0] sm:$0xf]
        %v366 = vld [vmem:[%s337 + $0xa8] sm:$0xf]
        %v367 = vld [vmem:[%s337 + $0xac] sm:$0xf]
        %v368 = vld [vmem:[%s337 + $0xb4] sm:$0xf]
        %v369 = vld [vmem:[%s337 + $0xb8] sm:$0xf]
        %v370 = vld [vmem:[%s337 + $0x8] sm:$0x1]
        %v371 = vld [vmem:[%s337 + $0x14] sm:$0x1]
        %v372 = vld [vmem:[%s337 + $0x20] sm:$0x1]
        %v373 = vld [vmem:[%s337 + $0x2c] sm:$0x1]
        %v374 = vld [vmem:[%s337 + $0x38] sm:$0x1]
        %v375 = vld [vmem:[%s337 + $0x44] sm:$0x1]
        %v376 = vld [vmem:[%s337 + $0x50] sm:$0x1]
        %v377 = vld [vmem:[%s337 + $0x5c] sm:$0x1]
        %v378 = vld [vmem:[%s337 + $0x68] sm:$0x1]
        %v379 = vld [vmem:[%s337 + $0x74] sm:$0x1]
        %v380 = vld [vmem:[%s337 + $0x80] sm:$0x1]
        %v381 = vld [vmem:[%s337 + $0x8c] sm:$0x1]
        %v382 = vld [vmem:[%s337 + $0x98] sm:$0x1]
        %v383 = vld [vmem:[%s337 + $0xa4] sm:$0x1]
        %v384 = vld [vmem:[%s337 + $0xb0] sm:$0x1]
        %v385 = vld [vmem:[%s337 + $0xbc] sm:$0x1]
        %v386 = vld [vmem:[%s337] sm:$0xe]
        %v387 = vld [vmem:[%s337 + $0xc] sm:$0xe]
        %v388 = vld [vmem:[%s337 + $0x18] sm:$0xe]
        %v389 = vld [vmem:[%s337 + $0x24] sm:$0xe]
        %v390 = vld [vmem:[%s337 + $0x30] sm:$0xe]
        %v391 = vld [vmem:[%s337 + $0x3c] sm:$0xe]
        %v392 = vld [vmem:[%s337 + $0x48] sm:$0xe]
        %v393 = vld [vmem:[%s337 + $0x54] sm:$0xe]
        %v394 = vld [vmem:[%s337 + $0x60] sm:$0xe]
        %v395 = vld [vmem:[%s337 + $0x6c] sm:$0xe]
        %v396 = vld [vmem:[%s337 + $0x78] sm:$0xe]
        %v397 = vld [vmem:[%s337 + $0x84] sm:$0xe]
        %v398 = vld [vmem:[%s337 + $0x90] sm:$0xe]
        %v399 = vld [vmem:[%s337 + $0x9c] sm:$0xe]
        %v400 = vld [vmem:[%s337 + $0xa8] sm:$0xe]
        %v401 = vld [vmem:[%s337 + $0xb4] sm:$0xe]
        %s402 = sadd.s32 %s266, 2
        %s403 = smul.u32 %s402, 3
        %s404 = smul.addr %s403, 4
        %s405 = scalar_lea.vmem %s253, %s404
        %v406 = vld [vmem:[%s405] sm:$0xf]
        %v407 = vld [vmem:[%s405 + $0x4] sm:$0xf]
        %v408 = vld [vmem:[%s405 + $0xc] sm:$0xf]
        %v409 = vld [vmem:[%s405 + $0x10] sm:$0xf]
        %v410 = vld [vmem:[%s405 + $0x18] sm:$0xf]
        %v411 = vld [vmem:[%s405 + $0x1c] sm:$0xf]
        %v412 = vld [vmem:[%s405 + $0x24] sm:$0xf]
        %v413 = vld [vmem:[%s405 + $0x28] sm:$0xf]
        %v414 = vld [vmem:[%s405 + $0x30] sm:$0xf]
        %v415 = vld [vmem:[%s405 + $0x34] sm:$0xf]
        %v416 = vld [vmem:[%s405 + $0x3c] sm:$0xf]
        %v417 = vld [vmem:[%s405 + $0x40] sm:$0xf]
        %v418 = vld [vmem:[%s405 + $0x48] sm:$0xf]
        %v419 = vld [vmem:[%s405 + $0x4c] sm:$0xf]
        %v420 = vld [vmem:[%s405 + $0x54] sm:$0xf]
        %v421 = vld [vmem:[%s405 + $0x58] sm:$0xf]
        %v422 = vld [vmem:[%s405 + $0x60] sm:$0xf]
        %v423 = vld [vmem:[%s405 + $0x64] sm:$0xf]
        %v424 = vld [vmem:[%s405 + $0x6c] sm:$0xf]
        %v425 = vld [vmem:[%s405 + $0x70] sm:$0xf]
        %v426 = vld [vmem:[%s405 + $0x78] sm:$0xf]
        %v427 = vld [vmem:[%s405 + $0x7c] sm:$0xf]
        %v428 = vld [vmem:[%s405 + $0x84] sm:$0xf]
        %v429 = vld [vmem:[%s405 + $0x88] sm:$0xf]
        %v430 = vld [vmem:[%s405 + $0x90] sm:$0xf]
        %v431 = vld [vmem:[%s405 + $0x94] sm:$0xf]
        %v432 = vld [vmem:[%s405 + $0x9c] sm:$0xf]
        %v433 = vld [vmem:[%s405 + $0xa0] sm:$0xf]
        %v434 = vld [vmem:[%s405 + $0xa8] sm:$0xf]
        %v435 = vld [vmem:[%s405 + $0xac] sm:$0xf]
        %v436 = vld [vmem:[%s405 + $0xb4] sm:$0xf]
        %v437 = vld [vmem:[%s405 + $0xb8] sm:$0xf]
        %v438 = vld [vmem:[%s405 + $0x8] sm:$0x1]
        %v439 = vld [vmem:[%s405 + $0x14] sm:$0x1]
        %v440 = vld [vmem:[%s405 + $0x20] sm:$0x1]
        %v441 = vld [vmem:[%s405 + $0x2c] sm:$0x1]
        %v442 = vld [vmem:[%s405 + $0x38] sm:$0x1]
        %v443 = vld [vmem:[%s405 + $0x44] sm:$0x1]
        %v444 = vld [vmem:[%s405 + $0x50] sm:$0x1]
        %v445 = vld [vmem:[%s405 + $0x5c] sm:$0x1]
        %v446 = vld [vmem:[%s405 + $0x68] sm:$0x1]
        %v447 = vld [vmem:[%s405 + $0x74] sm:$0x1]
        %v448 = vld [vmem:[%s405 + $0x80] sm:$0x1]
        %v449 = vld [vmem:[%s405 + $0x8c] sm:$0x1]
        %v450 = vld [vmem:[%s405 + $0x98] sm:$0x1]
        %v451 = vld [vmem:[%s405 + $0xa4] sm:$0x1]
        %v452 = vld [vmem:[%s405 + $0xb0] sm:$0x1]
        %v453 = vld [vmem:[%s405 + $0xbc] sm:$0x1]
        %v454 = vld [vmem:[%s405] sm:$0xe]
        %v455 = vld [vmem:[%s405 + $0xc] sm:$0xe]
        %v456 = vld [vmem:[%s405 + $0x18] sm:$0xe]
        %v457 = vld [vmem:[%s405 + $0x24] sm:$0xe]
        %v458 = vld [vmem:[%s405 + $0x30] sm:$0xe]
        %v459 = vld [vmem:[%s405 + $0x3c] sm:$0xe]
        %v460 = vld [vmem:[%s405 + $0x48] sm:$0xe]
        %v461 = vld [vmem:[%s405 + $0x54] sm:$0xe]
        %v462 = vld [vmem:[%s405 + $0x60] sm:$0xe]
        %v463 = vld [vmem:[%s405 + $0x6c] sm:$0xe]
        %v464 = vld [vmem:[%s405 + $0x78] sm:$0xe]
        %v465 = vld [vmem:[%s405 + $0x84] sm:$0xe]
        %v466 = vld [vmem:[%s405 + $0x90] sm:$0xe]
        %v467 = vld [vmem:[%s405 + $0x9c] sm:$0xe]
        %v468 = vld [vmem:[%s405 + $0xa8] sm:$0xe]
        %v469 = vld [vmem:[%s405 + $0xb4] sm:$0xe]
        %v502 = vunpack.c.l.b16 %v270
        %v503 = vunpack.c.l.b16 %v271
        %v504 = vunpack.c.l.b16 %v272
        %v505 = vunpack.c.l.b16 %v273
        %v506 = vunpack.c.l.b16 %v274
        %v507 = vunpack.c.l.b16 %v275
        %v508 = vunpack.c.l.b16 %v276
        %v509 = vunpack.c.l.b16 %v277
        %v510 = vunpack.c.l.b16 %v278
        %v511 = vunpack.c.l.b16 %v279
        %v512 = vunpack.c.l.b16 %v280
        %v513 = vunpack.c.l.b16 %v281
        %v514 = vunpack.c.l.b16 %v282
        %v515 = vunpack.c.l.b16 %v283
        %v516 = vunpack.c.l.b16 %v284
        %v517 = vunpack.c.l.b16 %v285
        %v518 = vunpack.c.l.b16 %v286
        %v519 = vunpack.c.l.b16 %v287
        %v520 = vunpack.c.l.b16 %v288
        %v521 = vunpack.c.l.b16 %v289
        %v522 = vunpack.c.l.b16 %v290
        %v523 = vunpack.c.l.b16 %v291
        %v524 = vunpack.c.l.b16 %v292
        %v525 = vunpack.c.l.b16 %v293
        %v526 = vunpack.c.l.b16 %v294
        %v527 = vunpack.c.l.b16 %v295
        %v528 = vunpack.c.l.b16 %v296
        %v529 = vunpack.c.l.b16 %v297
        %v530 = vunpack.c.l.b16 %v298
        %v531 = vunpack.c.l.b16 %v299
        %v532 = vunpack.c.l.b16 %v300
        %v533 = vunpack.c.l.b16 %v301
        %v534 = vpack.c.b16 %v503, %v502
        %v535 = vpack.c.b16 %v505, %v504
        %v536 = vpack.c.b16 %v507, %v506
        %v537 = vpack.c.b16 %v509, %v508
        %v538 = vpack.c.b16 %v511, %v510
        %v539 = vpack.c.b16 %v513, %v512
        %v540 = vpack.c.b16 %v515, %v514
        %v541 = vpack.c.b16 %v517, %v516
        %v542 = vpack.c.b16 %v519, %v518
        %v543 = vpack.c.b16 %v521, %v520
        %v544 = vpack.c.b16 %v523, %v522
        %v545 = vpack.c.b16 %v525, %v524
        %v546 = vpack.c.b16 %v527, %v526
        %v547 = vpack.c.b16 %v529, %v528
        %v548 = vpack.c.b16 %v531, %v530
        %v549 = vpack.c.b16 %v533, %v532
        %v566 = vunpack.c.l.b16 %v302
        %v567 = vunpack.c.l.b16 %v303
        %v568 = vunpack.c.l.b16 %v304
        %v569 = vunpack.c.l.b16 %v305
        %v570 = vunpack.c.l.b16 %v306
        %v571 = vunpack.c.l.b16 %v307
        %v572 = vunpack.c.l.b16 %v308
        %v573 = vunpack.c.l.b16 %v309
        %v574 = vunpack.c.l.b16 %v310
        %v575 = vunpack.c.l.b16 %v311
        %v576 = vunpack.c.l.b16 %v312
        %v577 = vunpack.c.l.b16 %v313
        %v578 = vunpack.c.l.b16 %v314
        %v579 = vunpack.c.l.b16 %v315
        %v580 = vunpack.c.l.b16 %v316
        %v581 = vunpack.c.l.b16 %v317
        %v582 = vpack.c.b16 %v566, %v566
        %v583 = vpack.c.b16 %v567, %v567
        %v584 = vpack.c.b16 %v568, %v568
        %v585 = vpack.c.b16 %v569, %v569
        %v586 = vpack.c.b16 %v570, %v570
        %v587 = vpack.c.b16 %v571, %v571
        %v588 = vpack.c.b16 %v572, %v572
        %v589 = vpack.c.b16 %v573, %v573
        %v590 = vpack.c.b16 %v574, %v574
        %v591 = vpack.c.b16 %v575, %v575
        %v592 = vpack.c.b16 %v576, %v576
        %v593 = vpack.c.b16 %v577, %v577
        %v594 = vpack.c.b16 %v578, %v578
        %v595 = vpack.c.b16 %v579, %v579
        %v596 = vpack.c.b16 %v580, %v580
        %v597 = vpack.c.b16 %v581, %v581
        %vm598 = vsmask.f32 7424
        %v600 = vshrl.u32 %v534, 16
        %v602 = vshll.u32 %v534, 16
        %v604 = vrot.slane %v602, 1
        %v605 = vor.u32 %v600, %v604
        %v607 = vshll.u32 %v582, 16
        %v609 = vrot.slane %v607, 1
        %v610 = vsel %vm598, %v605, %v609
        %v612 = vshrl.u32 %v535, 16
        %v614 = vshll.u32 %v535, 16
        %v616 = vrot.slane %v614, 1
        %v617 = vor.u32 %v612, %v616
        %v619 = vshll.u32 %v583, 16
        %v621 = vrot.slane %v619, 1
        %v622 = vsel %vm598, %v617, %v621
        %v624 = vshrl.u32 %v536, 16
        %v626 = vshll.u32 %v536, 16
        %v628 = vrot.slane %v626, 1
        %v629 = vor.u32 %v624, %v628
        %v631 = vshll.u32 %v584, 16
        %v633 = vrot.slane %v631, 1
        %v634 = vsel %vm598, %v629, %v633
        %v636 = vshrl.u32 %v537, 16
        %v638 = vshll.u32 %v537, 16
        %v640 = vrot.slane %v638, 1
        %v641 = vor.u32 %v636, %v640
        %v643 = vshll.u32 %v585, 16
        %v645 = vrot.slane %v643, 1
        %v646 = vsel %vm598, %v641, %v645
        %v648 = vshrl.u32 %v538, 16
        %v650 = vshll.u32 %v538, 16
        %v652 = vrot.slane %v650, 1
        %v653 = vor.u32 %v648, %v652
        %v655 = vshll.u32 %v586, 16
        %v657 = vrot.slane %v655, 1
        %v658 = vsel %vm598, %v653, %v657
        %v660 = vshrl.u32 %v539, 16
        %v662 = vshll.u32 %v539, 16
        %v664 = vrot.slane %v662, 1
        %v665 = vor.u32 %v660, %v664
        %v667 = vshll.u32 %v587, 16
        %v669 = vrot.slane %v667, 1
        %v670 = vsel %vm598, %v665, %v669
        %v672 = vshrl.u32 %v540, 16
        %v674 = vshll.u32 %v540, 16
        %v676 = vrot.slane %v674, 1
        %v677 = vor.u32 %v672, %v676
        %v679 = vshll.u32 %v588, 16
        %v681 = vrot.slane %v679, 1
        %v682 = vsel %vm598, %v677, %v681
        %v684 = vshrl.u32 %v541, 16
        %v686 = vshll.u32 %v541, 16
        %v688 = vrot.slane %v686, 1
        %v689 = vor.u32 %v684, %v688
        %v691 = vshll.u32 %v589, 16
        %v693 = vrot.slane %v691, 1
        %v694 = vsel %vm598, %v689, %v693
        %v696 = vshrl.u32 %v542, 16
        %v698 = vshll.u32 %v542, 16
        %v700 = vrot.slane %v698, 1
        %v701 = vor.u32 %v696, %v700
        %v703 = vshll.u32 %v590, 16
        %v705 = vrot.slane %v703, 1
        %v706 = vsel %vm598, %v701, %v705
        %v708 = vshrl.u32 %v543, 16
        %v710 = vshll.u32 %v543, 16
        %v712 = vrot.slane %v710, 1
        %v713 = vor.u32 %v708, %v712
        %v715 = vshll.u32 %v591, 16
        %v717 = vrot.slane %v715, 1
        %v718 = vsel %vm598, %v713, %v717
        %v720 = vshrl.u32 %v544, 16
        %v722 = vshll.u32 %v544, 16
        %v724 = vrot.slane %v722, 1
        %v725 = vor.u32 %v720, %v724
        %v727 = vshll.u32 %v592, 16
        %v729 = vrot.slane %v727, 1
        %v730 = vsel %vm598, %v725, %v729
        %v732 = vshrl.u32 %v545, 16
        %v734 = vshll.u32 %v545, 16
        %v736 = vrot.slane %v734, 1
        %v737 = vor.u32 %v732, %v736
        %v739 = vshll.u32 %v593, 16
        %v741 = vrot.slane %v739, 1
        %v742 = vsel %vm598, %v737, %v741
        %v744 = vshrl.u32 %v546, 16
        %v746 = vshll.u32 %v546, 16
        %v748 = vrot.slane %v746, 1
        %v749 = vor.u32 %v744, %v748
        %v751 = vshll.u32 %v594, 16
        %v753 = vrot.slane %v751, 1
        %v754 = vsel %vm598, %v749, %v753
        %v756 = vshrl.u32 %v547, 16
        %v758 = vshll.u32 %v547, 16
        %v760 = vrot.slane %v758, 1
        %v761 = vor.u32 %v756, %v760
        %v763 = vshll.u32 %v595, 16
        %v765 = vrot.slane %v763, 1
        %v766 = vsel %vm598, %v761, %v765
        %v768 = vshrl.u32 %v548, 16
        %v770 = vshll.u32 %v548, 16
        %v772 = vrot.slane %v770, 1
        %v773 = vor.u32 %v768, %v772
        %v775 = vshll.u32 %v596, 16
        %v777 = vrot.slane %v775, 1
        %v778 = vsel %vm598, %v773, %v777
        %v780 = vshrl.u32 %v549, 16
        %v782 = vshll.u32 %v549, 16
        %v784 = vrot.slane %v782, 1
        %v785 = vor.u32 %v780, %v784
        %v787 = vshll.u32 %v597, 16
        %v789 = vrot.slane %v787, 1
        %v790 = vsel %vm598, %v785, %v789
        %791 = vrot.lane.b32.xlu0 %v610, 4
        %v792 = vpop.permute.xlu0 %791
        %793 = vrot.lane.b32.xlu0 %v622, 4
        %v794 = vpop.permute.xlu0 %793
        %795 = vrot.lane.b32.xlu0 %v634, 4
        %v796 = vpop.permute.xlu0 %795
        %797 = vrot.lane.b32.xlu0 %v646, 4
        %v798 = vpop.permute.xlu0 %797
        %799 = vrot.lane.b32.xlu0 %v658, 4
        %v800 = vpop.permute.xlu0 %799
        %801 = vrot.lane.b32.xlu0 %v670, 4
        %v802 = vpop.permute.xlu0 %801
        %803 = vrot.lane.b32.xlu0 %v682, 4
        %v804 = vpop.permute.xlu0 %803
        %805 = vrot.lane.b32.xlu0 %v694, 4
        %v806 = vpop.permute.xlu0 %805
        %807 = vrot.lane.b32.xlu0 %v706, 4
        %v808 = vpop.permute.xlu0 %807
        %809 = vrot.lane.b32.xlu0 %v718, 4
        %v810 = vpop.permute.xlu0 %809
        %811 = vrot.lane.b32.xlu0 %v730, 4
        %v812 = vpop.permute.xlu0 %811
        %813 = vrot.lane.b32.xlu0 %v742, 4
        %v814 = vpop.permute.xlu0 %813
        %815 = vrot.lane.b32.xlu0 %v754, 4
        %v816 = vpop.permute.xlu0 %815
        %817 = vrot.lane.b32.xlu0 %v766, 4
        %v818 = vpop.permute.xlu0 %817
        %819 = vrot.lane.b32.xlu0 %v778, 4
        %v820 = vpop.permute.xlu0 %819
        %821 = vrot.lane.b32.xlu0 %v790, 4
        %v822 = vpop.permute.xlu0 %821
        %v839 = vunpack.c.l.b16 %v318
        %v840 = vunpack.c.l.b16 %v319
        %v841 = vunpack.c.l.b16 %v320
        %v842 = vunpack.c.l.b16 %v321
        %v843 = vunpack.c.l.b16 %v322
        %v844 = vunpack.c.l.b16 %v323
        %v845 = vunpack.c.l.b16 %v324
        %v846 = vunpack.c.l.b16 %v325
        %v847 = vunpack.c.l.b16 %v326
        %v848 = vunpack.c.l.b16 %v327
        %v849 = vunpack.c.l.b16 %v328
        %v850 = vunpack.c.l.b16 %v329
        %v851 = vunpack.c.l.b16 %v330
        %v852 = vunpack.c.l.b16 %v331
        %v853 = vunpack.c.l.b16 %v332
        %v854 = vunpack.c.l.b16 %v333
        %v855 = vpack.c.b16 %v503, %v839
        %v856 = vpack.c.b16 %v505, %v840
        %v857 = vpack.c.b16 %v507, %v841
        %v858 = vpack.c.b16 %v509, %v842
        %v859 = vpack.c.b16 %v511, %v843
        %v860 = vpack.c.b16 %v513, %v844
        %v861 = vpack.c.b16 %v515, %v845
        %v862 = vpack.c.b16 %v517, %v846
        %v863 = vpack.c.b16 %v519, %v847
        %v864 = vpack.c.b16 %v521, %v848
        %v865 = vpack.c.b16 %v523, %v849
        %v866 = vpack.c.b16 %v525, %v850
        %v867 = vpack.c.b16 %v527, %v851
        %v868 = vpack.c.b16 %v529, %v852
        %v869 = vpack.c.b16 %v531, %v853
        %v870 = vpack.c.b16 %v533, %v854
        %vm871 = vcmask 1046528
        %v872 = vrot.slane %v855, 1
        %v873 = vrot.slane %v582, 1
        %v874 = vsel %vm871, %v872, %v873
        %v875 = vrot.slane %v856, 1
        %v876 = vrot.slane %v583, 1
        %v877 = vsel %vm871, %v875, %v876
        %v878 = vrot.slane %v857, 1
        %v879 = vrot.slane %v584, 1
        %v880 = vsel %vm871, %v878, %v879
        %v881 = vrot.slane %v858, 1
        %v882 = vrot.slane %v585, 1
        %v883 = vsel %vm871, %v881, %v882
        %v884 = vrot.slane %v859, 1
        %v885 = vrot.slane %v586, 1
        %v886 = vsel %vm871, %v884, %v885
        %v887 = vrot.slane %v860, 1
        %v888 = vrot.slane %v587, 1
        %v889 = vsel %vm871, %v887, %v888
        %v890 = vrot.slane %v861, 1
        %v891 = vrot.slane %v588, 1
        %v892 = vsel %vm871, %v890, %v891
        %v893 = vrot.slane %v862, 1
        %v894 = vrot.slane %v589, 1
        %v895 = vsel %vm871, %v893, %v894
        %v896 = vrot.slane %v863, 1
        %v897 = vrot.slane %v590, 1
        %v898 = vsel %vm871, %v896, %v897
        %v899 = vrot.slane %v864, 1
        %v900 = vrot.slane %v591, 1
        %v901 = vsel %vm871, %v899, %v900
        %v902 = vrot.slane %v865, 1
        %v903 = vrot.slane %v592, 1
        %v904 = vsel %vm871, %v902, %v903
        %v905 = vrot.slane %v866, 1
        %v906 = vrot.slane %v593, 1
        %v907 = vsel %vm871, %v905, %v906
        %v908 = vrot.slane %v867, 1
        %v909 = vrot.slane %v594, 1
        %v910 = vsel %vm871, %v908, %v909
        %v911 = vrot.slane %v868, 1
        %v912 = vrot.slane %v595, 1
        %v913 = vsel %vm871, %v911, %v912
        %v914 = vrot.slane %v869, 1
        %v915 = vrot.slane %v596, 1
        %v916 = vsel %vm871, %v914, %v915
        %v917 = vrot.slane %v870, 1
        %v918 = vrot.slane %v597, 1
        %v919 = vsel %vm871, %v917, %v918
        %920 = vrot.lane.b32.xlu0 %v874, 8
        %v921 = vpop.permute.xlu0 %920
        %922 = vrot.lane.b32.xlu0 %v877, 8
        %v923 = vpop.permute.xlu0 %922
        %924 = vrot.lane.b32.xlu0 %v880, 8
        %v925 = vpop.permute.xlu0 %924
        %926 = vrot.lane.b32.xlu0 %v883, 8
        %v927 = vpop.permute.xlu0 %926
        %928 = vrot.lane.b32.xlu0 %v886, 8
        %v929 = vpop.permute.xlu0 %928
        %930 = vrot.lane.b32.xlu0 %v889, 8
        %v931 = vpop.permute.xlu0 %930
        %932 = vrot.lane.b32.xlu0 %v892, 8
        %v933 = vpop.permute.xlu0 %932
        %934 = vrot.lane.b32.xlu0 %v895, 8
        %v935 = vpop.permute.xlu0 %934
        %936 = vrot.lane.b32.xlu0 %v898, 8
        %v937 = vpop.permute.xlu0 %936
        %938 = vrot.lane.b32.xlu0 %v901, 8
        %v939 = vpop.permute.xlu0 %938
        %940 = vrot.lane.b32.xlu0 %v904, 8
        %v941 = vpop.permute.xlu0 %940
        %942 = vrot.lane.b32.xlu0 %v907, 8
        %v943 = vpop.permute.xlu0 %942
        %944 = vrot.lane.b32.xlu0 %v910, 8
        %v945 = vpop.permute.xlu0 %944
        %946 = vrot.lane.b32.xlu0 %v913, 8
        %v947 = vpop.permute.xlu0 %946
        %948 = vrot.lane.b32.xlu0 %v916, 8
        %v949 = vpop.permute.xlu0 %948
        %950 = vrot.lane.b32.xlu0 %v919, 8
        %v951 = vpop.permute.xlu0 %950
        %v984 = vunpack.c.l.b16 %v338
        %v985 = vunpack.c.l.b16 %v339
        %v986 = vunpack.c.l.b16 %v340
        %v987 = vunpack.c.l.b16 %v341
        %v988 = vunpack.c.l.b16 %v342
        %v989 = vunpack.c.l.b16 %v343
        %v990 = vunpack.c.l.b16 %v344
        %v991 = vunpack.c.l.b16 %v345
        %v992 = vunpack.c.l.b16 %v346
        %v993 = vunpack.c.l.b16 %v347
        %v994 = vunpack.c.l.b16 %v348
        %v995 = vunpack.c.l.b16 %v349
        %v996 = vunpack.c.l.b16 %v350
        %v997 = vunpack.c.l.b16 %v351
        %v998 = vunpack.c.l.b16 %v352
        %v999 = vunpack.c.l.b16 %v353
        %v1000 = vunpack.c.l.b16 %v354
        %v1001 = vunpack.c.l.b16 %v355
        %v1002 = vunpack.c.l.b16 %v356
        %v1003 = vunpack.c.l.b16 %v357
        %v1004 = vunpack.c.l.b16 %v358
        %v1005 = vunpack.c.l.b16 %v359
        %v1006 = vunpack.c.l.b16 %v360
        %v1007 = vunpack.c.l.b16 %v361
        %v1008 = vunpack.c.l.b16 %v362
        %v1009 = vunpack.c.l.b16 %v363
        %v1010 = vunpack.c.l.b16 %v364
        %v1011 = vunpack.c.l.b16 %v365
        %v1012 = vunpack.c.l.b16 %v366
        %v1013 = vunpack.c.l.b16 %v367
        %v1014 = vunpack.c.l.b16 %v368
        %v1015 = vunpack.c.l.b16 %v369
        %v1016 = vpack.c.b16 %v985, %v984
        %v1017 = vpack.c.b16 %v987, %v986
        %v1018 = vpack.c.b16 %v989, %v988
        %v1019 = vpack.c.b16 %v991, %v990
        %v1020 = vpack.c.b16 %v993, %v992
        %v1021 = vpack.c.b16 %v995, %v994
        %v1022 = vpack.c.b16 %v997, %v996
        %v1023 = vpack.c.b16 %v999, %v998
        %v1024 = vpack.c.b16 %v1001, %v1000
        %v1025 = vpack.c.b16 %v1003, %v1002
        %v1026 = vpack.c.b16 %v1005, %v1004
        %v1027 = vpack.c.b16 %v1007, %v1006
        %v1028 = vpack.c.b16 %v1009, %v1008
        %v1029 = vpack.c.b16 %v1011, %v1010
        %v1030 = vpack.c.b16 %v1013, %v1012
        %v1031 = vpack.c.b16 %v1015, %v1014
        %1032 = vrot.lane.b32.xlu0 %v1016, 12
        %v1033 = vpop.permute.xlu0 %1032
        %1034 = vrot.lane.b32.xlu0 %v1017, 12
        %v1035 = vpop.permute.xlu0 %1034
        %1036 = vrot.lane.b32.xlu0 %v1018, 12
        %v1037 = vpop.permute.xlu0 %1036
        %1038 = vrot.lane.b32.xlu0 %v1019, 12
        %v1039 = vpop.permute.xlu0 %1038
        %1040 = vrot.lane.b32.xlu0 %v1020, 12
        %v1041 = vpop.permute.xlu0 %1040
        %1042 = vrot.lane.b32.xlu0 %v1021, 12
        %v1043 = vpop.permute.xlu0 %1042
        %1044 = vrot.lane.b32.xlu0 %v1022, 12
        %v1045 = vpop.permute.xlu0 %1044
        %1046 = vrot.lane.b32.xlu0 %v1023, 12
        %v1047 = vpop.permute.xlu0 %1046
        %1048 = vrot.lane.b32.xlu0 %v1024, 12
        %v1049 = vpop.permute.xlu0 %1048
        %1050 = vrot.lane.b32.xlu0 %v1025, 12
        %v1051 = vpop.permute.xlu0 %1050
        %1052 = vrot.lane.b32.xlu0 %v1026, 12
        %v1053 = vpop.permute.xlu0 %1052
        %1054 = vrot.lane.b32.xlu0 %v1027, 12
        %v1055 = vpop.permute.xlu0 %1054
        %1056 = vrot.lane.b32.xlu0 %v1028, 12
        %v1057 = vpop.permute.xlu0 %1056
        %1058 = vrot.lane.b32.xlu0 %v1029, 12
        %v1059 = vpop.permute.xlu0 %1058
        %1060 = vrot.lane.b32.xlu0 %v1030, 12
        %v1061 = vpop.permute.xlu0 %1060
        %1062 = vrot.lane.b32.xlu0 %v1031, 12
        %v1063 = vpop.permute.xlu0 %1062
        %v1080 = vunpack.c.l.b16 %v370
        %v1081 = vunpack.c.l.b16 %v371
        %v1082 = vunpack.c.l.b16 %v372
        %v1083 = vunpack.c.l.b16 %v373
        %v1084 = vunpack.c.l.b16 %v374
        %v1085 = vunpack.c.l.b16 %v375
        %v1086 = vunpack.c.l.b16 %v376
        %v1087 = vunpack.c.l.b16 %v377
        %v1088 = vunpack.c.l.b16 %v378
        %v1089 = vunpack.c.l.b16 %v379
        %v1090 = vunpack.c.l.b16 %v380
        %v1091 = vunpack.c.l.b16 %v381
        %v1092 = vunpack.c.l.b16 %v382
        %v1093 = vunpack.c.l.b16 %v383
        %v1094 = vunpack.c.l.b16 %v384
        %v1095 = vunpack.c.l.b16 %v385
        %v1096 = vpack.c.b16 %v1080, %v1080
        %v1097 = vpack.c.b16 %v1081, %v1081
        %v1098 = vpack.c.b16 %v1082, %v1082
        %v1099 = vpack.c.b16 %v1083, %v1083
        %v1100 = vpack.c.b16 %v1084, %v1084
        %v1101 = vpack.c.b16 %v1085, %v1085
        %v1102 = vpack.c.b16 %v1086, %v1086
        %v1103 = vpack.c.b16 %v1087, %v1087
        %v1104 = vpack.c.b16 %v1088, %v1088
        %v1105 = vpack.c.b16 %v1089, %v1089
        %v1106 = vpack.c.b16 %v1090, %v1090
        %v1107 = vpack.c.b16 %v1091, %v1091
        %v1108 = vpack.c.b16 %v1092, %v1092
        %v1109 = vpack.c.b16 %v1093, %v1093
        %v1110 = vpack.c.b16 %v1094, %v1094
        %v1111 = vpack.c.b16 %v1095, %v1095
        %v1113 = vshrl.u32 %v1016, 16
        %v1115 = vshll.u32 %v1016, 16
        %v1117 = vrot.slane %v1115, 1
        %v1118 = vor.u32 %v1113, %v1117
        %v1120 = vshll.u32 %v1096, 16
        %v1122 = vrot.slane %v1120, 1
        %v1123 = vsel %vm598, %v1118, %v1122
        %v1125 = vshrl.u32 %v1017, 16
        %v1127 = vshll.u32 %v1017, 16
        %v1129 = vrot.slane %v1127, 1
        %v1130 = vor.u32 %v1125, %v1129
        %v1132 = vshll.u32 %v1097, 16
        %v1134 = vrot.slane %v1132, 1
        %v1135 = vsel %vm598, %v1130, %v1134
        %v1137 = vshrl.u32 %v1018, 16
        %v1139 = vshll.u32 %v1018, 16
        %v1141 = vrot.slane %v1139, 1
        %v1142 = vor.u32 %v1137, %v1141
        %v1144 = vshll.u32 %v1098, 16
        %v1146 = vrot.slane %v1144, 1
        %v1147 = vsel %vm598, %v1142, %v1146
        %v1149 = vshrl.u32 %v1019, 16
        %v1151 = vshll.u32 %v1019, 16
        %v1153 = vrot.slane %v1151, 1
        %v1154 = vor.u32 %v1149, %v1153
        %v1156 = vshll.u32 %v1099, 16
        %v1158 = vrot.slane %v1156, 1
        %v1159 = vsel %vm598, %v1154, %v1158
        %v1161 = vshrl.u32 %v1020, 16
        %v1163 = vshll.u32 %v1020, 16
        %v1165 = vrot.slane %v1163, 1
        %v1166 = vor.u32 %v1161, %v1165
        %v1168 = vshll.u32 %v1100, 16
        %v1170 = vrot.slane %v1168, 1
        %v1171 = vsel %vm598, %v1166, %v1170
        %v1173 = vshrl.u32 %v1021, 16
        %v1175 = vshll.u32 %v1021, 16
        %v1177 = vrot.slane %v1175, 1
        %v1178 = vor.u32 %v1173, %v1177
        %v1180 = vshll.u32 %v1101, 16
        %v1182 = vrot.slane %v1180, 1
        %v1183 = vsel %vm598, %v1178, %v1182
        %v1185 = vshrl.u32 %v1022, 16
        %v1187 = vshll.u32 %v1022, 16
        %v1189 = vrot.slane %v1187, 1
        %v1190 = vor.u32 %v1185, %v1189
        %v1192 = vshll.u32 %v1102, 16
        %v1194 = vrot.slane %v1192, 1
        %v1195 = vsel %vm598, %v1190, %v1194
        %v1197 = vshrl.u32 %v1023, 16
        %v1199 = vshll.u32 %v1023, 16
        %v1201 = vrot.slane %v1199, 1
        %v1202 = vor.u32 %v1197, %v1201
        %v1204 = vshll.u32 %v1103, 16
        %v1206 = vrot.slane %v1204, 1
        %v1207 = vsel %vm598, %v1202, %v1206
        %v1209 = vshrl.u32 %v1024, 16
        %v1211 = vshll.u32 %v1024, 16
        %v1213 = vrot.slane %v1211, 1
        %v1214 = vor.u32 %v1209, %v1213
        %v1216 = vshll.u32 %v1104, 16
        %v1218 = vrot.slane %v1216, 1
        %v1219 = vsel %vm598, %v1214, %v1218
        %v1221 = vshrl.u32 %v1025, 16
        %v1223 = vshll.u32 %v1025, 16
        %v1225 = vrot.slane %v1223, 1
        %v1226 = vor.u32 %v1221, %v1225
        %v1228 = vshll.u32 %v1105, 16
        %v1230 = vrot.slane %v1228, 1
        %v1231 = vsel %vm598, %v1226, %v1230
        %v1233 = vshrl.u32 %v1026, 16
        %v1235 = vshll.u32 %v1026, 16
        %v1237 = vrot.slane %v1235, 1
        %v1238 = vor.u32 %v1233, %v1237
        %v1240 = vshll.u32 %v1106, 16
        %v1242 = vrot.slane %v1240, 1
        %v1243 = vsel %vm598, %v1238, %v1242
        %v1245 = vshrl.u32 %v1027, 16
        %v1247 = vshll.u32 %v1027, 16
        %v1249 = vrot.slane %v1247, 1
        %v1250 = vor.u32 %v1245, %v1249
        %v1252 = vshll.u32 %v1107, 16
        %v1254 = vrot.slane %v1252, 1
        %v1255 = vsel %vm598, %v1250, %v1254
        %v1257 = vshrl.u32 %v1028, 16
        %v1259 = vshll.u32 %v1028, 16
        %v1261 = vrot.slane %v1259, 1
        %v1262 = vor.u32 %v1257, %v1261
        %v1264 = vshll.u32 %v1108, 16
        %v1266 = vrot.slane %v1264, 1
        %v1267 = vsel %vm598, %v1262, %v1266
        %v1269 = vshrl.u32 %v1029, 16
        %v1271 = vshll.u32 %v1029, 16
        %v1273 = vrot.slane %v1271, 1
        %v1274 = vor.u32 %v1269, %v1273
        %v1276 = vshll.u32 %v1109, 16
        %v1278 = vrot.slane %v1276, 1
        %v1279 = vsel %vm598, %v1274, %v1278
        %v1281 = vshrl.u32 %v1030, 16
        %v1283 = vshll.u32 %v1030, 16
        %v1285 = vrot.slane %v1283, 1
        %v1286 = vor.u32 %v1281, %v1285
        %v1288 = vshll.u32 %v1110, 16
        %v1290 = vrot.slane %v1288, 1
        %v1291 = vsel %vm598, %v1286, %v1290
        %v1293 = vshrl.u32 %v1031, 16
        %v1295 = vshll.u32 %v1031, 16
        %v1297 = vrot.slane %v1295, 1
        %v1298 = vor.u32 %v1293, %v1297
        %v1300 = vshll.u32 %v1111, 16
        %v1302 = vrot.slane %v1300, 1
        %v1303 = vsel %vm598, %v1298, %v1302
        %1304 = vrot.lane.b32.xlu0 %v1123, 16
        %v1305 = vpop.permute.xlu0 %1304
        %1306 = vrot.lane.b32.xlu0 %v1135, 16
        %v1307 = vpop.permute.xlu0 %1306
        %1308 = vrot.lane.b32.xlu0 %v1147, 16
        %v1309 = vpop.permute.xlu0 %1308
        %1310 = vrot.lane.b32.xlu0 %v1159, 16
        %v1311 = vpop.permute.xlu0 %1310
        %1312 = vrot.lane.b32.xlu0 %v1171, 16
        %v1313 = vpop.permute.xlu0 %1312
        %1314 = vrot.lane.b32.xlu0 %v1183, 16
        %v1315 = vpop.permute.xlu0 %1314
        %1316 = vrot.lane.b32.xlu0 %v1195, 16
        %v1317 = vpop.permute.xlu0 %1316
        %1318 = vrot.lane.b32.xlu0 %v1207, 16
        %v1319 = vpop.permute.xlu0 %1318
        %1320 = vrot.lane.b32.xlu0 %v1219, 16
        %v1321 = vpop.permute.xlu0 %1320
        %1322 = vrot.lane.b32.xlu0 %v1231, 16
        %v1323 = vpop.permute.xlu0 %1322
        %1324 = vrot.lane.b32.xlu0 %v1243, 16
        %v1325 = vpop.permute.xlu0 %1324
        %1326 = vrot.lane.b32.xlu0 %v1255, 16
        %v1327 = vpop.permute.xlu0 %1326
        %1328 = vrot.lane.b32.xlu0 %v1267, 16
        %v1329 = vpop.permute.xlu0 %1328
        %1330 = vrot.lane.b32.xlu0 %v1279, 16
        %v1331 = vpop.permute.xlu0 %1330
        %1332 = vrot.lane.b32.xlu0 %v1291, 16
        %v1333 = vpop.permute.xlu0 %1332
        %1334 = vrot.lane.b32.xlu0 %v1303, 16
        %v1335 = vpop.permute.xlu0 %1334
        %v1352 = vunpack.c.l.b16 %v386
        %v1353 = vunpack.c.l.b16 %v387
        %v1354 = vunpack.c.l.b16 %v388
        %v1355 = vunpack.c.l.b16 %v389
        %v1356 = vunpack.c.l.b16 %v390
        %v1357 = vunpack.c.l.b16 %v391
        %v1358 = vunpack.c.l.b16 %v392
        %v1359 = vunpack.c.l.b16 %v393
        %v1360 = vunpack.c.l.b16 %v394
        %v1361 = vunpack.c.l.b16 %v395
        %v1362 = vunpack.c.l.b16 %v396
        %v1363 = vunpack.c.l.b16 %v397
        %v1364 = vunpack.c.l.b16 %v398
        %v1365 = vunpack.c.l.b16 %v399
        %v1366 = vunpack.c.l.b16 %v400
        %v1367 = vunpack.c.l.b16 %v401
        %v1368 = vpack.c.b16 %v985, %v1352
        %v1369 = vpack.c.b16 %v987, %v1353
        %v1370 = vpack.c.b16 %v989, %v1354
        %v1371 = vpack.c.b16 %v991, %v1355
        %v1372 = vpack.c.b16 %v993, %v1356
        %v1373 = vpack.c.b16 %v995, %v1357
        %v1374 = vpack.c.b16 %v997, %v1358
        %v1375 = vpack.c.b16 %v999, %v1359
        %v1376 = vpack.c.b16 %v1001, %v1360
        %v1377 = vpack.c.b16 %v1003, %v1361
        %v1378 = vpack.c.b16 %v1005, %v1362
        %v1379 = vpack.c.b16 %v1007, %v1363
        %v1380 = vpack.c.b16 %v1009, %v1364
        %v1381 = vpack.c.b16 %v1011, %v1365
        %v1382 = vpack.c.b16 %v1013, %v1366
        %v1383 = vpack.c.b16 %v1015, %v1367
        %v1384 = vrot.slane %v1368, 1
        %v1385 = vrot.slane %v1096, 1
        %v1386 = vsel %vm871, %v1384, %v1385
        %v1387 = vrot.slane %v1369, 1
        %v1388 = vrot.slane %v1097, 1
        %v1389 = vsel %vm871, %v1387, %v1388
        %v1390 = vrot.slane %v1370, 1
        %v1391 = vrot.slane %v1098, 1
        %v1392 = vsel %vm871, %v1390, %v1391
        %v1393 = vrot.slane %v1371, 1
        %v1394 = vrot.slane %v1099, 1
        %v1395 = vsel %vm871, %v1393, %v1394
        %v1396 = vrot.slane %v1372, 1
        %v1397 = vrot.slane %v1100, 1
        %v1398 = vsel %vm871, %v1396, %v1397
        %v1399 = vrot.slane %v1373, 1
        %v1400 = vrot.slane %v1101, 1
        %v1401 = vsel %vm871, %v1399, %v1400
        %v1402 = vrot.slane %v1374, 1
        %v1403 = vrot.slane %v1102, 1
        %v1404 = vsel %vm871, %v1402, %v1403
        %v1405 = vrot.slane %v1375, 1
        %v1406 = vrot.slane %v1103, 1
        %v1407 = vsel %vm871, %v1405, %v1406
        %v1408 = vrot.slane %v1376, 1
        %v1409 = vrot.slane %v1104, 1
        %v1410 = vsel %vm871, %v1408, %v1409
        %v1411 = vrot.slane %v1377, 1
        %v1412 = vrot.slane %v1105, 1
        %v1413 = vsel %vm871, %v1411, %v1412
        %v1414 = vrot.slane %v1378, 1
        %v1415 = vrot.slane %v1106, 1
        %v1416 = vsel %vm871, %v1414, %v1415
        %v1417 = vrot.slane %v1379, 1
        %v1418 = vrot.slane %v1107, 1
        %v1419 = vsel %vm871, %v1417, %v1418
        %v1420 = vrot.slane %v1380, 1
        %v1421 = vrot.slane %v1108, 1
        %v1422 = vsel %vm871, %v1420, %v1421
        %v1423 = vrot.slane %v1381, 1
        %v1424 = vrot.slane %v1109, 1
        %v1425 = vsel %vm871, %v1423, %v1424
        %v1426 = vrot.slane %v1382, 1
        %v1427 = vrot.slane %v1110, 1
        %v1428 = vsel %vm871, %v1426, %v1427
        %v1429 = vrot.slane %v1383, 1
        %v1430 = vrot.slane %v1111, 1
        %v1431 = vsel %vm871, %v1429, %v1430
        %1432 = vrot.lane.b32.xlu0 %v1386, 20
        %v1433 = vpop.permute.xlu0 %1432
        %1434 = vrot.lane.b32.xlu0 %v1389, 20
        %v1435 = vpop.permute.xlu0 %1434
        %1436 = vrot.lane.b32.xlu0 %v1392, 20
        %v1437 = vpop.permute.xlu0 %1436
        %1438 = vrot.lane.b32.xlu0 %v1395, 20
        %v1439 = vpop.permute.xlu0 %1438
        %1440 = vrot.lane.b32.xlu0 %v1398, 20
        %v1441 = vpop.permute.xlu0 %1440
        %1442 = vrot.lane.b32.xlu0 %v1401, 20
        %v1443 = vpop.permute.xlu0 %1442
        %1444 = vrot.lane.b32.xlu0 %v1404, 20
        %v1445 = vpop.permute.xlu0 %1444
        %1446 = vrot.lane.b32.xlu0 %v1407, 20
        %v1447 = vpop.permute.xlu0 %1446
        %1448 = vrot.lane.b32.xlu0 %v1410, 20
        %v1449 = vpop.permute.xlu0 %1448
        %1450 = vrot.lane.b32.xlu0 %v1413, 20
        %v1451 = vpop.permute.xlu0 %1450
        %1452 = vrot.lane.b32.xlu0 %v1416, 20
        %v1453 = vpop.permute.xlu0 %1452
        %1454 = vrot.lane.b32.xlu0 %v1419, 20
        %v1455 = vpop.permute.xlu0 %1454
        %1456 = vrot.lane.b32.xlu0 %v1422, 20
        %v1457 = vpop.permute.xlu0 %1456
        %1458 = vrot.lane.b32.xlu0 %v1425, 20
        %v1459 = vpop.permute.xlu0 %1458
        %1460 = vrot.lane.b32.xlu0 %v1428, 20
        %v1461 = vpop.permute.xlu0 %1460
        %1462 = vrot.lane.b32.xlu0 %v1431, 20
        %v1463 = vpop.permute.xlu0 %1462
        %v1496 = vunpack.c.l.b16 %v406
        %v1497 = vunpack.c.l.b16 %v407
        %v1498 = vunpack.c.l.b16 %v408
        %v1499 = vunpack.c.l.b16 %v409
        %v1500 = vunpack.c.l.b16 %v410
        %v1501 = vunpack.c.l.b16 %v411
        %v1502 = vunpack.c.l.b16 %v412
        %v1503 = vunpack.c.l.b16 %v413
        %v1504 = vunpack.c.l.b16 %v414
        %v1505 = vunpack.c.l.b16 %v415
        %v1506 = vunpack.c.l.b16 %v416
        %v1507 = vunpack.c.l.b16 %v417
        %v1508 = vunpack.c.l.b16 %v418
        %v1509 = vunpack.c.l.b16 %v419
        %v1510 = vunpack.c.l.b16 %v420
        %v1511 = vunpack.c.l.b16 %v421
        %v1512 = vunpack.c.l.b16 %v422
        %v1513 = vunpack.c.l.b16 %v423
        %v1514 = vunpack.c.l.b16 %v424
        %v1515 = vunpack.c.l.b16 %v425
        %v1516 = vunpack.c.l.b16 %v426
        %v1517 = vunpack.c.l.b16 %v427
        %v1518 = vunpack.c.l.b16 %v428
        %v1519 = vunpack.c.l.b16 %v429
        %v1520 = vunpack.c.l.b16 %v430
        %v1521 = vunpack.c.l.b16 %v431
        %v1522 = vunpack.c.l.b16 %v432
        %v1523 = vunpack.c.l.b16 %v433
        %v1524 = vunpack.c.l.b16 %v434
        %v1525 = vunpack.c.l.b16 %v435
        %v1526 = vunpack.c.l.b16 %v436
        %v1527 = vunpack.c.l.b16 %v437
        %v1528 = vpack.c.b16 %v1497, %v1496
        %v1529 = vpack.c.b16 %v1499, %v1498
        %v1530 = vpack.c.b16 %v1501, %v1500
        %v1531 = vpack.c.b16 %v1503, %v1502
        %v1532 = vpack.c.b16 %v1505, %v1504
        %v1533 = vpack.c.b16 %v1507, %v1506
        %v1534 = vpack.c.b16 %v1509, %v1508
        %v1535 = vpack.c.b16 %v1511, %v1510
        %v1536 = vpack.c.b16 %v1513, %v1512
        %v1537 = vpack.c.b16 %v1515, %v1514
        %v1538 = vpack.c.b16 %v1517, %v1516
        %v1539 = vpack.c.b16 %v1519, %v1518
        %v1540 = vpack.c.b16 %v1521, %v1520
        %v1541 = vpack.c.b16 %v1523, %v1522
        %v1542 = vpack.c.b16 %v1525, %v1524
        %v1543 = vpack.c.b16 %v1527, %v1526
        %1544 = vrot.lane.b32.xlu0 %v1528, 24
        %v1545 = vpop.permute.xlu0 %1544
        %1546 = vrot.lane.b32.xlu0 %v1529, 24
        %v1547 = vpop.permute.xlu0 %1546
        %1548 = vrot.lane.b32.xlu0 %v1530, 24
        %v1549 = vpop.permute.xlu0 %1548
        %1550 = vrot.lane.b32.xlu0 %v1531, 24
        %v1551 = vpop.permute.xlu0 %1550
        %1552 = vrot.lane.b32.xlu0 %v1532, 24
        %v1553 = vpop.permute.xlu0 %1552
        %1554 = vrot.lane.b32.xlu0 %v1533, 24
        %v1555 = vpop.permute.xlu0 %1554
        %1556 = vrot.lane.b32.xlu0 %v1534, 24
        %v1557 = vpop.permute.xlu0 %1556
        %1558 = vrot.lane.b32.xlu0 %v1535, 24
        %v1559 = vpop.permute.xlu0 %1558
        %1560 = vrot.lane.b32.xlu0 %v1536, 24
        %v1561 = vpop.permute.xlu0 %1560
        %1562 = vrot.lane.b32.xlu0 %v1537, 24
        %v1563 = vpop.permute.xlu0 %1562
        %1564 = vrot.lane.b32.xlu0 %v1538, 24
        %v1565 = vpop.permute.xlu0 %1564
        %1566 = vrot.lane.b32.xlu0 %v1539, 24
        %v1567 = vpop.permute.xlu0 %1566
        %1568 = vrot.lane.b32.xlu0 %v1540, 24
        %v1569 = vpop.permute.xlu0 %1568
        %1570 = vrot.lane.b32.xlu0 %v1541, 24
        %v1571 = vpop.permute.xlu0 %1570
        %1572 = vrot.lane.b32.xlu0 %v1542, 24
        %v1573 = vpop.permute.xlu0 %1572
        %1574 = vrot.lane.b32.xlu0 %v1543, 24
        %v1575 = vpop.permute.xlu0 %1574
        %v1592 = vunpack.c.l.b16 %v438
        %v1593 = vunpack.c.l.b16 %v439
        %v1594 = vunpack.c.l.b16 %v440
        %v1595 = vunpack.c.l.b16 %v441
        %v1596 = vunpack.c.l.b16 %v442
        %v1597 = vunpack.c.l.b16 %v443
        %v1598 = vunpack.c.l.b16 %v444
        %v1599 = vunpack.c.l.b16 %v445
        %v1600 = vunpack.c.l.b16 %v446
        %v1601 = vunpack.c.l.b16 %v447
        %v1602 = vunpack.c.l.b16 %v448
        %v1603 = vunpack.c.l.b16 %v449
        %v1604 = vunpack.c.l.b16 %v450
        %v1605 = vunpack.c.l.b16 %v451
        %v1606 = vunpack.c.l.b16 %v452
        %v1607 = vunpack.c.l.b16 %v453
        %v1608 = vpack.c.b16 %v1592, %v1592
        %v1609 = vpack.c.b16 %v1593, %v1593
        %v1610 = vpack.c.b16 %v1594, %v1594
        %v1611 = vpack.c.b16 %v1595, %v1595
        %v1612 = vpack.c.b16 %v1596, %v1596
        %v1613 = vpack.c.b16 %v1597, %v1597
        %v1614 = vpack.c.b16 %v1598, %v1598
        %v1615 = vpack.c.b16 %v1599, %v1599
        %v1616 = vpack.c.b16 %v1600, %v1600
        %v1617 = vpack.c.b16 %v1601, %v1601
        %v1618 = vpack.c.b16 %v1602, %v1602
        %v1619 = vpack.c.b16 %v1603, %v1603
        %v1620 = vpack.c.b16 %v1604, %v1604
        %v1621 = vpack.c.b16 %v1605, %v1605
        %v1622 = vpack.c.b16 %v1606, %v1606
        %v1623 = vpack.c.b16 %v1607, %v1607
        %v1625 = vshrl.u32 %v1528, 16
        %v1627 = vshll.u32 %v1528, 16
        %v1629 = vrot.slane %v1627, 1
        %v1630 = vor.u32 %v1625, %v1629
        %v1632 = vshll.u32 %v1608, 16
        %v1634 = vrot.slane %v1632, 1
        %v1635 = vsel %vm598, %v1630, %v1634
        %v1637 = vshrl.u32 %v1529, 16
        %v1639 = vshll.u32 %v1529, 16
        %v1641 = vrot.slane %v1639, 1
        %v1642 = vor.u32 %v1637, %v1641
        %v1644 = vshll.u32 %v1609, 16
        %v1646 = vrot.slane %v1644, 1
        %v1647 = vsel %vm598, %v1642, %v1646
        %v1649 = vshrl.u32 %v1530, 16
        %v1651 = vshll.u32 %v1530, 16
        %v1653 = vrot.slane %v1651, 1
        %v1654 = vor.u32 %v1649, %v1653
        %v1656 = vshll.u32 %v1610, 16
        %v1658 = vrot.slane %v1656, 1
        %v1659 = vsel %vm598, %v1654, %v1658
        %v1661 = vshrl.u32 %v1531, 16
        %v1663 = vshll.u32 %v1531, 16
        %v1665 = vrot.slane %v1663, 1
        %v1666 = vor.u32 %v1661, %v1665
        %v1668 = vshll.u32 %v1611, 16
        %v1670 = vrot.slane %v1668, 1
        %v1671 = vsel %vm598, %v1666, %v1670
        %v1673 = vshrl.u32 %v1532, 16
        %v1675 = vshll.u32 %v1532, 16
        %v1677 = vrot.slane %v1675, 1
        %v1678 = vor.u32 %v1673, %v1677
        %v1680 = vshll.u32 %v1612, 16
        %v1682 = vrot.slane %v1680, 1
        %v1683 = vsel %vm598, %v1678, %v1682
        %v1685 = vshrl.u32 %v1533, 16
        %v1687 = vshll.u32 %v1533, 16
        %v1689 = vrot.slane %v1687, 1
        %v1690 = vor.u32 %v1685, %v1689
        %v1692 = vshll.u32 %v1613, 16
        %v1694 = vrot.slane %v1692, 1
        %v1695 = vsel %vm598, %v1690, %v1694
        %v1697 = vshrl.u32 %v1534, 16
        %v1699 = vshll.u32 %v1534, 16
        %v1701 = vrot.slane %v1699, 1
        %v1702 = vor.u32 %v1697, %v1701
        %v1704 = vshll.u32 %v1614, 16
        %v1706 = vrot.slane %v1704, 1
        %v1707 = vsel %vm598, %v1702, %v1706
        %v1709 = vshrl.u32 %v1535, 16
        %v1711 = vshll.u32 %v1535, 16
        %v1713 = vrot.slane %v1711, 1
        %v1714 = vor.u32 %v1709, %v1713
        %v1716 = vshll.u32 %v1615, 16
        %v1718 = vrot.slane %v1716, 1
        %v1719 = vsel %vm598, %v1714, %v1718
        %v1721 = vshrl.u32 %v1536, 16
        %v1723 = vshll.u32 %v1536, 16
        %v1725 = vrot.slane %v1723, 1
        %v1726 = vor.u32 %v1721, %v1725
        %v1728 = vshll.u32 %v1616, 16
        %v1730 = vrot.slane %v1728, 1
        %v1731 = vsel %vm598, %v1726, %v1730
        %v1733 = vshrl.u32 %v1537, 16
        %v1735 = vshll.u32 %v1537, 16
        %v1737 = vrot.slane %v1735, 1
        %v1738 = vor.u32 %v1733, %v1737
        %v1740 = vshll.u32 %v1617, 16
        %v1742 = vrot.slane %v1740, 1
        %v1743 = vsel %vm598, %v1738, %v1742
        %v1745 = vshrl.u32 %v1538, 16
        %v1747 = vshll.u32 %v1538, 16
        %v1749 = vrot.slane %v1747, 1
        %v1750 = vor.u32 %v1745, %v1749
        %v1752 = vshll.u32 %v1618, 16
        %v1754 = vrot.slane %v1752, 1
        %v1755 = vsel %vm598, %v1750, %v1754
        %v1757 = vshrl.u32 %v1539, 16
        %v1759 = vshll.u32 %v1539, 16
        %v1761 = vrot.slane %v1759, 1
        %v1762 = vor.u32 %v1757, %v1761
        %v1764 = vshll.u32 %v1619, 16
        %v1766 = vrot.slane %v1764, 1
        %v1767 = vsel %vm598, %v1762, %v1766
        %v1769 = vshrl.u32 %v1540, 16
        %v1771 = vshll.u32 %v1540, 16
        %v1773 = vrot.slane %v1771, 1
        %v1774 = vor.u32 %v1769, %v1773
        %v1776 = vshll.u32 %v1620, 16
        %v1778 = vrot.slane %v1776, 1
        %v1779 = vsel %vm598, %v1774, %v1778
        %v1781 = vshrl.u32 %v1541, 16
        %v1783 = vshll.u32 %v1541, 16
        %v1785 = vrot.slane %v1783, 1
        %v1786 = vor.u32 %v1781, %v1785
        %v1788 = vshll.u32 %v1621, 16
        %v1790 = vrot.slane %v1788, 1
        %v1791 = vsel %vm598, %v1786, %v1790
        %v1793 = vshrl.u32 %v1542, 16
        %v1795 = vshll.u32 %v1542, 16
        %v1797 = vrot.slane %v1795, 1
        %v1798 = vor.u32 %v1793, %v1797
        %v1800 = vshll.u32 %v1622, 16
        %v1802 = vrot.slane %v1800, 1
        %v1803 = vsel %vm598, %v1798, %v1802
        %v1805 = vshrl.u32 %v1543, 16
        %v1807 = vshll.u32 %v1543, 16
        %v1809 = vrot.slane %v1807, 1
        %v1810 = vor.u32 %v1805, %v1809
        %v1812 = vshll.u32 %v1623, 16
        %v1814 = vrot.slane %v1812, 1
        %v1815 = vsel %vm598, %v1810, %v1814
        %1816 = vrot.lane.b32.xlu0 %v1635, 28
        %v1817 = vpop.permute.xlu0 %1816
        %1818 = vrot.lane.b32.xlu0 %v1647, 28
        %v1819 = vpop.permute.xlu0 %1818
        %1820 = vrot.lane.b32.xlu0 %v1659, 28
        %v1821 = vpop.permute.xlu0 %1820
        %1822 = vrot.lane.b32.xlu0 %v1671, 28
        %v1823 = vpop.permute.xlu0 %1822
        %1824 = vrot.lane.b32.xlu0 %v1683, 28
        %v1825 = vpop.permute.xlu0 %1824
        %1826 = vrot.lane.b32.xlu0 %v1695, 28
        %v1827 = vpop.permute.xlu0 %1826
        %1828 = vrot.lane.b32.xlu0 %v1707, 28
        %v1829 = vpop.permute.xlu0 %1828
        %1830 = vrot.lane.b32.xlu0 %v1719, 28
        %v1831 = vpop.permute.xlu0 %1830
        %1832 = vrot.lane.b32.xlu0 %v1731, 28
        %v1833 = vpop.permute.xlu0 %1832
        %1834 = vrot.lane.b32.xlu0 %v1743, 28
        %v1835 = vpop.permute.xlu0 %1834
        %1836 = vrot.lane.b32.xlu0 %v1755, 28
        %v1837 = vpop.permute.xlu0 %1836
        %1838 = vrot.lane.b32.xlu0 %v1767, 28
        %v1839 = vpop.permute.xlu0 %1838
        %1840 = vrot.lane.b32.xlu0 %v1779, 28
        %v1841 = vpop.permute.xlu0 %1840
        %1842 = vrot.lane.b32.xlu0 %v1791, 28
        %v1843 = vpop.permute.xlu0 %1842
        %1844 = vrot.lane.b32.xlu0 %v1803, 28
        %v1845 = vpop.permute.xlu0 %1844
        %1846 = vrot.lane.b32.xlu0 %v1815, 28
        %v1847 = vpop.permute.xlu0 %1846
        %v1864 = vunpack.c.l.b16 %v454
        %v1865 = vunpack.c.l.b16 %v455
        %v1866 = vunpack.c.l.b16 %v456
        %v1867 = vunpack.c.l.b16 %v457
        %v1868 = vunpack.c.l.b16 %v458
        %v1869 = vunpack.c.l.b16 %v459
        %v1870 = vunpack.c.l.b16 %v460
        %v1871 = vunpack.c.l.b16 %v461
        %v1872 = vunpack.c.l.b16 %v462
        %v1873 = vunpack.c.l.b16 %v463
        %v1874 = vunpack.c.l.b16 %v464
        %v1875 = vunpack.c.l.b16 %v465
        %v1876 = vunpack.c.l.b16 %v466
        %v1877 = vunpack.c.l.b16 %v467
        %v1878 = vunpack.c.l.b16 %v468
        %v1879 = vunpack.c.l.b16 %v469
        %v1880 = vpack.c.b16 %v1497, %v1864
        %v1881 = vpack.c.b16 %v1499, %v1865
        %v1882 = vpack.c.b16 %v1501, %v1866
        %v1883 = vpack.c.b16 %v1503, %v1867
        %v1884 = vpack.c.b16 %v1505, %v1868
        %v1885 = vpack.c.b16 %v1507, %v1869
        %v1886 = vpack.c.b16 %v1509, %v1870
        %v1887 = vpack.c.b16 %v1511, %v1871
        %v1888 = vpack.c.b16 %v1513, %v1872
        %v1889 = vpack.c.b16 %v1515, %v1873
        %v1890 = vpack.c.b16 %v1517, %v1874
        %v1891 = vpack.c.b16 %v1519, %v1875
        %v1892 = vpack.c.b16 %v1521, %v1876
        %v1893 = vpack.c.b16 %v1523, %v1877
        %v1894 = vpack.c.b16 %v1525, %v1878
        %v1895 = vpack.c.b16 %v1527, %v1879
        %v1896 = vrot.slane %v1880, 1
        %v1897 = vrot.slane %v1608, 1
        %v1898 = vsel %vm871, %v1896, %v1897
        %v1899 = vrot.slane %v1881, 1
        %v1900 = vrot.slane %v1609, 1
        %v1901 = vsel %vm871, %v1899, %v1900
        %v1902 = vrot.slane %v1882, 1
        %v1903 = vrot.slane %v1610, 1
        %v1904 = vsel %vm871, %v1902, %v1903
        %v1905 = vrot.slane %v1883, 1
        %v1906 = vrot.slane %v1611, 1
        %v1907 = vsel %vm871, %v1905, %v1906
        %v1908 = vrot.slane %v1884, 1
        %v1909 = vrot.slane %v1612, 1
        %v1910 = vsel %vm871, %v1908, %v1909
        %v1911 = vrot.slane %v1885, 1
        %v1912 = vrot.slane %v1613, 1
        %v1913 = vsel %vm871, %v1911, %v1912
        %v1914 = vrot.slane %v1886, 1
        %v1915 = vrot.slane %v1614, 1
        %v1916 = vsel %vm871, %v1914, %v1915
        %v1917 = vrot.slane %v1887, 1
        %v1918 = vrot.slane %v1615, 1
        %v1919 = vsel %vm871, %v1917, %v1918
        %v1920 = vrot.slane %v1888, 1
        %v1921 = vrot.slane %v1616, 1
        %v1922 = vsel %vm871, %v1920, %v1921
        %v1923 = vrot.slane %v1889, 1
        %v1924 = vrot.slane %v1617, 1
        %v1925 = vsel %vm871, %v1923, %v1924
        %v1926 = vrot.slane %v1890, 1
        %v1927 = vrot.slane %v1618, 1
        %v1928 = vsel %vm871, %v1926, %v1927
        %v1929 = vrot.slane %v1891, 1
        %v1930 = vrot.slane %v1619, 1
        %v1931 = vsel %vm871, %v1929, %v1930
        %v1932 = vrot.slane %v1892, 1
        %v1933 = vrot.slane %v1620, 1
        %v1934 = vsel %vm871, %v1932, %v1933
        %v1935 = vrot.slane %v1893, 1
        %v1936 = vrot.slane %v1621, 1
        %v1937 = vsel %vm871, %v1935, %v1936
        %v1938 = vrot.slane %v1894, 1
        %v1939 = vrot.slane %v1622, 1
        %v1940 = vsel %vm871, %v1938, %v1939
        %v1941 = vrot.slane %v1895, 1
        %v1942 = vrot.slane %v1623, 1
        %v1943 = vsel %vm871, %v1941, %v1942
        %1944 = vrot.lane.b32.xlu0 %v1898, 32
        %v1945 = vpop.permute.xlu0 %1944
        %1946 = vrot.lane.b32.xlu0 %v1901, 32
        %v1947 = vpop.permute.xlu0 %1946
        %1948 = vrot.lane.b32.xlu0 %v1904, 32
        %v1949 = vpop.permute.xlu0 %1948
        %1950 = vrot.lane.b32.xlu0 %v1907, 32
        %v1951 = vpop.permute.xlu0 %1950
        %1952 = vrot.lane.b32.xlu0 %v1910, 32
        %v1953 = vpop.permute.xlu0 %1952
        %1954 = vrot.lane.b32.xlu0 %v1913, 32
        %v1955 = vpop.permute.xlu0 %1954
        %1956 = vrot.lane.b32.xlu0 %v1916, 32
        %v1957 = vpop.permute.xlu0 %1956
        %1958 = vrot.lane.b32.xlu0 %v1919, 32
        %v1959 = vpop.permute.xlu0 %1958
        %1960 = vrot.lane.b32.xlu0 %v1922, 32
        %v1961 = vpop.permute.xlu0 %1960
        %1962 = vrot.lane.b32.xlu0 %v1925, 32
        %v1963 = vpop.permute.xlu0 %1962
        %1964 = vrot.lane.b32.xlu0 %v1928, 32
        %v1965 = vpop.permute.xlu0 %1964
        %1966 = vrot.lane.b32.xlu0 %v1931, 32
        %v1967 = vpop.permute.xlu0 %1966
        %1968 = vrot.lane.b32.xlu0 %v1934, 32
        %v1969 = vpop.permute.xlu0 %1968
        %1970 = vrot.lane.b32.xlu0 %v1937, 32
        %v1971 = vpop.permute.xlu0 %1970
        %1972 = vrot.lane.b32.xlu0 %v1940, 32
        %v1973 = vpop.permute.xlu0 %1972
        %1974 = vrot.lane.b32.xlu0 %v1943, 32
        %v1975 = vpop.permute.xlu0 %1974
        %vm1976 = vcmask 31744
        %v1978 = vsel %vm1976, %v534, %v792
        %v1980 = vsel %vm1976, %v535, %v794
        %v1982 = vsel %vm1976, %v536, %v796
        %v1984 = vsel %vm1976, %v537, %v798
        %v1986 = vsel %vm1976, %v538, %v800
        %v1988 = vsel %vm1976, %v539, %v802
        %v1990 = vsel %vm1976, %v540, %v804
        %v1992 = vsel %vm1976, %v541, %v806
        %v1994 = vsel %vm1976, %v542, %v808
        %v1996 = vsel %vm1976, %v543, %v810
        %v1998 = vsel %vm1976, %v544, %v812
        %v2000 = vsel %vm1976, %v545, %v814
        %v2002 = vsel %vm1976, %v546, %v816
        %v2004 = vsel %vm1976, %v547, %v818
        %v2006 = vsel %vm1976, %v548, %v820
        %v2008 = vsel %vm1976, %v549, %v822
        %vm2009 = vcmask 64512
        %v2011 = vsel %vm2009, %v1978, %v921
        %v2013 = vsel %vm2009, %v1980, %v923
        %v2015 = vsel %vm2009, %v1982, %v925
        %v2017 = vsel %vm2009, %v1984, %v927
        %v2019 = vsel %vm2009, %v1986, %v929
        %v2021 = vsel %vm2009, %v1988, %v931
        %v2023 = vsel %vm2009, %v1990, %v933
        %v2025 = vsel %vm2009, %v1992, %v935
        %v2027 = vsel %vm2009, %v1994, %v937
        %v2029 = vsel %vm2009, %v1996, %v939
        %v2031 = vsel %vm2009, %v1998, %v941
        %v2033 = vsel %vm2009, %v2000, %v943
        %v2035 = vsel %vm2009, %v2002, %v945
        %v2037 = vsel %vm2009, %v2004, %v947
        %v2039 = vsel %vm2009, %v2006, %v949
        %v2041 = vsel %vm2009, %v2008, %v951
        %vm2042 = vcmask 97280
        %v2044 = vsel %vm2042, %v2011, %v1033
        %v2046 = vsel %vm2042, %v2013, %v1035
        %v2048 = vsel %vm2042, %v2015, %v1037
        %v2050 = vsel %vm2042, %v2017, %v1039
        %v2052 = vsel %vm2042, %v2019, %v1041
        %v2054 = vsel %vm2042, %v2021, %v1043
        %v2056 = vsel %vm2042, %v2023, %v1045
        %v2058 = vsel %vm2042, %v2025, %v1047
        %v2060 = vsel %vm2042, %v2027, %v1049
        %v2062 = vsel %vm2042, %v2029, %v1051
        %v2064 = vsel %vm2042, %v2031, %v1053
        %v2066 = vsel %vm2042, %v2033, %v1055
        %v2068 = vsel %vm2042, %v2035, %v1057
        %v2070 = vsel %vm2042, %v2037, %v1059
        %v2072 = vsel %vm2042, %v2039, %v1061
        %v2074 = vsel %vm2042, %v2041, %v1063
        %vm2075 = vcmask 130048
        %v2077 = vsel %vm2075, %v2044, %v1305
        %v2079 = vsel %vm2075, %v2046, %v1307
        %v2081 = vsel %vm2075, %v2048, %v1309
        %v2083 = vsel %vm2075, %v2050, %v1311
        %v2085 = vsel %vm2075, %v2052, %v1313
        %v2087 = vsel %vm2075, %v2054, %v1315
        %v2089 = vsel %vm2075, %v2056, %v1317
        %v2091 = vsel %vm2075, %v2058, %v1319
        %v2093 = vsel %vm2075, %v2060, %v1321
        %v2095 = vsel %vm2075, %v2062, %v1323
        %v2097 = vsel %vm2075, %v2064, %v1325
        %v2099 = vsel %vm2075, %v2066, %v1327
        %v2101 = vsel %vm2075, %v2068, %v1329
        %v2103 = vsel %vm2075, %v2070, %v1331
        %v2105 = vsel %vm2075, %v2072, %v1333
        %v2107 = vsel %vm2075, %v2074, %v1335
        %vm2108 = vcmask 162816
        %v2110 = vsel %vm2108, %v2077, %v1433
        %v2112 = vsel %vm2108, %v2079, %v1435
        %v2114 = vsel %vm2108, %v2081, %v1437
        %v2116 = vsel %vm2108, %v2083, %v1439
        %v2118 = vsel %vm2108, %v2085, %v1441
        %v2120 = vsel %vm2108, %v2087, %v1443
        %v2122 = vsel %vm2108, %v2089, %v1445
        %v2124 = vsel %vm2108, %v2091, %v1447
        %v2126 = vsel %vm2108, %v2093, %v1449
        %v2128 = vsel %vm2108, %v2095, %v1451
        %v2130 = vsel %vm2108, %v2097, %v1453
        %v2132 = vsel %vm2108, %v2099, %v1455
        %v2134 = vsel %vm2108, %v2101, %v1457
        %v2136 = vsel %vm2108, %v2103, %v1459
        %v2138 = vsel %vm2108, %v2105, %v1461
        %v2140 = vsel %vm2108, %v2107, %v1463
        %vm2141 = vcmask 195584
        %v2143 = vsel %vm2141, %v2110, %v1545
        %v2145 = vsel %vm2141, %v2112, %v1547
        %v2147 = vsel %vm2141, %v2114, %v1549
        %v2149 = vsel %vm2141, %v2116, %v1551
        %v2151 = vsel %vm2141, %v2118, %v1553
        %v2153 = vsel %vm2141, %v2120, %v1555
        %v2155 = vsel %vm2141, %v2122, %v1557
        %v2157 = vsel %vm2141, %v2124, %v1559
        %v2159 = vsel %vm2141, %v2126, %v1561
        %v2161 = vsel %vm2141, %v2128, %v1563
        %v2163 = vsel %vm2141, %v2130, %v1565
        %v2165 = vsel %vm2141, %v2132, %v1567
        %v2167 = vsel %vm2141, %v2134, %v1569
        %v2169 = vsel %vm2141, %v2136, %v1571
        %v2171 = vsel %vm2141, %v2138, %v1573
        %v2173 = vsel %vm2141, %v2140, %v1575
        %vm2174 = vcmask 228352
        %v2176 = vsel %vm2174, %v2143, %v1817
        %v2178 = vsel %vm2174, %v2145, %v1819
        %v2180 = vsel %vm2174, %v2147, %v1821
        %v2182 = vsel %vm2174, %v2149, %v1823
        %v2184 = vsel %vm2174, %v2151, %v1825
        %v2186 = vsel %vm2174, %v2153, %v1827
        %v2188 = vsel %vm2174, %v2155, %v1829
        %v2190 = vsel %vm2174, %v2157, %v1831
        %v2192 = vsel %vm2174, %v2159, %v1833
        %v2194 = vsel %vm2174, %v2161, %v1835
        %v2196 = vsel %vm2174, %v2163, %v1837
        %v2198 = vsel %vm2174, %v2165, %v1839
        %v2200 = vsel %vm2174, %v2167, %v1841
        %v2202 = vsel %vm2174, %v2169, %v1843
        %v2204 = vsel %vm2174, %v2171, %v1845
        %v2206 = vsel %vm2174, %v2173, %v1847
        %vm2207 = vcmask 261120
        %v2209 = vsel %vm2207, %v2176, %v1945
        %v2211 = vsel %vm2207, %v2178, %v1947
        %v2213 = vsel %vm2207, %v2180, %v1949
        %v2215 = vsel %vm2207, %v2182, %v1951
        %v2217 = vsel %vm2207, %v2184, %v1953
        %v2219 = vsel %vm2207, %v2186, %v1955
        %v2221 = vsel %vm2207, %v2188, %v1957
        %v2223 = vsel %vm2207, %v2190, %v1959
        %v2225 = vsel %vm2207, %v2192, %v1961
        %v2227 = vsel %vm2207, %v2194, %v1963
        %v2229 = vsel %vm2207, %v2196, %v1965
        %v2231 = vsel %vm2207, %v2198, %v1967
        %v2233 = vsel %vm2207, %v2200, %v1969
        %v2235 = vsel %vm2207, %v2202, %v1971
        %v2237 = vsel %vm2207, %v2204, %v1973
        %v2239 = vsel %vm2207, %v2206, %v1975
        %v2240 = vld [vmem:[%s257] sm:$0xf]
        %v2241 = vld [vmem:[%s257 + $0x4] sm:$0xf]
        %v2242 = vld [vmem:[%s257 + $0x8] sm:$0xf]
        %v2243 = vld [vmem:[%s257 + $0xc] sm:$0xf]
        %v2244 = vld [vmem:[%s257 + $0x10] sm:$0x3]
        %v2250 = vunpack.c.l.b16 %v2240
        %v2251 = vunpack.c.l.b16 %v2241
        %v2252 = vunpack.c.l.b16 %v2242
        %v2253 = vunpack.c.l.b16 %v2243
        %v2254 = vunpack.c.l.b16 %v2244
        %v2255 = vpack.c.b16 %v2251, %v2250
        %v2256 = vpack.c.b16 %v2253, %v2252
        %v2257 = vpack.c.b16 %v2254, %v2254
        %vm2260 = vcmask 293888
        %v2261 = vsel %vm2260, %v2209, 0
        %v2263 = vsel %vm2260, %v2211, 0
        %v2265 = vsel %vm2260, %v2213, 0
        %v2267 = vsel %vm2260, %v2215, 0
        %v2269 = vsel %vm2260, %v2217, 0
        %v2271 = vsel %vm2260, %v2219, 0
        %v2273 = vsel %vm2260, %v2221, 0
        %v2275 = vsel %vm2260, %v2223, 0
        %v2277 = vsel %vm2260, %v2225, 0
        %v2279 = vsel %vm2260, %v2227, 0
        %v2281 = vsel %vm2260, %v2229, 0
        %v2283 = vsel %vm2260, %v2231, 0
        %v2285 = vsel %vm2260, %v2233, 0
        %v2287 = vsel %vm2260, %v2235, 0
        %v2289 = vsel %vm2260, %v2237, 0
        %v2291 = vsel %vm2260, %v2239, 0
        %vm2293 = vcmask 1041408
        %v2295 = vsel %vm2293, %v2257, 0
        %2297 = vmatprep.subr.bf16.mxu0 0
        %2298 = vmatpush1.bf16.msra.mxu0 %v2255
        %2299 = vmatprep.subr.bf16.mxu0 0
        %2300 = vmatpush1.bf16.msra.mxu0 %v2256
        %2301 = vmatprep.subr.bf16.mxu0 0
        %2302 = vmatpush1.bf16.msra.mxu0 %v2295
        %2303 = vmatprep.subr.bf16.mxu0 0
        %2304 = vmatpush1.bf16.msra.mxu0 0
        %2305 = vmatprep.subr.bf16.mxu0 0
        %2306 = vmatpush1.bf16.msra.mxu0 0
        %2307 = vmatprep.subr.bf16.mxu0 0
        %2308 = vmatpush1.bf16.msra.mxu0 0
        %2309 = vmatprep.subr.bf16.mxu0 0
        %2310 = vmatpush1.bf16.msra.mxu0 0
        %2311 = vmatprep.subr.bf16.mxu0 0
        %2312 = vmatpush1.bf16.msra.mxu0 0
        %2313 = vmatprep.subr.bf16.mxu0 0
        %2314 = vmatpush1.bf16.msra.mxu0 0
        %2315 = vmatprep.subr.bf16.mxu0 0
        %2316 = vmatpush1.bf16.msra.mxu0 0
        %2317 = vmatprep.subr.bf16.mxu0 0
        %2318 = vmatpush1.bf16.msra.mxu0 0
        %2319 = vmatprep.subr.bf16.mxu0 0
        %2320 = vmatpush1.bf16.msra.mxu0 0
        %2321 = vmatprep.subr.bf16.mxu0 0
        %2322 = vmatpush1.bf16.msra.mxu0 0
        %2323 = vmatprep.subr.bf16.mxu0 0
        %2324 = vmatpush1.bf16.msra.mxu0 0
        %2325 = vmatprep.subr.bf16.mxu0 0
        %2326 = vmatpush1.bf16.msra.mxu0 0
        %2327 = vmatprep.subr.bf16.mxu0 0
        %2328 = vmatpush1.bf16.msra.mxu0 0
        %2329 = vmatprep.mubr.bf16.mxu0 0
        %2330 = vmatmul.mubr.bf16.gmra.mrb[0].mxu0 %v2261
        %v2331 = vpop.f32.mrb[0].mxu0
        %v2332 = vadd.f32 0.0, %v2331
        %v2333 = vpop.f32.mrb[0].mxu0
        %v2334 = vpop.f32.mrb[0].mxu0
        %v2335 = vadd.f32 0.0, %v2334
        %v2336 = vpop.f32.mrb[0].mxu0
        %2337 = vmatprep.mubr.bf16.mxu0 0
        %2338 = vmatmul.mubr.bf16.gmra.mrb[0].mxu0 %v2263
        %v2339 = vpop.f32.mrb[0].mxu0
        %v2340 = vadd.f32 0.0, %v2339
        %v2341 = vpop.f32.mrb[0].mxu0
        %v2342 = vpop.f32.mrb[0].mxu0
        %v2343 = vadd.f32 0.0, %v2342
        %v2344 = vpop.f32.mrb[0].mxu0
        %2345 = vmatprep.mubr.bf16.mxu0 0
        %2346 = vmatmul.mubr.bf16.gmra.mrb[0].mxu0 %v2265
        %v2347 = vpop.f32.mrb[0].mxu0
        %v2348 = vadd.f32 0.0, %v2347
        %v2349 = vpop.f32.mrb[0].mxu0
        %v2350 = vpop.f32.mrb[0].mxu0
        %v2351 = vadd.f32 0.0, %v2350
        %v2352 = vpop.f32.mrb[0].mxu0
        %2353 = vmatprep.mubr.bf16.mxu0 0
        %2354 = vmatmul.mubr.bf16.gmra.mrb[0].mxu0 %v2267
        %v2355 = vpop.f32.mrb[0].mxu0
        %v2356 = vadd.f32 0.0, %v2355
        %v2357 = vpop.f32.mrb[0].mxu0
        %v2358 = vpop.f32.mrb[0].mxu0
        %v2359 = vadd.f32 0.0, %v2358
        %v2360 = vpop.f32.mrb[0].mxu0
        %2361 = vmatprep.mubr.bf16.mxu0 0
        %2362 = vmatmul.mubr.bf16.gmra.mrb[0].mxu0 %v2269
        %v2363 = vpop.f32.mrb[0].mxu0
        %v2364 = vadd.f32 0.0, %v2363
        %v2365 = vpop.f32.mrb[0].mxu0
        %v2366 = vpop.f32.mrb[0].mxu0
        %v2367 = vadd.f32 0.0, %v2366
        %v2368 = vpop.f32.mrb[0].mxu0
        %2369 = vmatprep.mubr.bf16.mxu0 0
        %2370 = vmatmul.mubr.bf16.gmra.mrb[0].mxu0 %v2271
        %v2371 = vpop.f32.mrb[0].mxu0
        %v2372 = vadd.f32 0.0, %v2371
        %v2373 = vpop.f32.mrb[0].mxu0
        %v2374 = vpop.f32.mrb[0].mxu0
        %v2375 = vadd.f32 0.0, %v2374
        %v2376 = vpop.f32.mrb[0].mxu0
        %2377 = vmatprep.mubr.bf16.mxu0 0
        %2378 = vmatmul.mubr.bf16.gmra.mrb[0].mxu0 %v2273
        %v2379 = vpop.f32.mrb[0].mxu0
        %v2380 = vadd.f32 0.0, %v2379
        %v2381 = vpop.f32.mrb[0].mxu0
        %v2382 = vpop.f32.mrb[0].mxu0
        %v2383 = vadd.f32 0.0, %v2382
        %v2384 = vpop.f32.mrb[0].mxu0
        %2385 = vmatprep.mubr.bf16.mxu0 0
        %2386 = vmatmul.mubr.bf16.gmra.mrb[0].mxu0 %v2275
        %v2387 = vpop.f32.mrb[0].mxu0
        %v2388 = vadd.f32 0.0, %v2387
        %v2389 = vpop.f32.mrb[0].mxu0
        %v2390 = vpop.f32.mrb[0].mxu0
        %v2391 = vadd.f32 0.0, %v2390
        %v2392 = vpop.f32.mrb[0].mxu0
        %2393 = vmatprep.mubr.bf16.mxu0 0
        %2394 = vmatmul.mubr.bf16.gmra.mrb[0].mxu0 %v2277
        %v2395 = vpop.f32.mrb[0].mxu0
        %v2396 = vadd.f32 0.0, %v2395
        %v2397 = vpop.f32.mrb[0].mxu0
        %v2398 = vpop.f32.mrb[0].mxu0
        %v2399 = vadd.f32 0.0, %v2398
        %v2400 = vpop.f32.mrb[0].mxu0
        %2401 = vmatprep.mubr.bf16.mxu0 0
        %2402 = vmatmul.mubr.bf16.gmra.mrb[0].mxu0 %v2279
        %v2403 = vpop.f32.mrb[0].mxu0
        %v2404 = vadd.f32 0.0, %v2403
        %v2405 = vpop.f32.mrb[0].mxu0
        %v2406 = vpop.f32.mrb[0].mxu0
        %v2407 = vadd.f32 0.0, %v2406
        %v2408 = vpop.f32.mrb[0].mxu0
        %2409 = vmatprep.mubr.bf16.mxu0 0
        %2410 = vmatmul.mubr.bf16.gmra.mrb[0].mxu0 %v2281
        %v2411 = vpop.f32.mrb[0].mxu0
        %v2412 = vadd.f32 0.0, %v2411
        %v2413 = vpop.f32.mrb[0].mxu0
        %v2414 = vpop.f32.mrb[0].mxu0
        %v2415 = vadd.f32 0.0, %v2414
        %v2416 = vpop.f32.mrb[0].mxu0
        %2417 = vmatprep.mubr.bf16.mxu0 0
        %2418 = vmatmul.mubr.bf16.gmra.mrb[0].mxu0 %v2283
        %v2419 = vpop.f32.mrb[0].mxu0
        %v2420 = vadd.f32 0.0, %v2419
        %v2421 = vpop.f32.mrb[0].mxu0
        %v2422 = vpop.f32.mrb[0].mxu0
        %v2423 = vadd.f32 0.0, %v2422
        %v2424 = vpop.f32.mrb[0].mxu0
        %2425 = vmatprep.mubr.bf16.mxu0 0
        %2426 = vmatmul.mubr.bf16.gmra.mrb[0].mxu0 %v2285
        %v2427 = vpop.f32.mrb[0].mxu0
        %v2428 = vadd.f32 0.0, %v2427
        %v2429 = vpop.f32.mrb[0].mxu0
        %v2430 = vpop.f32.mrb[0].mxu0
        %v2431 = vadd.f32 0.0, %v2430
        %v2432 = vpop.f32.mrb[0].mxu0
        %2433 = vmatprep.mubr.bf16.mxu0 0
        %2434 = vmatmul.mubr.bf16.gmra.mrb[0].mxu0 %v2287
        %v2435 = vpop.f32.mrb[0].mxu0
        %v2436 = vadd.f32 0.0, %v2435
        %v2437 = vpop.f32.mrb[0].mxu0
        %v2438 = vpop.f32.mrb[0].mxu0
        %v2439 = vadd.f32 0.0, %v2438
        %v2440 = vpop.f32.mrb[0].mxu0
        %2441 = vmatprep.mubr.bf16.mxu0 0
        %2442 = vmatmul.mubr.bf16.gmra.mrb[0].mxu0 %v2289
        %v2443 = vpop.f32.mrb[0].mxu0
        %v2444 = vadd.f32 0.0, %v2443
        %v2445 = vpop.f32.mrb[0].mxu0
        %v2446 = vpop.f32.mrb[0].mxu0
        %v2447 = vadd.f32 0.0, %v2446
        %v2448 = vpop.f32.mrb[0].mxu0
        %2449 = vmatprep.mubr.bf16.mxu0 0
        %2450 = vmatmul.mubr.bf16.gmra.mrb[0].mxu0 %v2291
        %v2451 = vpop.f32.mrb[0].mxu0
        %v2452 = vadd.f32 0.0, %v2451
        %v2453 = vpop.f32.mrb[0].mxu0
        %v2454 = vpop.f32.mrb[0].mxu0
        %v2455 = vadd.f32 0.0, %v2454
        %v2456 = vpop.f32.mrb[0].mxu0
        %2457 = vdwg.mxu0
        %v2458 = vld [vmem:[%s260] sm:$0x1]
        %v2460 = vlaneseq
        %v2461 = vshrl.u32 %v2460, 7
        %v2462 = vsub.s32 0, %v2461
        %v2463 = vrot.slane %v2458, %v2462
        %v2465 = vmul.f32 %v2332, %v2463
        %v2466 = vmul.f32 %v2335, %v2463
        %v2467 = vmul.f32 %v2340, %v2463
        %v2468 = vmul.f32 %v2343, %v2463
        %v2469 = vmul.f32 %v2348, %v2463
        %v2470 = vmul.f32 %v2351, %v2463
        %v2471 = vmul.f32 %v2356, %v2463
        %v2472 = vmul.f32 %v2359, %v2463
        %v2473 = vmul.f32 %v2364, %v2463
        %v2474 = vmul.f32 %v2367, %v2463
        %v2475 = vmul.f32 %v2372, %v2463
        %v2476 = vmul.f32 %v2375, %v2463
        %v2477 = vmul.f32 %v2380, %v2463
        %v2478 = vmul.f32 %v2383, %v2463
        %v2479 = vmul.f32 %v2388, %v2463
        %v2480 = vmul.f32 %v2391, %v2463
        %v2481 = vmul.f32 %v2396, %v2463
        %v2482 = vmul.f32 %v2399, %v2463
        %v2483 = vmul.f32 %v2404, %v2463
        %v2484 = vmul.f32 %v2407, %v2463
        %v2485 = vmul.f32 %v2412, %v2463
        %v2486 = vmul.f32 %v2415, %v2463
        %v2487 = vmul.f32 %v2420, %v2463
        %v2488 = vmul.f32 %v2423, %v2463
        %v2489 = vmul.f32 %v2428, %v2463
        %v2490 = vmul.f32 %v2431, %v2463
        %v2491 = vmul.f32 %v2436, %v2463
        %v2492 = vmul.f32 %v2439, %v2463
        %v2493 = vmul.f32 %v2444, %v2463
        %v2494 = vmul.f32 %v2447, %v2463
        %v2495 = vmul.f32 %v2452, %v2463
        %v2496 = vmul.f32 %v2455, %v2463
        %v2497 = vld [vmem:[%s263] sm:$0x1]
        %v2499 = vlaneseq
        %v2500 = vshrl.u32 %v2499, 7
        %v2501 = vsub.s32 0, %v2500
        %v2502 = vrot.slane %v2497, %v2501
        %v2504 = vadd.f32 %v2465, %v2502
        %v2505 = vadd.f32 %v2466, %v2502
        %v2506 = vadd.f32 %v2467, %v2502
        %v2507 = vadd.f32 %v2468, %v2502
        %v2508 = vadd.f32 %v2469, %v2502
        %v2509 = vadd.f32 %v2470, %v2502
        %v2510 = vadd.f32 %v2471, %v2502
        %v2511 = vadd.f32 %v2472, %v2502
        %v2512 = vadd.f32 %v2473, %v2502
        %v2513 = vadd.f32 %v2474, %v2502
        %v2514 = vadd.f32 %v2475, %v2502
        %v2515 = vadd.f32 %v2476, %v2502
        %v2516 = vadd.f32 %v2477, %v2502
        %v2517 = vadd.f32 %v2478, %v2502
        %v2518 = vadd.f32 %v2479, %v2502
        %v2519 = vadd.f32 %v2480, %v2502
        %v2520 = vadd.f32 %v2481, %v2502
        %v2521 = vadd.f32 %v2482, %v2502
        %v2522 = vadd.f32 %v2483, %v2502
        %v2523 = vadd.f32 %v2484, %v2502
        %v2524 = vadd.f32 %v2485, %v2502
        %v2525 = vadd.f32 %v2486, %v2502
        %v2526 = vadd.f32 %v2487, %v2502
        %v2527 = vadd.f32 %v2488, %v2502
        %v2528 = vadd.f32 %v2489, %v2502
        %v2529 = vadd.f32 %v2490, %v2502
        %v2530 = vadd.f32 %v2491, %v2502
        %v2531 = vadd.f32 %v2492, %v2502
        %v2532 = vadd.f32 %v2493, %v2502
        %v2533 = vadd.f32 %v2494, %v2502
        %v2534 = vadd.f32 %v2495, %v2502
        %v2535 = vadd.f32 %v2496, %v2502
        %v2536 = vmax.f32 %v2504, 0.0
        %v2537 = vmax.f32 %v2505, 0.0
        %v2538 = vmax.f32 %v2506, 0.0
        %v2539 = vmax.f32 %v2507, 0.0
        %v2540 = vmax.f32 %v2508, 0.0
        %v2541 = vmax.f32 %v2509, 0.0
        %v2542 = vmax.f32 %v2510, 0.0
        %v2543 = vmax.f32 %v2511, 0.0
        %v2544 = vmax.f32 %v2512, 0.0
        %v2545 = vmax.f32 %v2513, 0.0
        %v2546 = vmax.f32 %v2514, 0.0
        %v2547 = vmax.f32 %v2515, 0.0
        %v2548 = vmax.f32 %v2516, 0.0
        %v2549 = vmax.f32 %v2517, 0.0
        %v2550 = vmax.f32 %v2518, 0.0
        %v2551 = vmax.f32 %v2519, 0.0
        %v2552 = vmax.f32 %v2520, 0.0
        %v2553 = vmax.f32 %v2521, 0.0
        %v2554 = vmax.f32 %v2522, 0.0
        %v2555 = vmax.f32 %v2523, 0.0
        %v2556 = vmax.f32 %v2524, 0.0
        %v2557 = vmax.f32 %v2525, 0.0
        %v2558 = vmax.f32 %v2526, 0.0
        %v2559 = vmax.f32 %v2527, 0.0
        %v2560 = vmax.f32 %v2528, 0.0
        %v2561 = vmax.f32 %v2529, 0.0
        %v2562 = vmax.f32 %v2530, 0.0
        %v2563 = vmax.f32 %v2531, 0.0
        %v2564 = vmax.f32 %v2532, 0.0
        %v2565 = vmax.f32 %v2533, 0.0
        %v2566 = vmax.f32 %v2534, 0.0
        %v2567 = vmax.f32 %v2535, 0.0
        %2568 = vst [vmem:[%s248] sm:$0xff] %v2536
        %2569 = vst [vmem:[%s248 + $0x8] sm:$0xff] %v2537
        %2570 = vst [vmem:[%s248 + $0x10] sm:$0xff] %v2538
        %2571 = vst [vmem:[%s248 + $0x18] sm:$0xff] %v2539
        %2572 = vst [vmem:[%s248 + $0x20] sm:$0xff] %v2540
        %2573 = vst [vmem:[%s248 + $0x28] sm:$0xff] %v2541
        %2574 = vst [vmem:[%s248 + $0x30] sm:$0xff] %v2542
        %2575 = vst [vmem:[%s248 + $0x38] sm:$0xff] %v2543
        %2576 = vst [vmem:[%s248 + $0x40] sm:$0xff] %v2544
        %2577 = vst [vmem:[%s248 + $0x48] sm:$0xff] %v2545
        %2578 = vst [vmem:[%s248 + $0x50] sm:$0xff] %v2546
        %2579 = vst [vmem:[%s248 + $0x58] sm:$0xff] %v2547
        %2580 = vst [vmem:[%s248 + $0x60] sm:$0xff] %v2548
        %2581 = vst [vmem:[%s248 + $0x68] sm:$0xff] %v2549
        %2582 = vst [vmem:[%s248 + $0x70] sm:$0xff] %v2550
        %2583 = vst [vmem:[%s248 + $0x78] sm:$0xff] %v2551
        %2584 = vst [vmem:[%s248 + $0x80] sm:$0xff] %v2552
        %2585 = vst [vmem:[%s248 + $0x88] sm:$0xff] %v2553
        %2586 = vst [vmem:[%s248 + $0x90] sm:$0xff] %v2554
        %2587 = vst [vmem:[%s248 + $0x98] sm:$0xff] %v2555
        %2588 = vst [vmem:[%s248 + $0xa0] sm:$0xff] %v2556
        %2589 = vst [vmem:[%s248 + $0xa8] sm:$0xff] %v2557
        %2590 = vst [vmem:[%s248 + $0xb0] sm:$0xff] %v2558
        %2591 = vst [vmem:[%s248 + $0xb8] sm:$0xff] %v2559
        %2592 = vst [vmem:[%s248 + $0xc0] sm:$0xff] %v2560
        %2593 = vst [vmem:[%s248 + $0xc8] sm:$0xff] %v2561
        %2594 = vst [vmem:[%s248 + $0xd0] sm:$0xff] %v2562
        %2595 = vst [vmem:[%s248 + $0xd8] sm:$0xff] %v2563
        %2596 = vst [vmem:[%s248 + $0xe0] sm:$0xff] %v2564
        %2597 = vst [vmem:[%s248 + $0xe8] sm:$0xff] %v2565
        %2598 = vst [vmem:[%s248 + $0xf0] sm:$0xff] %v2566
        %2599 = vst [vmem:[%s248 + $0xf8] sm:$0xff] %v2567
        %s2600 = sand.u32 %s153, 1
        %s2601 = scalar_lea.sflag [#allocation3], %s2600
        %s2602 = sand.u32 %s153, 1
        %s2603 = smul.addr %s2602, 256
        %s2604 = scalar_lea.vmem [#allocation2], %s2603
        // Predicated region
        $region37: #{tpu_custom_call.1} parent=35 // pred_check
          %p2605 = pneg %p163
        $region38: #{tpu_custom_call.1} parent=35 // pred_check_branch
          %2607 = sbr.rel (%p2605) target = $region40
        $region39: #{tpu_custom_call.1} parent=35 // pred_region
          %s2608 = smul.u32 16, %s25
          %s2610 = ssub.s32 4096, 4096
          %2611 = vsyncadd %s2601, %s2610
          %s2612 = smul.addr %s2608, 2
          %s2613 = sadd.s32 %s24, %s2612
          %s2614 = smul.addr %s23, 32
          %s2615 = sadd.s32 %s2613, %s2614
          %s2616 = smul.addr %s2615, 128
          %s2617 = scalar_lea.hbm %s4, %s2616
          %s2618 = sshll.u32 %s2604, 4
          %s2619 = int_to_ptr.vmem [resolvable:$true] %s2618
          %2624 = dma.vmem_to_hbm [thread:$0]  %s2619, 4096, %s2617, %s2601, 128, 128, 8
        $region40: #{tpu_custom_call.1} parent=35 // pred_fallthru
          _
      $region36: #{tpu_custom_call.1} parent=5 // pred_fallthru
        _
      %p2625 = scmp.le.s32.totalorder 2, %s13
      // Predicated region
      $region41: #{tpu_custom_call.1} parent=5 // pred_check
        %p2626 = pneg %p2625
      $region42: #{tpu_custom_call.1} parent=5 // pred_check_branch
        %2628 = sbr.rel (%p2626) target = $region44
      $region43: #{tpu_custom_call.1} parent=5 // pred_region
        %s2629 = ssub.s32 %s13, 2
        // Predicated region
        $region45: #{tpu_custom_call.1} parent=43 // pred_check
          %p2630 = pneg %p169
        $region46: #{tpu_custom_call.1} parent=43 // pred_check_branch
          %2632 = sbr.rel (%p2630) target = $region48
        $region47: #{tpu_custom_call.1} parent=43 // pred_region
          %s2633 = sand.u32 %s154, 1
          %s2634 = scalar_lea.sflag [#allocation3], %s2633
          %s2635 = sand.u32 %s154, 1
          %s2636 = smul.addr %s2635, 256
          %s2637 = scalar_lea.vmem [#allocation2], %s2636
          %2638 = dma.done %s2634, 4096
        $region48: #{tpu_custom_call.1} parent=43 // pred_fallthru
          _
      $region44: #{tpu_custom_call.1} parent=5 // pred_fallthru
        _
    $region6: #{tpu_custom_call.1} parent=1 // loop_footer
      %s17 = sadd.s32 1, %s13
    $region7: #{tpu_custom_call.1} parent=1 // loop_footer_branch
      %12 = sbr.rel target = $region3
    $region8: #{tpu_custom_call.1} parent=1 // loop_exit
      _
    %2639 = vsyncpa [#allocation3], 1
    %s2640 = scalar_lea.sflag [#allocation3], 1
    %2641 = vsyncpa %s2640, 1

// kernel: tpu_custom_call.1
$region0: #{tpu_custom_call.1}
  #allocation0 [shape = 'u32[]', space=smem, size = 0x4, offset = 0x4, fixed_abs, tag = 'smem constant byte address 0x4 - core index']
  #allocation1 [shape = 'u32[144,128]{1,0:T(1,128)}', space=vmem, size = 0x12000, scoped, tag = 'internal scratch']
  %s0 = inlined_call_operand.vmem [shape: bf16[2,18,18,4], index: 0, kind: input, shape index: {}]
  %s1 = inlined_call_operand.vmem [shape: bf16[36,128], index: 1, kind: input, shape index: {}]
  %s2 = inlined_call_operand.vmem [shape: f32[1,128], index: 2, kind: input, shape index: {}]
  %s3 = inlined_call_operand.vmem [shape: f32[1,128], index: 3, kind: input, shape index: {}]
  %s4 = inlined_call_operand.hbm [shape: f32[2,16,16,128], index: 4, kind: output, shape index: {}]
  %s5 = sld [smem:[#allocation0]]
  $region49: #{tpu_custom_call.1} parent=0
    _
  %s7 = ssub.s32 1, %s5
  %s8 = scalar_select 0, %s7, %s5
  $region1: #{tpu_custom_call.1} parent=0
    #allocation2 [shape = 'u8[262144]{0}', space=vmem, size = 0x40000, scoped, tag = 'output window, operand 0']
    #allocation3 [shape = 's32[2]{0}', space=sflag, size = 0x8, scoped, tag = 'scoped memory for tpu_custom_call.1']
    %9 = vsyncpa [#allocation3], 0
    %s10 = scalar_lea.sflag [#allocation3], 1
    %11 = vsyncpa %s10, 0
    loop: start=0, step=1, limit=4
    $region2: #{tpu_custom_call.1} parent=1 // loop_pre_header
      _
    $region3: #{tpu_custom_call.1} parent=1 // loop_header
      %s13 = sphi 0, %s17
      %p14 = scmp.ge.s32.totalorder %s13, 4
      %s20 = sphi 0, %s39
      %s21 = sphi 0, %s35
      %s22 = sphi 0, %s31
      %s23 = sphi 0, %s20
      %s24 = sphi 0, %s21
      %s25 = sphi 0, %s22
      %s26 = sphi 0, %s23
      %s27 = sphi 0, %s24
      %s28 = sphi 0, %s25
      %s42 = sphi 0, %s44
      %s45 = sphi 0, %s42
      %s46 = sphi 0, %s45
      %s62 = sphi 0, %s46
      %s68 = sphi 0, %s70
      %s71 = sphi 0, %s68
      %s72 = sphi 0, %s71
      %s88 = sphi 0, %s72
      %s94 = sphi 0, %s96
      %s97 = sphi 0, %s94
      %s98 = sphi 0, %s97
      %s114 = sphi 0, %s98
      %s120 = sphi 0, %s122
      %s123 = sphi 0, %s120
      %s124 = sphi 0, %s123
      %s140 = sphi 0, %s124
      %s150 = sphi 0, %s152
      %s153 = sphi 0, %s150
      %s154 = sphi 0, %s153
      %s170 = sphi 0, %s154
    $region4: #{tpu_custom_call.1} parent=1 // loop_header_branch
      %16 = sbr.rel (%p14) target = $region8
    $region5: #{tpu_custom_call.1} parent=1 // loop_body
      %s18 = ssub.s32 %s13, 1
      %s19 = ssub.s32 %s13, 2
      %s29 = sadd.s32 1, %s22
      %p30 = scmp.ge.s32.totalorder %s29, 1
      %s31 = scalar_select %p30, 0, %s29
      %s32 = sadd.s32 1, %s21
      %s33 = scalar_select %p30, %s32, %s21
      %p34 = scmp.ge.s32.totalorder %s33, 1
      %s35 = scalar_select %p34, 0, %s33
      %s36 = sadd.s32 1, %s20
      %s37 = scalar_select %p34, %s36, %s20
      %p38 = scmp.ge.s32.totalorder %s37, 2
      %s39 = scalar_select %p38, 0, %s37
      %s40 = ssub.s32 %s20, %s39
      %p41 = scmp.eq.s32.totalorder %s40, 0
      %s43 = sadd.s32 %s42, 1
      %s44 = scalar_select %p41, %s42, %s43
      %p47 = pneg %p41
      %p48 = scmp.eq.s32.totalorder %s13, 1
      %p49 = por %p47, %p48
      %p50 = scmp.ne.s32.totalorder %s42, %s45
      %p51 = scmp.eq.s32.totalorder %s13, 0
      %p52 = por %p50, %p51
      %p53 = scmp.ne.s32.totalorder %s42, %s45
      %p54 = scmp.eq.s32.totalorder %s18, 1
      %p55 = por %p53, %p54
      %p56 = scmp.ne.s32.totalorder %s45, %s46
      %p57 = scmp.eq.s32.totalorder %s18, 0
      %p58 = por %p56, %p57
      %p59 = scmp.ne.s32.totalorder %s45, %s46
      %p60 = scmp.eq.s32.totalorder %s19, 1
      %p61 = por %p59, %p60
      %p63 = scmp.ne.s32.totalorder %s46, %s62
      %p64 = scmp.eq.s32.totalorder %s19, 0
      %p65 = por %p63, %p64
      %s66 = ssub.s32 %s21, %s35
      %p67 = scmp.eq.s32.totalorder %s66, 0
      %s69 = sadd.s32 %s68, 1
      %s70 = scalar_select %p67, %s68, %s69
      %p73 = pneg %p67
      %p74 = scmp.eq.s32.totalorder %s13, 1
      %p75 = por %p73, %p74
      %p76 = scmp.ne.s32.totalorder %s68, %s71
      %p77 = scmp.eq.s32.totalorder %s13, 0
      %p78 = por %p76, %p77
      %p79 = scmp.ne.s32.totalorder %s68, %s71
      %p80 = scmp.eq.s32.totalorder %s18, 1
      %p81 = por %p79, %p80
      %p82 = scmp.ne.s32.totalorder %s71, %s72
      %p83 = scmp.eq.s32.totalorder %s18, 0
      %p84 = por %p82, %p83
      %p85 = scmp.ne.s32.totalorder %s71, %s72
      %p86 = scmp.eq.s32.totalorder %s19, 1
      %p87 = por %p85, %p86
      %p89 = scmp.ne.s32.totalorder %s72, %s88
      %p90 = scmp.eq.s32.totalorder %s19, 0
      %p91 = por %p89, %p90
      %s92 = ssub.s32 %s21, %s35
      %p93 = scmp.eq.s32.totalorder %s92, 0
      %s95 = sadd.s32 %s94, 1
      %s96 = scalar_select %p93, %s94, %s95
      %p99 = pneg %p93
      %p100 = scmp.eq.s32.totalorder %s13, 1
      %p101 = por %p99, %p100
      %p102 = scmp.ne.s32.totalorder %s94, %s97
      %p103 = scmp.eq.s32.totalorder %s13, 0
      %p104 = por %p102, %p103
      %p105 = scmp.ne.s32.totalorder %s94, %s97
      %p106 = scmp.eq.s32.totalorder %s18, 1
      %p107 = por %p105, %p106
      %p108 = scmp.ne.s32.totalorder %s97, %s98
      %p109 = scmp.eq.s32.totalorder %s18, 0
      %p110 = por %p108, %p109
      %p111 = scmp.ne.s32.totalorder %s97, %s98
      %p112 = scmp.eq.s32.totalorder %s19, 1
      %p113 = por %p111, %p112
      %p115 = scmp.ne.s32.totalorder %s98, %s114
      %p116 = scmp.eq.s32.totalorder %s19, 0
      %p117 = por %p115, %p116
      %s118 = ssub.s32 %s21, %s35
      %p119 = scmp.eq.s32.totalorder %s118, 0
      %s121 = sadd.s32 %s120, 1
      %s122 = scalar_select %p119, %s120, %s121
      %p125 = pneg %p119
      %p126 = scmp.eq.s32.totalorder %s13, 1
      %p127 = por %p125, %p126
      %p128 = scmp.ne.s32.totalorder %s120, %s123
      %p129 = scmp.eq.s32.totalorder %s13, 0
      %p130 = por %p128, %p129
      %p131 = scmp.ne.s32.totalorder %s120, %s123
      %p132 = scmp.eq.s32.totalorder %s18, 1
      %p133 = por %p131, %p132
      %p134 = scmp.ne.s32.totalorder %s123, %s124
      %p135 = scmp.eq.s32.totalorder %s18, 0
      %p136 = por %p134, %p135
      %p137 = scmp.ne.s32.totalorder %s123, %s124
      %p138 = scmp.eq.s32.totalorder %s19, 1
      %p139 = por %p137, %p138
      %p141 = scmp.ne.s32.totalorder %s124, %s140
      %p142 = scmp.eq.s32.totalorder %s19, 0
      %p143 = por %p141, %p142
      %s144 = ssub.s32 %s20, %s39
      %s145 = ssub.s32 %s22, %s31
      %s146 = sor.u32 %s144, %s145
      %s147 = ssub.s32 %s21, %s35
      %s148 = sor.u32 %s146, %s147
      %p149 = scmp.eq.s32.totalorder %s148, 0
      %s151 = sadd.s32 %s150, 1
      %s152 = scalar_select %p149, %s150, %s151
      %p155 = pneg %p149
      %p156 = scmp.eq.s32.totalorder %s13, 1
      %p157 = por %p155, %p156
      %p158 = scmp.ne.s32.totalorder %s150, %s153
      %p159 = scmp.eq.s32.totalorder %s13, 0
      %p160 = por %p158, %p159
      %p161 = scmp.ne.s32.totalorder %s150, %s153
      %p162 = scmp.eq.s32.totalorder %s18, 1
      %p163 = por %p161, %p162
      %p164 = scmp.ne.s32.totalorder %s153, %s154
      %p165 = scmp.eq.s32.totalorder %s18, 0
      %p166 = por %p164, %p165
      %p167 = scmp.ne.s32.totalorder %s153, %s154
      %p168 = scmp.eq.s32.totalorder %s19, 1
      %p169 = por %p167, %p168
      %p171 = scmp.ne.s32.totalorder %s154, %s170
      %p172 = scmp.eq.s32.totalorder %s19, 0
      %p173 = por %p171, %p172
      %p174 = scmp.le.s32.totalorder 1, %s13
      %p175 = scmp.lt.s32.totalorder %s13, 3
      %p176 = pnand %p174, %p175
      %p177 = pneg %p176
      // Predicated region
      $region9: #{tpu_custom_call.1} parent=5 // pred_check
        _
      $region10: #{tpu_custom_call.1} parent=5 // pred_check_branch
        %179 = sbr.rel (%p176) target = $region12
      $region11: #{tpu_custom_call.1} parent=5 // pred_region
        %s180 = ssub.s32 %s13, 1
        // Predicated region
        $region13: #{tpu_custom_call.1} parent=11 // pred_check
          %p181 = pneg %p84
        $region14: #{tpu_custom_call.1} parent=11 // pred_check_branch
          %183 = sbr.rel (%p181) target = $region16
        $region15: #{tpu_custom_call.1} parent=11 // pred_region
          %p184 = scmp.lt.s32.totalorder %s24, 0
          %s185 = scalar_select %p184, %s24, 0
          %s186 = smul.addr %s185, 4
          %s187 = scalar_lea.vmem %s1, %s186
        $region16: #{tpu_custom_call.1} parent=11 // pred_fallthru
          _
        // Predicated region
        $region17: #{tpu_custom_call.1} parent=11 // pred_check
          %p188 = pneg %p110
        $region18: #{tpu_custom_call.1} parent=11 // pred_check_branch
          %190 = sbr.rel (%p188) target = $region20
        $region19: #{tpu_custom_call.1} parent=11 // pred_region
          %p191 = scmp.lt.s32.totalorder %s24, 0
          %s192 = scalar_select %p191, %s24, 0
          %s193 = scalar_lea.vmem %s2, %s192
        $region20: #{tpu_custom_call.1} parent=11 // pred_fallthru
          _
        // Predicated region
        $region21: #{tpu_custom_call.1} parent=11 // pred_check
          %p194 = pneg %p136
        $region22: #{tpu_custom_call.1} parent=11 // pred_check_branch
          %196 = sbr.rel (%p194) target = $region24
        $region23: #{tpu_custom_call.1} parent=11 // pred_region
          %p197 = scmp.lt.s32.totalorder %s24, 0
          %s198 = scalar_select %p197, %s24, 0
          %s199 = scalar_lea.vmem %s3, %s198
        $region24: #{tpu_custom_call.1} parent=11 // pred_fallthru
          _
      $region12: #{tpu_custom_call.1} parent=5 // pred_fallthru
        _
      %p200 = scmp.lt.s32.totalorder %s13, 2
      // Predicated region
      $region25: #{tpu_custom_call.1} parent=5 // pred_check
        %p201 = pneg %p200
      $region26: #{tpu_custom_call.1} parent=5 // pred_check_branch
        %203 = sbr.rel (%p201) target = $region28
      $region27: #{tpu_custom_call.1} parent=5 // pred_region
        // Predicated region
        $region29: #{tpu_custom_call.1} parent=27 // pred_check
          %p204 = pneg %p52
        $region30: #{tpu_custom_call.1} parent=27 // pred_check_branch
          %206 = sbr.rel (%p204) target = $region32
        $region31: #{tpu_custom_call.1} parent=27 // pred_region
          %p207 = scmp.lt.s32.totalorder %s20, 1
          %s208 = scalar_select %p207, %s20, 1
          %s209 = smul.addr %s208, 54
          %s210 = smul.addr %s209, 4
          %s211 = scalar_lea.vmem %s0, %s210
        $region32: #{tpu_custom_call.1} parent=27 // pred_fallthru
          _
      $region28: #{tpu_custom_call.1} parent=5 // pred_fallthru
        _
      %p212 = scmp.le.s32.totalorder 1, %s13
      %p213 = scmp.lt.s32.totalorder %s13, 3
      %p214 = pnand %p212, %p213
      %p215 = pneg %p214
      // Predicated region
      $region33: #{tpu_custom_call.1} parent=5 // pred_check
        _
      $region34: #{tpu_custom_call.1} parent=5 // pred_check_branch
        %217 = sbr.rel (%p214) target = $region36
      $region35: #{tpu_custom_call.1} parent=5 // pred_region
        %s218 = ssub.s32 %s13, 1
        %p219 = scmp.lt.s32.totalorder %s23, 1
        %s220 = scalar_select %p219, %s23, 1
        %s221 = smul.addr %s220, 54
        %s222 = smul.addr %s221, 4
        %s223 = scalar_lea.vmem %s0, %s222
        %p224 = pneg %p58
        %p225 = pneg %p55
        %p226 = scmp.lt.s32.totalorder %s24, 0
        %s227 = scalar_select %p226, %s24, 0
        %s228 = smul.addr %s227, 4
        %s229 = scalar_lea.vmem %s1, %s228
        %p230 = pneg %p84
        %p231 = pneg %p81
        %p232 = scmp.lt.s32.totalorder %s24, 0
        %s233 = scalar_select %p232, %s24, 0
        %s234 = scalar_lea.vmem %s2, %s233
        %p235 = pneg %p110
        %p236 = pneg %p107
        %p237 = scmp.lt.s32.totalorder %s24, 0
        %s238 = scalar_select %p237, %s24, 0
        %s239 = scalar_lea.vmem %s3, %s238
        %p240 = pneg %p136
        %p241 = pneg %p133
        %p242 = pneg %p166
        %p243 = pneg %p163
        %s244 = sand.u32 %s153, 1
        %s245 = scalar_lea.sflag [#allocation3], %s244
        %s246 = sand.u32 %s153, 1
        %s247 = smul.addr %s246, 256
        %s248 = scalar_lea.vmem [#allocation2], %s247
        %p249 = scmp.lt.s32.totalorder %s23, 1
        %s250 = scalar_select %p249, %s23, 1
        %s251 = smul.addr %s250, 54
        %s252 = smul.addr %s251, 4
        %s253 = scalar_lea.vmem %s0, %s252
        %p254 = scmp.lt.s32.totalorder %s24, 0
        %s255 = scalar_select %p254, %s24, 0
        %s256 = smul.addr %s255, 4
        %s257 = scalar_lea.vmem %s1, %s256
        %p258 = scmp.lt.s32.totalorder %s24, 0
        %s259 = scalar_select %p258, %s24, 0
        %s260 = scalar_lea.vmem %s2, %s259
        %p261 = scmp.lt.s32.totalorder %s24, 0
        %s262 = scalar_select %p261, %s24, 0
        %s263 = scalar_lea.vmem %s3, %s262
        %s264 = smul.u32 16, %s25
        %s266 = smul.u32 %s25, 16
        %s267 = smul.u32 %s266, 3
        %s268 = smul.addr %s267, 4
        %s269 = scalar_lea.vmem %s253, %s268
        %v270 = vld [vmem:[%s269] sm:$0xf]
        %v271 = vld [vmem:[%s269 + $0x4] sm:$0xf]
        %v272 = vld [vmem:[%s269 + $0xc] sm:$0xf]
        %v273 = vld [vmem:[%s269 + $0x10] sm:$0xf]
        %v274 = vld [vmem:[%s269 + $0x18] sm:$0xf]
        %v275 = vld [vmem:[%s269 + $0x1c] sm:$0xf]
        %v276 = vld [vmem:[%s269 + $0x24] sm:$0xf]
        %v277 = vld [vmem:[%s269 + $0x28] sm:$0xf]
        %v278 = vld [vmem:[%s269 + $0x30] sm:$0xf]
        %v279 = vld [vmem:[%s269 + $0x34] sm:$0xf]
        %v280 = vld [vmem:[%s269 + $0x3c] sm:$0xf]
        %v281 = vld [vmem:[%s269 + $0x40] sm:$0xf]
        %v282 = vld [vmem:[%s269 + $0x48] sm:$0xf]
        %v283 = vld [vmem:[%s269 + $0x4c] sm:$0xf]
        %v284 = vld [vmem:[%s269 + $0x54] sm:$0xf]
        %v285 = vld [vmem:[%s269 + $0x58] sm:$0xf]
        %v286 = vld [vmem:[%s269 + $0x60] sm:$0xf]
        %v287 = vld [vmem:[%s269 + $0x64] sm:$0xf]
        %v288 = vld [vmem:[%s269 + $0x6c] sm:$0xf]
        %v289 = vld [vmem:[%s269 + $0x70] sm:$0xf]
        %v290 = vld [vmem:[%s269 + $0x78] sm:$0xf]
        %v291 = vld [vmem:[%s269 + $0x7c] sm:$0xf]
        %v292 = vld [vmem:[%s269 + $0x84] sm:$0xf]
        %v293 = vld [vmem:[%s269 + $0x88] sm:$0xf]
        %v294 = vld [vmem:[%s269 + $0x90] sm:$0xf]
        %v295 = vld [vmem:[%s269 + $0x94] sm:$0xf]
        %v296 = vld [vmem:[%s269 + $0x9c] sm:$0xf]
        %v297 = vld [vmem:[%s269 + $0xa0] sm:$0xf]
        %v298 = vld [vmem:[%s269 + $0xa8] sm:$0xf]
        %v299 = vld [vmem:[%s269 + $0xac] sm:$0xf]
        %v300 = vld [vmem:[%s269 + $0xb4] sm:$0xf]
        %v301 = vld [vmem:[%s269 + $0xb8] sm:$0xf]
        %v302 = vld [vmem:[%s269 + $0x8] sm:$0x1]
        %v303 = vld [vmem:[%s269 + $0x14] sm:$0x1]
        %v304 = vld [vmem:[%s269 + $0x20] sm:$0x1]
        %v305 = vld [vmem:[%s269 + $0x2c] sm:$0x1]
        %v306 = vld [vmem:[%s269 + $0x38] sm:$0x1]
        %v307 = vld [vmem:[%s269 + $0x44] sm:$0x1]
        %v308 = vld [vmem:[%s269 + $0x50] sm:$0x1]
        %v309 = vld [vmem:[%s269 + $0x5c] sm:$0x1]
        %v310 = vld [vmem:[%s269 + $0x68] sm:$0x1]
        %v311 = vld [vmem:[%s269 + $0x74] sm:$0x1]
        %v312 = vld [vmem:[%s269 + $0x80] sm:$0x1]
        %v313 = vld [vmem:[%s269 + $0x8c] sm:$0x1]
        %v314 = vld [vmem:[%s269 + $0x98] sm:$0x1]
        %v315 = vld [vmem:[%s269 + $0xa4] sm:$0x1]
        %v316 = vld [vmem:[%s269 + $0xb0] sm:$0x1]
        %v317 = vld [vmem:[%s269 + $0xbc] sm:$0x1]
        %v318 = vld [vmem:[%s269] sm:$0xe]
        %v319 = vld [vmem:[%s269 + $0xc] sm:$0xe]
        %v320 = vld [vmem:[%s269 + $0x18] sm:$0xe]
        %v321 = vld [vmem:[%s269 + $0x24] sm:$0xe]
        %v322 = vld [vmem:[%s269 + $0x30] sm:$0xe]
        %v323 = vld [vmem:[%s269 + $0x3c] sm:$0xe]
        %v324 = vld [vmem:[%s269 + $0x48] sm:$0xe]
        %v325 = vld [vmem:[%s269 + $0x54] sm:$0xe]
        %v326 = vld [vmem:[%s269 + $0x60] sm:$0xe]
        %v327 = vld [vmem:[%s269 + $0x6c] sm:$0xe]
        %v328 = vld [vmem:[%s269 + $0x78] sm:$0xe]
        %v329 = vld [vmem:[%s269 + $0x84] sm:$0xe]
        %v330 = vld [vmem:[%s269 + $0x90] sm:$0xe]
        %v331 = vld [vmem:[%s269 + $0x9c] sm:$0xe]
        %v332 = vld [vmem:[%s269 + $0xa8] sm:$0xe]
        %v333 = vld [vmem:[%s269 + $0xb4] sm:$0xe]
        %s334 = sadd.s32 %s266, 1
        %s335 = smul.u32 %s334, 3
        %s336 = smul.addr %s335, 4
        %s337 = scalar_lea.vmem %s253, %s336
        %v338 = vld [vmem:[%s337] sm:$0xf]
        %v339 = vld [vmem:[%s337 + $0x4] sm:$0xf]
        %v340 = vld [vmem:[%s337 + $0xc] sm:$0xf]
        %v341 = vld [vmem:[%s337 + $0x10] sm:$0xf]
        %v342 = vld [vmem:[%s337 + $0x18] sm:$0xf]
        %v343 = vld [vmem:[%s337 + $0x1c] sm:$0xf]
        %v344 = vld [vmem:[%s337 + $0x24] sm:$0xf]
        %v345 = vld [vmem:[%s337 + $0x28] sm:$0xf]
        %v346 = vld [vmem:[%s337 + $0x30] sm:$0xf]
        %v347 = vld [vmem:[%s337 + $0x34] sm:$0xf]
        %v348 = vld [vmem:[%s337 + $0x3c] sm:$0xf]
        %v349 = vld [vmem:[%s337 + $0x40] sm:$0xf]
        %v350 = vld [vmem:[%s337 + $0x48] sm:$0xf]
        %v351 = vld [vmem:[%s337 + $0x4c] sm:$0xf]
        %v352 = vld [vmem:[%s337 + $0x54] sm:$0xf]
        %v353 = vld [vmem:[%s337 + $0x58] sm:$0xf]
        %v354 = vld [vmem:[%s337 + $0x60] sm:$0xf]
        %v355 = vld [vmem:[%s337 + $0x64] sm:$0xf]
        %v356 = vld [vmem:[%s337 + $0x6c] sm:$0xf]
        %v357 = vld [vmem:[%s337 + $0x70] sm:$0xf]
        %v358 = vld [vmem:[%s337 + $0x78] sm:$0xf]
        %v359 = vld [vmem:[%s337 + $0x7c] sm:$0xf]
        %v360 = vld [vmem:[%s337 + $0x84] sm:$0xf]
        %v361 = vld [vmem:[%s337 + $0x88] sm:$0xf]
        %v362 = vld [vmem:[%s337 + $0x90] sm:$0xf]
        %v363 = vld [vmem:[%s337 + $0x94] sm:$0xf]
        %v364 = vld [vmem:[%s337 + $0x9c] sm:$0xf]
        %v365 = vld [vmem:[%s337 + $0xa0] sm:$0xf]
        %v366 = vld [vmem:[%s337 + $0xa8] sm:$0xf]
        %v367 = vld [vmem:[%s337 + $0xac] sm:$0xf]
        %v368 = vld [vmem:[%s337 + $0xb4] sm:$0xf]
        %v369 = vld [vmem:[%s337 + $0xb8] sm:$0xf]
        %v370 = vld [vmem:[%s337 + $0x8] sm:$0x1]
        %v371 = vld [vmem:[%s337 + $0x14] sm:$0x1]
        %v372 = vld [vmem:[%s337 + $0x20] sm:$0x1]
        %v373 = vld [vmem:[%s337 + $0x2c] sm:$0x1]
        %v374 = vld [vmem:[%s337 + $0x38] sm:$0x1]
        %v375 = vld [vmem:[%s337 + $0x44] sm:$0x1]
        %v376 = vld [vmem:[%s337 + $0x50] sm:$0x1]
        %v377 = vld [vmem:[%s337 + $0x5c] sm:$0x1]
        %v378 = vld [vmem:[%s337 + $0x68] sm:$0x1]
        %v379 = vld [vmem:[%s337 + $0x74] sm:$0x1]
        %v380 = vld [vmem:[%s337 + $0x80] sm:$0x1]
        %v381 = vld [vmem:[%s337 + $0x8c] sm:$0x1]
        %v382 = vld [vmem:[%s337 + $0x98] sm:$0x1]
        %v383 = vld [vmem:[%s337 + $0xa4] sm:$0x1]
        %v384 = vld [vmem:[%s337 + $0xb0] sm:$0x1]
        %v385 = vld [vmem:[%s337 + $0xbc] sm:$0x1]
        %v386 = vld [vmem:[%s337] sm:$0xe]
        %v387 = vld [vmem:[%s337 + $0xc] sm:$0xe]
        %v388 = vld [vmem:[%s337 + $0x18] sm:$0xe]
        %v389 = vld [vmem:[%s337 + $0x24] sm:$0xe]
        %v390 = vld [vmem:[%s337 + $0x30] sm:$0xe]
        %v391 = vld [vmem:[%s337 + $0x3c] sm:$0xe]
        %v392 = vld [vmem:[%s337 + $0x48] sm:$0xe]
        %v393 = vld [vmem:[%s337 + $0x54] sm:$0xe]
        %v394 = vld [vmem:[%s337 + $0x60] sm:$0xe]
        %v395 = vld [vmem:[%s337 + $0x6c] sm:$0xe]
        %v396 = vld [vmem:[%s337 + $0x78] sm:$0xe]
        %v397 = vld [vmem:[%s337 + $0x84] sm:$0xe]
        %v398 = vld [vmem:[%s337 + $0x90] sm:$0xe]
        %v399 = vld [vmem:[%s337 + $0x9c] sm:$0xe]
        %v400 = vld [vmem:[%s337 + $0xa8] sm:$0xe]
        %v401 = vld [vmem:[%s337 + $0xb4] sm:$0xe]
        %s402 = sadd.s32 %s266, 2
        %s403 = smul.u32 %s402, 3
        %s404 = smul.addr %s403, 4
        %s405 = scalar_lea.vmem %s253, %s404
        %v406 = vld [vmem:[%s405] sm:$0xf]
        %v407 = vld [vmem:[%s405 + $0x4] sm:$0xf]
        %v408 = vld [vmem:[%s405 + $0xc] sm:$0xf]
        %v409 = vld [vmem:[%s405 + $0x10] sm:$0xf]
        %v410 = vld [vmem:[%s405 + $0x18] sm:$0xf]
        %v411 = vld [vmem:[%s405 + $0x1c] sm:$0xf]
        %v412 = vld [vmem:[%s405 + $0x24] sm:$0xf]
        %v413 = vld [vmem:[%s405 + $0x28] sm:$0xf]
        %v414 = vld [vmem:[%s405 + $0x30] sm:$0xf]
        %v415 = vld [vmem:[%s405 + $0x34] sm:$0xf]
        %v416 = vld [vmem:[%s405 + $0x3c] sm:$0xf]
        %v417 = vld [vmem:[%s405 + $0x40] sm:$0xf]
        %v418 = vld [vmem:[%s405 + $0x48] sm:$0xf]
        %v419 = vld [vmem:[%s405 + $0x4c] sm:$0xf]
        %v420 = vld [vmem:[%s405 + $0x54] sm:$0xf]
        %v421 = vld [vmem:[%s405 + $0x58] sm:$0xf]
        %v422 = vld [vmem:[%s405 + $0x60] sm:$0xf]
        %v423 = vld [vmem:[%s405 + $0x64] sm:$0xf]
        %v424 = vld [vmem:[%s405 + $0x6c] sm:$0xf]
        %v425 = vld [vmem:[%s405 + $0x70] sm:$0xf]
        %v426 = vld [vmem:[%s405 + $0x78] sm:$0xf]
        %v427 = vld [vmem:[%s405 + $0x7c] sm:$0xf]
        %v428 = vld [vmem:[%s405 + $0x84] sm:$0xf]
        %v429 = vld [vmem:[%s405 + $0x88] sm:$0xf]
        %v430 = vld [vmem:[%s405 + $0x90] sm:$0xf]
        %v431 = vld [vmem:[%s405 + $0x94] sm:$0xf]
        %v432 = vld [vmem:[%s405 + $0x9c] sm:$0xf]
        %v433 = vld [vmem:[%s405 + $0xa0] sm:$0xf]
        %v434 = vld [vmem:[%s405 + $0xa8] sm:$0xf]
        %v435 = vld [vmem:[%s405 + $0xac] sm:$0xf]
        %v436 = vld [vmem:[%s405 + $0xb4] sm:$0xf]
        %v437 = vld [vmem:[%s405 + $0xb8] sm:$0xf]
        %v438 = vld [vmem:[%s405 + $0x8] sm:$0x1]
        %v439 = vld [vmem:[%s405 + $0x14] sm:$0x1]
        %v440 = vld [vmem:[%s405 + $0x20] sm:$0x1]
        %v441 = vld [vmem:[%s405 + $0x2c] sm:$0x1]
        %v442 = vld [vmem:[%s405 + $0x38] sm:$0x1]
        %v443 = vld [vmem:[%s405 + $0x44] sm:$0x1]
        %v444 = vld [vmem:[%s405 + $0x50] sm:$0x1]
        %v445 = vld [vmem:[%s405 + $0x5c] sm:$0x1]
        %v446 = vld [vmem:[%s405 + $0x68] sm:$0x1]
        %v447 = vld [vmem:[%s405 + $0x74] sm:$0x1]
        %v448 = vld [vmem:[%s405 + $0x80] sm:$0x1]
        %v449 = vld [vmem:[%s405 + $0x8c] sm:$0x1]
        %v450 = vld [vmem:[%s405 + $0x98] sm:$0x1]
        %v451 = vld [vmem:[%s405 + $0xa4] sm:$0x1]
        %v452 = vld [vmem:[%s405 + $0xb0] sm:$0x1]
        %v453 = vld [vmem:[%s405 + $0xbc] sm:$0x1]
        %v454 = vld [vmem:[%s405] sm:$0xe]
        %v455 = vld [vmem:[%s405 + $0xc] sm:$0xe]
        %v456 = vld [vmem:[%s405 + $0x18] sm:$0xe]
        %v457 = vld [vmem:[%s405 + $0x24] sm:$0xe]
        %v458 = vld [vmem:[%s405 + $0x30] sm:$0xe]
        %v459 = vld [vmem:[%s405 + $0x3c] sm:$0xe]
        %v460 = vld [vmem:[%s405 + $0x48] sm:$0xe]
        %v461 = vld [vmem:[%s405 + $0x54] sm:$0xe]
        %v462 = vld [vmem:[%s405 + $0x60] sm:$0xe]
        %v463 = vld [vmem:[%s405 + $0x6c] sm:$0xe]
        %v464 = vld [vmem:[%s405 + $0x78] sm:$0xe]
        %v465 = vld [vmem:[%s405 + $0x84] sm:$0xe]
        %v466 = vld [vmem:[%s405 + $0x90] sm:$0xe]
        %v467 = vld [vmem:[%s405 + $0x9c] sm:$0xe]
        %v468 = vld [vmem:[%s405 + $0xa8] sm:$0xe]
        %v469 = vld [vmem:[%s405 + $0xb4] sm:$0xe]
        %v502 = vunpack.c.l.b16 %v270
        %v503 = vunpack.c.l.b16 %v271
        %v504 = vunpack.c.l.b16 %v272
        %v505 = vunpack.c.l.b16 %v273
        %v506 = vunpack.c.l.b16 %v274
        %v507 = vunpack.c.l.b16 %v275
        %v508 = vunpack.c.l.b16 %v276
        %v509 = vunpack.c.l.b16 %v277
        %v510 = vunpack.c.l.b16 %v278
        %v511 = vunpack.c.l.b16 %v279
        %v512 = vunpack.c.l.b16 %v280
        %v513 = vunpack.c.l.b16 %v281
        %v514 = vunpack.c.l.b16 %v282
        %v515 = vunpack.c.l.b16 %v283
        %v516 = vunpack.c.l.b16 %v284
        %v517 = vunpack.c.l.b16 %v285
        %v518 = vunpack.c.l.b16 %v286
        %v519 = vunpack.c.l.b16 %v287
        %v520 = vunpack.c.l.b16 %v288
        %v521 = vunpack.c.l.b16 %v289
        %v522 = vunpack.c.l.b16 %v290
        %v523 = vunpack.c.l.b16 %v291
        %v524 = vunpack.c.l.b16 %v292
        %v525 = vunpack.c.l.b16 %v293
        %v526 = vunpack.c.l.b16 %v294
        %v527 = vunpack.c.l.b16 %v295
        %v528 = vunpack.c.l.b16 %v296
        %v529 = vunpack.c.l.b16 %v297
        %v530 = vunpack.c.l.b16 %v298
        %v531 = vunpack.c.l.b16 %v299
        %v532 = vunpack.c.l.b16 %v300
        %v533 = vunpack.c.l.b16 %v301
        %v534 = vpack.c.b16 %v503, %v502
        %v535 = vpack.c.b16 %v505, %v504
        %v536 = vpack.c.b16 %v507, %v506
        %v537 = vpack.c.b16 %v509, %v508
        %v538 = vpack.c.b16 %v511, %v510
        %v539 = vpack.c.b16 %v513, %v512
        %v540 = vpack.c.b16 %v515, %v514
        %v541 = vpack.c.b16 %v517, %v516
        %v542 = vpack.c.b16 %v519, %v518
        %v543 = vpack.c.b16 %v521, %v520
        %v544 = vpack.c.b16 %v523, %v522
        %v545 = vpack.c.b16 %v525, %v524
        %v546 = vpack.c.b16 %v527, %v526
        %v547 = vpack.c.b16 %v529, %v528
        %v548 = vpack.c.b16 %v531, %v530
        %v549 = vpack.c.b16 %v533, %v532
        %v566 = vunpack.c.l.b16 %v302
        %v567 = vunpack.c.l.b16 %v303
        %v568 = vunpack.c.l.b16 %v304
        %v569 = vunpack.c.l.b16 %v305
        %v570 = vunpack.c.l.b16 %v306
        %v571 = vunpack.c.l.b16 %v307
        %v572 = vunpack.c.l.b16 %v308
        %v573 = vunpack.c.l.b16 %v309
        %v574 = vunpack.c.l.b16 %v310
        %v575 = vunpack.c.l.b16 %v311
        %v576 = vunpack.c.l.b16 %v312
        %v577 = vunpack.c.l.b16 %v313
        %v578 = vunpack.c.l.b16 %v314
        %v579 = vunpack.c.l.b16 %v315
        %v580 = vunpack.c.l.b16 %v316
        %v581 = vunpack.c.l.b16 %v317
        %v582 = vpack.c.b16 %v566, %v566
        %v583 = vpack.c.b16 %v567, %v567
        %v584 = vpack.c.b16 %v568, %v568
        %v585 = vpack.c.b16 %v569, %v569
        %v586 = vpack.c.b16 %v570, %v570
        %v587 = vpack.c.b16 %v571, %v571
        %v588 = vpack.c.b16 %v572, %v572
        %v589 = vpack.c.b16 %v573, %v573
        %v590 = vpack.c.b16 %v574, %v574
        %v591 = vpack.c.b16 %v575, %v575
        %v592 = vpack.c.b16 %v576, %v576
        %v593 = vpack.c.b16 %v577, %v577
        %v594 = vpack.c.b16 %v578, %v578
        %v595 = vpack.c.b16 %v579, %v579
        %v596 = vpack.c.b16 %v580, %v580
        %v597 = vpack.c.b16 %v581, %v581
        %vm598 = vsmask.f32 7424
        %v600 = vshrl.u32 %v534, 16
        %v602 = vshll.u32 %v534, 16
        %v604 = vrot.slane %v602, 1
        %v605 = vor.u32 %v600, %v604
        %v607 = vshll.u32 %v582, 16
        %v609 = vrot.slane %v607, 1
        %v610 = vsel %vm598, %v605, %v609
        %v612 = vshrl.u32 %v535, 16
        %v614 = vshll.u32 %v535, 16
        %v616 = vrot.slane %v614, 1
        %v617 = vor.u32 %v612, %v616
        %v619 = vshll.u32 %v583, 16
        %v621 = vrot.slane %v619, 1
        %v622 = vsel %vm598, %v617, %v621
        %v624 = vshrl.u32 %v536, 16
        %v626 = vshll.u32 %v536, 16
        %v628 = vrot.slane %v626, 1
        %v629 = vor.u32 %v624, %v628
        %v631 = vshll.u32 %v584, 16
        %v633 = vrot.slane %v631, 1
        %v634 = vsel %vm598, %v629, %v633
        %v636 = vshrl.u32 %v537, 16
        %v638 = vshll.u32 %v537, 16
        %v640 = vrot.slane %v638, 1
        %v641 = vor.u32 %v636, %v640
        %v643 = vshll.u32 %v585, 16
        %v645 = vrot.slane %v643, 1
        %v646 = vsel %vm598, %v641, %v645
        %v648 = vshrl.u32 %v538, 16
        %v650 = vshll.u32 %v538, 16
        %v652 = vrot.slane %v650, 1
        %v653 = vor.u32 %v648, %v652
        %v655 = vshll.u32 %v586, 16
        %v657 = vrot.slane %v655, 1
        %v658 = vsel %vm598, %v653, %v657
        %v660 = vshrl.u32 %v539, 16
        %v662 = vshll.u32 %v539, 16
        %v664 = vrot.slane %v662, 1
        %v665 = vor.u32 %v660, %v664
        %v667 = vshll.u32 %v587, 16
        %v669 = vrot.slane %v667, 1
        %v670 = vsel %vm598, %v665, %v669
        %v672 = vshrl.u32 %v540, 16
        %v674 = vshll.u32 %v540, 16
        %v676 = vrot.slane %v674, 1
        %v677 = vor.u32 %v672, %v676
        %v679 = vshll.u32 %v588, 16
        %v681 = vrot.slane %v679, 1
        %v682 = vsel %vm598, %v677, %v681
        %v684 = vshrl.u32 %v541, 16
        %v686 = vshll.u32 %v541, 16
        %v688 = vrot.slane %v686, 1
        %v689 = vor.u32 %v684, %v688
        %v691 = vshll.u32 %v589, 16
        %v693 = vrot.slane %v691, 1
        %v694 = vsel %vm598, %v689, %v693
        %v696 = vshrl.u32 %v542, 16
        %v698 = vshll.u32 %v542, 16
        %v700 = vrot.slane %v698, 1
        %v701 = vor.u32 %v696, %v700
        %v703 = vshll.u32 %v590, 16
        %v705 = vrot.slane %v703, 1
        %v706 = vsel %vm598, %v701, %v705
        %v708 = vshrl.u32 %v543, 16
        %v710 = vshll.u32 %v543, 16
        %v712 = vrot.slane %v710, 1
        %v713 = vor.u32 %v708, %v712
        %v715 = vshll.u32 %v591, 16
        %v717 = vrot.slane %v715, 1
        %v718 = vsel %vm598, %v713, %v717
        %v720 = vshrl.u32 %v544, 16
        %v722 = vshll.u32 %v544, 16
        %v724 = vrot.slane %v722, 1
        %v725 = vor.u32 %v720, %v724
        %v727 = vshll.u32 %v592, 16
        %v729 = vrot.slane %v727, 1
        %v730 = vsel %vm598, %v725, %v729
        %v732 = vshrl.u32 %v545, 16
        %v734 = vshll.u32 %v545, 16
        %v736 = vrot.slane %v734, 1
        %v737 = vor.u32 %v732, %v736
        %v739 = vshll.u32 %v593, 16
        %v741 = vrot.slane %v739, 1
        %v742 = vsel %vm598, %v737, %v741
        %v744 = vshrl.u32 %v546, 16
        %v746 = vshll.u32 %v546, 16
        %v748 = vrot.slane %v746, 1
        %v749 = vor.u32 %v744, %v748
        %v751 = vshll.u32 %v594, 16
        %v753 = vrot.slane %v751, 1
        %v754 = vsel %vm598, %v749, %v753
        %v756 = vshrl.u32 %v547, 16
        %v758 = vshll.u32 %v547, 16
        %v760 = vrot.slane %v758, 1
        %v761 = vor.u32 %v756, %v760
        %v763 = vshll.u32 %v595, 16
        %v765 = vrot.slane %v763, 1
        %v766 = vsel %vm598, %v761, %v765
        %v768 = vshrl.u32 %v548, 16
        %v770 = vshll.u32 %v548, 16
        %v772 = vrot.slane %v770, 1
        %v773 = vor.u32 %v768, %v772
        %v775 = vshll.u32 %v596, 16
        %v777 = vrot.slane %v775, 1
        %v778 = vsel %vm598, %v773, %v777
        %v780 = vshrl.u32 %v549, 16
        %v782 = vshll.u32 %v549, 16
        %v784 = vrot.slane %v782, 1
        %v785 = vor.u32 %v780, %v784
        %v787 = vshll.u32 %v597, 16
        %v789 = vrot.slane %v787, 1
        %v790 = vsel %vm598, %v785, %v789
        %791 = vrot.lane.b32.xlu0 %v610, 4
        %v792 = vpop.permute.xlu0 %791
        %793 = vrot.lane.b32.xlu0 %v622, 4
        %v794 = vpop.permute.xlu0 %793
        %795 = vrot.lane.b32.xlu0 %v634, 4
        %v796 = vpop.permute.xlu0 %795
        %797 = vrot.lane.b32.xlu0 %v646, 4
        %v798 = vpop.permute.xlu0 %797
        %799 = vrot.lane.b32.xlu0 %v658, 4
        %v800 = vpop.permute.xlu0 %799
        %801 = vrot.lane.b32.xlu0 %v670, 4
        %v802 = vpop.permute.xlu0 %801
        %803 = vrot.lane.b32.xlu0 %v682, 4
        %v804 = vpop.permute.xlu0 %803
        %805 = vrot.lane.b32.xlu0 %v694, 4
        %v806 = vpop.permute.xlu0 %805
        %807 = vrot.lane.b32.xlu0 %v706, 4
        %v808 = vpop.permute.xlu0 %807
        %809 = vrot.lane.b32.xlu0 %v718, 4
        %v810 = vpop.permute.xlu0 %809
        %811 = vrot.lane.b32.xlu0 %v730, 4
        %v812 = vpop.permute.xlu0 %811
        %813 = vrot.lane.b32.xlu0 %v742, 4
        %v814 = vpop.permute.xlu0 %813
        %815 = vrot.lane.b32.xlu0 %v754, 4
        %v816 = vpop.permute.xlu0 %815
        %817 = vrot.lane.b32.xlu0 %v766, 4
        %v818 = vpop.permute.xlu0 %817
        %819 = vrot.lane.b32.xlu0 %v778, 4
        %v820 = vpop.permute.xlu0 %819
        %821 = vrot.lane.b32.xlu0 %v790, 4
        %v822 = vpop.permute.xlu0 %821
        %v839 = vunpack.c.l.b16 %v318
        %v840 = vunpack.c.l.b16 %v319
        %v841 = vunpack.c.l.b16 %v320
        %v842 = vunpack.c.l.b16 %v321
        %v843 = vunpack.c.l.b16 %v322
        %v844 = vunpack.c.l.b16 %v323
        %v845 = vunpack.c.l.b16 %v324
        %v846 = vunpack.c.l.b16 %v325
        %v847 = vunpack.c.l.b16 %v326
        %v848 = vunpack.c.l.b16 %v327
        %v849 = vunpack.c.l.b16 %v328
        %v850 = vunpack.c.l.b16 %v329
        %v851 = vunpack.c.l.b16 %v330
        %v852 = vunpack.c.l.b16 %v331
        %v853 = vunpack.c.l.b16 %v332
        %v854 = vunpack.c.l.b16 %v333
        %v855 = vpack.c.b16 %v503, %v839
        %v856 = vpack.c.b16 %v505, %v840
        %v857 = vpack.c.b16 %v507, %v841
        %v858 = vpack.c.b16 %v509, %v842
        %v859 = vpack.c.b16 %v511, %v843
        %v860 = vpack.c.b16 %v513, %v844
        %v861 = vpack.c.b16 %v515, %v845
        %v862 = vpack.c.b16 %v517, %v846
        %v863 = vpack.c.b16 %v519, %v847
        %v864 = vpack.c.b16 %v521, %v848
        %v865 = vpack.c.b16 %v523, %v849
        %v866 = vpack.c.b16 %v525, %v850
        %v867 = vpack.c.b16 %v527, %v851
        %v868 = vpack.c.b16 %v529, %v852
        %v869 = vpack.c.b16 %v531, %v853
        %v870 = vpack.c.b16 %v533, %v854
        %vm871 = vcmask 1046528
        %v872 = vrot.slane %v855, 1
        %v873 = vrot.slane %v582, 1
        %v874 = vsel %vm871, %v872, %v873
        %v875 = vrot.slane %v856, 1
        %v876 = vrot.slane %v583, 1
        %v877 = vsel %vm871, %v875, %v876
        %v878 = vrot.slane %v857, 1
        %v879 = vrot.slane %v584, 1
        %v880 = vsel %vm871, %v878, %v879
        %v881 = vrot.slane %v858, 1
        %v882 = vrot.slane %v585, 1
        %v883 = vsel %vm871, %v881, %v882
        %v884 = vrot.slane %v859, 1
        %v885 = vrot.slane %v586, 1
        %v886 = vsel %vm871, %v884, %v885
        %v887 = vrot.slane %v860, 1
        %v888 = vrot.slane %v587, 1
        %v889 = vsel %vm871, %v887, %v888
        %v890 = vrot.slane %v861, 1
        %v891 = vrot.slane %v588, 1
        %v892 = vsel %vm871, %v890, %v891
        %v893 = vrot.slane %v862, 1
        %v894 = vrot.slane %v589, 1
        %v895 = vsel %vm871, %v893, %v894
        %v896 = vrot.slane %v863, 1
        %v897 = vrot.slane %v590, 1
        %v898 = vsel %vm871, %v896, %v897
        %v899 = vrot.slane %v864, 1
        %v900 = vrot.slane %v591, 1
        %v901 = vsel %vm871, %v899, %v900
        %v902 = vrot.slane %v865, 1
        %v903 = vrot.slane %v592, 1
        %v904 = vsel %vm871, %v902, %v903
        %v905 = vrot.slane %v866, 1
        %v906 = vrot.slane %v593, 1
        %v907 = vsel %vm871, %v905, %v906
        %v908 = vrot.slane %v867, 1
        %v909 = vrot.slane %v594, 1
        %v910 = vsel %vm871, %v908, %v909
        %v911 = vrot.slane %v868, 1
        %v912 = vrot.slane %v595, 1
        %v913 = vsel %vm871, %v911, %v912
        %v914 = vrot.slane %v869, 1
        %v915 = vrot.slane %v596, 1
        %v916 = vsel %vm871, %v914, %v915
        %v917 = vrot.slane %v870, 1
        %v918 = vrot.slane %v597, 1
        %v919 = vsel %vm871, %v917, %v918
        %920 = vrot.lane.b32.xlu0 %v874, 8
        %v921 = vpop.permute.xlu0 %920
        %922 = vrot.lane.b32.xlu0 %v877, 8
        %v923 = vpop.permute.xlu0 %922
        %924 = vrot.lane.b32.xlu0 %v880, 8
        %v925 = vpop.permute.xlu0 %924
        %926 = vrot.lane.b32.xlu0 %v883, 8
        %v927 = vpop.permute.xlu0 %926
        %928 = vrot.lane.b32.xlu0 %v886, 8
        %v929 = vpop.permute.xlu0 %928
        %930 = vrot.lane.b32.xlu0 %v889, 8
        %v931 = vpop.permute.xlu0 %930
        %932 = vrot.lane.b32.xlu0 %v892, 8
        %v933 = vpop.permute.xlu0 %932
        %934 = vrot.lane.b32.xlu0 %v895, 8
        %v935 = vpop.permute.xlu0 %934
        %936 = vrot.lane.b32.xlu0 %v898, 8
        %v937 = vpop.permute.xlu0 %936
        %938 = vrot.lane.b32.xlu0 %v901, 8
        %v939 = vpop.permute.xlu0 %938
        %940 = vrot.lane.b32.xlu0 %v904, 8
        %v941 = vpop.permute.xlu0 %940
        %942 = vrot.lane.b32.xlu0 %v907, 8
        %v943 = vpop.permute.xlu0 %942
        %944 = vrot.lane.b32.xlu0 %v910, 8
        %v945 = vpop.permute.xlu0 %944
        %946 = vrot.lane.b32.xlu0 %v913, 8
        %v947 = vpop.permute.xlu0 %946
        %948 = vrot.lane.b32.xlu0 %v916, 8
        %v949 = vpop.permute.xlu0 %948
        %950 = vrot.lane.b32.xlu0 %v919, 8
        %v951 = vpop.permute.xlu0 %950
        %v984 = vunpack.c.l.b16 %v338
        %v985 = vunpack.c.l.b16 %v339
        %v986 = vunpack.c.l.b16 %v340
        %v987 = vunpack.c.l.b16 %v341
        %v988 = vunpack.c.l.b16 %v342
        %v989 = vunpack.c.l.b16 %v343
        %v990 = vunpack.c.l.b16 %v344
        %v991 = vunpack.c.l.b16 %v345
        %v992 = vunpack.c.l.b16 %v346
        %v993 = vunpack.c.l.b16 %v347
        %v994 = vunpack.c.l.b16 %v348
        %v995 = vunpack.c.l.b16 %v349
        %v996 = vunpack.c.l.b16 %v350
        %v997 = vunpack.c.l.b16 %v351
        %v998 = vunpack.c.l.b16 %v352
        %v999 = vunpack.c.l.b16 %v353
        %v1000 = vunpack.c.l.b16 %v354
        %v1001 = vunpack.c.l.b16 %v355
        %v1002 = vunpack.c.l.b16 %v356
        %v1003 = vunpack.c.l.b16 %v357
        %v1004 = vunpack.c.l.b16 %v358
        %v1005 = vunpack.c.l.b16 %v359
        %v1006 = vunpack.c.l.b16 %v360
        %v1007 = vunpack.c.l.b16 %v361
        %v1008 = vunpack.c.l.b16 %v362
        %v1009 = vunpack.c.l.b16 %v363
        %v1010 = vunpack.c.l.b16 %v364
        %v1011 = vunpack.c.l.b16 %v365
        %v1012 = vunpack.c.l.b16 %v366
        %v1013 = vunpack.c.l.b16 %v367
        %v1014 = vunpack.c.l.b16 %v368
        %v1015 = vunpack.c.l.b16 %v369
        %v1016 = vpack.c.b16 %v985, %v984
        %v1017 = vpack.c.b16 %v987, %v986
        %v1018 = vpack.c.b16 %v989, %v988
        %v1019 = vpack.c.b16 %v991, %v990
        %v1020 = vpack.c.b16 %v993, %v992
        %v1021 = vpack.c.b16 %v995, %v994
        %v1022 = vpack.c.b16 %v997, %v996
        %v1023 = vpack.c.b16 %v999, %v998
        %v1024 = vpack.c.b16 %v1001, %v1000
        %v1025 = vpack.c.b16 %v1003, %v1002
        %v1026 = vpack.c.b16 %v1005, %v1004
        %v1027 = vpack.c.b16 %v1007, %v1006
        %v1028 = vpack.c.b16 %v1009, %v1008
        %v1029 = vpack.c.b16 %v1011, %v1010
        %v1030 = vpack.c.b16 %v1013, %v1012
        %v1031 = vpack.c.b16 %v1015, %v1014
        %1032 = vrot.lane.b32.xlu0 %v1016, 12
        %v1033 = vpop.permute.xlu0 %1032
        %1034 = vrot.lane.b32.xlu0 %v1017, 12
        %v1035 = vpop.permute.xlu0 %1034
        %1036 = vrot.lane.b32.xlu0 %v1018, 12
        %v1037 = vpop.permute.xlu0 %1036
        %1038 = vrot.lane.b32.xlu0 %v1019, 12
        %v1039 = vpop.permute.xlu0 %1038
        %1040 = vrot.lane.b32.xlu0 %v1020, 12
        %v1041 = vpop.permute.xlu0 %1040
        %1042 = vrot.lane.b32.xlu0 %v1021, 12
        %v1043 = vpop.permute.xlu0 %1042
        %1044 = vrot.lane.b32.xlu0 %v1022, 12
        %v1045 = vpop.permute.xlu0 %1044
        %1046 = vrot.lane.b32.xlu0 %v1023, 12
        %v1047 = vpop.permute.xlu0 %1046
        %1048 = vrot.lane.b32.xlu0 %v1024, 12
        %v1049 = vpop.permute.xlu0 %1048
        %1050 = vrot.lane.b32.xlu0 %v1025, 12
        %v1051 = vpop.permute.xlu0 %1050
        %1052 = vrot.lane.b32.xlu0 %v1026, 12
        %v1053 = vpop.permute.xlu0 %1052
        %1054 = vrot.lane.b32.xlu0 %v1027, 12
        %v1055 = vpop.permute.xlu0 %1054
        %1056 = vrot.lane.b32.xlu0 %v1028, 12
        %v1057 = vpop.permute.xlu0 %1056
        %1058 = vrot.lane.b32.xlu0 %v1029, 12
        %v1059 = vpop.permute.xlu0 %1058
        %1060 = vrot.lane.b32.xlu0 %v1030, 12
        %v1061 = vpop.permute.xlu0 %1060
        %1062 = vrot.lane.b32.xlu0 %v1031, 12
        %v1063 = vpop.permute.xlu0 %1062
        %v1080 = vunpack.c.l.b16 %v370
        %v1081 = vunpack.c.l.b16 %v371
        %v1082 = vunpack.c.l.b16 %v372
        %v1083 = vunpack.c.l.b16 %v373
        %v1084 = vunpack.c.l.b16 %v374
        %v1085 = vunpack.c.l.b16 %v375
        %v1086 = vunpack.c.l.b16 %v376
        %v1087 = vunpack.c.l.b16 %v377
        %v1088 = vunpack.c.l.b16 %v378
        %v1089 = vunpack.c.l.b16 %v379
        %v1090 = vunpack.c.l.b16 %v380
        %v1091 = vunpack.c.l.b16 %v381
        %v1092 = vunpack.c.l.b16 %v382
        %v1093 = vunpack.c.l.b16 %v383
        %v1094 = vunpack.c.l.b16 %v384
        %v1095 = vunpack.c.l.b16 %v385
        %v1096 = vpack.c.b16 %v1080, %v1080
        %v1097 = vpack.c.b16 %v1081, %v1081
        %v1098 = vpack.c.b16 %v1082, %v1082
        %v1099 = vpack.c.b16 %v1083, %v1083
        %v1100 = vpack.c.b16 %v1084, %v1084
        %v1101 = vpack.c.b16 %v1085, %v1085
        %v1102 = vpack.c.b16 %v1086, %v1086
        %v1103 = vpack.c.b16 %v1087, %v1087
        %v1104 = vpack.c.b16 %v1088, %v1088
        %v1105 = vpack.c.b16 %v1089, %v1089
        %v1106 = vpack.c.b16 %v1090, %v1090
        %v1107 = vpack.c.b16 %v1091, %v1091
        %v1108 = vpack.c.b16 %v1092, %v1092
        %v1109 = vpack.c.b16 %v1093, %v1093
        %v1110 = vpack.c.b16 %v1094, %v1094
        %v1111 = vpack.c.b16 %v1095, %v1095
        %v1113 = vshrl.u32 %v1016, 16
        %v1115 = vshll.u32 %v1016, 16
        %v1117 = vrot.slane %v1115, 1
        %v1118 = vor.u32 %v1113, %v1117
        %v1120 = vshll.u32 %v1096, 16
        %v1122 = vrot.slane %v1120, 1
        %v1123 = vsel %vm598, %v1118, %v1122
        %v1125 = vshrl.u32 %v1017, 16
        %v1127 = vshll.u32 %v1017, 16
        %v1129 = vrot.slane %v1127, 1
        %v1130 = vor.u32 %v1125, %v1129
        %v1132 = vshll.u32 %v1097, 16
        %v1134 = vrot.slane %v1132, 1
        %v1135 = vsel %vm598, %v1130, %v1134
        %v1137 = vshrl.u32 %v1018, 16
        %v1139 = vshll.u32 %v1018, 16
        %v1141 = vrot.slane %v1139, 1
        %v1142 = vor.u32 %v1137, %v1141
        %v1144 = vshll.u32 %v1098, 16
        %v1146 = vrot.slane %v1144, 1
        %v1147 = vsel %vm598, %v1142, %v1146
        %v1149 = vshrl.u32 %v1019, 16
        %v1151 = vshll.u32 %v1019, 16
        %v1153 = vrot.slane %v1151, 1
        %v1154 = vor.u32 %v1149, %v1153
        %v1156 = vshll.u32 %v1099, 16
        %v1158 = vrot.slane %v1156, 1
        %v1159 = vsel %vm598, %v1154, %v1158
        %v1161 = vshrl.u32 %v1020, 16
        %v1163 = vshll.u32 %v1020, 16
        %v1165 = vrot.slane %v1163, 1
        %v1166 = vor.u32 %v1161, %v1165
        %v1168 = vshll.u32 %v1100, 16
        %v1170 = vrot.slane %v1168, 1
        %v1171 = vsel %vm598, %v1166, %v1170
        %v1173 = vshrl.u32 %v1021, 16
        %v1175 = vshll.u32 %v1021, 16
        %v1177 = vrot.slane %v1175, 1
        %v1178 = vor.u32 %v1173, %v1177
        %v1180 = vshll.u32 %v1101, 16
        %v1182 = vrot.slane %v1180, 1
        %v1183 = vsel %vm598, %v1178, %v1182
        %v1185 = vshrl.u32 %v1022, 16
        %v1187 = vshll.u32 %v1022, 16
        %v1189 = vrot.slane %v1187, 1
        %v1190 = vor.u32 %v1185, %v1189
        %v1192 = vshll.u32 %v1102, 16
        %v1194 = vrot.slane %v1192, 1
        %v1195 = vsel %vm598, %v1190, %v1194
        %v1197 = vshrl.u32 %v1023, 16
        %v1199 = vshll.u32 %v1023, 16
        %v1201 = vrot.slane %v1199, 1
        %v1202 = vor.u32 %v1197, %v1201
        %v1204 = vshll.u32 %v1103, 16
        %v1206 = vrot.slane %v1204, 1
        %v1207 = vsel %vm598, %v1202, %v1206
        %v1209 = vshrl.u32 %v1024, 16
        %v1211 = vshll.u32 %v1024, 16
        %v1213 = vrot.slane %v1211, 1
        %v1214 = vor.u32 %v1209, %v1213
        %v1216 = vshll.u32 %v1104, 16
        %v1218 = vrot.slane %v1216, 1
        %v1219 = vsel %vm598, %v1214, %v1218
        %v1221 = vshrl.u32 %v1025, 16
        %v1223 = vshll.u32 %v1025, 16
        %v1225 = vrot.slane %v1223, 1
        %v1226 = vor.u32 %v1221, %v1225
        %v1228 = vshll.u32 %v1105, 16
        %v1230 = vrot.slane %v1228, 1
        %v1231 = vsel %vm598, %v1226, %v1230
        %v1233 = vshrl.u32 %v1026, 16
        %v1235 = vshll.u32 %v1026, 16
        %v1237 = vrot.slane %v1235, 1
        %v1238 = vor.u32 %v1233, %v1237
        %v1240 = vshll.u32 %v1106, 16
        %v1242 = vrot.slane %v1240, 1
        %v1243 = vsel %vm598, %v1238, %v1242
        %v1245 = vshrl.u32 %v1027, 16
        %v1247 = vshll.u32 %v1027, 16
        %v1249 = vrot.slane %v1247, 1
        %v1250 = vor.u32 %v1245, %v1249
        %v1252 = vshll.u32 %v1107, 16
        %v1254 = vrot.slane %v1252, 1
        %v1255 = vsel %vm598, %v1250, %v1254
        %v1257 = vshrl.u32 %v1028, 16
        %v1259 = vshll.u32 %v1028, 16
        %v1261 = vrot.slane %v1259, 1
        %v1262 = vor.u32 %v1257, %v1261
        %v1264 = vshll.u32 %v1108, 16
        %v1266 = vrot.slane %v1264, 1
        %v1267 = vsel %vm598, %v1262, %v1266
        %v1269 = vshrl.u32 %v1029, 16
        %v1271 = vshll.u32 %v1029, 16
        %v1273 = vrot.slane %v1271, 1
        %v1274 = vor.u32 %v1269, %v1273
        %v1276 = vshll.u32 %v1109, 16
        %v1278 = vrot.slane %v1276, 1
        %v1279 = vsel %vm598, %v1274, %v1278
        %v1281 = vshrl.u32 %v1030, 16
        %v1283 = vshll.u32 %v1030, 16
        %v1285 = vrot.slane %v1283, 1
        %v1286 = vor.u32 %v1281, %v1285
        %v1288 = vshll.u32 %v1110, 16
        %v1290 = vrot.slane %v1288, 1
        %v1291 = vsel %vm598, %v1286, %v1290
        %v1293 = vshrl.u32 %v1031, 16
        %v1295 = vshll.u32 %v1031, 16
        %v1297 = vrot.slane %v1295, 1
        %v1298 = vor.u32 %v1293, %v1297
        %v1300 = vshll.u32 %v1111, 16
        %v1302 = vrot.slane %v1300, 1
        %v1303 = vsel %vm598, %v1298, %v1302
        %1304 = vrot.lane.b32.xlu0 %v1123, 16
        %v1305 = vpop.permute.xlu0 %1304
        %1306 = vrot.lane.b32.xlu0 %v1135, 16
        %v1307 = vpop.permute.xlu0 %1306
        %1308 = vrot.lane.b32.xlu0 %v1147, 16
        %v1309 = vpop.permute.xlu0 %1308
        %1310 = vrot.lane.b32.xlu0 %v1159, 16
        %v1311 = vpop.permute.xlu0 %1310
        %1312 = vrot.lane.b32.xlu0 %v1171, 16
        %v1313 = vpop.permute.xlu0 %1312
        %1314 = vrot.lane.b32.xlu0 %v1183, 16
        %v1315 = vpop.permute.xlu0 %1314
        %1316 = vrot.lane.b32.xlu0 %v1195, 16
        %v1317 = vpop.permute.xlu0 %1316
        %1318 = vrot.lane.b32.xlu0 %v1207, 16
        %v1319 = vpop.permute.xlu0 %1318
        %1320 = vrot.lane.b32.xlu0 %v1219, 16
        %v1321 = vpop.permute.xlu0 %1320
        %1322 = vrot.lane.b32.xlu0 %v1231, 16
        %v1323 = vpop.permute.xlu0 %1322
        %1324 = vrot.lane.b32.xlu0 %v1243, 16
        %v1325 = vpop.permute.xlu0 %1324
        %1326 = vrot.lane.b32.xlu0 %v1255, 16
        %v1327 = vpop.permute.xlu0 %1326
        %1328 = vrot.lane.b32.xlu0 %v1267, 16
        %v1329 = vpop.permute.xlu0 %1328
        %1330 = vrot.lane.b32.xlu0 %v1279, 16
        %v1331 = vpop.permute.xlu0 %1330
        %1332 = vrot.lane.b32.xlu0 %v1291, 16
        %v1333 = vpop.permute.xlu0 %1332
        %1334 = vrot.lane.b32.xlu0 %v1303, 16
        %v1335 = vpop.permute.xlu0 %1334
        %v1352 = vunpack.c.l.b16 %v386
        %v1353 = vunpack.c.l.b16 %v387
        %v1354 = vunpack.c.l.b16 %v388
        %v1355 = vunpack.c.l.b16 %v389
        %v1356 = vunpack.c.l.b16 %v390
        %v1357 = vunpack.c.l.b16 %v391
        %v1358 = vunpack.c.l.b16 %v392
        %v1359 = vunpack.c.l.b16 %v393
        %v1360 = vunpack.c.l.b16 %v394
        %v1361 = vunpack.c.l.b16 %v395
        %v1362 = vunpack.c.l.b16 %v396
        %v1363 = vunpack.c.l.b16 %v397
        %v1364 = vunpack.c.l.b16 %v398
        %v1365 = vunpack.c.l.b16 %v399
        %v1366 = vunpack.c.l.b16 %v400
        %v1367 = vunpack.c.l.b16 %v401
        %v1368 = vpack.c.b16 %v985, %v1352
        %v1369 = vpack.c.b16 %v987, %v1353
        %v1370 = vpack.c.b16 %v989, %v1354
        %v1371 = vpack.c.b16 %v991, %v1355
        %v1372 = vpack.c.b16 %v993, %v1356
        %v1373 = vpack.c.b16 %v995, %v1357
        %v1374 = vpack.c.b16 %v997, %v1358
        %v1375 = vpack.c.b16 %v999, %v1359
        %v1376 = vpack.c.b16 %v1001, %v1360
        %v1377 = vpack.c.b16 %v1003, %v1361
        %v1378 = vpack.c.b16 %v1005, %v1362
        %v1379 = vpack.c.b16 %v1007, %v1363
        %v1380 = vpack.c.b16 %v1009, %v1364
        %v1381 = vpack.c.b16 %v1011, %v1365
        %v1382 = vpack.c.b16 %v1013, %v1366
        %v1383 = vpack.c.b16 %v1015, %v1367
        %v1384 = vrot.slane %v1368, 1
        %v1385 = vrot.slane %v1096, 1
        %v1386 = vsel %vm871, %v1384, %v1385
        %v1387 = vrot.slane %v1369, 1
        %v1388 = vrot.slane %v1097, 1
        %v1389 = vsel %vm871, %v1387, %v1388
        %v1390 = vrot.slane %v1370, 1
        %v1391 = vrot.slane %v1098, 1
        %v1392 = vsel %vm871, %v1390, %v1391
        %v1393 = vrot.slane %v1371, 1
        %v1394 = vrot.slane %v1099, 1
        %v1395 = vsel %vm871, %v1393, %v1394
        %v1396 = vrot.slane %v1372, 1
        %v1397 = vrot.slane %v1100, 1
        %v1398 = vsel %vm871, %v1396, %v1397
        %v1399 = vrot.slane %v1373, 1
        %v1400 = vrot.slane %v1101, 1
        %v1401 = vsel %vm871, %v1399, %v1400
        %v1402 = vrot.slane %v1374, 1
        %v1403 = vrot.slane %v1102, 1
        %v1404 = vsel %vm871, %v1402, %v1403
        %v1405 = vrot.slane %v1375, 1
        %v1406 = vrot.slane %v1103, 1
        %v1407 = vsel %vm871, %v1405, %v1406
        %v1408 = vrot.slane %v1376, 1
        %v1409 = vrot.slane %v1104, 1
        %v1410 = vsel %vm871, %v1408, %v1409
        %v1411 = vrot.slane %v1377, 1
        %v1412 = vrot.slane %v1105, 1
        %v1413 = vsel %vm871, %v1411, %v1412
        %v1414 = vrot.slane %v1378, 1
        %v1415 = vrot.slane %v1106, 1
        %v1416 = vsel %vm871, %v1414, %v1415
        %v1417 = vrot.slane %v1379, 1
        %v1418 = vrot.slane %v1107, 1
        %v1419 = vsel %vm871, %v1417, %v1418
        %v1420 = vrot.slane %v1380, 1
        %v1421 = vrot.slane %v1108, 1
        %v1422 = vsel %vm871, %v1420, %v1421
        %v1423 = vrot.slane %v1381, 1
        %v1424 = vrot.slane %v1109, 1
        %v1425 = vsel %vm871, %v1423, %v1424
        %v1426 = vrot.slane %v1382, 1
        %v1427 = vrot.slane %v1110, 1
        %v1428 = vsel %vm871, %v1426, %v1427
        %v1429 = vrot.slane %v1383, 1
        %v1430 = vrot.slane %v1111, 1
        %v1431 = vsel %vm871, %v1429, %v1430
        %1432 = vrot.lane.b32.xlu0 %v1386, 20
        %v1433 = vpop.permute.xlu0 %1432
        %1434 = vrot.lane.b32.xlu0 %v1389, 20
        %v1435 = vpop.permute.xlu0 %1434
        %1436 = vrot.lane.b32.xlu0 %v1392, 20
        %v1437 = vpop.permute.xlu0 %1436
        %1438 = vrot.lane.b32.xlu0 %v1395, 20
        %v1439 = vpop.permute.xlu0 %1438
        %1440 = vrot.lane.b32.xlu0 %v1398, 20
        %v1441 = vpop.permute.xlu0 %1440
        %1442 = vrot.lane.b32.xlu0 %v1401, 20
        %v1443 = vpop.permute.xlu0 %1442
        %1444 = vrot.lane.b32.xlu0 %v1404, 20
        %v1445 = vpop.permute.xlu0 %1444
        %1446 = vrot.lane.b32.xlu0 %v1407, 20
        %v1447 = vpop.permute.xlu0 %1446
        %1448 = vrot.lane.b32.xlu0 %v1410, 20
        %v1449 = vpop.permute.xlu0 %1448
        %1450 = vrot.lane.b32.xlu0 %v1413, 20
        %v1451 = vpop.permute.xlu0 %1450
        %1452 = vrot.lane.b32.xlu0 %v1416, 20
        %v1453 = vpop.permute.xlu0 %1452
        %1454 = vrot.lane.b32.xlu0 %v1419, 20
        %v1455 = vpop.permute.xlu0 %1454
        %1456 = vrot.lane.b32.xlu0 %v1422, 20
        %v1457 = vpop.permute.xlu0 %1456
        %1458 = vrot.lane.b32.xlu0 %v1425, 20
        %v1459 = vpop.permute.xlu0 %1458
        %1460 = vrot.lane.b32.xlu0 %v1428, 20
        %v1461 = vpop.permute.xlu0 %1460
        %1462 = vrot.lane.b32.xlu0 %v1431, 20
        %v1463 = vpop.permute.xlu0 %1462
        %v1496 = vunpack.c.l.b16 %v406
        %v1497 = vunpack.c.l.b16 %v407
        %v1498 = vunpack.c.l.b16 %v408
        %v1499 = vunpack.c.l.b16 %v409
        %v1500 = vunpack.c.l.b16 %v410
        %v1501 = vunpack.c.l.b16 %v411
        %v1502 = vunpack.c.l.b16 %v412
        %v1503 = vunpack.c.l.b16 %v413
        %v1504 = vunpack.c.l.b16 %v414
        %v1505 = vunpack.c.l.b16 %v415
        %v1506 = vunpack.c.l.b16 %v416
        %v1507 = vunpack.c.l.b16 %v417
        %v1508 = vunpack.c.l.b16 %v418
        %v1509 = vunpack.c.l.b16 %v419
        %v1510 = vunpack.c.l.b16 %v420
        %v1511 = vunpack.c.l.b16 %v421
        %v1512 = vunpack.c.l.b16 %v422
        %v1513 = vunpack.c.l.b16 %v423
        %v1514 = vunpack.c.l.b16 %v424
        %v1515 = vunpack.c.l.b16 %v425
        %v1516 = vunpack.c.l.b16 %v426
        %v1517 = vunpack.c.l.b16 %v427
        %v1518 = vunpack.c.l.b16 %v428
        %v1519 = vunpack.c.l.b16 %v429
        %v1520 = vunpack.c.l.b16 %v430
        %v1521 = vunpack.c.l.b16 %v431
        %v1522 = vunpack.c.l.b16 %v432
        %v1523 = vunpack.c.l.b16 %v433
        %v1524 = vunpack.c.l.b16 %v434
        %v1525 = vunpack.c.l.b16 %v435
        %v1526 = vunpack.c.l.b16 %v436
        %v1527 = vunpack.c.l.b16 %v437
        %v1528 = vpack.c.b16 %v1497, %v1496
        %v1529 = vpack.c.b16 %v1499, %v1498
        %v1530 = vpack.c.b16 %v1501, %v1500
        %v1531 = vpack.c.b16 %v1503, %v1502
        %v1532 = vpack.c.b16 %v1505, %v1504
        %v1533 = vpack.c.b16 %v1507, %v1506
        %v1534 = vpack.c.b16 %v1509, %v1508
        %v1535 = vpack.c.b16 %v1511, %v1510
        %v1536 = vpack.c.b16 %v1513, %v1512
        %v1537 = vpack.c.b16 %v1515, %v1514
        %v1538 = vpack.c.b16 %v1517, %v1516
        %v1539 = vpack.c.b16 %v1519, %v1518
        %v1540 = vpack.c.b16 %v1521, %v1520
        %v1541 = vpack.c.b16 %v1523, %v1522
        %v1542 = vpack.c.b16 %v1525, %v1524
        %v1543 = vpack.c.b16 %v1527, %v1526
        %1544 = vrot.lane.b32.xlu0 %v1528, 24
        %v1545 = vpop.permute.xlu0 %1544
        %1546 = vrot.lane.b32.xlu0 %v1529, 24
        %v1547 = vpop.permute.xlu0 %1546
        %1548 = vrot.lane.b32.xlu0 %v1530, 24
        %v1549 = vpop.permute.xlu0 %1548
        %1550 = vrot.lane.b32.xlu0 %v1531, 24
        %v1551 = vpop.permute.xlu0 %1550
        %1552 = vrot.lane.b32.xlu0 %v1532, 24
        %v1553 = vpop.permute.xlu0 %1552
        %1554 = vrot.lane.b32.xlu0 %v1533, 24
        %v1555 = vpop.permute.xlu0 %1554
        %1556 = vrot.lane.b32.xlu0 %v1534, 24
        %v1557 = vpop.permute.xlu0 %1556
        %1558 = vrot.lane.b32.xlu0 %v1535, 24
        %v1559 = vpop.permute.xlu0 %1558
        %1560 = vrot.lane.b32.xlu0 %v1536, 24
        %v1561 = vpop.permute.xlu0 %1560
        %1562 = vrot.lane.b32.xlu0 %v1537, 24
        %v1563 = vpop.permute.xlu0 %1562
        %1564 = vrot.lane.b32.xlu0 %v1538, 24
        %v1565 = vpop.permute.xlu0 %1564
        %1566 = vrot.lane.b32.xlu0 %v1539, 24
        %v1567 = vpop.permute.xlu0 %1566
        %1568 = vrot.lane.b32.xlu0 %v1540, 24
        %v1569 = vpop.permute.xlu0 %1568
        %1570 = vrot.lane.b32.xlu0 %v1541, 24
        %v1571 = vpop.permute.xlu0 %1570
        %1572 = vrot.lane.b32.xlu0 %v1542, 24
        %v1573 = vpop.permute.xlu0 %1572
        %1574 = vrot.lane.b32.xlu0 %v1543, 24
        %v1575 = vpop.permute.xlu0 %1574
        %v1592 = vunpack.c.l.b16 %v438
        %v1593 = vunpack.c.l.b16 %v439
        %v1594 = vunpack.c.l.b16 %v440
        %v1595 = vunpack.c.l.b16 %v441
        %v1596 = vunpack.c.l.b16 %v442
        %v1597 = vunpack.c.l.b16 %v443
        %v1598 = vunpack.c.l.b16 %v444
        %v1599 = vunpack.c.l.b16 %v445
        %v1600 = vunpack.c.l.b16 %v446
        %v1601 = vunpack.c.l.b16 %v447
        %v1602 = vunpack.c.l.b16 %v448
        %v1603 = vunpack.c.l.b16 %v449
        %v1604 = vunpack.c.l.b16 %v450
        %v1605 = vunpack.c.l.b16 %v451
        %v1606 = vunpack.c.l.b16 %v452
        %v1607 = vunpack.c.l.b16 %v453
        %v1608 = vpack.c.b16 %v1592, %v1592
        %v1609 = vpack.c.b16 %v1593, %v1593
        %v1610 = vpack.c.b16 %v1594, %v1594
        %v1611 = vpack.c.b16 %v1595, %v1595
        %v1612 = vpack.c.b16 %v1596, %v1596
        %v1613 = vpack.c.b16 %v1597, %v1597
        %v1614 = vpack.c.b16 %v1598, %v1598
        %v1615 = vpack.c.b16 %v1599, %v1599
        %v1616 = vpack.c.b16 %v1600, %v1600
        %v1617 = vpack.c.b16 %v1601, %v1601
        %v1618 = vpack.c.b16 %v1602, %v1602
        %v1619 = vpack.c.b16 %v1603, %v1603
        %v1620 = vpack.c.b16 %v1604, %v1604
        %v1621 = vpack.c.b16 %v1605, %v1605
        %v1622 = vpack.c.b16 %v1606, %v1606
        %v1623 = vpack.c.b16 %v1607, %v1607
        %v1625 = vshrl.u32 %v1528, 16
        %v1627 = vshll.u32 %v1528, 16
        %v1629 = vrot.slane %v1627, 1
        %v1630 = vor.u32 %v1625, %v1629
        %v1632 = vshll.u32 %v1608, 16
        %v1634 = vrot.slane %v1632, 1
        %v1635 = vsel %vm598, %v1630, %v1634
        %v1637 = vshrl.u32 %v1529, 16
        %v1639 = vshll.u32 %v1529, 16
        %v1641 = vrot.slane %v1639, 1
        %v1642 = vor.u32 %v1637, %v1641
        %v1644 = vshll.u32 %v1609, 16
        %v1646 = vrot.slane %v1644, 1
        %v1647 = vsel %vm598, %v1642, %v1646
        %v1649 = vshrl.u32 %v1530, 16
        %v1651 = vshll.u32 %v1530, 16
        %v1653 = vrot.slane %v1651, 1
        %v1654 = vor.u32 %v1649, %v1653
        %v1656 = vshll.u32 %v1610, 16
        %v1658 = vrot.slane %v1656, 1
        %v1659 = vsel %vm598, %v1654, %v1658
        %v1661 = vshrl.u32 %v1531, 16
        %v1663 = vshll.u32 %v1531, 16
        %v1665 = vrot.slane %v1663, 1
        %v1666 = vor.u32 %v1661, %v1665
        %v1668 = vshll.u32 %v1611, 16
        %v1670 = vrot.slane %v1668, 1
        %v1671 = vsel %vm598, %v1666, %v1670
        %v1673 = vshrl.u32 %v1532, 16
        %v1675 = vshll.u32 %v1532, 16
        %v1677 = vrot.slane %v1675, 1
        %v1678 = vor.u32 %v1673, %v1677
        %v1680 = vshll.u32 %v1612, 16
        %v1682 = vrot.slane %v1680, 1
        %v1683 = vsel %vm598, %v1678, %v1682
        %v1685 = vshrl.u32 %v1533, 16
        %v1687 = vshll.u32 %v1533, 16
        %v1689 = vrot.slane %v1687, 1
        %v1690 = vor.u32 %v1685, %v1689
        %v1692 = vshll.u32 %v1613, 16
        %v1694 = vrot.slane %v1692, 1
        %v1695 = vsel %vm598, %v1690, %v1694
        %v1697 = vshrl.u32 %v1534, 16
        %v1699 = vshll.u32 %v1534, 16
        %v1701 = vrot.slane %v1699, 1
        %v1702 = vor.u32 %v1697, %v1701
        %v1704 = vshll.u32 %v1614, 16
        %v1706 = vrot.slane %v1704, 1
        %v1707 = vsel %vm598, %v1702, %v1706
        %v1709 = vshrl.u32 %v1535, 16
        %v1711 = vshll.u32 %v1535, 16
        %v1713 = vrot.slane %v1711, 1
        %v1714 = vor.u32 %v1709, %v1713
        %v1716 = vshll.u32 %v1615, 16
        %v1718 = vrot.slane %v1716, 1
        %v1719 = vsel %vm598, %v1714, %v1718
        %v1721 = vshrl.u32 %v1536, 16
        %v1723 = vshll.u32 %v1536, 16
        %v1725 = vrot.slane %v1723, 1
        %v1726 = vor.u32 %v1721, %v1725
        %v1728 = vshll.u32 %v1616, 16
        %v1730 = vrot.slane %v1728, 1
        %v1731 = vsel %vm598, %v1726, %v1730
        %v1733 = vshrl.u32 %v1537, 16
        %v1735 = vshll.u32 %v1537, 16
        %v1737 = vrot.slane %v1735, 1
        %v1738 = vor.u32 %v1733, %v1737
        %v1740 = vshll.u32 %v1617, 16
        %v1742 = vrot.slane %v1740, 1
        %v1743 = vsel %vm598, %v1738, %v1742
        %v1745 = vshrl.u32 %v1538, 16
        %v1747 = vshll.u32 %v1538, 16
        %v1749 = vrot.slane %v1747, 1
        %v1750 = vor.u32 %v1745, %v1749
        %v1752 = vshll.u32 %v1618, 16
        %v1754 = vrot.slane %v1752, 1
        %v1755 = vsel %vm598, %v1750, %v1754
        %v1757 = vshrl.u32 %v1539, 16
        %v1759 = vshll.u32 %v1539, 16
        %v1761 = vrot.slane %v1759, 1
        %v1762 = vor.u32 %v1757, %v1761
        %v1764 = vshll.u32 %v1619, 16
        %v1766 = vrot.slane %v1764, 1
        %v1767 = vsel %vm598, %v1762, %v1766
        %v1769 = vshrl.u32 %v1540, 16
        %v1771 = vshll.u32 %v1540, 16
        %v1773 = vrot.slane %v1771, 1
        %v1774 = vor.u32 %v1769, %v1773
        %v1776 = vshll.u32 %v1620, 16
        %v1778 = vrot.slane %v1776, 1
        %v1779 = vsel %vm598, %v1774, %v1778
        %v1781 = vshrl.u32 %v1541, 16
        %v1783 = vshll.u32 %v1541, 16
        %v1785 = vrot.slane %v1783, 1
        %v1786 = vor.u32 %v1781, %v1785
        %v1788 = vshll.u32 %v1621, 16
        %v1790 = vrot.slane %v1788, 1
        %v1791 = vsel %vm598, %v1786, %v1790
        %v1793 = vshrl.u32 %v1542, 16
        %v1795 = vshll.u32 %v1542, 16
        %v1797 = vrot.slane %v1795, 1
        %v1798 = vor.u32 %v1793, %v1797
        %v1800 = vshll.u32 %v1622, 16
        %v1802 = vrot.slane %v1800, 1
        %v1803 = vsel %vm598, %v1798, %v1802
        %v1805 = vshrl.u32 %v1543, 16
        %v1807 = vshll.u32 %v1543, 16
        %v1809 = vrot.slane %v1807, 1
        %v1810 = vor.u32 %v1805, %v1809
        %v1812 = vshll.u32 %v1623, 16
        %v1814 = vrot.slane %v1812, 1
        %v1815 = vsel %vm598, %v1810, %v1814
        %1816 = vrot.lane.b32.xlu0 %v1635, 28
        %v1817 = vpop.permute.xlu0 %1816
        %1818 = vrot.lane.b32.xlu0 %v1647, 28
        %v1819 = vpop.permute.xlu0 %1818
        %1820 = vrot.lane.b32.xlu0 %v1659, 28
        %v1821 = vpop.permute.xlu0 %1820
        %1822 = vrot.lane.b32.xlu0 %v1671, 28
        %v1823 = vpop.permute.xlu0 %1822
        %1824 = vrot.lane.b32.xlu0 %v1683, 28
        %v1825 = vpop.permute.xlu0 %1824
        %1826 = vrot.lane.b32.xlu0 %v1695, 28
        %v1827 = vpop.permute.xlu0 %1826
        %1828 = vrot.lane.b32.xlu0 %v1707, 28
        %v1829 = vpop.permute.xlu0 %1828
        %1830 = vrot.lane.b32.xlu0 %v1719, 28
        %v1831 = vpop.permute.xlu0 %1830
        %1832 = vrot.lane.b32.xlu0 %v1731, 28
        %v1833 = vpop.permute.xlu0 %1832
        %1834 = vrot.lane.b32.xlu0 %v1743, 28
        %v1835 = vpop.permute.xlu0 %1834
        %1836 = vrot.lane.b32.xlu0 %v1755, 28
        %v1837 = vpop.permute.xlu0 %1836
        %1838 = vrot.lane.b32.xlu0 %v1767, 28
        %v1839 = vpop.permute.xlu0 %1838
        %1840 = vrot.lane.b32.xlu0 %v1779, 28
        %v1841 = vpop.permute.xlu0 %1840
        %1842 = vrot.lane.b32.xlu0 %v1791, 28
        %v1843 = vpop.permute.xlu0 %1842
        %1844 = vrot.lane.b32.xlu0 %v1803, 28
        %v1845 = vpop.permute.xlu0 %1844
        %1846 = vrot.lane.b32.xlu0 %v1815, 28
        %v1847 = vpop.permute.xlu0 %1846
        %v1864 = vunpack.c.l.b16 %v454
        %v1865 = vunpack.c.l.b16 %v455
        %v1866 = vunpack.c.l.b16 %v456
        %v1867 = vunpack.c.l.b16 %v457
        %v1868 = vunpack.c.l.b16 %v458
        %v1869 = vunpack.c.l.b16 %v459
        %v1870 = vunpack.c.l.b16 %v460
        %v1871 = vunpack.c.l.b16 %v461
        %v1872 = vunpack.c.l.b16 %v462
        %v1873 = vunpack.c.l.b16 %v463
        %v1874 = vunpack.c.l.b16 %v464
        %v1875 = vunpack.c.l.b16 %v465
        %v1876 = vunpack.c.l.b16 %v466
        %v1877 = vunpack.c.l.b16 %v467
        %v1878 = vunpack.c.l.b16 %v468
        %v1879 = vunpack.c.l.b16 %v469
        %v1880 = vpack.c.b16 %v1497, %v1864
        %v1881 = vpack.c.b16 %v1499, %v1865
        %v1882 = vpack.c.b16 %v1501, %v1866
        %v1883 = vpack.c.b16 %v1503, %v1867
        %v1884 = vpack.c.b16 %v1505, %v1868
        %v1885 = vpack.c.b16 %v1507, %v1869
        %v1886 = vpack.c.b16 %v1509, %v1870
        %v1887 = vpack.c.b16 %v1511, %v1871
        %v1888 = vpack.c.b16 %v1513, %v1872
        %v1889 = vpack.c.b16 %v1515, %v1873
        %v1890 = vpack.c.b16 %v1517, %v1874
        %v1891 = vpack.c.b16 %v1519, %v1875
        %v1892 = vpack.c.b16 %v1521, %v1876
        %v1893 = vpack.c.b16 %v1523, %v1877
        %v1894 = vpack.c.b16 %v1525, %v1878
        %v1895 = vpack.c.b16 %v1527, %v1879
        %v1896 = vrot.slane %v1880, 1
        %v1897 = vrot.slane %v1608, 1
        %v1898 = vsel %vm871, %v1896, %v1897
        %v1899 = vrot.slane %v1881, 1
        %v1900 = vrot.slane %v1609, 1
        %v1901 = vsel %vm871, %v1899, %v1900
        %v1902 = vrot.slane %v1882, 1
        %v1903 = vrot.slane %v1610, 1
        %v1904 = vsel %vm871, %v1902, %v1903
        %v1905 = vrot.slane %v1883, 1
        %v1906 = vrot.slane %v1611, 1
        %v1907 = vsel %vm871, %v1905, %v1906
        %v1908 = vrot.slane %v1884, 1
        %v1909 = vrot.slane %v1612, 1
        %v1910 = vsel %vm871, %v1908, %v1909
        %v1911 = vrot.slane %v1885, 1
        %v1912 = vrot.slane %v1613, 1
        %v1913 = vsel %vm871, %v1911, %v1912
        %v1914 = vrot.slane %v1886, 1
        %v1915 = vrot.slane %v1614, 1
        %v1916 = vsel %vm871, %v1914, %v1915
        %v1917 = vrot.slane %v1887, 1
        %v1918 = vrot.slane %v1615, 1
        %v1919 = vsel %vm871, %v1917, %v1918
        %v1920 = vrot.slane %v1888, 1
        %v1921 = vrot.slane %v1616, 1
        %v1922 = vsel %vm871, %v1920, %v1921
        %v1923 = vrot.slane %v1889, 1
        %v1924 = vrot.slane %v1617, 1
        %v1925 = vsel %vm871, %v1923, %v1924
        %v1926 = vrot.slane %v1890, 1
        %v1927 = vrot.slane %v1618, 1
        %v1928 = vsel %vm871, %v1926, %v1927
        %v1929 = vrot.slane %v1891, 1
        %v1930 = vrot.slane %v1619, 1
        %v1931 = vsel %vm871, %v1929, %v1930
        %v1932 = vrot.slane %v1892, 1
        %v1933 = vrot.slane %v1620, 1
        %v1934 = vsel %vm871, %v1932, %v1933
        %v1935 = vrot.slane %v1893, 1
        %v1936 = vrot.slane %v1621, 1
        %v1937 = vsel %vm871, %v1935, %v1936
        %v1938 = vrot.slane %v1894, 1
        %v1939 = vrot.slane %v1622, 1
        %v1940 = vsel %vm871, %v1938, %v1939
        %v1941 = vrot.slane %v1895, 1
        %v1942 = vrot.slane %v1623, 1
        %v1943 = vsel %vm871, %v1941, %v1942
        %1944 = vrot.lane.b32.xlu0 %v1898, 32
        %v1945 = vpop.permute.xlu0 %1944
        %1946 = vrot.lane.b32.xlu0 %v1901, 32
        %v1947 = vpop.permute.xlu0 %1946
        %1948 = vrot.lane.b32.xlu0 %v1904, 32
        %v1949 = vpop.permute.xlu0 %1948
        %1950 = vrot.lane.b32.xlu0 %v1907, 32
        %v1951 = vpop.permute.xlu0 %1950
        %1952 = vrot.lane.b32.xlu0 %v1910, 32
        %v1953 = vpop.permute.xlu0 %1952
        %1954 = vrot.lane.b32.xlu0 %v1913, 32
        %v1955 = vpop.permute.xlu0 %1954
        %1956 = vrot.lane.b32.xlu0 %v1916, 32
        %v1957 = vpop.permute.xlu0 %1956
        %1958 = vrot.lane.b32.xlu0 %v1919, 32
        %v1959 = vpop.permute.xlu0 %1958
        %1960 = vrot.lane.b32.xlu0 %v1922, 32
        %v1961 = vpop.permute.xlu0 %1960
        %1962 = vrot.lane.b32.xlu0 %v1925, 32
        %v1963 = vpop.permute.xlu0 %1962
        %1964 = vrot.lane.b32.xlu0 %v1928, 32
        %v1965 = vpop.permute.xlu0 %1964
        %1966 = vrot.lane.b32.xlu0 %v1931, 32
        %v1967 = vpop.permute.xlu0 %1966
        %1968 = vrot.lane.b32.xlu0 %v1934, 32
        %v1969 = vpop.permute.xlu0 %1968
        %1970 = vrot.lane.b32.xlu0 %v1937, 32
        %v1971 = vpop.permute.xlu0 %1970
        %1972 = vrot.lane.b32.xlu0 %v1940, 32
        %v1973 = vpop.permute.xlu0 %1972
        %1974 = vrot.lane.b32.xlu0 %v1943, 32
        %v1975 = vpop.permute.xlu0 %1974
        %vm1976 = vcmask 31744
        %v1978 = vsel %vm1976, %v534, %v792
        %v1980 = vsel %vm1976, %v535, %v794
        %v1982 = vsel %vm1976, %v536, %v796
        %v1984 = vsel %vm1976, %v537, %v798
        %v1986 = vsel %vm1976, %v538, %v800
        %v1988 = vsel %vm1976, %v539, %v802
        %v1990 = vsel %vm1976, %v540, %v804
        %v1992 = vsel %vm1976, %v541, %v806
        %v1994 = vsel %vm1976, %v542, %v808
        %v1996 = vsel %vm1976, %v543, %v810
        %v1998 = vsel %vm1976, %v544, %v812
        %v2000 = vsel %vm1976, %v545, %v814
        %v2002 = vsel %vm1976, %v546, %v816
        %v2004 = vsel %vm1976, %v547, %v818
        %v2006 = vsel %vm1976, %v548, %v820
        %v2008 = vsel %vm1976, %v549, %v822
        %vm2009 = vcmask 64512
        %v2011 = vsel %vm2009, %v1978, %v921
        %v2013 = vsel %vm2009, %v1980, %v923
        %v2015 = vsel %vm2009, %v1982, %v925
        %v2017 = vsel %vm2009, %v1984, %v927
        %v2019 = vsel %vm2009, %v1986, %v929
        %v2021 = vsel %vm2009, %v1988, %v931
        %v2023 = vsel %vm2009, %v1990, %v933
        %v2025 = vsel %vm2009, %v1992, %v935
        %v2027 = vsel %vm2009, %v1994, %v937
        %v2029 = vsel %vm2009, %v1996, %v939
        %v2031 = vsel %vm2009, %v1998, %v941
        %v2033 = vsel %vm2009, %v2000, %v943
        %v2035 = vsel %vm2009, %v2002, %v945
        %v2037 = vsel %vm2009, %v2004, %v947
        %v2039 = vsel %vm2009, %v2006, %v949
        %v2041 = vsel %vm2009, %v2008, %v951
        %vm2042 = vcmask 97280
        %v2044 = vsel %vm2042, %v2011, %v1033
        %v2046 = vsel %vm2042, %v2013, %v1035
        %v2048 = vsel %vm2042, %v2015, %v1037
        %v2050 = vsel %vm2042, %v2017, %v1039
        %v2052 = vsel %vm2042, %v2019, %v1041
        %v2054 = vsel %vm2042, %v2021, %v1043
        %v2056 = vsel %vm2042, %v2023, %v1045
        %v2058 = vsel %vm2042, %v2025, %v1047
        %v2060 = vsel %vm2042, %v2027, %v1049
        %v2062 = vsel %vm2042, %v2029, %v1051
        %v2064 = vsel %vm2042, %v2031, %v1053
        %v2066 = vsel %vm2042, %v2033, %v1055
        %v2068 = vsel %vm2042, %v2035, %v1057
        %v2070 = vsel %vm2042, %v2037, %v1059
        %v2072 = vsel %vm2042, %v2039, %v1061
        %v2074 = vsel %vm2042, %v2041, %v1063
        %vm2075 = vcmask 130048
        %v2077 = vsel %vm2075, %v2044, %v1305
        %v2079 = vsel %vm2075, %v2046, %v1307
        %v2081 = vsel %vm2075, %v2048, %v1309
        %v2083 = vsel %vm2075, %v2050, %v1311
        %v2085 = vsel %vm2075, %v2052, %v1313
        %v2087 = vsel %vm2075, %v2054, %v1315
        %v2089 = vsel %vm2075, %v2056, %v1317
        %v2091 = vsel %vm2075, %v2058, %v1319
        %v2093 = vsel %vm2075, %v2060, %v1321
        %v2095 = vsel %vm2075, %v2062, %v1323
        %v2097 = vsel %vm2075, %v2064, %v1325
        %v2099 = vsel %vm2075, %v2066, %v1327
        %v2101 = vsel %vm2075, %v2068, %v1329
        %v2103 = vsel %vm2075, %v2070, %v1331
        %v2105 = vsel %vm2075, %v2072, %v1333
        %v2107 = vsel %vm2075, %v2074, %v1335
        %vm2108 = vcmask 162816
        %v2110 = vsel %vm2108, %v2077, %v1433
        %v2112 = vsel %vm2108, %v2079, %v1435
        %v2114 = vsel %vm2108, %v2081, %v1437
        %v2116 = vsel %vm2108, %v2083, %v1439
        %v2118 = vsel %vm2108, %v2085, %v1441
        %v2120 = vsel %vm2108, %v2087, %v1443
        %v2122 = vsel %vm2108, %v2089, %v1445
        %v2124 = vsel %vm2108, %v2091, %v1447
        %v2126 = vsel %vm2108, %v2093, %v1449
        %v2128 = vsel %vm2108, %v2095, %v1451
        %v2130 = vsel %vm2108, %v2097, %v1453
        %v2132 = vsel %vm2108, %v2099, %v1455
        %v2134 = vsel %vm2108, %v2101, %v1457
        %v2136 = vsel %vm2108, %v2103, %v1459
        %v2138 = vsel %vm2108, %v2105, %v1461
        %v2140 = vsel %vm2108, %v2107, %v1463
        %vm2141 = vcmask 195584
        %v2143 = vsel %vm2141, %v2110, %v1545
        %v2145 = vsel %vm2141, %v2112, %v1547
        %v2147 = vsel %vm2141, %v2114, %v1549
        %v2149 = vsel %vm2141, %v2116, %v1551
        %v2151 = vsel %vm2141, %v2118, %v1553
        %v2153 = vsel %vm2141, %v2120, %v1555
        %v2155 = vsel %vm2141, %v2122, %v1557
        %v2157 = vsel %vm2141, %v2124, %v1559
        %v2159 = vsel %vm2141, %v2126, %v1561
        %v2161 = vsel %vm2141, %v2128, %v1563
        %v2163 = vsel %vm2141, %v2130, %v1565
        %v2165 = vsel %vm2141, %v2132, %v1567
        %v2167 = vsel %vm2141, %v2134, %v1569
        %v2169 = vsel %vm2141, %v2136, %v1571
        %v2171 = vsel %vm2141, %v2138, %v1573
        %v2173 = vsel %vm2141, %v2140, %v1575
        %vm2174 = vcmask 228352
        %v2176 = vsel %vm2174, %v2143, %v1817
        %v2178 = vsel %vm2174, %v2145, %v1819
        %v2180 = vsel %vm2174, %v2147, %v1821
        %v2182 = vsel %vm2174, %v2149, %v1823
        %v2184 = vsel %vm2174, %v2151, %v1825
        %v2186 = vsel %vm2174, %v2153, %v1827
        %v2188 = vsel %vm2174, %v2155, %v1829
        %v2190 = vsel %vm2174, %v2157, %v1831
        %v2192 = vsel %vm2174, %v2159, %v1833
        %v2194 = vsel %vm2174, %v2161, %v1835
        %v2196 = vsel %vm2174, %v2163, %v1837
        %v2198 = vsel %vm2174, %v2165, %v1839
        %v2200 = vsel %vm2174, %v2167, %v1841
        %v2202 = vsel %vm2174, %v2169, %v1843
        %v2204 = vsel %vm2174, %v2171, %v1845
        %v2206 = vsel %vm2174, %v2173, %v1847
        %vm2207 = vcmask 261120
        %v2209 = vsel %vm2207, %v2176, %v1945
        %v2211 = vsel %vm2207, %v2178, %v1947
        %v2213 = vsel %vm2207, %v2180, %v1949
        %v2215 = vsel %vm2207, %v2182, %v1951
        %v2217 = vsel %vm2207, %v2184, %v1953
        %v2219 = vsel %vm2207, %v2186, %v1955
        %v2221 = vsel %vm2207, %v2188, %v1957
        %v2223 = vsel %vm2207, %v2190, %v1959
        %v2225 = vsel %vm2207, %v2192, %v1961
        %v2227 = vsel %vm2207, %v2194, %v1963
        %v2229 = vsel %vm2207, %v2196, %v1965
        %v2231 = vsel %vm2207, %v2198, %v1967
        %v2233 = vsel %vm2207, %v2200, %v1969
        %v2235 = vsel %vm2207, %v2202, %v1971
        %v2237 = vsel %vm2207, %v2204, %v1973
        %v2239 = vsel %vm2207, %v2206, %v1975
        %v2240 = vld [vmem:[%s257] sm:$0xf]
        %v2241 = vld [vmem:[%s257 + $0x4] sm:$0xf]
        %v2242 = vld [vmem:[%s257 + $0x8] sm:$0xf]
        %v2243 = vld [vmem:[%s257 + $0xc] sm:$0xf]
        %v2244 = vld [vmem:[%s257 + $0x10] sm:$0x3]
        %v2250 = vunpack.c.l.b16 %v2240
        %v2251 = vunpack.c.l.b16 %v2241
        %v2252 = vunpack.c.l.b16 %v2242
        %v2253 = vunpack.c.l.b16 %v2243
        %v2254 = vunpack.c.l.b16 %v2244
        %v2255 = vpack.c.b16 %v2251, %v2250
        %v2256 = vpack.c.b16 %v2253, %v2252
        %v2257 = vpack.c.b16 %v2254, %v2254
        %vm2260 = vcmask 293888
        %v2261 = vsel %vm2260, %v2209, 0
        %v2263 = vsel %vm2260, %v2211, 0
        %v2265 = vsel %vm2260, %v2213, 0
        %v2267 = vsel %vm2260, %v2215, 0
        %v2269 = vsel %vm2260, %v2217, 0
        %v2271 = vsel %vm2260, %v2219, 0
        %v2273 = vsel %vm2260, %v2221, 0
        %v2275 = vsel %vm2260, %v2223, 0
        %v2277 = vsel %vm2260, %v2225, 0
        %v2279 = vsel %vm2260, %v2227, 0
        %v2281 = vsel %vm2260, %v2229, 0
        %v2283 = vsel %vm2260, %v2231, 0
        %v2285 = vsel %vm2260, %v2233, 0
        %v2287 = vsel %vm2260, %v2235, 0
        %v2289 = vsel %vm2260, %v2237, 0
        %v2291 = vsel %vm2260, %v2239, 0
        %vm2293 = vcmask 1041408
        %v2295 = vsel %vm2293, %v2257, 0
        %2297 = vmatprep.subr.bf16.mxu0 0
        %2298 = vmatpush1.bf16.msra.mxu0 %v2255
        %2299 = vmatprep.subr.bf16.mxu0 0
        %2300 = vmatpush1.bf16.msra.mxu0 %v2256
        %2301 = vmatprep.subr.bf16.mxu0 0
        %2302 = vmatpush1.bf16.msra.mxu0 %v2295
        %2303 = vmatprep.subr.bf16.mxu0 0
        %2304 = vmatpush1.bf16.msra.mxu0 0
        %2305 = vmatprep.subr.bf16.mxu0 0
        %2306 = vmatpush1.bf16.msra.mxu0 0
        %2307 = vmatprep.subr.bf16.mxu0 0
        %2308 = vmatpush1.bf16.msra.mxu0 0
        %2309 = vmatprep.subr.bf16.mxu0 0
        %2310 = vmatpush1.bf16.msra.mxu0 0
        %2311 = vmatprep.subr.bf16.mxu0 0
        %2312 = vmatpush1.bf16.msra.mxu0 0
        %2313 = vmatprep.subr.bf16.mxu0 0
        %2314 = vmatpush1.bf16.msra.mxu0 0
        %2315 = vmatprep.subr.bf16.mxu0 0
        %2316 = vmatpush1.bf16.msra.mxu0 0
        %2317 = vmatprep.subr.bf16.mxu0 0
        %2318 = vmatpush1.bf16.msra.mxu0 0
        %2319 = vmatprep.subr.bf16.mxu0 0
        %2320 = vmatpush1.bf16.msra.mxu0 0
        %2321 = vmatprep.subr.bf16.mxu0 0
        %2322 = vmatpush1.bf16.msra.mxu0 0
        %2323 = vmatprep.subr.bf16.mxu0 0
        %2324 = vmatpush1.bf16.msra.mxu0 0
        %2325 = vmatprep.subr.bf16.mxu0 0
        %2326 = vmatpush1.bf16.msra.mxu0 0
        %2327 = vmatprep.subr.bf16.mxu0 0
        %2328 = vmatpush1.bf16.msra.mxu0 0
        %2329 = vmatprep.mubr.bf16.mxu0 0
        %2330 = vmatmul.mubr.bf16.gmra.mrb[0].mxu0 %v2261
        %v2331 = vpop.f32.mrb[0].mxu0
        %v2332 = vadd.f32 0.0, %v2331
        %v2333 = vpop.f32.mrb[0].mxu0
        %v2334 = vpop.f32.mrb[0].mxu0
        %v2335 = vadd.f32 0.0, %v2334
        %v2336 = vpop.f32.mrb[0].mxu0
        %2337 = vmatprep.mubr.bf16.mxu0 0
        %2338 = vmatmul.mubr.bf16.gmra.mrb[0].mxu0 %v2263
        %v2339 = vpop.f32.mrb[0].mxu0
        %v2340 = vadd.f32 0.0, %v2339
        %v2341 = vpop.f32.mrb[0].mxu0
        %v2342 = vpop.f32.mrb[0].mxu0
        %v2343 = vadd.f32 0.0, %v2342
        %v2344 = vpop.f32.mrb[0].mxu0
        %2345 = vmatprep.mubr.bf16.mxu0 0
        %2346 = vmatmul.mubr.bf16.gmra.mrb[0].mxu0 %v2265
        %v2347 = vpop.f32.mrb[0].mxu0
        %v2348 = vadd.f32 0.0, %v2347
        %v2349 = vpop.f32.mrb[0].mxu0
        %v2350 = vpop.f32.mrb[0].mxu0
        %v2351 = vadd.f32 0.0, %v2350
        %v2352 = vpop.f32.mrb[0].mxu0
        %2353 = vmatprep.mubr.bf16.mxu0 0
        %2354 = vmatmul.mubr.bf16.gmra.mrb[0].mxu0 %v2267
        %v2355 = vpop.f32.mrb[0].mxu0
        %v2356 = vadd.f32 0.0, %v2355
        %v2357 = vpop.f32.mrb[0].mxu0
        %v2358 = vpop.f32.mrb[0].mxu0
        %v2359 = vadd.f32 0.0, %v2358
        %v2360 = vpop.f32.mrb[0].mxu0
        %2361 = vmatprep.mubr.bf16.mxu0 0
        %2362 = vmatmul.mubr.bf16.gmra.mrb[0].mxu0 %v2269
        %v2363 = vpop.f32.mrb[0].mxu0
        %v2364 = vadd.f32 0.0, %v2363
        %v2365 = vpop.f32.mrb[0].mxu0
        %v2366 = vpop.f32.mrb[0].mxu0
        %v2367 = vadd.f32 0.0, %v2366
        %v2368 = vpop.f32.mrb[0].mxu0
        %2369 = vmatprep.mubr.bf16.mxu0 0
        %2370 = vmatmul.mubr.bf16.gmra.mrb[0].mxu0 %v2271
        %v2371 = vpop.f32.mrb[0].mxu0
        %v2372 = vadd.f32 0.0, %v2371
        %v2373 = vpop.f32.mrb[0].mxu0
        %v2374 = vpop.f32.mrb[0].mxu0
        %v2375 = vadd.f32 0.0, %v2374
        %v2376 = vpop.f32.mrb[0].mxu0
        %2377 = vmatprep.mubr.bf16.mxu0 0
        %2378 = vmatmul.mubr.bf16.gmra.mrb[0].mxu0 %v2273
        %v2379 = vpop.f32.mrb[0].mxu0
        %v2380 = vadd.f32 0.0, %v2379
        %v2381 = vpop.f32.mrb[0].mxu0
        %v2382 = vpop.f32.mrb[0].mxu0
        %v2383 = vadd.f32 0.0, %v2382
        %v2384 = vpop.f32.mrb[0].mxu0
        %2385 = vmatprep.mubr.bf16.mxu0 0
        %2386 = vmatmul.mubr.bf16.gmra.mrb[0].mxu0 %v2275
        %v2387 = vpop.f32.mrb[0].mxu0
        %v2388 = vadd.f32 0.0, %v2387
        %v2389 = vpop.f32.mrb[0].mxu0
        %v2390 = vpop.f32.mrb[0].mxu0
        %v2391 = vadd.f32 0.0, %v2390
        %v2392 = vpop.f32.mrb[0].mxu0
        %2393 = vmatprep.mubr.bf16.mxu0 0
        %2394 = vmatmul.mubr.bf16.gmra.mrb[0].mxu0 %v2277
        %v2395 = vpop.f32.mrb[0].mxu0
        %v2396 = vadd.f32 0.0, %v2395
        %v2397 = vpop.f32.mrb[0].mxu0
        %v2398 = vpop.f32.mrb[0].mxu0
        %v2399 = vadd.f32 0.0, %v2398
        %v2400 = vpop.f32.mrb[0].mxu0
        %2401 = vmatprep.mubr.bf16.mxu0 0
        %2402 = vmatmul.mubr.bf16.gmra.mrb[0].mxu0 %v2279
        %v2403 = vpop.f32.mrb[0].mxu0
        %v2404 = vadd.f32 0.0, %v2403
        %v2405 = vpop.f32.mrb[0].mxu0
        %v2406 = vpop.f32.mrb[0].mxu0
        %v2407 = vadd.f32 0.0, %v2406
        %v2408 = vpop.f32.mrb[0].mxu0
        %2409 = vmatprep.mubr.bf16.mxu0 0
        %2410 = vmatmul.mubr.bf16.gmra.mrb[0].mxu0 %v2281
        %v2411 = vpop.f32.mrb[0].mxu0
        %v2412 = vadd.f32 0.0, %v2411
        %v2413 = vpop.f32.mrb[0].mxu0
        %v2414 = vpop.f32.mrb[0].mxu0
        %v2415 = vadd.f32 0.0, %v2414
        %v2416 = vpop.f32.mrb[0].mxu0
        %2417 = vmatprep.mubr.bf16.mxu0 0
        %2418 = vmatmul.mubr.bf16.gmra.mrb[0].mxu0 %v2283
        %v2419 = vpop.f32.mrb[0].mxu0
        %v2420 = vadd.f32 0.0, %v2419
        %v2421 = vpop.f32.mrb[0].mxu0
        %v2422 = vpop.f32.mrb[0].mxu0
        %v2423 = vadd.f32 0.0, %v2422
        %v2424 = vpop.f32.mrb[0].mxu0
        %2425 = vmatprep.mubr.bf16.mxu0 0
        %2426 = vmatmul.mubr.bf16.gmra.mrb[0].mxu0 %v2285
        %v2427 = vpop.f32.mrb[0].mxu0
        %v2428 = vadd.f32 0.0, %v2427
        %v2429 = vpop.f32.mrb[0].mxu0
        %v2430 = vpop.f32.mrb[0].mxu0
        %v2431 = vadd.f32 0.0, %v2430
        %v2432 = vpop.f32.mrb[0].mxu0
        %2433 = vmatprep.mubr.bf16.mxu0 0
        %2434 = vmatmul.mubr.bf16.gmra.mrb[0].mxu0 %v2287
        %v2435 = vpop.f32.mrb[0].mxu0
        %v2436 = vadd.f32 0.0, %v2435
        %v2437 = vpop.f32.mrb[0].mxu0
        %v2438 = vpop.f32.mrb[0].mxu0
        %v2439 = vadd.f32 0.0, %v2438
        %v2440 = vpop.f32.mrb[0].mxu0
        %2441 = vmatprep.mubr.bf16.mxu0 0
        %2442 = vmatmul.mubr.bf16.gmra.mrb[0].mxu0 %v2289
        %v2443 = vpop.f32.mrb[0].mxu0
        %v2444 = vadd.f32 0.0, %v2443
        %v2445 = vpop.f32.mrb[0].mxu0
        %v2446 = vpop.f32.mrb[0].mxu0
        %v2447 = vadd.f32 0.0, %v2446
        %v2448 = vpop.f32.mrb[0].mxu0
        %2449 = vmatprep.mubr.bf16.mxu0 0
        %2450 = vmatmul.mubr.bf16.gmra.mrb[0].mxu0 %v2291
        %v2451 = vpop.f32.mrb[0].mxu0
        %v2452 = vadd.f32 0.0, %v2451
        %v2453 = vpop.f32.mrb[0].mxu0
        %v2454 = vpop.f32.mrb[0].mxu0
        %v2455 = vadd.f32 0.0, %v2454
        %v2456 = vpop.f32.mrb[0].mxu0
        %2457 = vdwg.mxu0
        %v2458 = vld [vmem:[%s260] sm:$0x1]
        %v2460 = vlaneseq
        %v2461 = vshrl.u32 %v2460, 7
        %v2462 = vsub.s32 0, %v2461
        %v2463 = vrot.slane %v2458, %v2462
        %v2465 = vmul.f32 %v2332, %v2463
        %v2466 = vmul.f32 %v2335, %v2463
        %v2467 = vmul.f32 %v2340, %v2463
        %v2468 = vmul.f32 %v2343, %v2463
        %v2469 = vmul.f32 %v2348, %v2463
        %v2470 = vmul.f32 %v2351, %v2463
        %v2471 = vmul.f32 %v2356, %v2463
        %v2472 = vmul.f32 %v2359, %v2463
        %v2473 = vmul.f32 %v2364, %v2463
        %v2474 = vmul.f32 %v2367, %v2463
        %v2475 = vmul.f32 %v2372, %v2463
        %v2476 = vmul.f32 %v2375, %v2463
        %v2477 = vmul.f32 %v2380, %v2463
        %v2478 = vmul.f32 %v2383, %v2463
        %v2479 = vmul.f32 %v2388, %v2463
        %v2480 = vmul.f32 %v2391, %v2463
        %v2481 = vmul.f32 %v2396, %v2463
        %v2482 = vmul.f32 %v2399, %v2463
        %v2483 = vmul.f32 %v2404, %v2463
        %v2484 = vmul.f32 %v2407, %v2463
        %v2485 = vmul.f32 %v2412, %v2463
        %v2486 = vmul.f32 %v2415, %v2463
        %v2487 = vmul.f32 %v2420, %v2463
        %v2488 = vmul.f32 %v2423, %v2463
        %v2489 = vmul.f32 %v2428, %v2463
        %v2490 = vmul.f32 %v2431, %v2463
        %v2491 = vmul.f32 %v2436, %v2463
        %v2492 = vmul.f32 %v2439, %v2463
        %v2493 = vmul.f32 %v2444, %v2463
        %v2494 = vmul.f32 %v2447, %v2463
        %v2495 = vmul.f32 %v2452, %v2463
        %v2496 = vmul.f32 %v2455, %v2463
        %v2497 = vld [vmem:[%s263] sm:$0x1]
        %v2499 = vlaneseq
        %v2500 = vshrl.u32 %v2499, 7
        %v2501 = vsub.s32 0, %v2500
        %v2502 = vrot.slane %v2497, %v2501
        %v2504 = vadd.f32 %v2465, %v2502
        %v2505 = vadd.f32 %v2466, %v2502
        %v2506 = vadd.f32 %v2467, %v2502
        %v2507 = vadd.f32 %v2468, %v2502
        %v2508 = vadd.f32 %v2469, %v2502
        %v2509 = vadd.f32 %v2470, %v2502
        %v2510 = vadd.f32 %v2471, %v2502
        %v2511 = vadd.f32 %v2472, %v2502
        %v2512 = vadd.f32 %v2473, %v2502
        %v2513 = vadd.f32 %v2474, %v2502
        %v2514 = vadd.f32 %v2475, %v2502
        %v2515 = vadd.f32 %v2476, %v2502
        %v2516 = vadd.f32 %v2477, %v2502
        %v2517 = vadd.f32 %v2478, %v2502
        %v2518 = vadd.f32 %v2479, %v2502
        %v2519 = vadd.f32 %v2480, %v2502
        %v2520 = vadd.f32 %v2481, %v2502
        %v2521 = vadd.f32 %v2482, %v2502
        %v2522 = vadd.f32 %v2483, %v2502
        %v2523 = vadd.f32 %v2484, %v2502
        %v2524 = vadd.f32 %v2485, %v2502
        %v2525 = vadd.f32 %v2486, %v2502
        %v2526 = vadd.f32 %v2487, %v2502
        %v2527 = vadd.f32 %v2488, %v2502
        %v2528 = vadd.f32 %v2489, %v2502
        %v2529 = vadd.f32 %v2490, %v2502
        %v2530 = vadd.f32 %v2491, %v2502
        %v2531 = vadd.f32 %v2492, %v2502
        %v2532 = vadd.f32 %v2493, %v2502
        %v2533 = vadd.f32 %v2494, %v2502
        %v2534 = vadd.f32 %v2495, %v2502
        %v2535 = vadd.f32 %v2496, %v2502
        %v2536 = vmax.f32 %v2504, 0.0
        %v2537 = vmax.f32 %v2505, 0.0
        %v2538 = vmax.f32 %v2506, 0.0
        %v2539 = vmax.f32 %v2507, 0.0
        %v2540 = vmax.f32 %v2508, 0.0
        %v2541 = vmax.f32 %v2509, 0.0
        %v2542 = vmax.f32 %v2510, 0.0
        %v2543 = vmax.f32 %v2511, 0.0
        %v2544 = vmax.f32 %v2512, 0.0
        %v2545 = vmax.f32 %v2513, 0.0
        %v2546 = vmax.f32 %v2514, 0.0
        %v2547 = vmax.f32 %v2515, 0.0
        %v2548 = vmax.f32 %v2516, 0.0
        %v2549 = vmax.f32 %v2517, 0.0
        %v2550 = vmax.f32 %v2518, 0.0
        %v2551 = vmax.f32 %v2519, 0.0
        %v2552 = vmax.f32 %v2520, 0.0
        %v2553 = vmax.f32 %v2521, 0.0
        %v2554 = vmax.f32 %v2522, 0.0
        %v2555 = vmax.f32 %v2523, 0.0
        %v2556 = vmax.f32 %v2524, 0.0
        %v2557 = vmax.f32 %v2525, 0.0
        %v2558 = vmax.f32 %v2526, 0.0
        %v2559 = vmax.f32 %v2527, 0.0
        %v2560 = vmax.f32 %v2528, 0.0
        %v2561 = vmax.f32 %v2529, 0.0
        %v2562 = vmax.f32 %v2530, 0.0
        %v2563 = vmax.f32 %v2531, 0.0
        %v2564 = vmax.f32 %v2532, 0.0
        %v2565 = vmax.f32 %v2533, 0.0
        %v2566 = vmax.f32 %v2534, 0.0
        %v2567 = vmax.f32 %v2535, 0.0
        %2568 = vst [vmem:[%s248] sm:$0xff] %v2536
        %2569 = vst [vmem:[%s248 + $0x8] sm:$0xff] %v2537
        %2570 = vst [vmem:[%s248 + $0x10] sm:$0xff] %v2538
        %2571 = vst [vmem:[%s248 + $0x18] sm:$0xff] %v2539
        %2572 = vst [vmem:[%s248 + $0x20] sm:$0xff] %v2540
        %2573 = vst [vmem:[%s248 + $0x28] sm:$0xff] %v2541
        %2574 = vst [vmem:[%s248 + $0x30] sm:$0xff] %v2542
        %2575 = vst [vmem:[%s248 + $0x38] sm:$0xff] %v2543
        %2576 = vst [vmem:[%s248 + $0x40] sm:$0xff] %v2544
        %2577 = vst [vmem:[%s248 + $0x48] sm:$0xff] %v2545
        %2578 = vst [vmem:[%s248 + $0x50] sm:$0xff] %v2546
        %2579 = vst [vmem:[%s248 + $0x58] sm:$0xff] %v2547
        %2580 = vst [vmem:[%s248 + $0x60] sm:$0xff] %v2548
        %2581 = vst [vmem:[%s248 + $0x68] sm:$0xff] %v2549
        %2582 = vst [vmem:[%s248 + $0x70] sm:$0xff] %v2550
        %2583 = vst [vmem:[%s248 + $0x78] sm:$0xff] %v2551
        %2584 = vst [vmem:[%s248 + $0x80] sm:$0xff] %v2552
        %2585 = vst [vmem:[%s248 + $0x88] sm:$0xff] %v2553
        %2586 = vst [vmem:[%s248 + $0x90] sm:$0xff] %v2554
        %2587 = vst [vmem:[%s248 + $0x98] sm:$0xff] %v2555
        %2588 = vst [vmem:[%s248 + $0xa0] sm:$0xff] %v2556
        %2589 = vst [vmem:[%s248 + $0xa8] sm:$0xff] %v2557
        %2590 = vst [vmem:[%s248 + $0xb0] sm:$0xff] %v2558
        %2591 = vst [vmem:[%s248 + $0xb8] sm:$0xff] %v2559
        %2592 = vst [vmem:[%s248 + $0xc0] sm:$0xff] %v2560
        %2593 = vst [vmem:[%s248 + $0xc8] sm:$0xff] %v2561
        %2594 = vst [vmem:[%s248 + $0xd0] sm:$0xff] %v2562
        %2595 = vst [vmem:[%s248 + $0xd8] sm:$0xff] %v2563
        %2596 = vst [vmem:[%s248 + $0xe0] sm:$0xff] %v2564
        %2597 = vst [vmem:[%s248 + $0xe8] sm:$0xff] %v2565
        %2598 = vst [vmem:[%s248 + $0xf0] sm:$0xff] %v2566
        %2599 = vst [vmem:[%s248 + $0xf8] sm:$0xff] %v2567
        %s2600 = sand.u32 %s153, 1
        %s2601 = scalar_lea.sflag [#allocation3], %s2600
        %s2602 = sand.u32 %s153, 1
        %s2603 = smul.addr %s2602, 256
        %s2604 = scalar_lea.vmem [#allocation2], %s2603
        // Predicated region
        $region37: #{tpu_custom_call.1} parent=35 // pred_check
          %p2605 = pneg %p163
        $region38: #{tpu_custom_call.1} parent=35 // pred_check_branch
          %2607 = sbr.rel (%p2605) target = $region40
        $region39: #{tpu_custom_call.1} parent=35 // pred_region
          %s2608 = smul.u32 16, %s25
          %s2610 = ssub.s32 4096, 4096
          %2611 = vsyncadd %s2601, %s2610
          %s2612 = smul.addr %s2608, 2
          %s2613 = sadd.s32 %s24, %s2612
          %s2614 = smul.addr %s23, 32
          %s2615 = sadd.s32 %s2613, %s2614
          %s2616 = smul.addr %s2615, 128
          %s2617 = scalar_lea.hbm %s4, %s2616
          %s2618 = sshll.u32 %s2604, 4
          %s2619 = int_to_ptr.vmem [resolvable:$true] %s2618
          %2624 = dma.vmem_to_hbm [thread:$0]  %s2619, 4096, %s2617, %s2601, 128, 128, 8
        $region40: #{tpu_custom_call.1} parent=35 // pred_fallthru
          _
      $region36: #{tpu_custom_call.1} parent=5 // pred_fallthru
        _
      %p2625 = scmp.le.s32.totalorder 2, %s13
      // Predicated region
      $region41: #{tpu_custom_call.1} parent=5 // pred_check
        %p2626 = pneg %p2625
      $region42: #{tpu_custom_call.1} parent=5 // pred_check_branch
        %2628 = sbr.rel (%p2626) target = $region44
      $region43: #{tpu_custom_call.1} parent=5 // pred_region
        %s2629 = ssub.s32 %s13, 2
        // Predicated region
        $region45: #{tpu_custom_call.1} parent=43 // pred_check
          %p2630 = pneg %p169
        $region46: #{tpu_custom_call.1} parent=43 // pred_check_branch
          %2632 = sbr.rel (%p2630) target = $region48
        $region47: #{tpu_custom_call.1} parent=43 // pred_region
          %s2633 = sand.u32 %s154, 1
          %s2634 = scalar_lea.sflag [#allocation3], %s2633
          %s2635 = sand.u32 %s154, 1
          %s2636 = smul.addr %s2635, 256
          %s2637 = scalar_lea.vmem [#allocation2], %s2636
          %2638 = dma.done %s2634, 4096
        $region48: #{tpu_custom_call.1} parent=43 // pred_fallthru
          _
      $region44: #{tpu_custom_call.1} parent=5 // pred_fallthru
        _
    $region6: #{tpu_custom_call.1} parent=1 // loop_footer
      %s17 = sadd.s32 1, %s13
    $region7: #{tpu_custom_call.1} parent=1 // loop_footer_branch
      %12 = sbr.rel target = $region3
    $region8: #{tpu_custom_call.1} parent=1 // loop_exit
      _
    %2639 = vsyncpa [#allocation3], 1
    %s2640 = scalar_lea.sflag [#allocation3], 1
    %2641 = vsyncpa %s2640, 1

// kernel: tpu_custom_call.1
$region0: #{tpu_custom_call.1}
  #allocation0 [shape = 'u32[]', space=smem, size = 0x4, offset = 0x4, fixed_abs, tag = 'smem constant byte address 0x4 - core index']
  #allocation1 [shape = 'u32[144,128]{1,0:T(1,128)}', space=vmem, size = 0x12000, scoped, tag = 'internal scratch']
  #allocation2 [shape = 'f32[256,128]{1,0:T(8,128)}', space=vmem, size = 0x20000, scoped, tag = 'scratch operand']
  %s0 = inlined_call_operand.vmem [shape: bf16[2,18,18,4], index: 0, kind: input, shape index: {}]
  %s1 = inlined_call_operand.vmem [shape: bf16[36,128], index: 1, kind: input, shape index: {}]
  %s2 = inlined_call_operand.vmem [shape: f32[1,128], index: 2, kind: input, shape index: {}]
  %s3 = inlined_call_operand.vmem [shape: f32[1,128], index: 3, kind: input, shape index: {}]
  %s4 = inlined_call_operand.hbm [shape: f32[2,16,16,128], index: 4, kind: output, shape index: {}]
  %s5 = sld [smem:[#allocation0]]
  $region49: #{tpu_custom_call.1} parent=0
    _
  %s7 = ssub.s32 1, %s5
  %s8 = scalar_select 0, %s7, %s5
  $region1: #{tpu_custom_call.1} parent=0
    #allocation3 [shape = 'u8[262144]{0}', space=vmem, size = 0x40000, scoped, tag = 'output window, operand 0']
    #allocation4 [shape = 's32[2]{0}', space=sflag, size = 0x8, scoped, tag = 'scoped memory for tpu_custom_call.1']
    %9 = vsyncpa [#allocation4], 0
    %s10 = scalar_lea.sflag [#allocation4], 1
    %11 = vsyncpa %s10, 0
    loop: start=0, step=1, limit=4
    $region2: #{tpu_custom_call.1} parent=1 // loop_pre_header
      _
    $region3: #{tpu_custom_call.1} parent=1 // loop_header
      %s13 = sphi 0, %s17
      %p14 = scmp.ge.s32.totalorder %s13, 4
      %s20 = sphi 0, %s39
      %s21 = sphi 0, %s35
      %s22 = sphi 0, %s31
      %s23 = sphi 0, %s20
      %s24 = sphi 0, %s21
      %s25 = sphi 0, %s22
      %s26 = sphi 0, %s23
      %s27 = sphi 0, %s24
      %s28 = sphi 0, %s25
      %s42 = sphi 0, %s44
      %s45 = sphi 0, %s42
      %s46 = sphi 0, %s45
      %s62 = sphi 0, %s46
      %s68 = sphi 0, %s70
      %s71 = sphi 0, %s68
      %s72 = sphi 0, %s71
      %s88 = sphi 0, %s72
      %s94 = sphi 0, %s96
      %s97 = sphi 0, %s94
      %s98 = sphi 0, %s97
      %s114 = sphi 0, %s98
      %s120 = sphi 0, %s122
      %s123 = sphi 0, %s120
      %s124 = sphi 0, %s123
      %s140 = sphi 0, %s124
      %s150 = sphi 0, %s152
      %s153 = sphi 0, %s150
      %s154 = sphi 0, %s153
      %s170 = sphi 0, %s154
    $region4: #{tpu_custom_call.1} parent=1 // loop_header_branch
      %16 = sbr.rel (%p14) target = $region8
    $region5: #{tpu_custom_call.1} parent=1 // loop_body
      %s18 = ssub.s32 %s13, 1
      %s19 = ssub.s32 %s13, 2
      %s29 = sadd.s32 1, %s22
      %p30 = scmp.ge.s32.totalorder %s29, 1
      %s31 = scalar_select %p30, 0, %s29
      %s32 = sadd.s32 1, %s21
      %s33 = scalar_select %p30, %s32, %s21
      %p34 = scmp.ge.s32.totalorder %s33, 1
      %s35 = scalar_select %p34, 0, %s33
      %s36 = sadd.s32 1, %s20
      %s37 = scalar_select %p34, %s36, %s20
      %p38 = scmp.ge.s32.totalorder %s37, 2
      %s39 = scalar_select %p38, 0, %s37
      %s40 = ssub.s32 %s20, %s39
      %p41 = scmp.eq.s32.totalorder %s40, 0
      %s43 = sadd.s32 %s42, 1
      %s44 = scalar_select %p41, %s42, %s43
      %p47 = pneg %p41
      %p48 = scmp.eq.s32.totalorder %s13, 1
      %p49 = por %p47, %p48
      %p50 = scmp.ne.s32.totalorder %s42, %s45
      %p51 = scmp.eq.s32.totalorder %s13, 0
      %p52 = por %p50, %p51
      %p53 = scmp.ne.s32.totalorder %s42, %s45
      %p54 = scmp.eq.s32.totalorder %s18, 1
      %p55 = por %p53, %p54
      %p56 = scmp.ne.s32.totalorder %s45, %s46
      %p57 = scmp.eq.s32.totalorder %s18, 0
      %p58 = por %p56, %p57
      %p59 = scmp.ne.s32.totalorder %s45, %s46
      %p60 = scmp.eq.s32.totalorder %s19, 1
      %p61 = por %p59, %p60
      %p63 = scmp.ne.s32.totalorder %s46, %s62
      %p64 = scmp.eq.s32.totalorder %s19, 0
      %p65 = por %p63, %p64
      %s66 = ssub.s32 %s21, %s35
      %p67 = scmp.eq.s32.totalorder %s66, 0
      %s69 = sadd.s32 %s68, 1
      %s70 = scalar_select %p67, %s68, %s69
      %p73 = pneg %p67
      %p74 = scmp.eq.s32.totalorder %s13, 1
      %p75 = por %p73, %p74
      %p76 = scmp.ne.s32.totalorder %s68, %s71
      %p77 = scmp.eq.s32.totalorder %s13, 0
      %p78 = por %p76, %p77
      %p79 = scmp.ne.s32.totalorder %s68, %s71
      %p80 = scmp.eq.s32.totalorder %s18, 1
      %p81 = por %p79, %p80
      %p82 = scmp.ne.s32.totalorder %s71, %s72
      %p83 = scmp.eq.s32.totalorder %s18, 0
      %p84 = por %p82, %p83
      %p85 = scmp.ne.s32.totalorder %s71, %s72
      %p86 = scmp.eq.s32.totalorder %s19, 1
      %p87 = por %p85, %p86
      %p89 = scmp.ne.s32.totalorder %s72, %s88
      %p90 = scmp.eq.s32.totalorder %s19, 0
      %p91 = por %p89, %p90
      %s92 = ssub.s32 %s21, %s35
      %p93 = scmp.eq.s32.totalorder %s92, 0
      %s95 = sadd.s32 %s94, 1
      %s96 = scalar_select %p93, %s94, %s95
      %p99 = pneg %p93
      %p100 = scmp.eq.s32.totalorder %s13, 1
      %p101 = por %p99, %p100
      %p102 = scmp.ne.s32.totalorder %s94, %s97
      %p103 = scmp.eq.s32.totalorder %s13, 0
      %p104 = por %p102, %p103
      %p105 = scmp.ne.s32.totalorder %s94, %s97
      %p106 = scmp.eq.s32.totalorder %s18, 1
      %p107 = por %p105, %p106
      %p108 = scmp.ne.s32.totalorder %s97, %s98
      %p109 = scmp.eq.s32.totalorder %s18, 0
      %p110 = por %p108, %p109
      %p111 = scmp.ne.s32.totalorder %s97, %s98
      %p112 = scmp.eq.s32.totalorder %s19, 1
      %p113 = por %p111, %p112
      %p115 = scmp.ne.s32.totalorder %s98, %s114
      %p116 = scmp.eq.s32.totalorder %s19, 0
      %p117 = por %p115, %p116
      %s118 = ssub.s32 %s21, %s35
      %p119 = scmp.eq.s32.totalorder %s118, 0
      %s121 = sadd.s32 %s120, 1
      %s122 = scalar_select %p119, %s120, %s121
      %p125 = pneg %p119
      %p126 = scmp.eq.s32.totalorder %s13, 1
      %p127 = por %p125, %p126
      %p128 = scmp.ne.s32.totalorder %s120, %s123
      %p129 = scmp.eq.s32.totalorder %s13, 0
      %p130 = por %p128, %p129
      %p131 = scmp.ne.s32.totalorder %s120, %s123
      %p132 = scmp.eq.s32.totalorder %s18, 1
      %p133 = por %p131, %p132
      %p134 = scmp.ne.s32.totalorder %s123, %s124
      %p135 = scmp.eq.s32.totalorder %s18, 0
      %p136 = por %p134, %p135
      %p137 = scmp.ne.s32.totalorder %s123, %s124
      %p138 = scmp.eq.s32.totalorder %s19, 1
      %p139 = por %p137, %p138
      %p141 = scmp.ne.s32.totalorder %s124, %s140
      %p142 = scmp.eq.s32.totalorder %s19, 0
      %p143 = por %p141, %p142
      %s144 = ssub.s32 %s20, %s39
      %s145 = ssub.s32 %s22, %s31
      %s146 = sor.u32 %s144, %s145
      %s147 = ssub.s32 %s21, %s35
      %s148 = sor.u32 %s146, %s147
      %p149 = scmp.eq.s32.totalorder %s148, 0
      %s151 = sadd.s32 %s150, 1
      %s152 = scalar_select %p149, %s150, %s151
      %p155 = pneg %p149
      %p156 = scmp.eq.s32.totalorder %s13, 1
      %p157 = por %p155, %p156
      %p158 = scmp.ne.s32.totalorder %s150, %s153
      %p159 = scmp.eq.s32.totalorder %s13, 0
      %p160 = por %p158, %p159
      %p161 = scmp.ne.s32.totalorder %s150, %s153
      %p162 = scmp.eq.s32.totalorder %s18, 1
      %p163 = por %p161, %p162
      %p164 = scmp.ne.s32.totalorder %s153, %s154
      %p165 = scmp.eq.s32.totalorder %s18, 0
      %p166 = por %p164, %p165
      %p167 = scmp.ne.s32.totalorder %s153, %s154
      %p168 = scmp.eq.s32.totalorder %s19, 1
      %p169 = por %p167, %p168
      %p171 = scmp.ne.s32.totalorder %s154, %s170
      %p172 = scmp.eq.s32.totalorder %s19, 0
      %p173 = por %p171, %p172
      %p174 = scmp.le.s32.totalorder 1, %s13
      %p175 = scmp.lt.s32.totalorder %s13, 3
      %p176 = pnand %p174, %p175
      %p177 = pneg %p176
      // Predicated region
      $region9: #{tpu_custom_call.1} parent=5 // pred_check
        _
      $region10: #{tpu_custom_call.1} parent=5 // pred_check_branch
        %179 = sbr.rel (%p176) target = $region12
      $region11: #{tpu_custom_call.1} parent=5 // pred_region
        %s180 = ssub.s32 %s13, 1
        // Predicated region
        $region13: #{tpu_custom_call.1} parent=11 // pred_check
          %p181 = pneg %p84
        $region14: #{tpu_custom_call.1} parent=11 // pred_check_branch
          %183 = sbr.rel (%p181) target = $region16
        $region15: #{tpu_custom_call.1} parent=11 // pred_region
          %p184 = scmp.lt.s32.totalorder %s24, 0
          %s185 = scalar_select %p184, %s24, 0
          %s186 = smul.addr %s185, 4
          %s187 = scalar_lea.vmem %s1, %s186
        $region16: #{tpu_custom_call.1} parent=11 // pred_fallthru
          _
        // Predicated region
        $region17: #{tpu_custom_call.1} parent=11 // pred_check
          %p188 = pneg %p110
        $region18: #{tpu_custom_call.1} parent=11 // pred_check_branch
          %190 = sbr.rel (%p188) target = $region20
        $region19: #{tpu_custom_call.1} parent=11 // pred_region
          %p191 = scmp.lt.s32.totalorder %s24, 0
          %s192 = scalar_select %p191, %s24, 0
          %s193 = scalar_lea.vmem %s2, %s192
        $region20: #{tpu_custom_call.1} parent=11 // pred_fallthru
          _
        // Predicated region
        $region21: #{tpu_custom_call.1} parent=11 // pred_check
          %p194 = pneg %p136
        $region22: #{tpu_custom_call.1} parent=11 // pred_check_branch
          %196 = sbr.rel (%p194) target = $region24
        $region23: #{tpu_custom_call.1} parent=11 // pred_region
          %p197 = scmp.lt.s32.totalorder %s24, 0
          %s198 = scalar_select %p197, %s24, 0
          %s199 = scalar_lea.vmem %s3, %s198
        $region24: #{tpu_custom_call.1} parent=11 // pred_fallthru
          _
      $region12: #{tpu_custom_call.1} parent=5 // pred_fallthru
        _
      %p200 = scmp.lt.s32.totalorder %s13, 2
      // Predicated region
      $region25: #{tpu_custom_call.1} parent=5 // pred_check
        %p201 = pneg %p200
      $region26: #{tpu_custom_call.1} parent=5 // pred_check_branch
        %203 = sbr.rel (%p201) target = $region28
      $region27: #{tpu_custom_call.1} parent=5 // pred_region
        // Predicated region
        $region29: #{tpu_custom_call.1} parent=27 // pred_check
          %p204 = pneg %p52
        $region30: #{tpu_custom_call.1} parent=27 // pred_check_branch
          %206 = sbr.rel (%p204) target = $region32
        $region31: #{tpu_custom_call.1} parent=27 // pred_region
          %p207 = scmp.lt.s32.totalorder %s20, 1
          %s208 = scalar_select %p207, %s20, 1
          %s209 = smul.addr %s208, 54
          %s210 = smul.addr %s209, 4
          %s211 = scalar_lea.vmem %s0, %s210
        $region32: #{tpu_custom_call.1} parent=27 // pred_fallthru
          _
      $region28: #{tpu_custom_call.1} parent=5 // pred_fallthru
        _
      %p212 = scmp.le.s32.totalorder 1, %s13
      %p213 = scmp.lt.s32.totalorder %s13, 3
      %p214 = pnand %p212, %p213
      %p215 = pneg %p214
      // Predicated region
      $region33: #{tpu_custom_call.1} parent=5 // pred_check
        _
      $region34: #{tpu_custom_call.1} parent=5 // pred_check_branch
        %217 = sbr.rel (%p214) target = $region36
      $region35: #{tpu_custom_call.1} parent=5 // pred_region
        %s218 = ssub.s32 %s13, 1
        %p219 = scmp.lt.s32.totalorder %s23, 1
        %s220 = scalar_select %p219, %s23, 1
        %s221 = smul.addr %s220, 54
        %s222 = smul.addr %s221, 4
        %s223 = scalar_lea.vmem %s0, %s222
        %p224 = pneg %p58
        %p225 = pneg %p55
        %p226 = scmp.lt.s32.totalorder %s24, 0
        %s227 = scalar_select %p226, %s24, 0
        %s228 = smul.addr %s227, 4
        %s229 = scalar_lea.vmem %s1, %s228
        %p230 = pneg %p84
        %p231 = pneg %p81
        %p232 = scmp.lt.s32.totalorder %s24, 0
        %s233 = scalar_select %p232, %s24, 0
        %s234 = scalar_lea.vmem %s2, %s233
        %p235 = pneg %p110
        %p236 = pneg %p107
        %p237 = scmp.lt.s32.totalorder %s24, 0
        %s238 = scalar_select %p237, %s24, 0
        %s239 = scalar_lea.vmem %s3, %s238
        %p240 = pneg %p136
        %p241 = pneg %p133
        %p242 = pneg %p166
        %p243 = pneg %p163
        %s244 = sand.u32 %s153, 1
        %s245 = scalar_lea.sflag [#allocation4], %s244
        %s246 = sand.u32 %s153, 1
        %s247 = smul.addr %s246, 256
        %s248 = scalar_lea.vmem [#allocation3], %s247
        %p249 = scmp.lt.s32.totalorder %s23, 1
        %s250 = scalar_select %p249, %s23, 1
        %s251 = smul.addr %s250, 54
        %s252 = smul.addr %s251, 4
        %s253 = scalar_lea.vmem %s0, %s252
        %p254 = scmp.lt.s32.totalorder %s24, 0
        %s255 = scalar_select %p254, %s24, 0
        %s256 = smul.addr %s255, 4
        %s257 = scalar_lea.vmem %s1, %s256
        %p258 = scmp.lt.s32.totalorder %s24, 0
        %s259 = scalar_select %p258, %s24, 0
        %s260 = scalar_lea.vmem %s2, %s259
        %p261 = scmp.lt.s32.totalorder %s24, 0
        %s262 = scalar_select %p261, %s24, 0
        %s263 = scalar_lea.vmem %s3, %s262
        %s264 = smul.u32 16, %s25
        %s266 = smul.u32 %s25, 16
        %267 = vst [vmem:[#allocation2] sm:$0xff] 0.0
        %268 = vst [vmem:[#allocation2 + $0x8] sm:$0xff] 0.0
        %269 = vst [vmem:[#allocation2 + $0x10] sm:$0xff] 0.0
        %270 = vst [vmem:[#allocation2 + $0x18] sm:$0xff] 0.0
        %271 = vst [vmem:[#allocation2 + $0x20] sm:$0xff] 0.0
        %272 = vst [vmem:[#allocation2 + $0x28] sm:$0xff] 0.0
        %273 = vst [vmem:[#allocation2 + $0x30] sm:$0xff] 0.0
        %274 = vst [vmem:[#allocation2 + $0x38] sm:$0xff] 0.0
        %275 = vst [vmem:[#allocation2 + $0x40] sm:$0xff] 0.0
        %276 = vst [vmem:[#allocation2 + $0x48] sm:$0xff] 0.0
        %277 = vst [vmem:[#allocation2 + $0x50] sm:$0xff] 0.0
        %278 = vst [vmem:[#allocation2 + $0x58] sm:$0xff] 0.0
        %279 = vst [vmem:[#allocation2 + $0x60] sm:$0xff] 0.0
        %280 = vst [vmem:[#allocation2 + $0x68] sm:$0xff] 0.0
        %281 = vst [vmem:[#allocation2 + $0x70] sm:$0xff] 0.0
        %282 = vst [vmem:[#allocation2 + $0x78] sm:$0xff] 0.0
        %283 = vst [vmem:[#allocation2 + $0x80] sm:$0xff] 0.0
        %284 = vst [vmem:[#allocation2 + $0x88] sm:$0xff] 0.0
        %285 = vst [vmem:[#allocation2 + $0x90] sm:$0xff] 0.0
        %286 = vst [vmem:[#allocation2 + $0x98] sm:$0xff] 0.0
        %287 = vst [vmem:[#allocation2 + $0xa0] sm:$0xff] 0.0
        %288 = vst [vmem:[#allocation2 + $0xa8] sm:$0xff] 0.0
        %289 = vst [vmem:[#allocation2 + $0xb0] sm:$0xff] 0.0
        %290 = vst [vmem:[#allocation2 + $0xb8] sm:$0xff] 0.0
        %291 = vst [vmem:[#allocation2 + $0xc0] sm:$0xff] 0.0
        %292 = vst [vmem:[#allocation2 + $0xc8] sm:$0xff] 0.0
        %293 = vst [vmem:[#allocation2 + $0xd0] sm:$0xff] 0.0
        %294 = vst [vmem:[#allocation2 + $0xd8] sm:$0xff] 0.0
        %295 = vst [vmem:[#allocation2 + $0xe0] sm:$0xff] 0.0
        %296 = vst [vmem:[#allocation2 + $0xe8] sm:$0xff] 0.0
        %297 = vst [vmem:[#allocation2 + $0xf0] sm:$0xff] 0.0
        %298 = vst [vmem:[#allocation2 + $0xf8] sm:$0xff] 0.0
        %v299 = vld [vmem:[#allocation2] sm:$0xff]
        %v300 = vld [vmem:[#allocation2 + $0x8] sm:$0xff]
        %v301 = vld [vmem:[#allocation2 + $0x10] sm:$0xff]
        %v302 = vld [vmem:[#allocation2 + $0x18] sm:$0xff]
        %v303 = vld [vmem:[#allocation2 + $0x20] sm:$0xff]
        %v304 = vld [vmem:[#allocation2 + $0x28] sm:$0xff]
        %v305 = vld [vmem:[#allocation2 + $0x30] sm:$0xff]
        %v306 = vld [vmem:[#allocation2 + $0x38] sm:$0xff]
        %v307 = vld [vmem:[#allocation2 + $0x40] sm:$0xff]
        %v308 = vld [vmem:[#allocation2 + $0x48] sm:$0xff]
        %v309 = vld [vmem:[#allocation2 + $0x50] sm:$0xff]
        %v310 = vld [vmem:[#allocation2 + $0x58] sm:$0xff]
        %v311 = vld [vmem:[#allocation2 + $0x60] sm:$0xff]
        %v312 = vld [vmem:[#allocation2 + $0x68] sm:$0xff]
        %v313 = vld [vmem:[#allocation2 + $0x70] sm:$0xff]
        %v314 = vld [vmem:[#allocation2 + $0x78] sm:$0xff]
        %v315 = vld [vmem:[#allocation2 + $0x80] sm:$0xff]
        %v316 = vld [vmem:[#allocation2 + $0x88] sm:$0xff]
        %v317 = vld [vmem:[#allocation2 + $0x90] sm:$0xff]
        %v318 = vld [vmem:[#allocation2 + $0x98] sm:$0xff]
        %v319 = vld [vmem:[#allocation2 + $0xa0] sm:$0xff]
        %v320 = vld [vmem:[#allocation2 + $0xa8] sm:$0xff]
        %v321 = vld [vmem:[#allocation2 + $0xb0] sm:$0xff]
        %v322 = vld [vmem:[#allocation2 + $0xb8] sm:$0xff]
        %v323 = vld [vmem:[#allocation2 + $0xc0] sm:$0xff]
        %v324 = vld [vmem:[#allocation2 + $0xc8] sm:$0xff]
        %v325 = vld [vmem:[#allocation2 + $0xd0] sm:$0xff]
        %v326 = vld [vmem:[#allocation2 + $0xd8] sm:$0xff]
        %v327 = vld [vmem:[#allocation2 + $0xe0] sm:$0xff]
        %v328 = vld [vmem:[#allocation2 + $0xe8] sm:$0xff]
        %v329 = vld [vmem:[#allocation2 + $0xf0] sm:$0xff]
        %v330 = vld [vmem:[#allocation2 + $0xf8] sm:$0xff]
        %s331 = smul.u32 %s266, 3
        %s332 = smul.addr %s331, 4
        %s333 = scalar_lea.vmem %s253, %s332
        %v334 = vld [vmem:[%s333] sm:$0xf]
        %v335 = vld [vmem:[%s333 + $0x4] sm:$0xf]
        %v336 = vld [vmem:[%s333 + $0xc] sm:$0xf]
        %v337 = vld [vmem:[%s333 + $0x10] sm:$0xf]
        %v338 = vld [vmem:[%s333 + $0x18] sm:$0xf]
        %v339 = vld [vmem:[%s333 + $0x1c] sm:$0xf]
        %v340 = vld [vmem:[%s333 + $0x24] sm:$0xf]
        %v341 = vld [vmem:[%s333 + $0x28] sm:$0xf]
        %v342 = vld [vmem:[%s333 + $0x30] sm:$0xf]
        %v343 = vld [vmem:[%s333 + $0x34] sm:$0xf]
        %v344 = vld [vmem:[%s333 + $0x3c] sm:$0xf]
        %v345 = vld [vmem:[%s333 + $0x40] sm:$0xf]
        %v346 = vld [vmem:[%s333 + $0x48] sm:$0xf]
        %v347 = vld [vmem:[%s333 + $0x4c] sm:$0xf]
        %v348 = vld [vmem:[%s333 + $0x54] sm:$0xf]
        %v349 = vld [vmem:[%s333 + $0x58] sm:$0xf]
        %v350 = vld [vmem:[%s333 + $0x60] sm:$0xf]
        %v351 = vld [vmem:[%s333 + $0x64] sm:$0xf]
        %v352 = vld [vmem:[%s333 + $0x6c] sm:$0xf]
        %v353 = vld [vmem:[%s333 + $0x70] sm:$0xf]
        %v354 = vld [vmem:[%s333 + $0x78] sm:$0xf]
        %v355 = vld [vmem:[%s333 + $0x7c] sm:$0xf]
        %v356 = vld [vmem:[%s333 + $0x84] sm:$0xf]
        %v357 = vld [vmem:[%s333 + $0x88] sm:$0xf]
        %v358 = vld [vmem:[%s333 + $0x90] sm:$0xf]
        %v359 = vld [vmem:[%s333 + $0x94] sm:$0xf]
        %v360 = vld [vmem:[%s333 + $0x9c] sm:$0xf]
        %v361 = vld [vmem:[%s333 + $0xa0] sm:$0xf]
        %v362 = vld [vmem:[%s333 + $0xa8] sm:$0xf]
        %v363 = vld [vmem:[%s333 + $0xac] sm:$0xf]
        %v364 = vld [vmem:[%s333 + $0xb4] sm:$0xf]
        %v365 = vld [vmem:[%s333 + $0xb8] sm:$0xf]
        %v366 = vld [vmem:[%s257] sm:$0x3]
        %v399 = vunpack.c.l.b16 %v334
        %v400 = vunpack.c.l.b16 %v335
        %v401 = vunpack.c.l.b16 %v336
        %v402 = vunpack.c.l.b16 %v337
        %v403 = vunpack.c.l.b16 %v338
        %v404 = vunpack.c.l.b16 %v339
        %v405 = vunpack.c.l.b16 %v340
        %v406 = vunpack.c.l.b16 %v341
        %v407 = vunpack.c.l.b16 %v342
        %v408 = vunpack.c.l.b16 %v343
        %v409 = vunpack.c.l.b16 %v344
        %v410 = vunpack.c.l.b16 %v345
        %v411 = vunpack.c.l.b16 %v346
        %v412 = vunpack.c.l.b16 %v347
        %v413 = vunpack.c.l.b16 %v348
        %v414 = vunpack.c.l.b16 %v349
        %v415 = vunpack.c.l.b16 %v350
        %v416 = vunpack.c.l.b16 %v351
        %v417 = vunpack.c.l.b16 %v352
        %v418 = vunpack.c.l.b16 %v353
        %v419 = vunpack.c.l.b16 %v354
        %v420 = vunpack.c.l.b16 %v355
        %v421 = vunpack.c.l.b16 %v356
        %v422 = vunpack.c.l.b16 %v357
        %v423 = vunpack.c.l.b16 %v358
        %v424 = vunpack.c.l.b16 %v359
        %v425 = vunpack.c.l.b16 %v360
        %v426 = vunpack.c.l.b16 %v361
        %v427 = vunpack.c.l.b16 %v362
        %v428 = vunpack.c.l.b16 %v363
        %v429 = vunpack.c.l.b16 %v364
        %v430 = vunpack.c.l.b16 %v365
        %v431 = vpack.c.b16 %v400, %v399
        %v432 = vpack.c.b16 %v402, %v401
        %v433 = vpack.c.b16 %v404, %v403
        %v434 = vpack.c.b16 %v406, %v405
        %v435 = vpack.c.b16 %v408, %v407
        %v436 = vpack.c.b16 %v410, %v409
        %v437 = vpack.c.b16 %v412, %v411
        %v438 = vpack.c.b16 %v414, %v413
        %v439 = vpack.c.b16 %v416, %v415
        %v440 = vpack.c.b16 %v418, %v417
        %v441 = vpack.c.b16 %v420, %v419
        %v442 = vpack.c.b16 %v422, %v421
        %v443 = vpack.c.b16 %v424, %v423
        %v444 = vpack.c.b16 %v426, %v425
        %v445 = vpack.c.b16 %v428, %v427
        %v446 = vpack.c.b16 %v430, %v429
        %vm447 = vcmask 31744
        %v449 = vsel %vm447, %v431, 0
        %v452 = vsel %vm447, %v432, 0
        %v455 = vsel %vm447, %v433, 0
        %v458 = vsel %vm447, %v434, 0
        %v461 = vsel %vm447, %v435, 0
        %v464 = vsel %vm447, %v436, 0
        %v467 = vsel %vm447, %v437, 0
        %v470 = vsel %vm447, %v438, 0
        %v473 = vsel %vm447, %v439, 0
        %v476 = vsel %vm447, %v440, 0
        %v479 = vsel %vm447, %v441, 0
        %v482 = vsel %vm447, %v442, 0
        %v485 = vsel %vm447, %v443, 0
        %v488 = vsel %vm447, %v444, 0
        %v491 = vsel %vm447, %v445, 0
        %v494 = vsel %vm447, %v446, 0
        %vm496 = vcmask 1041408
        %v498 = vsel %vm496, %v366, 0
        %500 = vmatprep.subr.bf16.mxu0 0
        %501 = vmatpush1.bf16.msra.mxu0 %v498
        %502 = vmatprep.subr.bf16.mxu0 0
        %503 = vmatpush1.bf16.msra.mxu0 0
        %504 = vmatprep.subr.bf16.mxu0 0
        %505 = vmatpush1.bf16.msra.mxu0 0
        %506 = vmatprep.subr.bf16.mxu0 0
        %507 = vmatpush1.bf16.msra.mxu0 0
        %508 = vmatprep.subr.bf16.mxu0 0
        %509 = vmatpush1.bf16.msra.mxu0 0
        %510 = vmatprep.subr.bf16.mxu0 0
        %511 = vmatpush1.bf16.msra.mxu0 0
        %512 = vmatprep.subr.bf16.mxu0 0
        %513 = vmatpush1.bf16.msra.mxu0 0
        %514 = vmatprep.subr.bf16.mxu0 0
        %515 = vmatpush1.bf16.msra.mxu0 0
        %516 = vmatprep.subr.bf16.mxu0 0
        %517 = vmatpush1.bf16.msra.mxu0 0
        %518 = vmatprep.subr.bf16.mxu0 0
        %519 = vmatpush1.bf16.msra.mxu0 0
        %520 = vmatprep.subr.bf16.mxu0 0
        %521 = vmatpush1.bf16.msra.mxu0 0
        %522 = vmatprep.subr.bf16.mxu0 0
        %523 = vmatpush1.bf16.msra.mxu0 0
        %524 = vmatprep.subr.bf16.mxu0 0
        %525 = vmatpush1.bf16.msra.mxu0 0
        %526 = vmatprep.subr.bf16.mxu0 0
        %527 = vmatpush1.bf16.msra.mxu0 0
        %528 = vmatprep.subr.bf16.mxu0 0
        %529 = vmatpush1.bf16.msra.mxu0 0
        %530 = vmatprep.subr.bf16.mxu0 0
        %531 = vmatpush1.bf16.msra.mxu0 0
        %532 = vmatprep.mubr.bf16.mxu0 0
        %533 = vmatmul.mubr.bf16.gmra.mrb[0].mxu0 %v449
        %v534 = vpop.f32.mrb[0].mxu0
        %v535 = vadd.f32 0.0, %v534
        %v536 = vpop.f32.mrb[0].mxu0
        %v537 = vpop.f32.mrb[0].mxu0
        %v538 = vadd.f32 0.0, %v537
        %v539 = vpop.f32.mrb[0].mxu0
        %540 = vmatprep.mubr.bf16.mxu0 0
        %541 = vmatmul.mubr.bf16.gmra.mrb[0].mxu0 %v452
        %v542 = vpop.f32.mrb[0].mxu0
        %v543 = vadd.f32 0.0, %v542
        %v544 = vpop.f32.mrb[0].mxu0
        %v545 = vpop.f32.mrb[0].mxu0
        %v546 = vadd.f32 0.0, %v545
        %v547 = vpop.f32.mrb[0].mxu0
        %548 = vmatprep.mubr.bf16.mxu0 0
        %549 = vmatmul.mubr.bf16.gmra.mrb[0].mxu0 %v455
        %v550 = vpop.f32.mrb[0].mxu0
        %v551 = vadd.f32 0.0, %v550
        %v552 = vpop.f32.mrb[0].mxu0
        %v553 = vpop.f32.mrb[0].mxu0
        %v554 = vadd.f32 0.0, %v553
        %v555 = vpop.f32.mrb[0].mxu0
        %556 = vmatprep.mubr.bf16.mxu0 0
        %557 = vmatmul.mubr.bf16.gmra.mrb[0].mxu0 %v458
        %v558 = vpop.f32.mrb[0].mxu0
        %v559 = vadd.f32 0.0, %v558
        %v560 = vpop.f32.mrb[0].mxu0
        %v561 = vpop.f32.mrb[0].mxu0
        %v562 = vadd.f32 0.0, %v561
        %v563 = vpop.f32.mrb[0].mxu0
        %564 = vmatprep.mubr.bf16.mxu0 0
        %565 = vmatmul.mubr.bf16.gmra.mrb[0].mxu0 %v461
        %v566 = vpop.f32.mrb[0].mxu0
        %v567 = vadd.f32 0.0, %v566
        %v568 = vpop.f32.mrb[0].mxu0
        %v569 = vpop.f32.mrb[0].mxu0
        %v570 = vadd.f32 0.0, %v569
        %v571 = vpop.f32.mrb[0].mxu0
        %572 = vmatprep.mubr.bf16.mxu0 0
        %573 = vmatmul.mubr.bf16.gmra.mrb[0].mxu0 %v464
        %v574 = vpop.f32.mrb[0].mxu0
        %v575 = vadd.f32 0.0, %v574
        %v576 = vpop.f32.mrb[0].mxu0
        %v577 = vpop.f32.mrb[0].mxu0
        %v578 = vadd.f32 0.0, %v577
        %v579 = vpop.f32.mrb[0].mxu0
        %580 = vmatprep.mubr.bf16.mxu0 0
        %581 = vmatmul.mubr.bf16.gmra.mrb[0].mxu0 %v467
        %v582 = vpop.f32.mrb[0].mxu0
        %v583 = vadd.f32 0.0, %v582
        %v584 = vpop.f32.mrb[0].mxu0
        %v585 = vpop.f32.mrb[0].mxu0
        %v586 = vadd.f32 0.0, %v585
        %v587 = vpop.f32.mrb[0].mxu0
        %588 = vmatprep.mubr.bf16.mxu0 0
        %589 = vmatmul.mubr.bf16.gmra.mrb[0].mxu0 %v470
        %v590 = vpop.f32.mrb[0].mxu0
        %v591 = vadd.f32 0.0, %v590
        %v592 = vpop.f32.mrb[0].mxu0
        %v593 = vpop.f32.mrb[0].mxu0
        %v594 = vadd.f32 0.0, %v593
        %v595 = vpop.f32.mrb[0].mxu0
        %596 = vmatprep.mubr.bf16.mxu0 0
        %597 = vmatmul.mubr.bf16.gmra.mrb[0].mxu0 %v473
        %v598 = vpop.f32.mrb[0].mxu0
        %v599 = vadd.f32 0.0, %v598
        %v600 = vpop.f32.mrb[0].mxu0
        %v601 = vpop.f32.mrb[0].mxu0
        %v602 = vadd.f32 0.0, %v601
        %v603 = vpop.f32.mrb[0].mxu0
        %604 = vmatprep.mubr.bf16.mxu0 0
        %605 = vmatmul.mubr.bf16.gmra.mrb[0].mxu0 %v476
        %v606 = vpop.f32.mrb[0].mxu0
        %v607 = vadd.f32 0.0, %v606
        %v608 = vpop.f32.mrb[0].mxu0
        %v609 = vpop.f32.mrb[0].mxu0
        %v610 = vadd.f32 0.0, %v609
        %v611 = vpop.f32.mrb[0].mxu0
        %612 = vmatprep.mubr.bf16.mxu0 0
        %613 = vmatmul.mubr.bf16.gmra.mrb[0].mxu0 %v479
        %v614 = vpop.f32.mrb[0].mxu0
        %v615 = vadd.f32 0.0, %v614
        %v616 = vpop.f32.mrb[0].mxu0
        %v617 = vpop.f32.mrb[0].mxu0
        %v618 = vadd.f32 0.0, %v617
        %v619 = vpop.f32.mrb[0].mxu0
        %620 = vmatprep.mubr.bf16.mxu0 0
        %621 = vmatmul.mubr.bf16.gmra.mrb[0].mxu0 %v482
        %v622 = vpop.f32.mrb[0].mxu0
        %v623 = vadd.f32 0.0, %v622
        %v624 = vpop.f32.mrb[0].mxu0
        %v625 = vpop.f32.mrb[0].mxu0
        %v626 = vadd.f32 0.0, %v625
        %v627 = vpop.f32.mrb[0].mxu0
        %628 = vmatprep.mubr.bf16.mxu0 0
        %629 = vmatmul.mubr.bf16.gmra.mrb[0].mxu0 %v485
        %v630 = vpop.f32.mrb[0].mxu0
        %v631 = vadd.f32 0.0, %v630
        %v632 = vpop.f32.mrb[0].mxu0
        %v633 = vpop.f32.mrb[0].mxu0
        %v634 = vadd.f32 0.0, %v633
        %v635 = vpop.f32.mrb[0].mxu0
        %636 = vmatprep.mubr.bf16.mxu0 0
        %637 = vmatmul.mubr.bf16.gmra.mrb[0].mxu0 %v488
        %v638 = vpop.f32.mrb[0].mxu0
        %v639 = vadd.f32 0.0, %v638
        %v640 = vpop.f32.mrb[0].mxu0
        %v641 = vpop.f32.mrb[0].mxu0
        %v642 = vadd.f32 0.0, %v641
        %v643 = vpop.f32.mrb[0].mxu0
        %644 = vmatprep.mubr.bf16.mxu0 0
        %645 = vmatmul.mubr.bf16.gmra.mrb[0].mxu0 %v491
        %v646 = vpop.f32.mrb[0].mxu0
        %v647 = vadd.f32 0.0, %v646
        %v648 = vpop.f32.mrb[0].mxu0
        %v649 = vpop.f32.mrb[0].mxu0
        %v650 = vadd.f32 0.0, %v649
        %v651 = vpop.f32.mrb[0].mxu0
        %652 = vmatprep.mubr.bf16.mxu0 0
        %653 = vmatmul.mubr.bf16.gmra.mrb[0].mxu0 %v494
        %v654 = vpop.f32.mrb[0].mxu0
        %v655 = vadd.f32 0.0, %v654
        %v656 = vpop.f32.mrb[0].mxu0
        %v657 = vpop.f32.mrb[0].mxu0
        %v658 = vadd.f32 0.0, %v657
        %v659 = vpop.f32.mrb[0].mxu0
        %660 = vdwg.mxu0
        %v661 = vadd.f32 %v299, %v535
        %v662 = vadd.f32 %v300, %v538
        %v663 = vadd.f32 %v301, %v543
        %v664 = vadd.f32 %v302, %v546
        %v665 = vadd.f32 %v303, %v551
        %v666 = vadd.f32 %v304, %v554
        %v667 = vadd.f32 %v305, %v559
        %v668 = vadd.f32 %v306, %v562
        %v669 = vadd.f32 %v307, %v567
        %v670 = vadd.f32 %v308, %v570
        %v671 = vadd.f32 %v309, %v575
        %v672 = vadd.f32 %v310, %v578
        %v673 = vadd.f32 %v311, %v583
        %v674 = vadd.f32 %v312, %v586
        %v675 = vadd.f32 %v313, %v591
        %v676 = vadd.f32 %v314, %v594
        %v677 = vadd.f32 %v315, %v599
        %v678 = vadd.f32 %v316, %v602
        %v679 = vadd.f32 %v317, %v607
        %v680 = vadd.f32 %v318, %v610
        %v681 = vadd.f32 %v319, %v615
        %v682 = vadd.f32 %v320, %v618
        %v683 = vadd.f32 %v321, %v623
        %v684 = vadd.f32 %v322, %v626
        %v685 = vadd.f32 %v323, %v631
        %v686 = vadd.f32 %v324, %v634
        %v687 = vadd.f32 %v325, %v639
        %v688 = vadd.f32 %v326, %v642
        %v689 = vadd.f32 %v327, %v647
        %v690 = vadd.f32 %v328, %v650
        %v691 = vadd.f32 %v329, %v655
        %v692 = vadd.f32 %v330, %v658
        %693 = vst [vmem:[#allocation2] sm:$0xff] %v661
        %694 = vst [vmem:[#allocation2 + $0x8] sm:$0xff] %v662
        %695 = vst [vmem:[#allocation2 + $0x10] sm:$0xff] %v663
        %696 = vst [vmem:[#allocation2 + $0x18] sm:$0xff] %v664
        %697 = vst [vmem:[#allocation2 + $0x20] sm:$0xff] %v665
        %698 = vst [vmem:[#allocation2 + $0x28] sm:$0xff] %v666
        %699 = vst [vmem:[#allocation2 + $0x30] sm:$0xff] %v667
        %700 = vst [vmem:[#allocation2 + $0x38] sm:$0xff] %v668
        %701 = vst [vmem:[#allocation2 + $0x40] sm:$0xff] %v669
        %702 = vst [vmem:[#allocation2 + $0x48] sm:$0xff] %v670
        %703 = vst [vmem:[#allocation2 + $0x50] sm:$0xff] %v671
        %704 = vst [vmem:[#allocation2 + $0x58] sm:$0xff] %v672
        %705 = vst [vmem:[#allocation2 + $0x60] sm:$0xff] %v673
        %706 = vst [vmem:[#allocation2 + $0x68] sm:$0xff] %v674
        %707 = vst [vmem:[#allocation2 + $0x70] sm:$0xff] %v675
        %708 = vst [vmem:[#allocation2 + $0x78] sm:$0xff] %v676
        %709 = vst [vmem:[#allocation2 + $0x80] sm:$0xff] %v677
        %710 = vst [vmem:[#allocation2 + $0x88] sm:$0xff] %v678
        %711 = vst [vmem:[#allocation2 + $0x90] sm:$0xff] %v679
        %712 = vst [vmem:[#allocation2 + $0x98] sm:$0xff] %v680
        %713 = vst [vmem:[#allocation2 + $0xa0] sm:$0xff] %v681
        %714 = vst [vmem:[#allocation2 + $0xa8] sm:$0xff] %v682
        %715 = vst [vmem:[#allocation2 + $0xb0] sm:$0xff] %v683
        %716 = vst [vmem:[#allocation2 + $0xb8] sm:$0xff] %v684
        %717 = vst [vmem:[#allocation2 + $0xc0] sm:$0xff] %v685
        %718 = vst [vmem:[#allocation2 + $0xc8] sm:$0xff] %v686
        %719 = vst [vmem:[#allocation2 + $0xd0] sm:$0xff] %v687
        %720 = vst [vmem:[#allocation2 + $0xd8] sm:$0xff] %v688
        %721 = vst [vmem:[#allocation2 + $0xe0] sm:$0xff] %v689
        %722 = vst [vmem:[#allocation2 + $0xe8] sm:$0xff] %v690
        %723 = vst [vmem:[#allocation2 + $0xf0] sm:$0xff] %v691
        %724 = vst [vmem:[#allocation2 + $0xf8] sm:$0xff] %v692
        %v725 = vld [vmem:[#allocation2] sm:$0xff]
        %v726 = vld [vmem:[#allocation2 + $0x8] sm:$0xff]
        %v727 = vld [vmem:[#allocation2 + $0x10] sm:$0xff]
        %v728 = vld [vmem:[#allocation2 + $0x18] sm:$0xff]
        %v729 = vld [vmem:[#allocation2 + $0x20] sm:$0xff]
        %v730 = vld [vmem:[#allocation2 + $0x28] sm:$0xff]
        %v731 = vld [vmem:[#allocation2 + $0x30] sm:$0xff]
        %v732 = vld [vmem:[#allocation2 + $0x38] sm:$0xff]
        %v733 = vld [vmem:[#allocation2 + $0x40] sm:$0xff]
        %v734 = vld [vmem:[#allocation2 + $0x48] sm:$0xff]
        %v735 = vld [vmem:[#allocation2 + $0x50] sm:$0xff]
        %v736 = vld [vmem:[#allocation2 + $0x58] sm:$0xff]
        %v737 = vld [vmem:[#allocation2 + $0x60] sm:$0xff]
        %v738 = vld [vmem:[#allocation2 + $0x68] sm:$0xff]
        %v739 = vld [vmem:[#allocation2 + $0x70] sm:$0xff]
        %v740 = vld [vmem:[#allocation2 + $0x78] sm:$0xff]
        %v741 = vld [vmem:[#allocation2 + $0x80] sm:$0xff]
        %v742 = vld [vmem:[#allocation2 + $0x88] sm:$0xff]
        %v743 = vld [vmem:[#allocation2 + $0x90] sm:$0xff]
        %v744 = vld [vmem:[#allocation2 + $0x98] sm:$0xff]
        %v745 = vld [vmem:[#allocation2 + $0xa0] sm:$0xff]
        %v746 = vld [vmem:[#allocation2 + $0xa8] sm:$0xff]
        %v747 = vld [vmem:[#allocation2 + $0xb0] sm:$0xff]
        %v748 = vld [vmem:[#allocation2 + $0xb8] sm:$0xff]
        %v749 = vld [vmem:[#allocation2 + $0xc0] sm:$0xff]
        %v750 = vld [vmem:[#allocation2 + $0xc8] sm:$0xff]
        %v751 = vld [vmem:[#allocation2 + $0xd0] sm:$0xff]
        %v752 = vld [vmem:[#allocation2 + $0xd8] sm:$0xff]
        %v753 = vld [vmem:[#allocation2 + $0xe0] sm:$0xff]
        %v754 = vld [vmem:[#allocation2 + $0xe8] sm:$0xff]
        %v755 = vld [vmem:[#allocation2 + $0xf0] sm:$0xff]
        %v756 = vld [vmem:[#allocation2 + $0xf8] sm:$0xff]
        %v757 = vld [vmem:[%s333] sm:$0xf]
        %v758 = vld [vmem:[%s333 + $0x4] sm:$0xf]
        %v759 = vld [vmem:[%s333 + $0x8] sm:$0x1]
        %v760 = vld [vmem:[%s333 + $0xc] sm:$0xf]
        %v761 = vld [vmem:[%s333 + $0x10] sm:$0xf]
        %v762 = vld [vmem:[%s333 + $0x14] sm:$0x1]
        %v763 = vld [vmem:[%s333 + $0x18] sm:$0xf]
        %v764 = vld [vmem:[%s333 + $0x1c] sm:$0xf]
        %v765 = vld [vmem:[%s333 + $0x20] sm:$0x1]
        %v766 = vld [vmem:[%s333 + $0x24] sm:$0xf]
        %v767 = vld [vmem:[%s333 + $0x28] sm:$0xf]
        %v768 = vld [vmem:[%s333 + $0x2c] sm:$0x1]
        %v769 = vld [vmem:[%s333 + $0x30] sm:$0xf]
        %v770 = vld [vmem:[%s333 + $0x34] sm:$0xf]
        %v771 = vld [vmem:[%s333 + $0x38] sm:$0x1]
        %v772 = vld [vmem:[%s333 + $0x3c] sm:$0xf]
        %v773 = vld [vmem:[%s333 + $0x40] sm:$0xf]
        %v774 = vld [vmem:[%s333 + $0x44] sm:$0x1]
        %v775 = vld [vmem:[%s333 + $0x48] sm:$0xf]
        %v776 = vld [vmem:[%s333 + $0x4c] sm:$0xf]
        %v777 = vld [vmem:[%s333 + $0x50] sm:$0x1]
        %v778 = vld [vmem:[%s333 + $0x54] sm:$0xf]
        %v779 = vld [vmem:[%s333 + $0x58] sm:$0xf]
        %v780 = vld [vmem:[%s333 + $0x5c] sm:$0x1]
        %v781 = vld [vmem:[%s333 + $0x60] sm:$0xf]
        %v782 = vld [vmem:[%s333 + $0x64] sm:$0xf]
        %v783 = vld [vmem:[%s333 + $0x68] sm:$0x1]
        %v784 = vld [vmem:[%s333 + $0x6c] sm:$0xf]
        %v785 = vld [vmem:[%s333 + $0x70] sm:$0xf]
        %v786 = vld [vmem:[%s333 + $0x74] sm:$0x1]
        %v787 = vld [vmem:[%s333 + $0x78] sm:$0xf]
        %v788 = vld [vmem:[%s333 + $0x7c] sm:$0xf]
        %v789 = vld [vmem:[%s333 + $0x80] sm:$0x1]
        %v790 = vld [vmem:[%s333 + $0x84] sm:$0xf]
        %v791 = vld [vmem:[%s333 + $0x88] sm:$0xf]
        %v792 = vld [vmem:[%s333 + $0x8c] sm:$0x1]
        %v793 = vld [vmem:[%s333 + $0x90] sm:$0xf]
        %v794 = vld [vmem:[%s333 + $0x94] sm:$0xf]
        %v795 = vld [vmem:[%s333 + $0x98] sm:$0x1]
        %v796 = vld [vmem:[%s333 + $0x9c] sm:$0xf]
        %v797 = vld [vmem:[%s333 + $0xa0] sm:$0xf]
        %v798 = vld [vmem:[%s333 + $0xa4] sm:$0x1]
        %v799 = vld [vmem:[%s333 + $0xa8] sm:$0xf]
        %v800 = vld [vmem:[%s333 + $0xac] sm:$0xf]
        %v801 = vld [vmem:[%s333 + $0xb0] sm:$0x1]
        %v802 = vld [vmem:[%s333 + $0xb4] sm:$0xf]
        %v803 = vld [vmem:[%s333 + $0xb8] sm:$0xf]
        %v804 = vld [vmem:[%s333 + $0xbc] sm:$0x1]
        %vm805 = vsmask.f32 3328
        %vm806 = vsmask.f32 7440
        %vm807 = vmor %vm805, %vm806
        %v809 = vshrl.u32 %v757, 16
        %v811 = vrot.slane %v809, 4
        %v812 = vshll.u32 %v757, 16
        %v814 = vrot.slane %v812, 5
        %v815 = vor.u32 %v811, %v814
        %v816 = vrot.slane %v815, 4
        %v818 = vshll.u32 %v758, 16
        %v820 = vrot.slane %v818, 5
        %v821 = vsel %vm807, %v816, %v820
        %v822 = vshrl.u32 %v758, 16
        %v824 = vrot.slane %v822, 4
        %v825 = vor.u32 %v824, %v820
        %v826 = vrot.slane %v825, 4
        %v828 = vshll.u32 %v759, 16
        %v830 = vrot.slane %v828, 5
        %v831 = vsel %vm807, %v826, %v830
        %v833 = vshrl.u32 %v760, 16
        %v835 = vrot.slane %v833, 4
        %v836 = vshll.u32 %v760, 16
        %v838 = vrot.slane %v836, 5
        %v839 = vor.u32 %v835, %v838
        %v840 = vrot.slane %v839, 4
        %v842 = vshll.u32 %v761, 16
        %v844 = vrot.slane %v842, 5
        %v845 = vsel %vm807, %v840, %v844
        %v846 = vshrl.u32 %v761, 16
        %v848 = vrot.slane %v846, 4
        %v849 = vor.u32 %v848, %v844
        %v850 = vrot.slane %v849, 4
        %v852 = vshll.u32 %v762, 16
        %v854 = vrot.slane %v852, 5
        %v855 = vsel %vm807, %v850, %v854
        %v857 = vshrl.u32 %v763, 16
        %v859 = vrot.slane %v857, 4
        %v860 = vshll.u32 %v763, 16
        %v862 = vrot.slane %v860, 5
        %v863 = vor.u32 %v859, %v862
        %v864 = vrot.slane %v863, 4
        %v866 = vshll.u32 %v764, 16
        %v868 = vrot.slane %v866, 5
        %v869 = vsel %vm807, %v864, %v868
        %v870 = vshrl.u32 %v764, 16
        %v872 = vrot.slane %v870, 4
        %v873 = vor.u32 %v872, %v868
        %v874 = vrot.slane %v873, 4
        %v876 = vshll.u32 %v765, 16
        %v878 = vrot.slane %v876, 5
        %v879 = vsel %vm807, %v874, %v878
        %v881 = vshrl.u32 %v766, 16
        %v883 = vrot.slane %v881, 4
        %v884 = vshll.u32 %v766, 16
        %v886 = vrot.slane %v884, 5
        %v887 = vor.u32 %v883, %v886
        %v888 = vrot.slane %v887, 4
        %v890 = vshll.u32 %v767, 16
        %v892 = vrot.slane %v890, 5
        %v893 = vsel %vm807, %v888, %v892
        %v894 = vshrl.u32 %v767, 16
        %v896 = vrot.slane %v894, 4
        %v897 = vor.u32 %v896, %v892
        %v898 = vrot.slane %v897, 4
        %v900 = vshll.u32 %v768, 16
        %v902 = vrot.slane %v900, 5
        %v903 = vsel %vm807, %v898, %v902
        %v905 = vshrl.u32 %v769, 16
        %v907 = vrot.slane %v905, 4
        %v908 = vshll.u32 %v769, 16
        %v910 = vrot.slane %v908, 5
        %v911 = vor.u32 %v907, %v910
        %v912 = vrot.slane %v911, 4
        %v914 = vshll.u32 %v770, 16
        %v916 = vrot.slane %v914, 5
        %v917 = vsel %vm807, %v912, %v916
        %v918 = vshrl.u32 %v770, 16
        %v920 = vrot.slane %v918, 4
        %v921 = vor.u32 %v920, %v916
        %v922 = vrot.slane %v921, 4
        %v924 = vshll.u32 %v771, 16
        %v926 = vrot.slane %v924, 5
        %v927 = vsel %vm807, %v922, %v926
        %v929 = vshrl.u32 %v772, 16
        %v931 = vrot.slane %v929, 4
        %v932 = vshll.u32 %v772, 16
        %v934 = vrot.slane %v932, 5
        %v935 = vor.u32 %v931, %v934
        %v936 = vrot.slane %v935, 4
        %v938 = vshll.u32 %v773, 16
        %v940 = vrot.slane %v938, 5
        %v941 = vsel %vm807, %v936, %v940
        %v942 = vshrl.u32 %v773, 16
        %v944 = vrot.slane %v942, 4
        %v945 = vor.u32 %v944, %v940
        %v946 = vrot.slane %v945, 4
        %v948 = vshll.u32 %v774, 16
        %v950 = vrot.slane %v948, 5
        %v951 = vsel %vm807, %v946, %v950
        %v953 = vshrl.u32 %v775, 16
        %v955 = vrot.slane %v953, 4
        %v956 = vshll.u32 %v775, 16
        %v958 = vrot.slane %v956, 5
        %v959 = vor.u32 %v955, %v958
        %v960 = vrot.slane %v959, 4
        %v962 = vshll.u32 %v776, 16
        %v964 = vrot.slane %v962, 5
        %v965 = vsel %vm807, %v960, %v964
        %v966 = vshrl.u32 %v776, 16
        %v968 = vrot.slane %v966, 4
        %v969 = vor.u32 %v968, %v964
        %v970 = vrot.slane %v969, 4
        %v972 = vshll.u32 %v777, 16
        %v974 = vrot.slane %v972, 5
        %v975 = vsel %vm807, %v970, %v974
        %v977 = vshrl.u32 %v778, 16
        %v979 = vrot.slane %v977, 4
        %v980 = vshll.u32 %v778, 16
        %v982 = vrot.slane %v980, 5
        %v983 = vor.u32 %v979, %v982
        %v984 = vrot.slane %v983, 4
        %v986 = vshll.u32 %v779, 16
        %v988 = vrot.slane %v986, 5
        %v989 = vsel %vm807, %v984, %v988
        %v990 = vshrl.u32 %v779, 16
        %v992 = vrot.slane %v990, 4
        %v993 = vor.u32 %v992, %v988
        %v994 = vrot.slane %v993, 4
        %v996 = vshll.u32 %v780, 16
        %v998 = vrot.slane %v996, 5
        %v999 = vsel %vm807, %v994, %v998
        %v1001 = vshrl.u32 %v781, 16
        %v1003 = vrot.slane %v1001, 4
        %v1004 = vshll.u32 %v781, 16
        %v1006 = vrot.slane %v1004, 5
        %v1007 = vor.u32 %v1003, %v1006
        %v1008 = vrot.slane %v1007, 4
        %v1010 = vshll.u32 %v782, 16
        %v1012 = vrot.slane %v1010, 5
        %v1013 = vsel %vm807, %v1008, %v1012
        %v1014 = vshrl.u32 %v782, 16
        %v1016 = vrot.slane %v1014, 4
        %v1017 = vor.u32 %v1016, %v1012
        %v1018 = vrot.slane %v1017, 4
        %v1020 = vshll.u32 %v783, 16
        %v1022 = vrot.slane %v1020, 5
        %v1023 = vsel %vm807, %v1018, %v1022
        %v1025 = vshrl.u32 %v784, 16
        %v1027 = vrot.slane %v1025, 4
        %v1028 = vshll.u32 %v784, 16
        %v1030 = vrot.slane %v1028, 5
        %v1031 = vor.u32 %v1027, %v1030
        %v1032 = vrot.slane %v1031, 4
        %v1034 = vshll.u32 %v785, 16
        %v1036 = vrot.slane %v1034, 5
        %v1037 = vsel %vm807, %v1032, %v1036
        %v1038 = vshrl.u32 %v785, 16
        %v1040 = vrot.slane %v1038, 4
        %v1041 = vor.u32 %v1040, %v1036
        %v1042 = vrot.slane %v1041, 4
        %v1044 = vshll.u32 %v786, 16
        %v1046 = vrot.slane %v1044, 5
        %v1047 = vsel %vm807, %v1042, %v1046
        %v1049 = vshrl.u32 %v787, 16
        %v1051 = vrot.slane %v1049, 4
        %v1052 = vshll.u32 %v787, 16
        %v1054 = vrot.slane %v1052, 5
        %v1055 = vor.u32 %v1051, %v1054
        %v1056 = vrot.slane %v1055, 4
        %v1058 = vshll.u32 %v788, 16
        %v1060 = vrot.slane %v1058, 5
        %v1061 = vsel %vm807, %v1056, %v1060
        %v1062 = vshrl.u32 %v788, 16
        %v1064 = vrot.slane %v1062, 4
        %v1065 = vor.u32 %v1064, %v1060
        %v1066 = vrot.slane %v1065, 4
        %v1068 = vshll.u32 %v789, 16
        %v1070 = vrot.slane %v1068, 5
        %v1071 = vsel %vm807, %v1066, %v1070
        %v1073 = vshrl.u32 %v790, 16
        %v1075 = vrot.slane %v1073, 4
        %v1076 = vshll.u32 %v790, 16
        %v1078 = vrot.slane %v1076, 5
        %v1079 = vor.u32 %v1075, %v1078
        %v1080 = vrot.slane %v1079, 4
        %v1082 = vshll.u32 %v791, 16
        %v1084 = vrot.slane %v1082, 5
        %v1085 = vsel %vm807, %v1080, %v1084
        %v1086 = vshrl.u32 %v791, 16
        %v1088 = vrot.slane %v1086, 4
        %v1089 = vor.u32 %v1088, %v1084
        %v1090 = vrot.slane %v1089, 4
        %v1092 = vshll.u32 %v792, 16
        %v1094 = vrot.slane %v1092, 5
        %v1095 = vsel %vm807, %v1090, %v1094
        %v1097 = vshrl.u32 %v793, 16
        %v1099 = vrot.slane %v1097, 4
        %v1100 = vshll.u32 %v793, 16
        %v1102 = vrot.slane %v1100, 5
        %v1103 = vor.u32 %v1099, %v1102
        %v1104 = vrot.slane %v1103, 4
        %v1106 = vshll.u32 %v794, 16
        %v1108 = vrot.slane %v1106, 5
        %v1109 = vsel %vm807, %v1104, %v1108
        %v1110 = vshrl.u32 %v794, 16
        %v1112 = vrot.slane %v1110, 4
        %v1113 = vor.u32 %v1112, %v1108
        %v1114 = vrot.slane %v1113, 4
        %v1116 = vshll.u32 %v795, 16
        %v1118 = vrot.slane %v1116, 5
        %v1119 = vsel %vm807, %v1114, %v1118
        %v1121 = vshrl.u32 %v796, 16
        %v1123 = vrot.slane %v1121, 4
        %v1124 = vshll.u32 %v796, 16
        %v1126 = vrot.slane %v1124, 5
        %v1127 = vor.u32 %v1123, %v1126
        %v1128 = vrot.slane %v1127, 4
        %v1130 = vshll.u32 %v797, 16
        %v1132 = vrot.slane %v1130, 5
        %v1133 = vsel %vm807, %v1128, %v1132
        %v1134 = vshrl.u32 %v797, 16
        %v1136 = vrot.slane %v1134, 4
        %v1137 = vor.u32 %v1136, %v1132
        %v1138 = vrot.slane %v1137, 4
        %v1140 = vshll.u32 %v798, 16
        %v1142 = vrot.slane %v1140, 5
        %v1143 = vsel %vm807, %v1138, %v1142
        %v1145 = vshrl.u32 %v799, 16
        %v1147 = vrot.slane %v1145, 4
        %v1148 = vshll.u32 %v799, 16
        %v1150 = vrot.slane %v1148, 5
        %v1151 = vor.u32 %v1147, %v1150
        %v1152 = vrot.slane %v1151, 4
        %v1154 = vshll.u32 %v800, 16
        %v1156 = vrot.slane %v1154, 5
        %v1157 = vsel %vm807, %v1152, %v1156
        %v1158 = vshrl.u32 %v800, 16
        %v1160 = vrot.slane %v1158, 4
        %v1161 = vor.u32 %v1160, %v1156
        %v1162 = vrot.slane %v1161, 4
        %v1164 = vshll.u32 %v801, 16
        %v1166 = vrot.slane %v1164, 5
        %v1167 = vsel %vm807, %v1162, %v1166
        %v1169 = vshrl.u32 %v802, 16
        %v1171 = vrot.slane %v1169, 4
        %v1172 = vshll.u32 %v802, 16
        %v1174 = vrot.slane %v1172, 5
        %v1175 = vor.u32 %v1171, %v1174
        %v1176 = vrot.slane %v1175, 4
        %v1178 = vshll.u32 %v803, 16
        %v1180 = vrot.slane %v1178, 5
        %v1181 = vsel %vm807, %v1176, %v1180
        %v1182 = vshrl.u32 %v803, 16
        %v1184 = vrot.slane %v1182, 4
        %v1185 = vor.u32 %v1184, %v1180
        %v1186 = vrot.slane %v1185, 4
        %v1188 = vshll.u32 %v804, 16
        %v1190 = vrot.slane %v1188, 5
        %v1191 = vsel %vm807, %v1186, %v1190
        %v1192 = vld [vmem:[%s257] sm:$0xc]
        %v1193 = vunpack.c.l.b16 %v821
        %v1194 = vunpack.c.l.b16 %v831
        %v1195 = vunpack.c.l.b16 %v845
        %v1196 = vunpack.c.l.b16 %v855
        %v1197 = vunpack.c.l.b16 %v869
        %v1198 = vunpack.c.l.b16 %v879
        %v1199 = vunpack.c.l.b16 %v893
        %v1200 = vunpack.c.l.b16 %v903
        %v1201 = vunpack.c.l.b16 %v917
        %v1202 = vunpack.c.l.b16 %v927
        %v1203 = vunpack.c.l.b16 %v941
        %v1204 = vunpack.c.l.b16 %v951
        %v1205 = vunpack.c.l.b16 %v965
        %v1206 = vunpack.c.l.b16 %v975
        %v1207 = vunpack.c.l.b16 %v989
        %v1208 = vunpack.c.l.b16 %v999
        %v1209 = vunpack.c.l.b16 %v1013
        %v1210 = vunpack.c.l.b16 %v1023
        %v1211 = vunpack.c.l.b16 %v1037
        %v1212 = vunpack.c.l.b16 %v1047
        %v1213 = vunpack.c.l.b16 %v1061
        %v1214 = vunpack.c.l.b16 %v1071
        %v1215 = vunpack.c.l.b16 %v1085
        %v1216 = vunpack.c.l.b16 %v1095
        %v1217 = vunpack.c.l.b16 %v1109
        %v1218 = vunpack.c.l.b16 %v1119
        %v1219 = vunpack.c.l.b16 %v1133
        %v1220 = vunpack.c.l.b16 %v1143
        %v1221 = vunpack.c.l.b16 %v1157
        %v1222 = vunpack.c.l.b16 %v1167
        %v1223 = vunpack.c.l.b16 %v1181
        %v1224 = vunpack.c.l.b16 %v1191
        %v1225 = vpack.c.b16 %v1194, %v1193
        %v1226 = vpack.c.b16 %v1196, %v1195
        %v1227 = vpack.c.b16 %v1198, %v1197
        %v1228 = vpack.c.b16 %v1200, %v1199
        %v1229 = vpack.c.b16 %v1202, %v1201
        %v1230 = vpack.c.b16 %v1204, %v1203
        %v1231 = vpack.c.b16 %v1206, %v1205
        %v1232 = vpack.c.b16 %v1208, %v1207
        %v1233 = vpack.c.b16 %v1210, %v1209
        %v1234 = vpack.c.b16 %v1212, %v1211
        %v1235 = vpack.c.b16 %v1214, %v1213
        %v1236 = vpack.c.b16 %v1216, %v1215
        %v1237 = vpack.c.b16 %v1218, %v1217
        %v1238 = vpack.c.b16 %v1220, %v1219
        %v1239 = vpack.c.b16 %v1222, %v1221
        %v1240 = vpack.c.b16 %v1224, %v1223
        %v1242 = vunpack.c.l.b16 %v1192
        %v1243 = vpack.c.b16 %v1242, %v1242
        %v1244 = vrot.slane %v1243, 2
        %v1246 = vsel %vm447, %v1225, 0
        %v1249 = vsel %vm447, %v1226, 0
        %v1252 = vsel %vm447, %v1227, 0
        %v1255 = vsel %vm447, %v1228, 0
        %v1258 = vsel %vm447, %v1229, 0
        %v1261 = vsel %vm447, %v1230, 0
        %v1264 = vsel %vm447, %v1231, 0
        %v1267 = vsel %vm447, %v1232, 0
        %v1270 = vsel %vm447, %v1233, 0
        %v1273 = vsel %vm447, %v1234, 0
        %v1276 = vsel %vm447, %v1235, 0
        %v1279 = vsel %vm447, %v1236, 0
        %v1282 = vsel %vm447, %v1237, 0
        %v1285 = vsel %vm447, %v1238, 0
        %v1288 = vsel %vm447, %v1239, 0
        %v1291 = vsel %vm447, %v1240, 0
        %v1294 = vsel %vm496, %v1244, 0
        %1296 = vmatprep.subr.bf16.mxu0 0
        %1297 = vmatpush1.bf16.msra.mxu0 %v1294
        %1298 = vmatprep.subr.bf16.mxu0 0
        %1299 = vmatpush1.bf16.msra.mxu0 0
        %1300 = vmatprep.subr.bf16.mxu0 0
        %1301 = vmatpush1.bf16.msra.mxu0 0
        %1302 = vmatprep.subr.bf16.mxu0 0
        %1303 = vmatpush1.bf16.msra.mxu0 0
        %1304 = vmatprep.subr.bf16.mxu0 0
        %1305 = vmatpush1.bf16.msra.mxu0 0
        %1306 = vmatprep.subr.bf16.mxu0 0
        %1307 = vmatpush1.bf16.msra.mxu0 0
        %1308 = vmatprep.subr.bf16.mxu0 0
        %1309 = vmatpush1.bf16.msra.mxu0 0
        %1310 = vmatprep.subr.bf16.mxu0 0
        %1311 = vmatpush1.bf16.msra.mxu0 0
        %1312 = vmatprep.subr.bf16.mxu0 0
        %1313 = vmatpush1.bf16.msra.mxu0 0
        %1314 = vmatprep.subr.bf16.mxu0 0
        %1315 = vmatpush1.bf16.msra.mxu0 0
        %1316 = vmatprep.subr.bf16.mxu0 0
        %1317 = vmatpush1.bf16.msra.mxu0 0
        %1318 = vmatprep.subr.bf16.mxu0 0
        %1319 = vmatpush1.bf16.msra.mxu0 0
        %1320 = vmatprep.subr.bf16.mxu0 0
        %1321 = vmatpush1.bf16.msra.mxu0 0
        %1322 = vmatprep.subr.bf16.mxu0 0
        %1323 = vmatpush1.bf16.msra.mxu0 0
        %1324 = vmatprep.subr.bf16.mxu0 0
        %1325 = vmatpush1.bf16.msra.mxu0 0
        %1326 = vmatprep.subr.bf16.mxu0 0
        %1327 = vmatpush1.bf16.msra.mxu0 0
        %1328 = vmatprep.mubr.bf16.mxu0 0
        %1329 = vmatmul.mubr.bf16.gmra.mrb[0].mxu0 %v1246
        %v1330 = vpop.f32.mrb[0].mxu0
        %v1331 = vadd.f32 0.0, %v1330
        %v1332 = vpop.f32.mrb[0].mxu0
        %v1333 = vpop.f32.mrb[0].mxu0
        %v1334 = vadd.f32 0.0, %v1333
        %v1335 = vpop.f32.mrb[0].mxu0
        %1336 = vmatprep.mubr.bf16.mxu0 0
        %1337 = vmatmul.mubr.bf16.gmra.mrb[0].mxu0 %v1249
        %v1338 = vpop.f32.mrb[0].mxu0
        %v1339 = vadd.f32 0.0, %v1338
        %v1340 = vpop.f32.mrb[0].mxu0
        %v1341 = vpop.f32.mrb[0].mxu0
        %v1342 = vadd.f32 0.0, %v1341
        %v1343 = vpop.f32.mrb[0].mxu0
        %1344 = vmatprep.mubr.bf16.mxu0 0
        %1345 = vmatmul.mubr.bf16.gmra.mrb[0].mxu0 %v1252
        %v1346 = vpop.f32.mrb[0].mxu0
        %v1347 = vadd.f32 0.0, %v1346
        %v1348 = vpop.f32.mrb[0].mxu0
        %v1349 = vpop.f32.mrb[0].mxu0
        %v1350 = vadd.f32 0.0, %v1349
        %v1351 = vpop.f32.mrb[0].mxu0
        %1352 = vmatprep.mubr.bf16.mxu0 0
        %1353 = vmatmul.mubr.bf16.gmra.mrb[0].mxu0 %v1255
        %v1354 = vpop.f32.mrb[0].mxu0
        %v1355 = vadd.f32 0.0, %v1354
        %v1356 = vpop.f32.mrb[0].mxu0
        %v1357 = vpop.f32.mrb[0].mxu0
        %v1358 = vadd.f32 0.0, %v1357
        %v1359 = vpop.f32.mrb[0].mxu0
        %1360 = vmatprep.mubr.bf16.mxu0 0
        %1361 = vmatmul.mubr.bf16.gmra.mrb[0].mxu0 %v1258
        %v1362 = vpop.f32.mrb[0].mxu0
        %v1363 = vadd.f32 0.0, %v1362
        %v1364 = vpop.f32.mrb[0].mxu0
        %v1365 = vpop.f32.mrb[0].mxu0
        %v1366 = vadd.f32 0.0, %v1365
        %v1367 = vpop.f32.mrb[0].mxu0
        %1368 = vmatprep.mubr.bf16.mxu0 0
        %1369 = vmatmul.mubr.bf16.gmra.mrb[0].mxu0 %v1261
        %v1370 = vpop.f32.mrb[0].mxu0
        %v1371 = vadd.f32 0.0, %v1370
        %v1372 = vpop.f32.mrb[0].mxu0
        %v1373 = vpop.f32.mrb[0].mxu0
        %v1374 = vadd.f32 0.0, %v1373
        %v1375 = vpop.f32.mrb[0].mxu0
        %1376 = vmatprep.mubr.bf16.mxu0 0
        %1377 = vmatmul.mubr.bf16.gmra.mrb[0].mxu0 %v1264
        %v1378 = vpop.f32.mrb[0].mxu0
        %v1379 = vadd.f32 0.0, %v1378
        %v1380 = vpop.f32.mrb[0].mxu0
        %v1381 = vpop.f32.mrb[0].mxu0
        %v1382 = vadd.f32 0.0, %v1381
        %v1383 = vpop.f32.mrb[0].mxu0
        %1384 = vmatprep.mubr.bf16.mxu0 0
        %1385 = vmatmul.mubr.bf16.gmra.mrb[0].mxu0 %v1267
        %v1386 = vpop.f32.mrb[0].mxu0
        %v1387 = vadd.f32 0.0, %v1386
        %v1388 = vpop.f32.mrb[0].mxu0
        %v1389 = vpop.f32.mrb[0].mxu0
        %v1390 = vadd.f32 0.0, %v1389
        %v1391 = vpop.f32.mrb[0].mxu0
        %1392 = vmatprep.mubr.bf16.mxu0 0
        %1393 = vmatmul.mubr.bf16.gmra.mrb[0].mxu0 %v1270
        %v1394 = vpop.f32.mrb[0].mxu0
        %v1395 = vadd.f32 0.0, %v1394
        %v1396 = vpop.f32.mrb[0].mxu0
        %v1397 = vpop.f32.mrb[0].mxu0
        %v1398 = vadd.f32 0.0, %v1397
        %v1399 = vpop.f32.mrb[0].mxu0
        %1400 = vmatprep.mubr.bf16.mxu0 0
        %1401 = vmatmul.mubr.bf16.gmra.mrb[0].mxu0 %v1273
        %v1402 = vpop.f32.mrb[0].mxu0
        %v1403 = vadd.f32 0.0, %v1402
        %v1404 = vpop.f32.mrb[0].mxu0
        %v1405 = vpop.f32.mrb[0].mxu0
        %v1406 = vadd.f32 0.0, %v1405
        %v1407 = vpop.f32.mrb[0].mxu0
        %1408 = vmatprep.mubr.bf16.mxu0 0
        %1409 = vmatmul.mubr.bf16.gmra.mrb[0].mxu0 %v1276
        %v1410 = vpop.f32.mrb[0].mxu0
        %v1411 = vadd.f32 0.0, %v1410
        %v1412 = vpop.f32.mrb[0].mxu0
        %v1413 = vpop.f32.mrb[0].mxu0
        %v1414 = vadd.f32 0.0, %v1413
        %v1415 = vpop.f32.mrb[0].mxu0
        %1416 = vmatprep.mubr.bf16.mxu0 0
        %1417 = vmatmul.mubr.bf16.gmra.mrb[0].mxu0 %v1279
        %v1418 = vpop.f32.mrb[0].mxu0
        %v1419 = vadd.f32 0.0, %v1418
        %v1420 = vpop.f32.mrb[0].mxu0
        %v1421 = vpop.f32.mrb[0].mxu0
        %v1422 = vadd.f32 0.0, %v1421
        %v1423 = vpop.f32.mrb[0].mxu0
        %1424 = vmatprep.mubr.bf16.mxu0 0
        %1425 = vmatmul.mubr.bf16.gmra.mrb[0].mxu0 %v1282
        %v1426 = vpop.f32.mrb[0].mxu0
        %v1427 = vadd.f32 0.0, %v1426
        %v1428 = vpop.f32.mrb[0].mxu0
        %v1429 = vpop.f32.mrb[0].mxu0
        %v1430 = vadd.f32 0.0, %v1429
        %v1431 = vpop.f32.mrb[0].mxu0
        %1432 = vmatprep.mubr.bf16.mxu0 0
        %1433 = vmatmul.mubr.bf16.gmra.mrb[0].mxu0 %v1285
        %v1434 = vpop.f32.mrb[0].mxu0
        %v1435 = vadd.f32 0.0, %v1434
        %v1436 = vpop.f32.mrb[0].mxu0
        %v1437 = vpop.f32.mrb[0].mxu0
        %v1438 = vadd.f32 0.0, %v1437
        %v1439 = vpop.f32.mrb[0].mxu0
        %1440 = vmatprep.mubr.bf16.mxu0 0
        %1441 = vmatmul.mubr.bf16.gmra.mrb[0].mxu0 %v1288
        %v1442 = vpop.f32.mrb[0].mxu0
        %v1443 = vadd.f32 0.0, %v1442
        %v1444 = vpop.f32.mrb[0].mxu0
        %v1445 = vpop.f32.mrb[0].mxu0
        %v1446 = vadd.f32 0.0, %v1445
        %v1447 = vpop.f32.mrb[0].mxu0
        %1448 = vmatprep.mubr.bf16.mxu0 0
        %1449 = vmatmul.mubr.bf16.gmra.mrb[0].mxu0 %v1291
        %v1450 = vpop.f32.mrb[0].mxu0
        %v1451 = vadd.f32 0.0, %v1450
        %v1452 = vpop.f32.mrb[0].mxu0
        %v1453 = vpop.f32.mrb[0].mxu0
        %v1454 = vadd.f32 0.0, %v1453
        %v1455 = vpop.f32.mrb[0].mxu0
        %1456 = vdwg.mxu0
        %v1457 = vadd.f32 %v725, %v1331
        %v1458 = vadd.f32 %v726, %v1334
        %v1459 = vadd.f32 %v727, %v1339
        %v1460 = vadd.f32 %v728, %v1342
        %v1461 = vadd.f32 %v729, %v1347
        %v1462 = vadd.f32 %v730, %v1350
        %v1463 = vadd.f32 %v731, %v1355
        %v1464 = vadd.f32 %v732, %v1358
        %v1465 = vadd.f32 %v733, %v1363
        %v1466 = vadd.f32 %v734, %v1366
        %v1467 = vadd.f32 %v735, %v1371
        %v1468 = vadd.f32 %v736, %v1374
        %v1469 = vadd.f32 %v737, %v1379
        %v1470 = vadd.f32 %v738, %v1382
        %v1471 = vadd.f32 %v739, %v1387
        %v1472 = vadd.f32 %v740, %v1390
        %v1473 = vadd.f32 %v741, %v1395
        %v1474 = vadd.f32 %v742, %v1398
        %v1475 = vadd.f32 %v743, %v1403
        %v1476 = vadd.f32 %v744, %v1406
        %v1477 = vadd.f32 %v745, %v1411
        %v1478 = vadd.f32 %v746, %v1414
        %v1479 = vadd.f32 %v747, %v1419
        %v1480 = vadd.f32 %v748, %v1422
        %v1481 = vadd.f32 %v749, %v1427
        %v1482 = vadd.f32 %v750, %v1430
        %v1483 = vadd.f32 %v751, %v1435
        %v1484 = vadd.f32 %v752, %v1438
        %v1485 = vadd.f32 %v753, %v1443
        %v1486 = vadd.f32 %v754, %v1446
        %v1487 = vadd.f32 %v755, %v1451
        %v1488 = vadd.f32 %v756, %v1454
        %1489 = vst [vmem:[#allocation2] sm:$0xff] %v1457
        %1490 = vst [vmem:[#allocation2 + $0x8] sm:$0xff] %v1458
        %1491 = vst [vmem:[#allocation2 + $0x10] sm:$0xff] %v1459
        %1492 = vst [vmem:[#allocation2 + $0x18] sm:$0xff] %v1460
        %1493 = vst [vmem:[#allocation2 + $0x20] sm:$0xff] %v1461
        %1494 = vst [vmem:[#allocation2 + $0x28] sm:$0xff] %v1462
        %1495 = vst [vmem:[#allocation2 + $0x30] sm:$0xff] %v1463
        %1496 = vst [vmem:[#allocation2 + $0x38] sm:$0xff] %v1464
        %1497 = vst [vmem:[#allocation2 + $0x40] sm:$0xff] %v1465
        %1498 = vst [vmem:[#allocation2 + $0x48] sm:$0xff] %v1466
        %1499 = vst [vmem:[#allocation2 + $0x50] sm:$0xff] %v1467
        %1500 = vst [vmem:[#allocation2 + $0x58] sm:$0xff] %v1468
        %1501 = vst [vmem:[#allocation2 + $0x60] sm:$0xff] %v1469
        %1502 = vst [vmem:[#allocation2 + $0x68] sm:$0xff] %v1470
        %1503 = vst [vmem:[#allocation2 + $0x70] sm:$0xff] %v1471
        %1504 = vst [vmem:[#allocation2 + $0x78] sm:$0xff] %v1472
        %1505 = vst [vmem:[#allocation2 + $0x80] sm:$0xff] %v1473
        %1506 = vst [vmem:[#allocation2 + $0x88] sm:$0xff] %v1474
        %1507 = vst [vmem:[#allocation2 + $0x90] sm:$0xff] %v1475
        %1508 = vst [vmem:[#allocation2 + $0x98] sm:$0xff] %v1476
        %1509 = vst [vmem:[#allocation2 + $0xa0] sm:$0xff] %v1477
        %1510 = vst [vmem:[#allocation2 + $0xa8] sm:$0xff] %v1478
        %1511 = vst [vmem:[#allocation2 + $0xb0] sm:$0xff] %v1479
        %1512 = vst [vmem:[#allocation2 + $0xb8] sm:$0xff] %v1480
        %1513 = vst [vmem:[#allocation2 + $0xc0] sm:$0xff] %v1481
        %1514 = vst [vmem:[#allocation2 + $0xc8] sm:$0xff] %v1482
        %1515 = vst [vmem:[#allocation2 + $0xd0] sm:$0xff] %v1483
        %1516 = vst [vmem:[#allocation2 + $0xd8] sm:$0xff] %v1484
        %1517 = vst [vmem:[#allocation2 + $0xe0] sm:$0xff] %v1485
        %1518 = vst [vmem:[#allocation2 + $0xe8] sm:$0xff] %v1486
        %1519 = vst [vmem:[#allocation2 + $0xf0] sm:$0xff] %v1487
        %1520 = vst [vmem:[#allocation2 + $0xf8] sm:$0xff] %v1488
        %v1521 = vld [vmem:[#allocation2] sm:$0xff]
        %v1522 = vld [vmem:[#allocation2 + $0x8] sm:$0xff]
        %v1523 = vld [vmem:[#allocation2 + $0x10] sm:$0xff]
        %v1524 = vld [vmem:[#allocation2 + $0x18] sm:$0xff]
        %v1525 = vld [vmem:[#allocation2 + $0x20] sm:$0xff]
        %v1526 = vld [vmem:[#allocation2 + $0x28] sm:$0xff]
        %v1527 = vld [vmem:[#allocation2 + $0x30] sm:$0xff]
        %v1528 = vld [vmem:[#allocation2 + $0x38] sm:$0xff]
        %v1529 = vld [vmem:[#allocation2 + $0x40] sm:$0xff]
        %v1530 = vld [vmem:[#allocation2 + $0x48] sm:$0xff]
        %v1531 = vld [vmem:[#allocation2 + $0x50] sm:$0xff]
        %v1532 = vld [vmem:[#allocation2 + $0x58] sm:$0xff]
        %v1533 = vld [vmem:[#allocation2 + $0x60] sm:$0xff]
        %v1534 = vld [vmem:[#allocation2 + $0x68] sm:$0xff]
        %v1535 = vld [vmem:[#allocation2 + $0x70] sm:$0xff]
        %v1536 = vld [vmem:[#allocation2 + $0x78] sm:$0xff]
        %v1537 = vld [vmem:[#allocation2 + $0x80] sm:$0xff]
        %v1538 = vld [vmem:[#allocation2 + $0x88] sm:$0xff]
        %v1539 = vld [vmem:[#allocation2 + $0x90] sm:$0xff]
        %v1540 = vld [vmem:[#allocation2 + $0x98] sm:$0xff]
        %v1541 = vld [vmem:[#allocation2 + $0xa0] sm:$0xff]
        %v1542 = vld [vmem:[#allocation2 + $0xa8] sm:$0xff]
        %v1543 = vld [vmem:[#allocation2 + $0xb0] sm:$0xff]
        %v1544 = vld [vmem:[#allocation2 + $0xb8] sm:$0xff]
        %v1545 = vld [vmem:[#allocation2 + $0xc0] sm:$0xff]
        %v1546 = vld [vmem:[#allocation2 + $0xc8] sm:$0xff]
        %v1547 = vld [vmem:[#allocation2 + $0xd0] sm:$0xff]
        %v1548 = vld [vmem:[#allocation2 + $0xd8] sm:$0xff]
        %v1549 = vld [vmem:[#allocation2 + $0xe0] sm:$0xff]
        %v1550 = vld [vmem:[#allocation2 + $0xe8] sm:$0xff]
        %v1551 = vld [vmem:[#allocation2 + $0xf0] sm:$0xff]
        %v1552 = vld [vmem:[#allocation2 + $0xf8] sm:$0xff]
        %v1553 = vld [vmem:[%s333] sm:$0xe]
        %v1554 = vld [vmem:[%s333 + $0x4] sm:$0xf]
        %v1555 = vld [vmem:[%s333 + $0x8] sm:$0x1]
        %v1556 = vld [vmem:[%s333 + $0xc] sm:$0xe]
        %v1557 = vld [vmem:[%s333 + $0x10] sm:$0xf]
        %v1558 = vld [vmem:[%s333 + $0x14] sm:$0x1]
        %v1559 = vld [vmem:[%s333 + $0x18] sm:$0xe]
        %v1560 = vld [vmem:[%s333 + $0x1c] sm:$0xf]
        %v1561 = vld [vmem:[%s333 + $0x20] sm:$0x1]
        %v1562 = vld [vmem:[%s333 + $0x24] sm:$0xe]
        %v1563 = vld [vmem:[%s333 + $0x28] sm:$0xf]
        %v1564 = vld [vmem:[%s333 + $0x2c] sm:$0x1]
        %v1565 = vld [vmem:[%s333 + $0x30] sm:$0xe]
        %v1566 = vld [vmem:[%s333 + $0x34] sm:$0xf]
        %v1567 = vld [vmem:[%s333 + $0x38] sm:$0x1]
        %v1568 = vld [vmem:[%s333 + $0x3c] sm:$0xe]
        %v1569 = vld [vmem:[%s333 + $0x40] sm:$0xf]
        %v1570 = vld [vmem:[%s333 + $0x44] sm:$0x1]
        %v1571 = vld [vmem:[%s333 + $0x48] sm:$0xe]
        %v1572 = vld [vmem:[%s333 + $0x4c] sm:$0xf]
        %v1573 = vld [vmem:[%s333 + $0x50] sm:$0x1]
        %v1574 = vld [vmem:[%s333 + $0x54] sm:$0xe]
        %v1575 = vld [vmem:[%s333 + $0x58] sm:$0xf]
        %v1576 = vld [vmem:[%s333 + $0x5c] sm:$0x1]
        %v1577 = vld [vmem:[%s333 + $0x60] sm:$0xe]
        %v1578 = vld [vmem:[%s333 + $0x64] sm:$0xf]
        %v1579 = vld [vmem:[%s333 + $0x68] sm:$0x1]
        %v1580 = vld [vmem:[%s333 + $0x6c] sm:$0xe]
        %v1581 = vld [vmem:[%s333 + $0x70] sm:$0xf]
        %v1582 = vld [vmem:[%s333 + $0x74] sm:$0x1]
        %v1583 = vld [vmem:[%s333 + $0x78] sm:$0xe]
        %v1584 = vld [vmem:[%s333 + $0x7c] sm:$0xf]
        %v1585 = vld [vmem:[%s333 + $0x80] sm:$0x1]
        %v1586 = vld [vmem:[%s333 + $0x84] sm:$0xe]
        %v1587 = vld [vmem:[%s333 + $0x88] sm:$0xf]
        %v1588 = vld [vmem:[%s333 + $0x8c] sm:$0x1]
        %v1589 = vld [vmem:[%s333 + $0x90] sm:$0xe]
        %v1590 = vld [vmem:[%s333 + $0x94] sm:$0xf]
        %v1591 = vld [vmem:[%s333 + $0x98] sm:$0x1]
        %v1592 = vld [vmem:[%s333 + $0x9c] sm:$0xe]
        %v1593 = vld [vmem:[%s333 + $0xa0] sm:$0xf]
        %v1594 = vld [vmem:[%s333 + $0xa4] sm:$0x1]
        %v1595 = vld [vmem:[%s333 + $0xa8] sm:$0xe]
        %v1596 = vld [vmem:[%s333 + $0xac] sm:$0xf]
        %v1597 = vld [vmem:[%s333 + $0xb0] sm:$0x1]
        %v1598 = vld [vmem:[%s333 + $0xb4] sm:$0xe]
        %v1599 = vld [vmem:[%s333 + $0xb8] sm:$0xf]
        %v1600 = vld [vmem:[%s333 + $0xbc] sm:$0x1]
        %vm1649 = vcmask 1042432
        %vm1650 = vcmask 1046532
        %vm1651 = vmor %vm1649, %vm1650
        %v1652 = vrot.slane %v1553, 5
        %v1653 = vrot.slane %v1652, 4
        %v1654 = vrot.slane %v1554, 5
        %v1655 = vsel %vm1651, %v1653, %v1654
        %v1656 = vrot.slane %v1654, 4
        %v1657 = vrot.slane %v1555, 5
        %v1658 = vsel %vm1651, %v1656, %v1657
        %v1659 = vrot.slane %v1556, 5
        %v1660 = vrot.slane %v1659, 4
        %v1661 = vrot.slane %v1557, 5
        %v1662 = vsel %vm1651, %v1660, %v1661
        %v1663 = vrot.slane %v1661, 4
        %v1664 = vrot.slane %v1558, 5
        %v1665 = vsel %vm1651, %v1663, %v1664
        %v1666 = vrot.slane %v1559, 5
        %v1667 = vrot.slane %v1666, 4
        %v1668 = vrot.slane %v1560, 5
        %v1669 = vsel %vm1651, %v1667, %v1668
        %v1670 = vrot.slane %v1668, 4
        %v1671 = vrot.slane %v1561, 5
        %v1672 = vsel %vm1651, %v1670, %v1671
        %v1673 = vrot.slane %v1562, 5
        %v1674 = vrot.slane %v1673, 4
        %v1675 = vrot.slane %v1563, 5
        %v1676 = vsel %vm1651, %v1674, %v1675
        %v1677 = vrot.slane %v1675, 4
        %v1678 = vrot.slane %v1564, 5
        %v1679 = vsel %vm1651, %v1677, %v1678
        %v1680 = vrot.slane %v1565, 5
        %v1681 = vrot.slane %v1680, 4
        %v1682 = vrot.slane %v1566, 5
        %v1683 = vsel %vm1651, %v1681, %v1682
        %v1684 = vrot.slane %v1682, 4
        %v1685 = vrot.slane %v1567, 5
        %v1686 = vsel %vm1651, %v1684, %v1685
        %v1687 = vrot.slane %v1568, 5
        %v1688 = vrot.slane %v1687, 4
        %v1689 = vrot.slane %v1569, 5
        %v1690 = vsel %vm1651, %v1688, %v1689
        %v1691 = vrot.slane %v1689, 4
        %v1692 = vrot.slane %v1570, 5
        %v1693 = vsel %vm1651, %v1691, %v1692
        %v1694 = vrot.slane %v1571, 5
        %v1695 = vrot.slane %v1694, 4
        %v1696 = vrot.slane %v1572, 5
        %v1697 = vsel %vm1651, %v1695, %v1696
        %v1698 = vrot.slane %v1696, 4
        %v1699 = vrot.slane %v1573, 5
        %v1700 = vsel %vm1651, %v1698, %v1699
        %v1701 = vrot.slane %v1574, 5
        %v1702 = vrot.slane %v1701, 4
        %v1703 = vrot.slane %v1575, 5
        %v1704 = vsel %vm1651, %v1702, %v1703
        %v1705 = vrot.slane %v1703, 4
        %v1706 = vrot.slane %v1576, 5
        %v1707 = vsel %vm1651, %v1705, %v1706
        %v1708 = vrot.slane %v1577, 5
        %v1709 = vrot.slane %v1708, 4
        %v1710 = vrot.slane %v1578, 5
        %v1711 = vsel %vm1651, %v1709, %v1710
        %v1712 = vrot.slane %v1710, 4
        %v1713 = vrot.slane %v1579, 5
        %v1714 = vsel %vm1651, %v1712, %v1713
        %v1715 = vrot.slane %v1580, 5
        %v1716 = vrot.slane %v1715, 4
        %v1717 = vrot.slane %v1581, 5
        %v1718 = vsel %vm1651, %v1716, %v1717
        %v1719 = vrot.slane %v1717, 4
        %v1720 = vrot.slane %v1582, 5
        %v1721 = vsel %vm1651, %v1719, %v1720
        %v1722 = vrot.slane %v1583, 5
        %v1723 = vrot.slane %v1722, 4
        %v1724 = vrot.slane %v1584, 5
        %v1725 = vsel %vm1651, %v1723, %v1724
        %v1726 = vrot.slane %v1724, 4
        %v1727 = vrot.slane %v1585, 5
        %v1728 = vsel %vm1651, %v1726, %v1727
        %v1729 = vrot.slane %v1586, 5
        %v1730 = vrot.slane %v1729, 4
        %v1731 = vrot.slane %v1587, 5
        %v1732 = vsel %vm1651, %v1730, %v1731
        %v1733 = vrot.slane %v1731, 4
        %v1734 = vrot.slane %v1588, 5
        %v1735 = vsel %vm1651, %v1733, %v1734
        %v1736 = vrot.slane %v1589, 5
        %v1737 = vrot.slane %v1736, 4
        %v1738 = vrot.slane %v1590, 5
        %v1739 = vsel %vm1651, %v1737, %v1738
        %v1740 = vrot.slane %v1738, 4
        %v1741 = vrot.slane %v1591, 5
        %v1742 = vsel %vm1651, %v1740, %v1741
        %v1743 = vrot.slane %v1592, 5
        %v1744 = vrot.slane %v1743, 4
        %v1745 = vrot.slane %v1593, 5
        %v1746 = vsel %vm1651, %v1744, %v1745
        %v1747 = vrot.slane %v1745, 4
        %v1748 = vrot.slane %v1594, 5
        %v1749 = vsel %vm1651, %v1747, %v1748
        %v1750 = vrot.slane %v1595, 5
        %v1751 = vrot.slane %v1750, 4
        %v1752 = vrot.slane %v1596, 5
        %v1753 = vsel %vm1651, %v1751, %v1752
        %v1754 = vrot.slane %v1752, 4
        %v1755 = vrot.slane %v1597, 5
        %v1756 = vsel %vm1651, %v1754, %v1755
        %v1757 = vrot.slane %v1598, 5
        %v1758 = vrot.slane %v1757, 4
        %v1759 = vrot.slane %v1599, 5
        %v1760 = vsel %vm1651, %v1758, %v1759
        %v1761 = vrot.slane %v1759, 4
        %v1762 = vrot.slane %v1600, 5
        %v1763 = vsel %vm1651, %v1761, %v1762
        %v1764 = vld [vmem:[%s257 + $0x4] sm:$0x3]
        %v1765 = vunpack.c.l.b16 %v1655
        %v1766 = vunpack.c.l.b16 %v1658
        %v1767 = vunpack.c.l.b16 %v1662
        %v1768 = vunpack.c.l.b16 %v1665
        %v1769 = vunpack.c.l.b16 %v1669
        %v1770 = vunpack.c.l.b16 %v1672
        %v1771 = vunpack.c.l.b16 %v1676
        %v1772 = vunpack.c.l.b16 %v1679
        %v1773 = vunpack.c.l.b16 %v1683
        %v1774 = vunpack.c.l.b16 %v1686
        %v1775 = vunpack.c.l.b16 %v1690
        %v1776 = vunpack.c.l.b16 %v1693
        %v1777 = vunpack.c.l.b16 %v1697
        %v1778 = vunpack.c.l.b16 %v1700
        %v1779 = vunpack.c.l.b16 %v1704
        %v1780 = vunpack.c.l.b16 %v1707
        %v1781 = vunpack.c.l.b16 %v1711
        %v1782 = vunpack.c.l.b16 %v1714
        %v1783 = vunpack.c.l.b16 %v1718
        %v1784 = vunpack.c.l.b16 %v1721
        %v1785 = vunpack.c.l.b16 %v1725
        %v1786 = vunpack.c.l.b16 %v1728
        %v1787 = vunpack.c.l.b16 %v1732
        %v1788 = vunpack.c.l.b16 %v1735
        %v1789 = vunpack.c.l.b16 %v1739
        %v1790 = vunpack.c.l.b16 %v1742
        %v1791 = vunpack.c.l.b16 %v1746
        %v1792 = vunpack.c.l.b16 %v1749
        %v1793 = vunpack.c.l.b16 %v1753
        %v1794 = vunpack.c.l.b16 %v1756
        %v1795 = vunpack.c.l.b16 %v1760
        %v1796 = vunpack.c.l.b16 %v1763
        %v1797 = vpack.c.b16 %v1766, %v1765
        %v1798 = vpack.c.b16 %v1768, %v1767
        %v1799 = vpack.c.b16 %v1770, %v1769
        %v1800 = vpack.c.b16 %v1772, %v1771
        %v1801 = vpack.c.b16 %v1774, %v1773
        %v1802 = vpack.c.b16 %v1776, %v1775
        %v1803 = vpack.c.b16 %v1778, %v1777
        %v1804 = vpack.c.b16 %v1780, %v1779
        %v1805 = vpack.c.b16 %v1782, %v1781
        %v1806 = vpack.c.b16 %v1784, %v1783
        %v1807 = vpack.c.b16 %v1786, %v1785
        %v1808 = vpack.c.b16 %v1788, %v1787
        %v1809 = vpack.c.b16 %v1790, %v1789
        %v1810 = vpack.c.b16 %v1792, %v1791
        %v1811 = vpack.c.b16 %v1794, %v1793
        %v1812 = vpack.c.b16 %v1796, %v1795
        %v1814 = vsel %vm447, %v1797, 0
        %v1817 = vsel %vm447, %v1798, 0
        %v1820 = vsel %vm447, %v1799, 0
        %v1823 = vsel %vm447, %v1800, 0
        %v1826 = vsel %vm447, %v1801, 0
        %v1829 = vsel %vm447, %v1802, 0
        %v1832 = vsel %vm447, %v1803, 0
        %v1835 = vsel %vm447, %v1804, 0
        %v1838 = vsel %vm447, %v1805, 0
        %v1841 = vsel %vm447, %v1806, 0
        %v1844 = vsel %vm447, %v1807, 0
        %v1847 = vsel %vm447, %v1808, 0
        %v1850 = vsel %vm447, %v1809, 0
        %v1853 = vsel %vm447, %v1810, 0
        %v1856 = vsel %vm447, %v1811, 0
        %v1859 = vsel %vm447, %v1812, 0
        %v1862 = vsel %vm496, %v1764, 0
        %1864 = vmatprep.subr.bf16.mxu0 0
        %1865 = vmatpush1.bf16.msra.mxu0 %v1862
        %1866 = vmatprep.subr.bf16.mxu0 0
        %1867 = vmatpush1.bf16.msra.mxu0 0
        %1868 = vmatprep.subr.bf16.mxu0 0
        %1869 = vmatpush1.bf16.msra.mxu0 0
        %1870 = vmatprep.subr.bf16.mxu0 0
        %1871 = vmatpush1.bf16.msra.mxu0 0
        %1872 = vmatprep.subr.bf16.mxu0 0
        %1873 = vmatpush1.bf16.msra.mxu0 0
        %1874 = vmatprep.subr.bf16.mxu0 0
        %1875 = vmatpush1.bf16.msra.mxu0 0
        %1876 = vmatprep.subr.bf16.mxu0 0
        %1877 = vmatpush1.bf16.msra.mxu0 0
        %1878 = vmatprep.subr.bf16.mxu0 0
        %1879 = vmatpush1.bf16.msra.mxu0 0
        %1880 = vmatprep.subr.bf16.mxu0 0
        %1881 = vmatpush1.bf16.msra.mxu0 0
        %1882 = vmatprep.subr.bf16.mxu0 0
        %1883 = vmatpush1.bf16.msra.mxu0 0
        %1884 = vmatprep.subr.bf16.mxu0 0
        %1885 = vmatpush1.bf16.msra.mxu0 0
        %1886 = vmatprep.subr.bf16.mxu0 0
        %1887 = vmatpush1.bf16.msra.mxu0 0
        %1888 = vmatprep.subr.bf16.mxu0 0
        %1889 = vmatpush1.bf16.msra.mxu0 0
        %1890 = vmatprep.subr.bf16.mxu0 0
        %1891 = vmatpush1.bf16.msra.mxu0 0
        %1892 = vmatprep.subr.bf16.mxu0 0
        %1893 = vmatpush1.bf16.msra.mxu0 0
        %1894 = vmatprep.subr.bf16.mxu0 0
        %1895 = vmatpush1.bf16.msra.mxu0 0
        %1896 = vmatprep.mubr.bf16.mxu0 0
        %1897 = vmatmul.mubr.bf16.gmra.mrb[0].mxu0 %v1814
        %v1898 = vpop.f32.mrb[0].mxu0
        %v1899 = vadd.f32 0.0, %v1898
        %v1900 = vpop.f32.mrb[0].mxu0
        %v1901 = vpop.f32.mrb[0].mxu0
        %v1902 = vadd.f32 0.0, %v1901
        %v1903 = vpop.f32.mrb[0].mxu0
        %1904 = vmatprep.mubr.bf16.mxu0 0
        %1905 = vmatmul.mubr.bf16.gmra.mrb[0].mxu0 %v1817
        %v1906 = vpop.f32.mrb[0].mxu0
        %v1907 = vadd.f32 0.0, %v1906
        %v1908 = vpop.f32.mrb[0].mxu0
        %v1909 = vpop.f32.mrb[0].mxu0
        %v1910 = vadd.f32 0.0, %v1909
        %v1911 = vpop.f32.mrb[0].mxu0
        %1912 = vmatprep.mubr.bf16.mxu0 0
        %1913 = vmatmul.mubr.bf16.gmra.mrb[0].mxu0 %v1820
        %v1914 = vpop.f32.mrb[0].mxu0
        %v1915 = vadd.f32 0.0, %v1914
        %v1916 = vpop.f32.mrb[0].mxu0
        %v1917 = vpop.f32.mrb[0].mxu0
        %v1918 = vadd.f32 0.0, %v1917
        %v1919 = vpop.f32.mrb[0].mxu0
        %1920 = vmatprep.mubr.bf16.mxu0 0
        %1921 = vmatmul.mubr.bf16.gmra.mrb[0].mxu0 %v1823
        %v1922 = vpop.f32.mrb[0].mxu0
        %v1923 = vadd.f32 0.0, %v1922
        %v1924 = vpop.f32.mrb[0].mxu0
        %v1925 = vpop.f32.mrb[0].mxu0
        %v1926 = vadd.f32 0.0, %v1925
        %v1927 = vpop.f32.mrb[0].mxu0
        %1928 = vmatprep.mubr.bf16.mxu0 0
        %1929 = vmatmul.mubr.bf16.gmra.mrb[0].mxu0 %v1826
        %v1930 = vpop.f32.mrb[0].mxu0
        %v1931 = vadd.f32 0.0, %v1930
        %v1932 = vpop.f32.mrb[0].mxu0
        %v1933 = vpop.f32.mrb[0].mxu0
        %v1934 = vadd.f32 0.0, %v1933
        %v1935 = vpop.f32.mrb[0].mxu0
        %1936 = vmatprep.mubr.bf16.mxu0 0
        %1937 = vmatmul.mubr.bf16.gmra.mrb[0].mxu0 %v1829
        %v1938 = vpop.f32.mrb[0].mxu0
        %v1939 = vadd.f32 0.0, %v1938
        %v1940 = vpop.f32.mrb[0].mxu0
        %v1941 = vpop.f32.mrb[0].mxu0
        %v1942 = vadd.f32 0.0, %v1941
        %v1943 = vpop.f32.mrb[0].mxu0
        %1944 = vmatprep.mubr.bf16.mxu0 0
        %1945 = vmatmul.mubr.bf16.gmra.mrb[0].mxu0 %v1832
        %v1946 = vpop.f32.mrb[0].mxu0
        %v1947 = vadd.f32 0.0, %v1946
        %v1948 = vpop.f32.mrb[0].mxu0
        %v1949 = vpop.f32.mrb[0].mxu0
        %v1950 = vadd.f32 0.0, %v1949
        %v1951 = vpop.f32.mrb[0].mxu0
        %1952 = vmatprep.mubr.bf16.mxu0 0
        %1953 = vmatmul.mubr.bf16.gmra.mrb[0].mxu0 %v1835
        %v1954 = vpop.f32.mrb[0].mxu0
        %v1955 = vadd.f32 0.0, %v1954
        %v1956 = vpop.f32.mrb[0].mxu0
        %v1957 = vpop.f32.mrb[0].mxu0
        %v1958 = vadd.f32 0.0, %v1957
        %v1959 = vpop.f32.mrb[0].mxu0
        %1960 = vmatprep.mubr.bf16.mxu0 0
        %1961 = vmatmul.mubr.bf16.gmra.mrb[0].mxu0 %v1838
        %v1962 = vpop.f32.mrb[0].mxu0
        %v1963 = vadd.f32 0.0, %v1962
        %v1964 = vpop.f32.mrb[0].mxu0
        %v1965 = vpop.f32.mrb[0].mxu0
        %v1966 = vadd.f32 0.0, %v1965
        %v1967 = vpop.f32.mrb[0].mxu0
        %1968 = vmatprep.mubr.bf16.mxu0 0
        %1969 = vmatmul.mubr.bf16.gmra.mrb[0].mxu0 %v1841
        %v1970 = vpop.f32.mrb[0].mxu0
        %v1971 = vadd.f32 0.0, %v1970
        %v1972 = vpop.f32.mrb[0].mxu0
        %v1973 = vpop.f32.mrb[0].mxu0
        %v1974 = vadd.f32 0.0, %v1973
        %v1975 = vpop.f32.mrb[0].mxu0
        %1976 = vmatprep.mubr.bf16.mxu0 0
        %1977 = vmatmul.mubr.bf16.gmra.mrb[0].mxu0 %v1844
        %v1978 = vpop.f32.mrb[0].mxu0
        %v1979 = vadd.f32 0.0, %v1978
        %v1980 = vpop.f32.mrb[0].mxu0
        %v1981 = vpop.f32.mrb[0].mxu0
        %v1982 = vadd.f32 0.0, %v1981
        %v1983 = vpop.f32.mrb[0].mxu0
        %1984 = vmatprep.mubr.bf16.mxu0 0
        %1985 = vmatmul.mubr.bf16.gmra.mrb[0].mxu0 %v1847
        %v1986 = vpop.f32.mrb[0].mxu0
        %v1987 = vadd.f32 0.0, %v1986
        %v1988 = vpop.f32.mrb[0].mxu0
        %v1989 = vpop.f32.mrb[0].mxu0
        %v1990 = vadd.f32 0.0, %v1989
        %v1991 = vpop.f32.mrb[0].mxu0
        %1992 = vmatprep.mubr.bf16.mxu0 0
        %1993 = vmatmul.mubr.bf16.gmra.mrb[0].mxu0 %v1850
        %v1994 = vpop.f32.mrb[0].mxu0
        %v1995 = vadd.f32 0.0, %v1994
        %v1996 = vpop.f32.mrb[0].mxu0
        %v1997 = vpop.f32.mrb[0].mxu0
        %v1998 = vadd.f32 0.0, %v1997
        %v1999 = vpop.f32.mrb[0].mxu0
        %2000 = vmatprep.mubr.bf16.mxu0 0
        %2001 = vmatmul.mubr.bf16.gmra.mrb[0].mxu0 %v1853
        %v2002 = vpop.f32.mrb[0].mxu0
        %v2003 = vadd.f32 0.0, %v2002
        %v2004 = vpop.f32.mrb[0].mxu0
        %v2005 = vpop.f32.mrb[0].mxu0
        %v2006 = vadd.f32 0.0, %v2005
        %v2007 = vpop.f32.mrb[0].mxu0
        %2008 = vmatprep.mubr.bf16.mxu0 0
        %2009 = vmatmul.mubr.bf16.gmra.mrb[0].mxu0 %v1856
        %v2010 = vpop.f32.mrb[0].mxu0
        %v2011 = vadd.f32 0.0, %v2010
        %v2012 = vpop.f32.mrb[0].mxu0
        %v2013 = vpop.f32.mrb[0].mxu0
        %v2014 = vadd.f32 0.0, %v2013
        %v2015 = vpop.f32.mrb[0].mxu0
        %2016 = vmatprep.mubr.bf16.mxu0 0
        %2017 = vmatmul.mubr.bf16.gmra.mrb[0].mxu0 %v1859
        %v2018 = vpop.f32.mrb[0].mxu0
        %v2019 = vadd.f32 0.0, %v2018
        %v2020 = vpop.f32.mrb[0].mxu0
        %v2021 = vpop.f32.mrb[0].mxu0
        %v2022 = vadd.f32 0.0, %v2021
        %v2023 = vpop.f32.mrb[0].mxu0
        %2024 = vdwg.mxu0
        %v2025 = vadd.f32 %v1521, %v1899
        %v2026 = vadd.f32 %v1522, %v1902
        %v2027 = vadd.f32 %v1523, %v1907
        %v2028 = vadd.f32 %v1524, %v1910
        %v2029 = vadd.f32 %v1525, %v1915
        %v2030 = vadd.f32 %v1526, %v1918
        %v2031 = vadd.f32 %v1527, %v1923
        %v2032 = vadd.f32 %v1528, %v1926
        %v2033 = vadd.f32 %v1529, %v1931
        %v2034 = vadd.f32 %v1530, %v1934
        %v2035 = vadd.f32 %v1531, %v1939
        %v2036 = vadd.f32 %v1532, %v1942
        %v2037 = vadd.f32 %v1533, %v1947
        %v2038 = vadd.f32 %v1534, %v1950
        %v2039 = vadd.f32 %v1535, %v1955
        %v2040 = vadd.f32 %v1536, %v1958
        %v2041 = vadd.f32 %v1537, %v1963
        %v2042 = vadd.f32 %v1538, %v1966
        %v2043 = vadd.f32 %v1539, %v1971
        %v2044 = vadd.f32 %v1540, %v1974
        %v2045 = vadd.f32 %v1541, %v1979
        %v2046 = vadd.f32 %v1542, %v1982
        %v2047 = vadd.f32 %v1543, %v1987
        %v2048 = vadd.f32 %v1544, %v1990
        %v2049 = vadd.f32 %v1545, %v1995
        %v2050 = vadd.f32 %v1546, %v1998
        %v2051 = vadd.f32 %v1547, %v2003
        %v2052 = vadd.f32 %v1548, %v2006
        %v2053 = vadd.f32 %v1549, %v2011
        %v2054 = vadd.f32 %v1550, %v2014
        %v2055 = vadd.f32 %v1551, %v2019
        %v2056 = vadd.f32 %v1552, %v2022
        %2057 = vst [vmem:[#allocation2] sm:$0xff] %v2025
        %2058 = vst [vmem:[#allocation2 + $0x8] sm:$0xff] %v2026
        %2059 = vst [vmem:[#allocation2 + $0x10] sm:$0xff] %v2027
        %2060 = vst [vmem:[#allocation2 + $0x18] sm:$0xff] %v2028
        %2061 = vst [vmem:[#allocation2 + $0x20] sm:$0xff] %v2029
        %2062 = vst [vmem:[#allocation2 + $0x28] sm:$0xff] %v2030
        %2063 = vst [vmem:[#allocation2 + $0x30] sm:$0xff] %v2031
        %2064 = vst [vmem:[#allocation2 + $0x38] sm:$0xff] %v2032
        %2065 = vst [vmem:[#allocation2 + $0x40] sm:$0xff] %v2033
        %2066 = vst [vmem:[#allocation2 + $0x48] sm:$0xff] %v2034
        %2067 = vst [vmem:[#allocation2 + $0x50] sm:$0xff] %v2035
        %2068 = vst [vmem:[#allocation2 + $0x58] sm:$0xff] %v2036
        %2069 = vst [vmem:[#allocation2 + $0x60] sm:$0xff] %v2037
        %2070 = vst [vmem:[#allocation2 + $0x68] sm:$0xff] %v2038
        %2071 = vst [vmem:[#allocation2 + $0x70] sm:$0xff] %v2039
        %2072 = vst [vmem:[#allocation2 + $0x78] sm:$0xff] %v2040
        %2073 = vst [vmem:[#allocation2 + $0x80] sm:$0xff] %v2041
        %2074 = vst [vmem:[#allocation2 + $0x88] sm:$0xff] %v2042
        %2075 = vst [vmem:[#allocation2 + $0x90] sm:$0xff] %v2043
        %2076 = vst [vmem:[#allocation2 + $0x98] sm:$0xff] %v2044
        %2077 = vst [vmem:[#allocation2 + $0xa0] sm:$0xff] %v2045
        %2078 = vst [vmem:[#allocation2 + $0xa8] sm:$0xff] %v2046
        %2079 = vst [vmem:[#allocation2 + $0xb0] sm:$0xff] %v2047
        %2080 = vst [vmem:[#allocation2 + $0xb8] sm:$0xff] %v2048
        %2081 = vst [vmem:[#allocation2 + $0xc0] sm:$0xff] %v2049
        %2082 = vst [vmem:[#allocation2 + $0xc8] sm:$0xff] %v2050
        %2083 = vst [vmem:[#allocation2 + $0xd0] sm:$0xff] %v2051
        %2084 = vst [vmem:[#allocation2 + $0xd8] sm:$0xff] %v2052
        %2085 = vst [vmem:[#allocation2 + $0xe0] sm:$0xff] %v2053
        %2086 = vst [vmem:[#allocation2 + $0xe8] sm:$0xff] %v2054
        %2087 = vst [vmem:[#allocation2 + $0xf0] sm:$0xff] %v2055
        %2088 = vst [vmem:[#allocation2 + $0xf8] sm:$0xff] %v2056
        %v2089 = vld [vmem:[#allocation2] sm:$0xff]
        %v2090 = vld [vmem:[#allocation2 + $0x8] sm:$0xff]
        %v2091 = vld [vmem:[#allocation2 + $0x10] sm:$0xff]
        %v2092 = vld [vmem:[#allocation2 + $0x18] sm:$0xff]
        %v2093 = vld [vmem:[#allocation2 + $0x20] sm:$0xff]
        %v2094 = vld [vmem:[#allocation2 + $0x28] sm:$0xff]
        %v2095 = vld [vmem:[#allocation2 + $0x30] sm:$0xff]
        %v2096 = vld [vmem:[#allocation2 + $0x38] sm:$0xff]
        %v2097 = vld [vmem:[#allocation2 + $0x40] sm:$0xff]
        %v2098 = vld [vmem:[#allocation2 + $0x48] sm:$0xff]
        %v2099 = vld [vmem:[#allocation2 + $0x50] sm:$0xff]
        %v2100 = vld [vmem:[#allocation2 + $0x58] sm:$0xff]
        %v2101 = vld [vmem:[#allocation2 + $0x60] sm:$0xff]
        %v2102 = vld [vmem:[#allocation2 + $0x68] sm:$0xff]
        %v2103 = vld [vmem:[#allocation2 + $0x70] sm:$0xff]
        %v2104 = vld [vmem:[#allocation2 + $0x78] sm:$0xff]
        %v2105 = vld [vmem:[#allocation2 + $0x80] sm:$0xff]
        %v2106 = vld [vmem:[#allocation2 + $0x88] sm:$0xff]
        %v2107 = vld [vmem:[#allocation2 + $0x90] sm:$0xff]
        %v2108 = vld [vmem:[#allocation2 + $0x98] sm:$0xff]
        %v2109 = vld [vmem:[#allocation2 + $0xa0] sm:$0xff]
        %v2110 = vld [vmem:[#allocation2 + $0xa8] sm:$0xff]
        %v2111 = vld [vmem:[#allocation2 + $0xb0] sm:$0xff]
        %v2112 = vld [vmem:[#allocation2 + $0xb8] sm:$0xff]
        %v2113 = vld [vmem:[#allocation2 + $0xc0] sm:$0xff]
        %v2114 = vld [vmem:[#allocation2 + $0xc8] sm:$0xff]
        %v2115 = vld [vmem:[#allocation2 + $0xd0] sm:$0xff]
        %v2116 = vld [vmem:[#allocation2 + $0xd8] sm:$0xff]
        %v2117 = vld [vmem:[#allocation2 + $0xe0] sm:$0xff]
        %v2118 = vld [vmem:[#allocation2 + $0xe8] sm:$0xff]
        %v2119 = vld [vmem:[#allocation2 + $0xf0] sm:$0xff]
        %v2120 = vld [vmem:[#allocation2 + $0xf8] sm:$0xff]
        %s2121 = sadd.s32 %s266, 1
        %s2122 = smul.u32 %s2121, 3
        %s2123 = smul.addr %s2122, 4
        %s2124 = scalar_lea.vmem %s253, %s2123
        %v2125 = vld [vmem:[%s2124] sm:$0xf]
        %v2126 = vld [vmem:[%s2124 + $0x4] sm:$0xf]
        %v2127 = vld [vmem:[%s2124 + $0xc] sm:$0xf]
        %v2128 = vld [vmem:[%s2124 + $0x10] sm:$0xf]
        %v2129 = vld [vmem:[%s2124 + $0x18] sm:$0xf]
        %v2130 = vld [vmem:[%s2124 + $0x1c] sm:$0xf]
        %v2131 = vld [vmem:[%s2124 + $0x24] sm:$0xf]
        %v2132 = vld [vmem:[%s2124 + $0x28] sm:$0xf]
        %v2133 = vld [vmem:[%s2124 + $0x30] sm:$0xf]
        %v2134 = vld [vmem:[%s2124 + $0x34] sm:$0xf]
        %v2135 = vld [vmem:[%s2124 + $0x3c] sm:$0xf]
        %v2136 = vld [vmem:[%s2124 + $0x40] sm:$0xf]
        %v2137 = vld [vmem:[%s2124 + $0x48] sm:$0xf]
        %v2138 = vld [vmem:[%s2124 + $0x4c] sm:$0xf]
        %v2139 = vld [vmem:[%s2124 + $0x54] sm:$0xf]
        %v2140 = vld [vmem:[%s2124 + $0x58] sm:$0xf]
        %v2141 = vld [vmem:[%s2124 + $0x60] sm:$0xf]
        %v2142 = vld [vmem:[%s2124 + $0x64] sm:$0xf]
        %v2143 = vld [vmem:[%s2124 + $0x6c] sm:$0xf]
        %v2144 = vld [vmem:[%s2124 + $0x70] sm:$0xf]
        %v2145 = vld [vmem:[%s2124 + $0x78] sm:$0xf]
        %v2146 = vld [vmem:[%s2124 + $0x7c] sm:$0xf]
        %v2147 = vld [vmem:[%s2124 + $0x84] sm:$0xf]
        %v2148 = vld [vmem:[%s2124 + $0x88] sm:$0xf]
        %v2149 = vld [vmem:[%s2124 + $0x90] sm:$0xf]
        %v2150 = vld [vmem:[%s2124 + $0x94] sm:$0xf]
        %v2151 = vld [vmem:[%s2124 + $0x9c] sm:$0xf]
        %v2152 = vld [vmem:[%s2124 + $0xa0] sm:$0xf]
        %v2153 = vld [vmem:[%s2124 + $0xa8] sm:$0xf]
        %v2154 = vld [vmem:[%s2124 + $0xac] sm:$0xf]
        %v2155 = vld [vmem:[%s2124 + $0xb4] sm:$0xf]
        %v2156 = vld [vmem:[%s2124 + $0xb8] sm:$0xf]
        %v2157 = vld [vmem:[%s257 + $0x4] sm:$0xc]
        %v2190 = vunpack.c.l.b16 %v2125
        %v2191 = vunpack.c.l.b16 %v2126
        %v2192 = vunpack.c.l.b16 %v2127
        %v2193 = vunpack.c.l.b16 %v2128
        %v2194 = vunpack.c.l.b16 %v2129
        %v2195 = vunpack.c.l.b16 %v2130
        %v2196 = vunpack.c.l.b16 %v2131
        %v2197 = vunpack.c.l.b16 %v2132
        %v2198 = vunpack.c.l.b16 %v2133
        %v2199 = vunpack.c.l.b16 %v2134
        %v2200 = vunpack.c.l.b16 %v2135
        %v2201 = vunpack.c.l.b16 %v2136
        %v2202 = vunpack.c.l.b16 %v2137
        %v2203 = vunpack.c.l.b16 %v2138
        %v2204 = vunpack.c.l.b16 %v2139
        %v2205 = vunpack.c.l.b16 %v2140
        %v2206 = vunpack.c.l.b16 %v2141
        %v2207 = vunpack.c.l.b16 %v2142
        %v2208 = vunpack.c.l.b16 %v2143
        %v2209 = vunpack.c.l.b16 %v2144
        %v2210 = vunpack.c.l.b16 %v2145
        %v2211 = vunpack.c.l.b16 %v2146
        %v2212 = vunpack.c.l.b16 %v2147
        %v2213 = vunpack.c.l.b16 %v2148
        %v2214 = vunpack.c.l.b16 %v2149
        %v2215 = vunpack.c.l.b16 %v2150
        %v2216 = vunpack.c.l.b16 %v2151
        %v2217 = vunpack.c.l.b16 %v2152
        %v2218 = vunpack.c.l.b16 %v2153
        %v2219 = vunpack.c.l.b16 %v2154
        %v2220 = vunpack.c.l.b16 %v2155
        %v2221 = vunpack.c.l.b16 %v2156
        %v2222 = vpack.c.b16 %v2191, %v2190
        %v2223 = vpack.c.b16 %v2193, %v2192
        %v2224 = vpack.c.b16 %v2195, %v2194
        %v2225 = vpack.c.b16 %v2197, %v2196
        %v2226 = vpack.c.b16 %v2199, %v2198
        %v2227 = vpack.c.b16 %v2201, %v2200
        %v2228 = vpack.c.b16 %v2203, %v2202
        %v2229 = vpack.c.b16 %v2205, %v2204
        %v2230 = vpack.c.b16 %v2207, %v2206
        %v2231 = vpack.c.b16 %v2209, %v2208
        %v2232 = vpack.c.b16 %v2211, %v2210
        %v2233 = vpack.c.b16 %v2213, %v2212
        %v2234 = vpack.c.b16 %v2215, %v2214
        %v2235 = vpack.c.b16 %v2217, %v2216
        %v2236 = vpack.c.b16 %v2219, %v2218
        %v2237 = vpack.c.b16 %v2221, %v2220
        %v2239 = vunpack.c.l.b16 %v2157
        %v2240 = vpack.c.b16 %v2239, %v2239
        %v2241 = vrot.slane %v2240, 2
        %v2243 = vsel %vm447, %v2222, 0
        %v2246 = vsel %vm447, %v2223, 0
        %v2249 = vsel %vm447, %v2224, 0
        %v2252 = vsel %vm447, %v2225, 0
        %v2255 = vsel %vm447, %v2226, 0
        %v2258 = vsel %vm447, %v2227, 0
        %v2261 = vsel %vm447, %v2228, 0
        %v2264 = vsel %vm447, %v2229, 0
        %v2267 = vsel %vm447, %v2230, 0
        %v2270 = vsel %vm447, %v2231, 0
        %v2273 = vsel %vm447, %v2232, 0
        %v2276 = vsel %vm447, %v2233, 0
        %v2279 = vsel %vm447, %v2234, 0
        %v2282 = vsel %vm447, %v2235, 0
        %v2285 = vsel %vm447, %v2236, 0
        %v2288 = vsel %vm447, %v2237, 0
        %v2291 = vsel %vm496, %v2241, 0
        %2293 = vmatprep.subr.bf16.mxu0 0
        %2294 = vmatpush1.bf16.msra.mxu0 %v2291
        %2295 = vmatprep.subr.bf16.mxu0 0
        %2296 = vmatpush1.bf16.msra.mxu0 0
        %2297 = vmatprep.subr.bf16.mxu0 0
        %2298 = vmatpush1.bf16.msra.mxu0 0
        %2299 = vmatprep.subr.bf16.mxu0 0
        %2300 = vmatpush1.bf16.msra.mxu0 0
        %2301 = vmatprep.subr.bf16.mxu0 0
        %2302 = vmatpush1.bf16.msra.mxu0 0
        %2303 = vmatprep.subr.bf16.mxu0 0
        %2304 = vmatpush1.bf16.msra.mxu0 0
        %2305 = vmatprep.subr.bf16.mxu0 0
        %2306 = vmatpush1.bf16.msra.mxu0 0
        %2307 = vmatprep.subr.bf16.mxu0 0
        %2308 = vmatpush1.bf16.msra.mxu0 0
        %2309 = vmatprep.subr.bf16.mxu0 0
        %2310 = vmatpush1.bf16.msra.mxu0 0
        %2311 = vmatprep.subr.bf16.mxu0 0
        %2312 = vmatpush1.bf16.msra.mxu0 0
        %2313 = vmatprep.subr.bf16.mxu0 0
        %2314 = vmatpush1.bf16.msra.mxu0 0
        %2315 = vmatprep.subr.bf16.mxu0 0
        %2316 = vmatpush1.bf16.msra.mxu0 0
        %2317 = vmatprep.subr.bf16.mxu0 0
        %2318 = vmatpush1.bf16.msra.mxu0 0
        %2319 = vmatprep.subr.bf16.mxu0 0
        %2320 = vmatpush1.bf16.msra.mxu0 0
        %2321 = vmatprep.subr.bf16.mxu0 0
        %2322 = vmatpush1.bf16.msra.mxu0 0
        %2323 = vmatprep.subr.bf16.mxu0 0
        %2324 = vmatpush1.bf16.msra.mxu0 0
        %2325 = vmatprep.mubr.bf16.mxu0 0
        %2326 = vmatmul.mubr.bf16.gmra.mrb[0].mxu0 %v2243
        %v2327 = vpop.f32.mrb[0].mxu0
        %v2328 = vadd.f32 0.0, %v2327
        %v2329 = vpop.f32.mrb[0].mxu0
        %v2330 = vpop.f32.mrb[0].mxu0
        %v2331 = vadd.f32 0.0, %v2330
        %v2332 = vpop.f32.mrb[0].mxu0
        %2333 = vmatprep.mubr.bf16.mxu0 0
        %2334 = vmatmul.mubr.bf16.gmra.mrb[0].mxu0 %v2246
        %v2335 = vpop.f32.mrb[0].mxu0
        %v2336 = vadd.f32 0.0, %v2335
        %v2337 = vpop.f32.mrb[0].mxu0
        %v2338 = vpop.f32.mrb[0].mxu0
        %v2339 = vadd.f32 0.0, %v2338
        %v2340 = vpop.f32.mrb[0].mxu0
        %2341 = vmatprep.mubr.bf16.mxu0 0
        %2342 = vmatmul.mubr.bf16.gmra.mrb[0].mxu0 %v2249
        %v2343 = vpop.f32.mrb[0].mxu0
        %v2344 = vadd.f32 0.0, %v2343
        %v2345 = vpop.f32.mrb[0].mxu0
        %v2346 = vpop.f32.mrb[0].mxu0
        %v2347 = vadd.f32 0.0, %v2346
        %v2348 = vpop.f32.mrb[0].mxu0
        %2349 = vmatprep.mubr.bf16.mxu0 0
        %2350 = vmatmul.mubr.bf16.gmra.mrb[0].mxu0 %v2252
        %v2351 = vpop.f32.mrb[0].mxu0
        %v2352 = vadd.f32 0.0, %v2351
        %v2353 = vpop.f32.mrb[0].mxu0
        %v2354 = vpop.f32.mrb[0].mxu0
        %v2355 = vadd.f32 0.0, %v2354
        %v2356 = vpop.f32.mrb[0].mxu0
        %2357 = vmatprep.mubr.bf16.mxu0 0
        %2358 = vmatmul.mubr.bf16.gmra.mrb[0].mxu0 %v2255
        %v2359 = vpop.f32.mrb[0].mxu0
        %v2360 = vadd.f32 0.0, %v2359
        %v2361 = vpop.f32.mrb[0].mxu0
        %v2362 = vpop.f32.mrb[0].mxu0
        %v2363 = vadd.f32 0.0, %v2362
        %v2364 = vpop.f32.mrb[0].mxu0
        %2365 = vmatprep.mubr.bf16.mxu0 0
        %2366 = vmatmul.mubr.bf16.gmra.mrb[0].mxu0 %v2258
        %v2367 = vpop.f32.mrb[0].mxu0
        %v2368 = vadd.f32 0.0, %v2367
        %v2369 = vpop.f32.mrb[0].mxu0
        %v2370 = vpop.f32.mrb[0].mxu0
        %v2371 = vadd.f32 0.0, %v2370
        %v2372 = vpop.f32.mrb[0].mxu0
        %2373 = vmatprep.mubr.bf16.mxu0 0
        %2374 = vmatmul.mubr.bf16.gmra.mrb[0].mxu0 %v2261
        %v2375 = vpop.f32.mrb[0].mxu0
        %v2376 = vadd.f32 0.0, %v2375
        %v2377 = vpop.f32.mrb[0].mxu0
        %v2378 = vpop.f32.mrb[0].mxu0
        %v2379 = vadd.f32 0.0, %v2378
        %v2380 = vpop.f32.mrb[0].mxu0
        %2381 = vmatprep.mubr.bf16.mxu0 0
        %2382 = vmatmul.mubr.bf16.gmra.mrb[0].mxu0 %v2264
        %v2383 = vpop.f32.mrb[0].mxu0
        %v2384 = vadd.f32 0.0, %v2383
        %v2385 = vpop.f32.mrb[0].mxu0
        %v2386 = vpop.f32.mrb[0].mxu0
        %v2387 = vadd.f32 0.0, %v2386
        %v2388 = vpop.f32.mrb[0].mxu0
        %2389 = vmatprep.mubr.bf16.mxu0 0
        %2390 = vmatmul.mubr.bf16.gmra.mrb[0].mxu0 %v2267
        %v2391 = vpop.f32.mrb[0].mxu0
        %v2392 = vadd.f32 0.0, %v2391
        %v2393 = vpop.f32.mrb[0].mxu0
        %v2394 = vpop.f32.mrb[0].mxu0
        %v2395 = vadd.f32 0.0, %v2394
        %v2396 = vpop.f32.mrb[0].mxu0
        %2397 = vmatprep.mubr.bf16.mxu0 0
        %2398 = vmatmul.mubr.bf16.gmra.mrb[0].mxu0 %v2270
        %v2399 = vpop.f32.mrb[0].mxu0
        %v2400 = vadd.f32 0.0, %v2399
        %v2401 = vpop.f32.mrb[0].mxu0
        %v2402 = vpop.f32.mrb[0].mxu0
        %v2403 = vadd.f32 0.0, %v2402
        %v2404 = vpop.f32.mrb[0].mxu0
        %2405 = vmatprep.mubr.bf16.mxu0 0
        %2406 = vmatmul.mubr.bf16.gmra.mrb[0].mxu0 %v2273
        %v2407 = vpop.f32.mrb[0].mxu0
        %v2408 = vadd.f32 0.0, %v2407
        %v2409 = vpop.f32.mrb[0].mxu0
        %v2410 = vpop.f32.mrb[0].mxu0
        %v2411 = vadd.f32 0.0, %v2410
        %v2412 = vpop.f32.mrb[0].mxu0
        %2413 = vmatprep.mubr.bf16.mxu0 0
        %2414 = vmatmul.mubr.bf16.gmra.mrb[0].mxu0 %v2276
        %v2415 = vpop.f32.mrb[0].mxu0
        %v2416 = vadd.f32 0.0, %v2415
        %v2417 = vpop.f32.mrb[0].mxu0
        %v2418 = vpop.f32.mrb[0].mxu0
        %v2419 = vadd.f32 0.0, %v2418
        %v2420 = vpop.f32.mrb[0].mxu0
        %2421 = vmatprep.mubr.bf16.mxu0 0
        %2422 = vmatmul.mubr.bf16.gmra.mrb[0].mxu0 %v2279
        %v2423 = vpop.f32.mrb[0].mxu0
        %v2424 = vadd.f32 0.0, %v2423
        %v2425 = vpop.f32.mrb[0].mxu0
        %v2426 = vpop.f32.mrb[0].mxu0
        %v2427 = vadd.f32 0.0, %v2426
        %v2428 = vpop.f32.mrb[0].mxu0
        %2429 = vmatprep.mubr.bf16.mxu0 0
        %2430 = vmatmul.mubr.bf16.gmra.mrb[0].mxu0 %v2282
        %v2431 = vpop.f32.mrb[0].mxu0
        %v2432 = vadd.f32 0.0, %v2431
        %v2433 = vpop.f32.mrb[0].mxu0
        %v2434 = vpop.f32.mrb[0].mxu0
        %v2435 = vadd.f32 0.0, %v2434
        %v2436 = vpop.f32.mrb[0].mxu0
        %2437 = vmatprep.mubr.bf16.mxu0 0
        %2438 = vmatmul.mubr.bf16.gmra.mrb[0].mxu0 %v2285
        %v2439 = vpop.f32.mrb[0].mxu0
        %v2440 = vadd.f32 0.0, %v2439
        %v2441 = vpop.f32.mrb[0].mxu0
        %v2442 = vpop.f32.mrb[0].mxu0
        %v2443 = vadd.f32 0.0, %v2442
        %v2444 = vpop.f32.mrb[0].mxu0
        %2445 = vmatprep.mubr.bf16.mxu0 0
        %2446 = vmatmul.mubr.bf16.gmra.mrb[0].mxu0 %v2288
        %v2447 = vpop.f32.mrb[0].mxu0
        %v2448 = vadd.f32 0.0, %v2447
        %v2449 = vpop.f32.mrb[0].mxu0
        %v2450 = vpop.f32.mrb[0].mxu0
        %v2451 = vadd.f32 0.0, %v2450
        %v2452 = vpop.f32.mrb[0].mxu0
        %2453 = vdwg.mxu0
        %v2454 = vadd.f32 %v2089, %v2328
        %v2455 = vadd.f32 %v2090, %v2331
        %v2456 = vadd.f32 %v2091, %v2336
        %v2457 = vadd.f32 %v2092, %v2339
        %v2458 = vadd.f32 %v2093, %v2344
        %v2459 = vadd.f32 %v2094, %v2347
        %v2460 = vadd.f32 %v2095, %v2352
        %v2461 = vadd.f32 %v2096, %v2355
        %v2462 = vadd.f32 %v2097, %v2360
        %v2463 = vadd.f32 %v2098, %v2363
        %v2464 = vadd.f32 %v2099, %v2368
        %v2465 = vadd.f32 %v2100, %v2371
        %v2466 = vadd.f32 %v2101, %v2376
        %v2467 = vadd.f32 %v2102, %v2379
        %v2468 = vadd.f32 %v2103, %v2384
        %v2469 = vadd.f32 %v2104, %v2387
        %v2470 = vadd.f32 %v2105, %v2392
        %v2471 = vadd.f32 %v2106, %v2395
        %v2472 = vadd.f32 %v2107, %v2400
        %v2473 = vadd.f32 %v2108, %v2403
        %v2474 = vadd.f32 %v2109, %v2408
        %v2475 = vadd.f32 %v2110, %v2411
        %v2476 = vadd.f32 %v2111, %v2416
        %v2477 = vadd.f32 %v2112, %v2419
        %v2478 = vadd.f32 %v2113, %v2424
        %v2479 = vadd.f32 %v2114, %v2427
        %v2480 = vadd.f32 %v2115, %v2432
        %v2481 = vadd.f32 %v2116, %v2435
        %v2482 = vadd.f32 %v2117, %v2440
        %v2483 = vadd.f32 %v2118, %v2443
        %v2484 = vadd.f32 %v2119, %v2448
        %v2485 = vadd.f32 %v2120, %v2451
        %2486 = vst [vmem:[#allocation2] sm:$0xff] %v2454
        %2487 = vst [vmem:[#allocation2 + $0x8] sm:$0xff] %v2455
        %2488 = vst [vmem:[#allocation2 + $0x10] sm:$0xff] %v2456
        %2489 = vst [vmem:[#allocation2 + $0x18] sm:$0xff] %v2457
        %2490 = vst [vmem:[#allocation2 + $0x20] sm:$0xff] %v2458
        %2491 = vst [vmem:[#allocation2 + $0x28] sm:$0xff] %v2459
        %2492 = vst [vmem:[#allocation2 + $0x30] sm:$0xff] %v2460
        %2493 = vst [vmem:[#allocation2 + $0x38] sm:$0xff] %v2461
        %2494 = vst [vmem:[#allocation2 + $0x40] sm:$0xff] %v2462
        %2495 = vst [vmem:[#allocation2 + $0x48] sm:$0xff] %v2463
        %2496 = vst [vmem:[#allocation2 + $0x50] sm:$0xff] %v2464
        %2497 = vst [vmem:[#allocation2 + $0x58] sm:$0xff] %v2465
        %2498 = vst [vmem:[#allocation2 + $0x60] sm:$0xff] %v2466
        %2499 = vst [vmem:[#allocation2 + $0x68] sm:$0xff] %v2467
        %2500 = vst [vmem:[#allocation2 + $0x70] sm:$0xff] %v2468
        %2501 = vst [vmem:[#allocation2 + $0x78] sm:$0xff] %v2469
        %2502 = vst [vmem:[#allocation2 + $0x80] sm:$0xff] %v2470
        %2503 = vst [vmem:[#allocation2 + $0x88] sm:$0xff] %v2471
        %2504 = vst [vmem:[#allocation2 + $0x90] sm:$0xff] %v2472
        %2505 = vst [vmem:[#allocation2 + $0x98] sm:$0xff] %v2473
        %2506 = vst [vmem:[#allocation2 + $0xa0] sm:$0xff] %v2474
        %2507 = vst [vmem:[#allocation2 + $0xa8] sm:$0xff] %v2475
        %2508 = vst [vmem:[#allocation2 + $0xb0] sm:$0xff] %v2476
        %2509 = vst [vmem:[#allocation2 + $0xb8] sm:$0xff] %v2477
        %2510 = vst [vmem:[#allocation2 + $0xc0] sm:$0xff] %v2478
        %2511 = vst [vmem:[#allocation2 + $0xc8] sm:$0xff] %v2479
        %2512 = vst [vmem:[#allocation2 + $0xd0] sm:$0xff] %v2480
        %2513 = vst [vmem:[#allocation2 + $0xd8] sm:$0xff] %v2481
        %2514 = vst [vmem:[#allocation2 + $0xe0] sm:$0xff] %v2482
        %2515 = vst [vmem:[#allocation2 + $0xe8] sm:$0xff] %v2483
        %2516 = vst [vmem:[#allocation2 + $0xf0] sm:$0xff] %v2484
        %2517 = vst [vmem:[#allocation2 + $0xf8] sm:$0xff] %v2485
        %v2518 = vld [vmem:[#allocation2] sm:$0xff]
        %v2519 = vld [vmem:[#allocation2 + $0x8] sm:$0xff]
        %v2520 = vld [vmem:[#allocation2 + $0x10] sm:$0xff]
        %v2521 = vld [vmem:[#allocation2 + $0x18] sm:$0xff]
        %v2522 = vld [vmem:[#allocation2 + $0x20] sm:$0xff]
        %v2523 = vld [vmem:[#allocation2 + $0x28] sm:$0xff]
        %v2524 = vld [vmem:[#allocation2 + $0x30] sm:$0xff]
        %v2525 = vld [vmem:[#allocation2 + $0x38] sm:$0xff]
        %v2526 = vld [vmem:[#allocation2 + $0x40] sm:$0xff]
        %v2527 = vld [vmem:[#allocation2 + $0x48] sm:$0xff]
        %v2528 = vld [vmem:[#allocation2 + $0x50] sm:$0xff]
        %v2529 = vld [vmem:[#allocation2 + $0x58] sm:$0xff]
        %v2530 = vld [vmem:[#allocation2 + $0x60] sm:$0xff]
        %v2531 = vld [vmem:[#allocation2 + $0x68] sm:$0xff]
        %v2532 = vld [vmem:[#allocation2 + $0x70] sm:$0xff]
        %v2533 = vld [vmem:[#allocation2 + $0x78] sm:$0xff]
        %v2534 = vld [vmem:[#allocation2 + $0x80] sm:$0xff]
        %v2535 = vld [vmem:[#allocation2 + $0x88] sm:$0xff]
        %v2536 = vld [vmem:[#allocation2 + $0x90] sm:$0xff]
        %v2537 = vld [vmem:[#allocation2 + $0x98] sm:$0xff]
        %v2538 = vld [vmem:[#allocation2 + $0xa0] sm:$0xff]
        %v2539 = vld [vmem:[#allocation2 + $0xa8] sm:$0xff]
        %v2540 = vld [vmem:[#allocation2 + $0xb0] sm:$0xff]
        %v2541 = vld [vmem:[#allocation2 + $0xb8] sm:$0xff]
        %v2542 = vld [vmem:[#allocation2 + $0xc0] sm:$0xff]
        %v2543 = vld [vmem:[#allocation2 + $0xc8] sm:$0xff]
        %v2544 = vld [vmem:[#allocation2 + $0xd0] sm:$0xff]
        %v2545 = vld [vmem:[#allocation2 + $0xd8] sm:$0xff]
        %v2546 = vld [vmem:[#allocation2 + $0xe0] sm:$0xff]
        %v2547 = vld [vmem:[#allocation2 + $0xe8] sm:$0xff]
        %v2548 = vld [vmem:[#allocation2 + $0xf0] sm:$0xff]
        %v2549 = vld [vmem:[#allocation2 + $0xf8] sm:$0xff]
        %v2550 = vld [vmem:[%s2124] sm:$0xf]
        %v2551 = vld [vmem:[%s2124 + $0x4] sm:$0xf]
        %v2552 = vld [vmem:[%s2124 + $0x8] sm:$0x1]
        %v2553 = vld [vmem:[%s2124 + $0xc] sm:$0xf]
        %v2554 = vld [vmem:[%s2124 + $0x10] sm:$0xf]
        %v2555 = vld [vmem:[%s2124 + $0x14] sm:$0x1]
        %v2556 = vld [vmem:[%s2124 + $0x18] sm:$0xf]
        %v2557 = vld [vmem:[%s2124 + $0x1c] sm:$0xf]
        %v2558 = vld [vmem:[%s2124 + $0x20] sm:$0x1]
        %v2559 = vld [vmem:[%s2124 + $0x24] sm:$0xf]
        %v2560 = vld [vmem:[%s2124 + $0x28] sm:$0xf]
        %v2561 = vld [vmem:[%s2124 + $0x2c] sm:$0x1]
        %v2562 = vld [vmem:[%s2124 + $0x30] sm:$0xf]
        %v2563 = vld [vmem:[%s2124 + $0x34] sm:$0xf]
        %v2564 = vld [vmem:[%s2124 + $0x38] sm:$0x1]
        %v2565 = vld [vmem:[%s2124 + $0x3c] sm:$0xf]
        %v2566 = vld [vmem:[%s2124 + $0x40] sm:$0xf]
        %v2567 = vld [vmem:[%s2124 + $0x44] sm:$0x1]
        %v2568 = vld [vmem:[%s2124 + $0x48] sm:$0xf]
        %v2569 = vld [vmem:[%s2124 + $0x4c] sm:$0xf]
        %v2570 = vld [vmem:[%s2124 + $0x50] sm:$0x1]
        %v2571 = vld [vmem:[%s2124 + $0x54] sm:$0xf]
        %v2572 = vld [vmem:[%s2124 + $0x58] sm:$0xf]
        %v2573 = vld [vmem:[%s2124 + $0x5c] sm:$0x1]
        %v2574 = vld [vmem:[%s2124 + $0x60] sm:$0xf]
        %v2575 = vld [vmem:[%s2124 + $0x64] sm:$0xf]
        %v2576 = vld [vmem:[%s2124 + $0x68] sm:$0x1]
        %v2577 = vld [vmem:[%s2124 + $0x6c] sm:$0xf]
        %v2578 = vld [vmem:[%s2124 + $0x70] sm:$0xf]
        %v2579 = vld [vmem:[%s2124 + $0x74] sm:$0x1]
        %v2580 = vld [vmem:[%s2124 + $0x78] sm:$0xf]
        %v2581 = vld [vmem:[%s2124 + $0x7c] sm:$0xf]
        %v2582 = vld [vmem:[%s2124 + $0x80] sm:$0x1]
        %v2583 = vld [vmem:[%s2124 + $0x84] sm:$0xf]
        %v2584 = vld [vmem:[%s2124 + $0x88] sm:$0xf]
        %v2585 = vld [vmem:[%s2124 + $0x8c] sm:$0x1]
        %v2586 = vld [vmem:[%s2124 + $0x90] sm:$0xf]
        %v2587 = vld [vmem:[%s2124 + $0x94] sm:$0xf]
        %v2588 = vld [vmem:[%s2124 + $0x98] sm:$0x1]
        %v2589 = vld [vmem:[%s2124 + $0x9c] sm:$0xf]
        %v2590 = vld [vmem:[%s2124 + $0xa0] sm:$0xf]
        %v2591 = vld [vmem:[%s2124 + $0xa4] sm:$0x1]
        %v2592 = vld [vmem:[%s2124 + $0xa8] sm:$0xf]
        %v2593 = vld [vmem:[%s2124 + $0xac] sm:$0xf]
        %v2594 = vld [vmem:[%s2124 + $0xb0] sm:$0x1]
        %v2595 = vld [vmem:[%s2124 + $0xb4] sm:$0xf]
        %v2596 = vld [vmem:[%s2124 + $0xb8] sm:$0xf]
        %v2597 = vld [vmem:[%s2124 + $0xbc] sm:$0x1]
        %v2599 = vshrl.u32 %v2550, 16
        %v2601 = vrot.slane %v2599, 4
        %v2602 = vshll.u32 %v2550, 16
        %v2604 = vrot.slane %v2602, 5
        %v2605 = vor.u32 %v2601, %v2604
        %v2606 = vrot.slane %v2605, 4
        %v2608 = vshll.u32 %v2551, 16
        %v2610 = vrot.slane %v2608, 5
        %v2611 = vsel %vm807, %v2606, %v2610
        %v2612 = vshrl.u32 %v2551, 16
        %v2614 = vrot.slane %v2612, 4
        %v2615 = vor.u32 %v2614, %v2610
        %v2616 = vrot.slane %v2615, 4
        %v2618 = vshll.u32 %v2552, 16
        %v2620 = vrot.slane %v2618, 5
        %v2621 = vsel %vm807, %v2616, %v2620
        %v2623 = vshrl.u32 %v2553, 16
        %v2625 = vrot.slane %v2623, 4
        %v2626 = vshll.u32 %v2553, 16
        %v2628 = vrot.slane %v2626, 5
        %v2629 = vor.u32 %v2625, %v2628
        %v2630 = vrot.slane %v2629, 4
        %v2632 = vshll.u32 %v2554, 16
        %v2634 = vrot.slane %v2632, 5
        %v2635 = vsel %vm807, %v2630, %v2634
        %v2636 = vshrl.u32 %v2554, 16
        %v2638 = vrot.slane %v2636, 4
        %v2639 = vor.u32 %v2638, %v2634
        %v2640 = vrot.slane %v2639, 4
        %v2642 = vshll.u32 %v2555, 16
        %v2644 = vrot.slane %v2642, 5
        %v2645 = vsel %vm807, %v2640, %v2644
        %v2647 = vshrl.u32 %v2556, 16
        %v2649 = vrot.slane %v2647, 4
        %v2650 = vshll.u32 %v2556, 16
        %v2652 = vrot.slane %v2650, 5
        %v2653 = vor.u32 %v2649, %v2652
        %v2654 = vrot.slane %v2653, 4
        %v2656 = vshll.u32 %v2557, 16
        %v2658 = vrot.slane %v2656, 5
        %v2659 = vsel %vm807, %v2654, %v2658
        %v2660 = vshrl.u32 %v2557, 16
        %v2662 = vrot.slane %v2660, 4
        %v2663 = vor.u32 %v2662, %v2658
        %v2664 = vrot.slane %v2663, 4
        %v2666 = vshll.u32 %v2558, 16
        %v2668 = vrot.slane %v2666, 5
        %v2669 = vsel %vm807, %v2664, %v2668
        %v2671 = vshrl.u32 %v2559, 16
        %v2673 = vrot.slane %v2671, 4
        %v2674 = vshll.u32 %v2559, 16
        %v2676 = vrot.slane %v2674, 5
        %v2677 = vor.u32 %v2673, %v2676
        %v2678 = vrot.slane %v2677, 4
        %v2680 = vshll.u32 %v2560, 16
        %v2682 = vrot.slane %v2680, 5
        %v2683 = vsel %vm807, %v2678, %v2682
        %v2684 = vshrl.u32 %v2560, 16
        %v2686 = vrot.slane %v2684, 4
        %v2687 = vor.u32 %v2686, %v2682
        %v2688 = vrot.slane %v2687, 4
        %v2690 = vshll.u32 %v2561, 16
        %v2692 = vrot.slane %v2690, 5
        %v2693 = vsel %vm807, %v2688, %v2692
        %v2695 = vshrl.u32 %v2562, 16
        %v2697 = vrot.slane %v2695, 4
        %v2698 = vshll.u32 %v2562, 16
        %v2700 = vrot.slane %v2698, 5
        %v2701 = vor.u32 %v2697, %v2700
        %v2702 = vrot.slane %v2701, 4
        %v2704 = vshll.u32 %v2563, 16
        %v2706 = vrot.slane %v2704, 5
        %v2707 = vsel %vm807, %v2702, %v2706
        %v2708 = vshrl.u32 %v2563, 16
        %v2710 = vrot.slane %v2708, 4
        %v2711 = vor.u32 %v2710, %v2706
        %v2712 = vrot.slane %v2711, 4
        %v2714 = vshll.u32 %v2564, 16
        %v2716 = vrot.slane %v2714, 5
        %v2717 = vsel %vm807, %v2712, %v2716
        %v2719 = vshrl.u32 %v2565, 16
        %v2721 = vrot.slane %v2719, 4
        %v2722 = vshll.u32 %v2565, 16
        %v2724 = vrot.slane %v2722, 5
        %v2725 = vor.u32 %v2721, %v2724
        %v2726 = vrot.slane %v2725, 4
        %v2728 = vshll.u32 %v2566, 16
        %v2730 = vrot.slane %v2728, 5
        %v2731 = vsel %vm807, %v2726, %v2730
        %v2732 = vshrl.u32 %v2566, 16
        %v2734 = vrot.slane %v2732, 4
        %v2735 = vor.u32 %v2734, %v2730
        %v2736 = vrot.slane %v2735, 4
        %v2738 = vshll.u32 %v2567, 16
        %v2740 = vrot.slane %v2738, 5
        %v2741 = vsel %vm807, %v2736, %v2740
        %v2743 = vshrl.u32 %v2568, 16
        %v2745 = vrot.slane %v2743, 4
        %v2746 = vshll.u32 %v2568, 16
        %v2748 = vrot.slane %v2746, 5
        %v2749 = vor.u32 %v2745, %v2748
        %v2750 = vrot.slane %v2749, 4
        %v2752 = vshll.u32 %v2569, 16
        %v2754 = vrot.slane %v2752, 5
        %v2755 = vsel %vm807, %v2750, %v2754
        %v2756 = vshrl.u32 %v2569, 16
        %v2758 = vrot.slane %v2756, 4
        %v2759 = vor.u32 %v2758, %v2754
        %v2760 = vrot.slane %v2759, 4
        %v2762 = vshll.u32 %v2570, 16
        %v2764 = vrot.slane %v2762, 5
        %v2765 = vsel %vm807, %v2760, %v2764
        %v2767 = vshrl.u32 %v2571, 16
        %v2769 = vrot.slane %v2767, 4
        %v2770 = vshll.u32 %v2571, 16
        %v2772 = vrot.slane %v2770, 5
        %v2773 = vor.u32 %v2769, %v2772
        %v2774 = vrot.slane %v2773, 4
        %v2776 = vshll.u32 %v2572, 16
        %v2778 = vrot.slane %v2776, 5
        %v2779 = vsel %vm807, %v2774, %v2778
        %v2780 = vshrl.u32 %v2572, 16
        %v2782 = vrot.slane %v2780, 4
        %v2783 = vor.u32 %v2782, %v2778
        %v2784 = vrot.slane %v2783, 4
        %v2786 = vshll.u32 %v2573, 16
        %v2788 = vrot.slane %v2786, 5
        %v2789 = vsel %vm807, %v2784, %v2788
        %v2791 = vshrl.u32 %v2574, 16
        %v2793 = vrot.slane %v2791, 4
        %v2794 = vshll.u32 %v2574, 16
        %v2796 = vrot.slane %v2794, 5
        %v2797 = vor.u32 %v2793, %v2796
        %v2798 = vrot.slane %v2797, 4
        %v2800 = vshll.u32 %v2575, 16
        %v2802 = vrot.slane %v2800, 5
        %v2803 = vsel %vm807, %v2798, %v2802
        %v2804 = vshrl.u32 %v2575, 16
        %v2806 = vrot.slane %v2804, 4
        %v2807 = vor.u32 %v2806, %v2802
        %v2808 = vrot.slane %v2807, 4
        %v2810 = vshll.u32 %v2576, 16
        %v2812 = vrot.slane %v2810, 5
        %v2813 = vsel %vm807, %v2808, %v2812
        %v2815 = vshrl.u32 %v2577, 16
        %v2817 = vrot.slane %v2815, 4
        %v2818 = vshll.u32 %v2577, 16
        %v2820 = vrot.slane %v2818, 5
        %v2821 = vor.u32 %v2817, %v2820
        %v2822 = vrot.slane %v2821, 4
        %v2824 = vshll.u32 %v2578, 16
        %v2826 = vrot.slane %v2824, 5
        %v2827 = vsel %vm807, %v2822, %v2826
        %v2828 = vshrl.u32 %v2578, 16
        %v2830 = vrot.slane %v2828, 4
        %v2831 = vor.u32 %v2830, %v2826
        %v2832 = vrot.slane %v2831, 4
        %v2834 = vshll.u32 %v2579, 16
        %v2836 = vrot.slane %v2834, 5
        %v2837 = vsel %vm807, %v2832, %v2836
        %v2839 = vshrl.u32 %v2580, 16
        %v2841 = vrot.slane %v2839, 4
        %v2842 = vshll.u32 %v2580, 16
        %v2844 = vrot.slane %v2842, 5
        %v2845 = vor.u32 %v2841, %v2844
        %v2846 = vrot.slane %v2845, 4
        %v2848 = vshll.u32 %v2581, 16
        %v2850 = vrot.slane %v2848, 5
        %v2851 = vsel %vm807, %v2846, %v2850
        %v2852 = vshrl.u32 %v2581, 16
        %v2854 = vrot.slane %v2852, 4
        %v2855 = vor.u32 %v2854, %v2850
        %v2856 = vrot.slane %v2855, 4
        %v2858 = vshll.u32 %v2582, 16
        %v2860 = vrot.slane %v2858, 5
        %v2861 = vsel %vm807, %v2856, %v2860
        %v2863 = vshrl.u32 %v2583, 16
        %v2865 = vrot.slane %v2863, 4
        %v2866 = vshll.u32 %v2583, 16
        %v2868 = vrot.slane %v2866, 5
        %v2869 = vor.u32 %v2865, %v2868
        %v2870 = vrot.slane %v2869, 4
        %v2872 = vshll.u32 %v2584, 16
        %v2874 = vrot.slane %v2872, 5
        %v2875 = vsel %vm807, %v2870, %v2874
        %v2876 = vshrl.u32 %v2584, 16
        %v2878 = vrot.slane %v2876, 4
        %v2879 = vor.u32 %v2878, %v2874
        %v2880 = vrot.slane %v2879, 4
        %v2882 = vshll.u32 %v2585, 16
        %v2884 = vrot.slane %v2882, 5
        %v2885 = vsel %vm807, %v2880, %v2884
        %v2887 = vshrl.u32 %v2586, 16
        %v2889 = vrot.slane %v2887, 4
        %v2890 = vshll.u32 %v2586, 16
        %v2892 = vrot.slane %v2890, 5
        %v2893 = vor.u32 %v2889, %v2892
        %v2894 = vrot.slane %v2893, 4
        %v2896 = vshll.u32 %v2587, 16
        %v2898 = vrot.slane %v2896, 5
        %v2899 = vsel %vm807, %v2894, %v2898
        %v2900 = vshrl.u32 %v2587, 16
        %v2902 = vrot.slane %v2900, 4
        %v2903 = vor.u32 %v2902, %v2898
        %v2904 = vrot.slane %v2903, 4
        %v2906 = vshll.u32 %v2588, 16
        %v2908 = vrot.slane %v2906, 5
        %v2909 = vsel %vm807, %v2904, %v2908
        %v2911 = vshrl.u32 %v2589, 16
        %v2913 = vrot.slane %v2911, 4
        %v2914 = vshll.u32 %v2589, 16
        %v2916 = vrot.slane %v2914, 5
        %v2917 = vor.u32 %v2913, %v2916
        %v2918 = vrot.slane %v2917, 4
        %v2920 = vshll.u32 %v2590, 16
        %v2922 = vrot.slane %v2920, 5
        %v2923 = vsel %vm807, %v2918, %v2922
        %v2924 = vshrl.u32 %v2590, 16
        %v2926 = vrot.slane %v2924, 4
        %v2927 = vor.u32 %v2926, %v2922
        %v2928 = vrot.slane %v2927, 4
        %v2930 = vshll.u32 %v2591, 16
        %v2932 = vrot.slane %v2930, 5
        %v2933 = vsel %vm807, %v2928, %v2932
        %v2935 = vshrl.u32 %v2592, 16
        %v2937 = vrot.slane %v2935, 4
        %v2938 = vshll.u32 %v2592, 16
        %v2940 = vrot.slane %v2938, 5
        %v2941 = vor.u32 %v2937, %v2940
        %v2942 = vrot.slane %v2941, 4
        %v2944 = vshll.u32 %v2593, 16
        %v2946 = vrot.slane %v2944, 5
        %v2947 = vsel %vm807, %v2942, %v2946
        %v2948 = vshrl.u32 %v2593, 16
        %v2950 = vrot.slane %v2948, 4
        %v2951 = vor.u32 %v2950, %v2946
        %v2952 = vrot.slane %v2951, 4
        %v2954 = vshll.u32 %v2594, 16
        %v2956 = vrot.slane %v2954, 5
        %v2957 = vsel %vm807, %v2952, %v2956
        %v2959 = vshrl.u32 %v2595, 16
        %v2961 = vrot.slane %v2959, 4
        %v2962 = vshll.u32 %v2595, 16
        %v2964 = vrot.slane %v2962, 5
        %v2965 = vor.u32 %v2961, %v2964
        %v2966 = vrot.slane %v2965, 4
        %v2968 = vshll.u32 %v2596, 16
        %v2970 = vrot.slane %v2968, 5
        %v2971 = vsel %vm807, %v2966, %v2970
        %v2972 = vshrl.u32 %v2596, 16
        %v2974 = vrot.slane %v2972, 4
        %v2975 = vor.u32 %v2974, %v2970
        %v2976 = vrot.slane %v2975, 4
        %v2978 = vshll.u32 %v2597, 16
        %v2980 = vrot.slane %v2978, 5
        %v2981 = vsel %vm807, %v2976, %v2980
        %v2982 = vld [vmem:[%s257 + $0x8] sm:$0x3]
        %v2983 = vunpack.c.l.b16 %v2611
        %v2984 = vunpack.c.l.b16 %v2621
        %v2985 = vunpack.c.l.b16 %v2635
        %v2986 = vunpack.c.l.b16 %v2645
        %v2987 = vunpack.c.l.b16 %v2659
        %v2988 = vunpack.c.l.b16 %v2669
        %v2989 = vunpack.c.l.b16 %v2683
        %v2990 = vunpack.c.l.b16 %v2693
        %v2991 = vunpack.c.l.b16 %v2707
        %v2992 = vunpack.c.l.b16 %v2717
        %v2993 = vunpack.c.l.b16 %v2731
        %v2994 = vunpack.c.l.b16 %v2741
        %v2995 = vunpack.c.l.b16 %v2755
        %v2996 = vunpack.c.l.b16 %v2765
        %v2997 = vunpack.c.l.b16 %v2779
        %v2998 = vunpack.c.l.b16 %v2789
        %v2999 = vunpack.c.l.b16 %v2803
        %v3000 = vunpack.c.l.b16 %v2813
        %v3001 = vunpack.c.l.b16 %v2827
        %v3002 = vunpack.c.l.b16 %v2837
        %v3003 = vunpack.c.l.b16 %v2851
        %v3004 = vunpack.c.l.b16 %v2861
        %v3005 = vunpack.c.l.b16 %v2875
        %v3006 = vunpack.c.l.b16 %v2885
        %v3007 = vunpack.c.l.b16 %v2899
        %v3008 = vunpack.c.l.b16 %v2909
        %v3009 = vunpack.c.l.b16 %v2923
        %v3010 = vunpack.c.l.b16 %v2933
        %v3011 = vunpack.c.l.b16 %v2947
        %v3012 = vunpack.c.l.b16 %v2957
        %v3013 = vunpack.c.l.b16 %v2971
        %v3014 = vunpack.c.l.b16 %v2981
        %v3015 = vpack.c.b16 %v2984, %v2983
        %v3016 = vpack.c.b16 %v2986, %v2985
        %v3017 = vpack.c.b16 %v2988, %v2987
        %v3018 = vpack.c.b16 %v2990, %v2989
        %v3019 = vpack.c.b16 %v2992, %v2991
        %v3020 = vpack.c.b16 %v2994, %v2993
        %v3021 = vpack.c.b16 %v2996, %v2995
        %v3022 = vpack.c.b16 %v2998, %v2997
        %v3023 = vpack.c.b16 %v3000, %v2999
        %v3024 = vpack.c.b16 %v3002, %v3001
        %v3025 = vpack.c.b16 %v3004, %v3003
        %v3026 = vpack.c.b16 %v3006, %v3005
        %v3027 = vpack.c.b16 %v3008, %v3007
        %v3028 = vpack.c.b16 %v3010, %v3009
        %v3029 = vpack.c.b16 %v3012, %v3011
        %v3030 = vpack.c.b16 %v3014, %v3013
        %v3032 = vsel %vm447, %v3015, 0
        %v3035 = vsel %vm447, %v3016, 0
        %v3038 = vsel %vm447, %v3017, 0
        %v3041 = vsel %vm447, %v3018, 0
        %v3044 = vsel %vm447, %v3019, 0
        %v3047 = vsel %vm447, %v3020, 0
        %v3050 = vsel %vm447, %v3021, 0
        %v3053 = vsel %vm447, %v3022, 0
        %v3056 = vsel %vm447, %v3023, 0
        %v3059 = vsel %vm447, %v3024, 0
        %v3062 = vsel %vm447, %v3025, 0
        %v3065 = vsel %vm447, %v3026, 0
        %v3068 = vsel %vm447, %v3027, 0
        %v3071 = vsel %vm447, %v3028, 0
        %v3074 = vsel %vm447, %v3029, 0
        %v3077 = vsel %vm447, %v3030, 0
        %v3080 = vsel %vm496, %v2982, 0
        %3082 = vmatprep.subr.bf16.mxu0 0
        %3083 = vmatpush1.bf16.msra.mxu0 %v3080
        %3084 = vmatprep.subr.bf16.mxu0 0
        %3085 = vmatpush1.bf16.msra.mxu0 0
        %3086 = vmatprep.subr.bf16.mxu0 0
        %3087 = vmatpush1.bf16.msra.mxu0 0
        %3088 = vmatprep.subr.bf16.mxu0 0
        %3089 = vmatpush1.bf16.msra.mxu0 0
        %3090 = vmatprep.subr.bf16.mxu0 0
        %3091 = vmatpush1.bf16.msra.mxu0 0
        %3092 = vmatprep.subr.bf16.mxu0 0
        %3093 = vmatpush1.bf16.msra.mxu0 0
        %3094 = vmatprep.subr.bf16.mxu0 0
        %3095 = vmatpush1.bf16.msra.mxu0 0
        %3096 = vmatprep.subr.bf16.mxu0 0
        %3097 = vmatpush1.bf16.msra.mxu0 0
        %3098 = vmatprep.subr.bf16.mxu0 0
        %3099 = vmatpush1.bf16.msra.mxu0 0
        %3100 = vmatprep.subr.bf16.mxu0 0
        %3101 = vmatpush1.bf16.msra.mxu0 0
        %3102 = vmatprep.subr.bf16.mxu0 0
        %3103 = vmatpush1.bf16.msra.mxu0 0
        %3104 = vmatprep.subr.bf16.mxu0 0
        %3105 = vmatpush1.bf16.msra.mxu0 0
        %3106 = vmatprep.subr.bf16.mxu0 0
        %3107 = vmatpush1.bf16.msra.mxu0 0
        %3108 = vmatprep.subr.bf16.mxu0 0
        %3109 = vmatpush1.bf16.msra.mxu0 0
        %3110 = vmatprep.subr.bf16.mxu0 0
        %3111 = vmatpush1.bf16.msra.mxu0 0
        %3112 = vmatprep.subr.bf16.mxu0 0
        %3113 = vmatpush1.bf16.msra.mxu0 0
        %3114 = vmatprep.mubr.bf16.mxu0 0
        %3115 = vmatmul.mubr.bf16.gmra.mrb[0].mxu0 %v3032
        %v3116 = vpop.f32.mrb[0].mxu0
        %v3117 = vadd.f32 0.0, %v3116
        %v3118 = vpop.f32.mrb[0].mxu0
        %v3119 = vpop.f32.mrb[0].mxu0
        %v3120 = vadd.f32 0.0, %v3119
        %v3121 = vpop.f32.mrb[0].mxu0
        %3122 = vmatprep.mubr.bf16.mxu0 0
        %3123 = vmatmul.mubr.bf16.gmra.mrb[0].mxu0 %v3035
        %v3124 = vpop.f32.mrb[0].mxu0
        %v3125 = vadd.f32 0.0, %v3124
        %v3126 = vpop.f32.mrb[0].mxu0
        %v3127 = vpop.f32.mrb[0].mxu0
        %v3128 = vadd.f32 0.0, %v3127
        %v3129 = vpop.f32.mrb[0].mxu0
        %3130 = vmatprep.mubr.bf16.mxu0 0
        %3131 = vmatmul.mubr.bf16.gmra.mrb[0].mxu0 %v3038
        %v3132 = vpop.f32.mrb[0].mxu0
        %v3133 = vadd.f32 0.0, %v3132
        %v3134 = vpop.f32.mrb[0].mxu0
        %v3135 = vpop.f32.mrb[0].mxu0
        %v3136 = vadd.f32 0.0, %v3135
        %v3137 = vpop.f32.mrb[0].mxu0
        %3138 = vmatprep.mubr.bf16.mxu0 0
        %3139 = vmatmul.mubr.bf16.gmra.mrb[0].mxu0 %v3041
        %v3140 = vpop.f32.mrb[0].mxu0
        %v3141 = vadd.f32 0.0, %v3140
        %v3142 = vpop.f32.mrb[0].mxu0
        %v3143 = vpop.f32.mrb[0].mxu0
        %v3144 = vadd.f32 0.0, %v3143
        %v3145 = vpop.f32.mrb[0].mxu0
        %3146 = vmatprep.mubr.bf16.mxu0 0
        %3147 = vmatmul.mubr.bf16.gmra.mrb[0].mxu0 %v3044
        %v3148 = vpop.f32.mrb[0].mxu0
        %v3149 = vadd.f32 0.0, %v3148
        %v3150 = vpop.f32.mrb[0].mxu0
        %v3151 = vpop.f32.mrb[0].mxu0
        %v3152 = vadd.f32 0.0, %v3151
        %v3153 = vpop.f32.mrb[0].mxu0
        %3154 = vmatprep.mubr.bf16.mxu0 0
        %3155 = vmatmul.mubr.bf16.gmra.mrb[0].mxu0 %v3047
        %v3156 = vpop.f32.mrb[0].mxu0
        %v3157 = vadd.f32 0.0, %v3156
        %v3158 = vpop.f32.mrb[0].mxu0
        %v3159 = vpop.f32.mrb[0].mxu0
        %v3160 = vadd.f32 0.0, %v3159
        %v3161 = vpop.f32.mrb[0].mxu0
        %3162 = vmatprep.mubr.bf16.mxu0 0
        %3163 = vmatmul.mubr.bf16.gmra.mrb[0].mxu0 %v3050
        %v3164 = vpop.f32.mrb[0].mxu0
        %v3165 = vadd.f32 0.0, %v3164
        %v3166 = vpop.f32.mrb[0].mxu0
        %v3167 = vpop.f32.mrb[0].mxu0
        %v3168 = vadd.f32 0.0, %v3167
        %v3169 = vpop.f32.mrb[0].mxu0
        %3170 = vmatprep.mubr.bf16.mxu0 0
        %3171 = vmatmul.mubr.bf16.gmra.mrb[0].mxu0 %v3053
        %v3172 = vpop.f32.mrb[0].mxu0
        %v3173 = vadd.f32 0.0, %v3172
        %v3174 = vpop.f32.mrb[0].mxu0
        %v3175 = vpop.f32.mrb[0].mxu0
        %v3176 = vadd.f32 0.0, %v3175
        %v3177 = vpop.f32.mrb[0].mxu0
        %3178 = vmatprep.mubr.bf16.mxu0 0
        %3179 = vmatmul.mubr.bf16.gmra.mrb[0].mxu0 %v3056
        %v3180 = vpop.f32.mrb[0].mxu0
        %v3181 = vadd.f32 0.0, %v3180
        %v3182 = vpop.f32.mrb[0].mxu0
        %v3183 = vpop.f32.mrb[0].mxu0
        %v3184 = vadd.f32 0.0, %v3183
        %v3185 = vpop.f32.mrb[0].mxu0
        %3186 = vmatprep.mubr.bf16.mxu0 0
        %3187 = vmatmul.mubr.bf16.gmra.mrb[0].mxu0 %v3059
        %v3188 = vpop.f32.mrb[0].mxu0
        %v3189 = vadd.f32 0.0, %v3188
        %v3190 = vpop.f32.mrb[0].mxu0
        %v3191 = vpop.f32.mrb[0].mxu0
        %v3192 = vadd.f32 0.0, %v3191
        %v3193 = vpop.f32.mrb[0].mxu0
        %3194 = vmatprep.mubr.bf16.mxu0 0
        %3195 = vmatmul.mubr.bf16.gmra.mrb[0].mxu0 %v3062
        %v3196 = vpop.f32.mrb[0].mxu0
        %v3197 = vadd.f32 0.0, %v3196
        %v3198 = vpop.f32.mrb[0].mxu0
        %v3199 = vpop.f32.mrb[0].mxu0
        %v3200 = vadd.f32 0.0, %v3199
        %v3201 = vpop.f32.mrb[0].mxu0
        %3202 = vmatprep.mubr.bf16.mxu0 0
        %3203 = vmatmul.mubr.bf16.gmra.mrb[0].mxu0 %v3065
        %v3204 = vpop.f32.mrb[0].mxu0
        %v3205 = vadd.f32 0.0, %v3204
        %v3206 = vpop.f32.mrb[0].mxu0
        %v3207 = vpop.f32.mrb[0].mxu0
        %v3208 = vadd.f32 0.0, %v3207
        %v3209 = vpop.f32.mrb[0].mxu0
        %3210 = vmatprep.mubr.bf16.mxu0 0
        %3211 = vmatmul.mubr.bf16.gmra.mrb[0].mxu0 %v3068
        %v3212 = vpop.f32.mrb[0].mxu0
        %v3213 = vadd.f32 0.0, %v3212
        %v3214 = vpop.f32.mrb[0].mxu0
        %v3215 = vpop.f32.mrb[0].mxu0
        %v3216 = vadd.f32 0.0, %v3215
        %v3217 = vpop.f32.mrb[0].mxu0
        %3218 = vmatprep.mubr.bf16.mxu0 0
        %3219 = vmatmul.mubr.bf16.gmra.mrb[0].mxu0 %v3071
        %v3220 = vpop.f32.mrb[0].mxu0
        %v3221 = vadd.f32 0.0, %v3220
        %v3222 = vpop.f32.mrb[0].mxu0
        %v3223 = vpop.f32.mrb[0].mxu0
        %v3224 = vadd.f32 0.0, %v3223
        %v3225 = vpop.f32.mrb[0].mxu0
        %3226 = vmatprep.mubr.bf16.mxu0 0
        %3227 = vmatmul.mubr.bf16.gmra.mrb[0].mxu0 %v3074
        %v3228 = vpop.f32.mrb[0].mxu0
        %v3229 = vadd.f32 0.0, %v3228
        %v3230 = vpop.f32.mrb[0].mxu0
        %v3231 = vpop.f32.mrb[0].mxu0
        %v3232 = vadd.f32 0.0, %v3231
        %v3233 = vpop.f32.mrb[0].mxu0
        %3234 = vmatprep.mubr.bf16.mxu0 0
        %3235 = vmatmul.mubr.bf16.gmra.mrb[0].mxu0 %v3077
        %v3236 = vpop.f32.mrb[0].mxu0
        %v3237 = vadd.f32 0.0, %v3236
        %v3238 = vpop.f32.mrb[0].mxu0
        %v3239 = vpop.f32.mrb[0].mxu0
        %v3240 = vadd.f32 0.0, %v3239
        %v3241 = vpop.f32.mrb[0].mxu0
        %3242 = vdwg.mxu0
        %v3243 = vadd.f32 %v2518, %v3117
        %v3244 = vadd.f32 %v2519, %v3120
        %v3245 = vadd.f32 %v2520, %v3125
        %v3246 = vadd.f32 %v2521, %v3128
        %v3247 = vadd.f32 %v2522, %v3133
        %v3248 = vadd.f32 %v2523, %v3136
        %v3249 = vadd.f32 %v2524, %v3141
        %v3250 = vadd.f32 %v2525, %v3144
        %v3251 = vadd.f32 %v2526, %v3149
        %v3252 = vadd.f32 %v2527, %v3152
        %v3253 = vadd.f32 %v2528, %v3157
        %v3254 = vadd.f32 %v2529, %v3160
        %v3255 = vadd.f32 %v2530, %v3165
        %v3256 = vadd.f32 %v2531, %v3168
        %v3257 = vadd.f32 %v2532, %v3173
        %v3258 = vadd.f32 %v2533, %v3176
        %v3259 = vadd.f32 %v2534, %v3181
        %v3260 = vadd.f32 %v2535, %v3184
        %v3261 = vadd.f32 %v2536, %v3189
        %v3262 = vadd.f32 %v2537, %v3192
        %v3263 = vadd.f32 %v2538, %v3197
        %v3264 = vadd.f32 %v2539, %v3200
        %v3265 = vadd.f32 %v2540, %v3205
        %v3266 = vadd.f32 %v2541, %v3208
        %v3267 = vadd.f32 %v2542, %v3213
        %v3268 = vadd.f32 %v2543, %v3216
        %v3269 = vadd.f32 %v2544, %v3221
        %v3270 = vadd.f32 %v2545, %v3224
        %v3271 = vadd.f32 %v2546, %v3229
        %v3272 = vadd.f32 %v2547, %v3232
        %v3273 = vadd.f32 %v2548, %v3237
        %v3274 = vadd.f32 %v2549, %v3240
        %3275 = vst [vmem:[#allocation2] sm:$0xff] %v3243
        %3276 = vst [vmem:[#allocation2 + $0x8] sm:$0xff] %v3244
        %3277 = vst [vmem:[#allocation2 + $0x10] sm:$0xff] %v3245
        %3278 = vst [vmem:[#allocation2 + $0x18] sm:$0xff] %v3246
        %3279 = vst [vmem:[#allocation2 + $0x20] sm:$0xff] %v3247
        %3280 = vst [vmem:[#allocation2 + $0x28] sm:$0xff] %v3248
        %3281 = vst [vmem:[#allocation2 + $0x30] sm:$0xff] %v3249
        %3282 = vst [vmem:[#allocation2 + $0x38] sm:$0xff] %v3250
        %3283 = vst [vmem:[#allocation2 + $0x40] sm:$0xff] %v3251
        %3284 = vst [vmem:[#allocation2 + $0x48] sm:$0xff] %v3252
        %3285 = vst [vmem:[#allocation2 + $0x50] sm:$0xff] %v3253
        %3286 = vst [vmem:[#allocation2 + $0x58] sm:$0xff] %v3254
        %3287 = vst [vmem:[#allocation2 + $0x60] sm:$0xff] %v3255
        %3288 = vst [vmem:[#allocation2 + $0x68] sm:$0xff] %v3256
        %3289 = vst [vmem:[#allocation2 + $0x70] sm:$0xff] %v3257
        %3290 = vst [vmem:[#allocation2 + $0x78] sm:$0xff] %v3258
        %3291 = vst [vmem:[#allocation2 + $0x80] sm:$0xff] %v3259
        %3292 = vst [vmem:[#allocation2 + $0x88] sm:$0xff] %v3260
        %3293 = vst [vmem:[#allocation2 + $0x90] sm:$0xff] %v3261
        %3294 = vst [vmem:[#allocation2 + $0x98] sm:$0xff] %v3262
        %3295 = vst [vmem:[#allocation2 + $0xa0] sm:$0xff] %v3263
        %3296 = vst [vmem:[#allocation2 + $0xa8] sm:$0xff] %v3264
        %3297 = vst [vmem:[#allocation2 + $0xb0] sm:$0xff] %v3265
        %3298 = vst [vmem:[#allocation2 + $0xb8] sm:$0xff] %v3266
        %3299 = vst [vmem:[#allocation2 + $0xc0] sm:$0xff] %v3267
        %3300 = vst [vmem:[#allocation2 + $0xc8] sm:$0xff] %v3268
        %3301 = vst [vmem:[#allocation2 + $0xd0] sm:$0xff] %v3269
        %3302 = vst [vmem:[#allocation2 + $0xd8] sm:$0xff] %v3270
        %3303 = vst [vmem:[#allocation2 + $0xe0] sm:$0xff] %v3271
        %3304 = vst [vmem:[#allocation2 + $0xe8] sm:$0xff] %v3272
        %3305 = vst [vmem:[#allocation2 + $0xf0] sm:$0xff] %v3273
        %3306 = vst [vmem:[#allocation2 + $0xf8] sm:$0xff] %v3274
        %v3307 = vld [vmem:[#allocation2] sm:$0xff]
        %v3308 = vld [vmem:[#allocation2 + $0x8] sm:$0xff]
        %v3309 = vld [vmem:[#allocation2 + $0x10] sm:$0xff]
        %v3310 = vld [vmem:[#allocation2 + $0x18] sm:$0xff]
        %v3311 = vld [vmem:[#allocation2 + $0x20] sm:$0xff]
        %v3312 = vld [vmem:[#allocation2 + $0x28] sm:$0xff]
        %v3313 = vld [vmem:[#allocation2 + $0x30] sm:$0xff]
        %v3314 = vld [vmem:[#allocation2 + $0x38] sm:$0xff]
        %v3315 = vld [vmem:[#allocation2 + $0x40] sm:$0xff]
        %v3316 = vld [vmem:[#allocation2 + $0x48] sm:$0xff]
        %v3317 = vld [vmem:[#allocation2 + $0x50] sm:$0xff]
        %v3318 = vld [vmem:[#allocation2 + $0x58] sm:$0xff]
        %v3319 = vld [vmem:[#allocation2 + $0x60] sm:$0xff]
        %v3320 = vld [vmem:[#allocation2 + $0x68] sm:$0xff]
        %v3321 = vld [vmem:[#allocation2 + $0x70] sm:$0xff]
        %v3322 = vld [vmem:[#allocation2 + $0x78] sm:$0xff]
        %v3323 = vld [vmem:[#allocation2 + $0x80] sm:$0xff]
        %v3324 = vld [vmem:[#allocation2 + $0x88] sm:$0xff]
        %v3325 = vld [vmem:[#allocation2 + $0x90] sm:$0xff]
        %v3326 = vld [vmem:[#allocation2 + $0x98] sm:$0xff]
        %v3327 = vld [vmem:[#allocation2 + $0xa0] sm:$0xff]
        %v3328 = vld [vmem:[#allocation2 + $0xa8] sm:$0xff]
        %v3329 = vld [vmem:[#allocation2 + $0xb0] sm:$0xff]
        %v3330 = vld [vmem:[#allocation2 + $0xb8] sm:$0xff]
        %v3331 = vld [vmem:[#allocation2 + $0xc0] sm:$0xff]
        %v3332 = vld [vmem:[#allocation2 + $0xc8] sm:$0xff]
        %v3333 = vld [vmem:[#allocation2 + $0xd0] sm:$0xff]
        %v3334 = vld [vmem:[#allocation2 + $0xd8] sm:$0xff]
        %v3335 = vld [vmem:[#allocation2 + $0xe0] sm:$0xff]
        %v3336 = vld [vmem:[#allocation2 + $0xe8] sm:$0xff]
        %v3337 = vld [vmem:[#allocation2 + $0xf0] sm:$0xff]
        %v3338 = vld [vmem:[#allocation2 + $0xf8] sm:$0xff]
        %v3339 = vld [vmem:[%s2124] sm:$0xe]
        %v3340 = vld [vmem:[%s2124 + $0x4] sm:$0xf]
        %v3341 = vld [vmem:[%s2124 + $0x8] sm:$0x1]
        %v3342 = vld [vmem:[%s2124 + $0xc] sm:$0xe]
        %v3343 = vld [vmem:[%s2124 + $0x10] sm:$0xf]
        %v3344 = vld [vmem:[%s2124 + $0x14] sm:$0x1]
        %v3345 = vld [vmem:[%s2124 + $0x18] sm:$0xe]
        %v3346 = vld [vmem:[%s2124 + $0x1c] sm:$0xf]
        %v3347 = vld [vmem:[%s2124 + $0x20] sm:$0x1]
        %v3348 = vld [vmem:[%s2124 + $0x24] sm:$0xe]
        %v3349 = vld [vmem:[%s2124 + $0x28] sm:$0xf]
        %v3350 = vld [vmem:[%s2124 + $0x2c] sm:$0x1]
        %v3351 = vld [vmem:[%s2124 + $0x30] sm:$0xe]
        %v3352 = vld [vmem:[%s2124 + $0x34] sm:$0xf]
        %v3353 = vld [vmem:[%s2124 + $0x38] sm:$0x1]
        %v3354 = vld [vmem:[%s2124 + $0x3c] sm:$0xe]
        %v3355 = vld [vmem:[%s2124 + $0x40] sm:$0xf]
        %v3356 = vld [vmem:[%s2124 + $0x44] sm:$0x1]
        %v3357 = vld [vmem:[%s2124 + $0x48] sm:$0xe]
        %v3358 = vld [vmem:[%s2124 + $0x4c] sm:$0xf]
        %v3359 = vld [vmem:[%s2124 + $0x50] sm:$0x1]
        %v3360 = vld [vmem:[%s2124 + $0x54] sm:$0xe]
        %v3361 = vld [vmem:[%s2124 + $0x58] sm:$0xf]
        %v3362 = vld [vmem:[%s2124 + $0x5c] sm:$0x1]
        %v3363 = vld [vmem:[%s2124 + $0x60] sm:$0xe]
        %v3364 = vld [vmem:[%s2124 + $0x64] sm:$0xf]
        %v3365 = vld [vmem:[%s2124 + $0x68] sm:$0x1]
        %v3366 = vld [vmem:[%s2124 + $0x6c] sm:$0xe]
        %v3367 = vld [vmem:[%s2124 + $0x70] sm:$0xf]
        %v3368 = vld [vmem:[%s2124 + $0x74] sm:$0x1]
        %v3369 = vld [vmem:[%s2124 + $0x78] sm:$0xe]
        %v3370 = vld [vmem:[%s2124 + $0x7c] sm:$0xf]
        %v3371 = vld [vmem:[%s2124 + $0x80] sm:$0x1]
        %v3372 = vld [vmem:[%s2124 + $0x84] sm:$0xe]
        %v3373 = vld [vmem:[%s2124 + $0x88] sm:$0xf]
        %v3374 = vld [vmem:[%s2124 + $0x8c] sm:$0x1]
        %v3375 = vld [vmem:[%s2124 + $0x90] sm:$0xe]
        %v3376 = vld [vmem:[%s2124 + $0x94] sm:$0xf]
        %v3377 = vld [vmem:[%s2124 + $0x98] sm:$0x1]
        %v3378 = vld [vmem:[%s2124 + $0x9c] sm:$0xe]
        %v3379 = vld [vmem:[%s2124 + $0xa0] sm:$0xf]
        %v3380 = vld [vmem:[%s2124 + $0xa4] sm:$0x1]
        %v3381 = vld [vmem:[%s2124 + $0xa8] sm:$0xe]
        %v3382 = vld [vmem:[%s2124 + $0xac] sm:$0xf]
        %v3383 = vld [vmem:[%s2124 + $0xb0] sm:$0x1]
        %v3384 = vld [vmem:[%s2124 + $0xb4] sm:$0xe]
        %v3385 = vld [vmem:[%s2124 + $0xb8] sm:$0xf]
        %v3386 = vld [vmem:[%s2124 + $0xbc] sm:$0x1]
        %v3435 = vrot.slane %v3339, 5
        %v3436 = vrot.slane %v3435, 4
        %v3437 = vrot.slane %v3340, 5
        %v3438 = vsel %vm1651, %v3436, %v3437
        %v3439 = vrot.slane %v3437, 4
        %v3440 = vrot.slane %v3341, 5
        %v3441 = vsel %vm1651, %v3439, %v3440
        %v3442 = vrot.slane %v3342, 5
        %v3443 = vrot.slane %v3442, 4
        %v3444 = vrot.slane %v3343, 5
        %v3445 = vsel %vm1651, %v3443, %v3444
        %v3446 = vrot.slane %v3444, 4
        %v3447 = vrot.slane %v3344, 5
        %v3448 = vsel %vm1651, %v3446, %v3447
        %v3449 = vrot.slane %v3345, 5
        %v3450 = vrot.slane %v3449, 4
        %v3451 = vrot.slane %v3346, 5
        %v3452 = vsel %vm1651, %v3450, %v3451
        %v3453 = vrot.slane %v3451, 4
        %v3454 = vrot.slane %v3347, 5
        %v3455 = vsel %vm1651, %v3453, %v3454
        %v3456 = vrot.slane %v3348, 5
        %v3457 = vrot.slane %v3456, 4
        %v3458 = vrot.slane %v3349, 5
        %v3459 = vsel %vm1651, %v3457, %v3458
        %v3460 = vrot.slane %v3458, 4
        %v3461 = vrot.slane %v3350, 5
        %v3462 = vsel %vm1651, %v3460, %v3461
        %v3463 = vrot.slane %v3351, 5
        %v3464 = vrot.slane %v3463, 4
        %v3465 = vrot.slane %v3352, 5
        %v3466 = vsel %vm1651, %v3464, %v3465
        %v3467 = vrot.slane %v3465, 4
        %v3468 = vrot.slane %v3353, 5
        %v3469 = vsel %vm1651, %v3467, %v3468
        %v3470 = vrot.slane %v3354, 5
        %v3471 = vrot.slane %v3470, 4
        %v3472 = vrot.slane %v3355, 5
        %v3473 = vsel %vm1651, %v3471, %v3472
        %v3474 = vrot.slane %v3472, 4
        %v3475 = vrot.slane %v3356, 5
        %v3476 = vsel %vm1651, %v3474, %v3475
        %v3477 = vrot.slane %v3357, 5
        %v3478 = vrot.slane %v3477, 4
        %v3479 = vrot.slane %v3358, 5
        %v3480 = vsel %vm1651, %v3478, %v3479
        %v3481 = vrot.slane %v3479, 4
        %v3482 = vrot.slane %v3359, 5
        %v3483 = vsel %vm1651, %v3481, %v3482
        %v3484 = vrot.slane %v3360, 5
        %v3485 = vrot.slane %v3484, 4
        %v3486 = vrot.slane %v3361, 5
        %v3487 = vsel %vm1651, %v3485, %v3486
        %v3488 = vrot.slane %v3486, 4
        %v3489 = vrot.slane %v3362, 5
        %v3490 = vsel %vm1651, %v3488, %v3489
        %v3491 = vrot.slane %v3363, 5
        %v3492 = vrot.slane %v3491, 4
        %v3493 = vrot.slane %v3364, 5
        %v3494 = vsel %vm1651, %v3492, %v3493
        %v3495 = vrot.slane %v3493, 4
        %v3496 = vrot.slane %v3365, 5
        %v3497 = vsel %vm1651, %v3495, %v3496
        %v3498 = vrot.slane %v3366, 5
        %v3499 = vrot.slane %v3498, 4
        %v3500 = vrot.slane %v3367, 5
        %v3501 = vsel %vm1651, %v3499, %v3500
        %v3502 = vrot.slane %v3500, 4
        %v3503 = vrot.slane %v3368, 5
        %v3504 = vsel %vm1651, %v3502, %v3503
        %v3505 = vrot.slane %v3369, 5
        %v3506 = vrot.slane %v3505, 4
        %v3507 = vrot.slane %v3370, 5
        %v3508 = vsel %vm1651, %v3506, %v3507
        %v3509 = vrot.slane %v3507, 4
        %v3510 = vrot.slane %v3371, 5
        %v3511 = vsel %vm1651, %v3509, %v3510
        %v3512 = vrot.slane %v3372, 5
        %v3513 = vrot.slane %v3512, 4
        %v3514 = vrot.slane %v3373, 5
        %v3515 = vsel %vm1651, %v3513, %v3514
        %v3516 = vrot.slane %v3514, 4
        %v3517 = vrot.slane %v3374, 5
        %v3518 = vsel %vm1651, %v3516, %v3517
        %v3519 = vrot.slane %v3375, 5
        %v3520 = vrot.slane %v3519, 4
        %v3521 = vrot.slane %v3376, 5
        %v3522 = vsel %vm1651, %v3520, %v3521
        %v3523 = vrot.slane %v3521, 4
        %v3524 = vrot.slane %v3377, 5
        %v3525 = vsel %vm1651, %v3523, %v3524
        %v3526 = vrot.slane %v3378, 5
        %v3527 = vrot.slane %v3526, 4
        %v3528 = vrot.slane %v3379, 5
        %v3529 = vsel %vm1651, %v3527, %v3528
        %v3530 = vrot.slane %v3528, 4
        %v3531 = vrot.slane %v3380, 5
        %v3532 = vsel %vm1651, %v3530, %v3531
        %v3533 = vrot.slane %v3381, 5
        %v3534 = vrot.slane %v3533, 4
        %v3535 = vrot.slane %v3382, 5
        %v3536 = vsel %vm1651, %v3534, %v3535
        %v3537 = vrot.slane %v3535, 4
        %v3538 = vrot.slane %v3383, 5
        %v3539 = vsel %vm1651, %v3537, %v3538
        %v3540 = vrot.slane %v3384, 5
        %v3541 = vrot.slane %v3540, 4
        %v3542 = vrot.slane %v3385, 5
        %v3543 = vsel %vm1651, %v3541, %v3542
        %v3544 = vrot.slane %v3542, 4
        %v3545 = vrot.slane %v3386, 5
        %v3546 = vsel %vm1651, %v3544, %v3545
        %v3547 = vld [vmem:[%s257 + $0x8] sm:$0xc]
        %v3548 = vunpack.c.l.b16 %v3438
        %v3549 = vunpack.c.l.b16 %v3441
        %v3550 = vunpack.c.l.b16 %v3445
        %v3551 = vunpack.c.l.b16 %v3448
        %v3552 = vunpack.c.l.b16 %v3452
        %v3553 = vunpack.c.l.b16 %v3455
        %v3554 = vunpack.c.l.b16 %v3459
        %v3555 = vunpack.c.l.b16 %v3462
        %v3556 = vunpack.c.l.b16 %v3466
        %v3557 = vunpack.c.l.b16 %v3469
        %v3558 = vunpack.c.l.b16 %v3473
        %v3559 = vunpack.c.l.b16 %v3476
        %v3560 = vunpack.c.l.b16 %v3480
        %v3561 = vunpack.c.l.b16 %v3483
        %v3562 = vunpack.c.l.b16 %v3487
        %v3563 = vunpack.c.l.b16 %v3490
        %v3564 = vunpack.c.l.b16 %v3494
        %v3565 = vunpack.c.l.b16 %v3497
        %v3566 = vunpack.c.l.b16 %v3501
        %v3567 = vunpack.c.l.b16 %v3504
        %v3568 = vunpack.c.l.b16 %v3508
        %v3569 = vunpack.c.l.b16 %v3511
        %v3570 = vunpack.c.l.b16 %v3515
        %v3571 = vunpack.c.l.b16 %v3518
        %v3572 = vunpack.c.l.b16 %v3522
        %v3573 = vunpack.c.l.b16 %v3525
        %v3574 = vunpack.c.l.b16 %v3529
        %v3575 = vunpack.c.l.b16 %v3532
        %v3576 = vunpack.c.l.b16 %v3536
        %v3577 = vunpack.c.l.b16 %v3539
        %v3578 = vunpack.c.l.b16 %v3543
        %v3579 = vunpack.c.l.b16 %v3546
        %v3580 = vpack.c.b16 %v3549, %v3548
        %v3581 = vpack.c.b16 %v3551, %v3550
        %v3582 = vpack.c.b16 %v3553, %v3552
        %v3583 = vpack.c.b16 %v3555, %v3554
        %v3584 = vpack.c.b16 %v3557, %v3556
        %v3585 = vpack.c.b16 %v3559, %v3558
        %v3586 = vpack.c.b16 %v3561, %v3560
        %v3587 = vpack.c.b16 %v3563, %v3562
        %v3588 = vpack.c.b16 %v3565, %v3564
        %v3589 = vpack.c.b16 %v3567, %v3566
        %v3590 = vpack.c.b16 %v3569, %v3568
        %v3591 = vpack.c.b16 %v3571, %v3570
        %v3592 = vpack.c.b16 %v3573, %v3572
        %v3593 = vpack.c.b16 %v3575, %v3574
        %v3594 = vpack.c.b16 %v3577, %v3576
        %v3595 = vpack.c.b16 %v3579, %v3578
        %v3597 = vunpack.c.l.b16 %v3547
        %v3598 = vpack.c.b16 %v3597, %v3597
        %v3599 = vrot.slane %v3598, 2
        %v3601 = vsel %vm447, %v3580, 0
        %v3604 = vsel %vm447, %v3581, 0
        %v3607 = vsel %vm447, %v3582, 0
        %v3610 = vsel %vm447, %v3583, 0
        %v3613 = vsel %vm447, %v3584, 0
        %v3616 = vsel %vm447, %v3585, 0
        %v3619 = vsel %vm447, %v3586, 0
        %v3622 = vsel %vm447, %v3587, 0
        %v3625 = vsel %vm447, %v3588, 0
        %v3628 = vsel %vm447, %v3589, 0
        %v3631 = vsel %vm447, %v3590, 0
        %v3634 = vsel %vm447, %v3591, 0
        %v3637 = vsel %vm447, %v3592, 0
        %v3640 = vsel %vm447, %v3593, 0
        %v3643 = vsel %vm447, %v3594, 0
        %v3646 = vsel %vm447, %v3595, 0
        %v3649 = vsel %vm496, %v3599, 0
        %3651 = vmatprep.subr.bf16.mxu0 0
        %3652 = vmatpush1.bf16.msra.mxu0 %v3649
        %3653 = vmatprep.subr.bf16.mxu0 0
        %3654 = vmatpush1.bf16.msra.mxu0 0
        %3655 = vmatprep.subr.bf16.mxu0 0
        %3656 = vmatpush1.bf16.msra.mxu0 0
        %3657 = vmatprep.subr.bf16.mxu0 0
        %3658 = vmatpush1.bf16.msra.mxu0 0
        %3659 = vmatprep.subr.bf16.mxu0 0
        %3660 = vmatpush1.bf16.msra.mxu0 0
        %3661 = vmatprep.subr.bf16.mxu0 0
        %3662 = vmatpush1.bf16.msra.mxu0 0
        %3663 = vmatprep.subr.bf16.mxu0 0
        %3664 = vmatpush1.bf16.msra.mxu0 0
        %3665 = vmatprep.subr.bf16.mxu0 0
        %3666 = vmatpush1.bf16.msra.mxu0 0
        %3667 = vmatprep.subr.bf16.mxu0 0
        %3668 = vmatpush1.bf16.msra.mxu0 0
        %3669 = vmatprep.subr.bf16.mxu0 0
        %3670 = vmatpush1.bf16.msra.mxu0 0
        %3671 = vmatprep.subr.bf16.mxu0 0
        %3672 = vmatpush1.bf16.msra.mxu0 0
        %3673 = vmatprep.subr.bf16.mxu0 0
        %3674 = vmatpush1.bf16.msra.mxu0 0
        %3675 = vmatprep.subr.bf16.mxu0 0
        %3676 = vmatpush1.bf16.msra.mxu0 0
        %3677 = vmatprep.subr.bf16.mxu0 0
        %3678 = vmatpush1.bf16.msra.mxu0 0
        %3679 = vmatprep.subr.bf16.mxu0 0
        %3680 = vmatpush1.bf16.msra.mxu0 0
        %3681 = vmatprep.subr.bf16.mxu0 0
        %3682 = vmatpush1.bf16.msra.mxu0 0
        %3683 = vmatprep.mubr.bf16.mxu0 0
        %3684 = vmatmul.mubr.bf16.gmra.mrb[0].mxu0 %v3601
        %v3685 = vpop.f32.mrb[0].mxu0
        %v3686 = vadd.f32 0.0, %v3685
        %v3687 = vpop.f32.mrb[0].mxu0
        %v3688 = vpop.f32.mrb[0].mxu0
        %v3689 = vadd.f32 0.0, %v3688
        %v3690 = vpop.f32.mrb[0].mxu0
        %3691 = vmatprep.mubr.bf16.mxu0 0
        %3692 = vmatmul.mubr.bf16.gmra.mrb[0].mxu0 %v3604
        %v3693 = vpop.f32.mrb[0].mxu0
        %v3694 = vadd.f32 0.0, %v3693
        %v3695 = vpop.f32.mrb[0].mxu0
        %v3696 = vpop.f32.mrb[0].mxu0
        %v3697 = vadd.f32 0.0, %v3696
        %v3698 = vpop.f32.mrb[0].mxu0
        %3699 = vmatprep.mubr.bf16.mxu0 0
        %3700 = vmatmul.mubr.bf16.gmra.mrb[0].mxu0 %v3607
        %v3701 = vpop.f32.mrb[0].mxu0
        %v3702 = vadd.f32 0.0, %v3701
        %v3703 = vpop.f32.mrb[0].mxu0
        %v3704 = vpop.f32.mrb[0].mxu0
        %v3705 = vadd.f32 0.0, %v3704
        %v3706 = vpop.f32.mrb[0].mxu0
        %3707 = vmatprep.mubr.bf16.mxu0 0
        %3708 = vmatmul.mubr.bf16.gmra.mrb[0].mxu0 %v3610
        %v3709 = vpop.f32.mrb[0].mxu0
        %v3710 = vadd.f32 0.0, %v3709
        %v3711 = vpop.f32.mrb[0].mxu0
        %v3712 = vpop.f32.mrb[0].mxu0
        %v3713 = vadd.f32 0.0, %v3712
        %v3714 = vpop.f32.mrb[0].mxu0
        %3715 = vmatprep.mubr.bf16.mxu0 0
        %3716 = vmatmul.mubr.bf16.gmra.mrb[0].mxu0 %v3613
        %v3717 = vpop.f32.mrb[0].mxu0
        %v3718 = vadd.f32 0.0, %v3717
        %v3719 = vpop.f32.mrb[0].mxu0
        %v3720 = vpop.f32.mrb[0].mxu0
        %v3721 = vadd.f32 0.0, %v3720
        %v3722 = vpop.f32.mrb[0].mxu0
        %3723 = vmatprep.mubr.bf16.mxu0 0
        %3724 = vmatmul.mubr.bf16.gmra.mrb[0].mxu0 %v3616
        %v3725 = vpop.f32.mrb[0].mxu0
        %v3726 = vadd.f32 0.0, %v3725
        %v3727 = vpop.f32.mrb[0].mxu0
        %v3728 = vpop.f32.mrb[0].mxu0
        %v3729 = vadd.f32 0.0, %v3728
        %v3730 = vpop.f32.mrb[0].mxu0
        %3731 = vmatprep.mubr.bf16.mxu0 0
        %3732 = vmatmul.mubr.bf16.gmra.mrb[0].mxu0 %v3619
        %v3733 = vpop.f32.mrb[0].mxu0
        %v3734 = vadd.f32 0.0, %v3733
        %v3735 = vpop.f32.mrb[0].mxu0
        %v3736 = vpop.f32.mrb[0].mxu0
        %v3737 = vadd.f32 0.0, %v3736
        %v3738 = vpop.f32.mrb[0].mxu0
        %3739 = vmatprep.mubr.bf16.mxu0 0
        %3740 = vmatmul.mubr.bf16.gmra.mrb[0].mxu0 %v3622
        %v3741 = vpop.f32.mrb[0].mxu0
        %v3742 = vadd.f32 0.0, %v3741
        %v3743 = vpop.f32.mrb[0].mxu0
        %v3744 = vpop.f32.mrb[0].mxu0
        %v3745 = vadd.f32 0.0, %v3744
        %v3746 = vpop.f32.mrb[0].mxu0
        %3747 = vmatprep.mubr.bf16.mxu0 0
        %3748 = vmatmul.mubr.bf16.gmra.mrb[0].mxu0 %v3625
        %v3749 = vpop.f32.mrb[0].mxu0
        %v3750 = vadd.f32 0.0, %v3749
        %v3751 = vpop.f32.mrb[0].mxu0
        %v3752 = vpop.f32.mrb[0].mxu0
        %v3753 = vadd.f32 0.0, %v3752
        %v3754 = vpop.f32.mrb[0].mxu0
        %3755 = vmatprep.mubr.bf16.mxu0 0
        %3756 = vmatmul.mubr.bf16.gmra.mrb[0].mxu0 %v3628
        %v3757 = vpop.f32.mrb[0].mxu0
        %v3758 = vadd.f32 0.0, %v3757
        %v3759 = vpop.f32.mrb[0].mxu0
        %v3760 = vpop.f32.mrb[0].mxu0
        %v3761 = vadd.f32 0.0, %v3760
        %v3762 = vpop.f32.mrb[0].mxu0
        %3763 = vmatprep.mubr.bf16.mxu0 0
        %3764 = vmatmul.mubr.bf16.gmra.mrb[0].mxu0 %v3631
        %v3765 = vpop.f32.mrb[0].mxu0
        %v3766 = vadd.f32 0.0, %v3765
        %v3767 = vpop.f32.mrb[0].mxu0
        %v3768 = vpop.f32.mrb[0].mxu0
        %v3769 = vadd.f32 0.0, %v3768
        %v3770 = vpop.f32.mrb[0].mxu0
        %3771 = vmatprep.mubr.bf16.mxu0 0
        %3772 = vmatmul.mubr.bf16.gmra.mrb[0].mxu0 %v3634
        %v3773 = vpop.f32.mrb[0].mxu0
        %v3774 = vadd.f32 0.0, %v3773
        %v3775 = vpop.f32.mrb[0].mxu0
        %v3776 = vpop.f32.mrb[0].mxu0
        %v3777 = vadd.f32 0.0, %v3776
        %v3778 = vpop.f32.mrb[0].mxu0
        %3779 = vmatprep.mubr.bf16.mxu0 0
        %3780 = vmatmul.mubr.bf16.gmra.mrb[0].mxu0 %v3637
        %v3781 = vpop.f32.mrb[0].mxu0
        %v3782 = vadd.f32 0.0, %v3781
        %v3783 = vpop.f32.mrb[0].mxu0
        %v3784 = vpop.f32.mrb[0].mxu0
        %v3785 = vadd.f32 0.0, %v3784
        %v3786 = vpop.f32.mrb[0].mxu0
        %3787 = vmatprep.mubr.bf16.mxu0 0
        %3788 = vmatmul.mubr.bf16.gmra.mrb[0].mxu0 %v3640
        %v3789 = vpop.f32.mrb[0].mxu0
        %v3790 = vadd.f32 0.0, %v3789
        %v3791 = vpop.f32.mrb[0].mxu0
        %v3792 = vpop.f32.mrb[0].mxu0
        %v3793 = vadd.f32 0.0, %v3792
        %v3794 = vpop.f32.mrb[0].mxu0
        %3795 = vmatprep.mubr.bf16.mxu0 0
        %3796 = vmatmul.mubr.bf16.gmra.mrb[0].mxu0 %v3643
        %v3797 = vpop.f32.mrb[0].mxu0
        %v3798 = vadd.f32 0.0, %v3797
        %v3799 = vpop.f32.mrb[0].mxu0
        %v3800 = vpop.f32.mrb[0].mxu0
        %v3801 = vadd.f32 0.0, %v3800
        %v3802 = vpop.f32.mrb[0].mxu0
        %3803 = vmatprep.mubr.bf16.mxu0 0
        %3804 = vmatmul.mubr.bf16.gmra.mrb[0].mxu0 %v3646
        %v3805 = vpop.f32.mrb[0].mxu0
        %v3806 = vadd.f32 0.0, %v3805
        %v3807 = vpop.f32.mrb[0].mxu0
        %v3808 = vpop.f32.mrb[0].mxu0
        %v3809 = vadd.f32 0.0, %v3808
        %v3810 = vpop.f32.mrb[0].mxu0
        %3811 = vdwg.mxu0
        %v3812 = vadd.f32 %v3307, %v3686
        %v3813 = vadd.f32 %v3308, %v3689
        %v3814 = vadd.f32 %v3309, %v3694
        %v3815 = vadd.f32 %v3310, %v3697
        %v3816 = vadd.f32 %v3311, %v3702
        %v3817 = vadd.f32 %v3312, %v3705
        %v3818 = vadd.f32 %v3313, %v3710
        %v3819 = vadd.f32 %v3314, %v3713
        %v3820 = vadd.f32 %v3315, %v3718
        %v3821 = vadd.f32 %v3316, %v3721
        %v3822 = vadd.f32 %v3317, %v3726
        %v3823 = vadd.f32 %v3318, %v3729
        %v3824 = vadd.f32 %v3319, %v3734
        %v3825 = vadd.f32 %v3320, %v3737
        %v3826 = vadd.f32 %v3321, %v3742
        %v3827 = vadd.f32 %v3322, %v3745
        %v3828 = vadd.f32 %v3323, %v3750
        %v3829 = vadd.f32 %v3324, %v3753
        %v3830 = vadd.f32 %v3325, %v3758
        %v3831 = vadd.f32 %v3326, %v3761
        %v3832 = vadd.f32 %v3327, %v3766
        %v3833 = vadd.f32 %v3328, %v3769
        %v3834 = vadd.f32 %v3329, %v3774
        %v3835 = vadd.f32 %v3330, %v3777
        %v3836 = vadd.f32 %v3331, %v3782
        %v3837 = vadd.f32 %v3332, %v3785
        %v3838 = vadd.f32 %v3333, %v3790
        %v3839 = vadd.f32 %v3334, %v3793
        %v3840 = vadd.f32 %v3335, %v3798
        %v3841 = vadd.f32 %v3336, %v3801
        %v3842 = vadd.f32 %v3337, %v3806
        %v3843 = vadd.f32 %v3338, %v3809
        %3844 = vst [vmem:[#allocation2] sm:$0xff] %v3812
        %3845 = vst [vmem:[#allocation2 + $0x8] sm:$0xff] %v3813
        %3846 = vst [vmem:[#allocation2 + $0x10] sm:$0xff] %v3814
        %3847 = vst [vmem:[#allocation2 + $0x18] sm:$0xff] %v3815
        %3848 = vst [vmem:[#allocation2 + $0x20] sm:$0xff] %v3816
        %3849 = vst [vmem:[#allocation2 + $0x28] sm:$0xff] %v3817
        %3850 = vst [vmem:[#allocation2 + $0x30] sm:$0xff] %v3818
        %3851 = vst [vmem:[#allocation2 + $0x38] sm:$0xff] %v3819
        %3852 = vst [vmem:[#allocation2 + $0x40] sm:$0xff] %v3820
        %3853 = vst [vmem:[#allocation2 + $0x48] sm:$0xff] %v3821
        %3854 = vst [vmem:[#allocation2 + $0x50] sm:$0xff] %v3822
        %3855 = vst [vmem:[#allocation2 + $0x58] sm:$0xff] %v3823
        %3856 = vst [vmem:[#allocation2 + $0x60] sm:$0xff] %v3824
        %3857 = vst [vmem:[#allocation2 + $0x68] sm:$0xff] %v3825
        %3858 = vst [vmem:[#allocation2 + $0x70] sm:$0xff] %v3826
        %3859 = vst [vmem:[#allocation2 + $0x78] sm:$0xff] %v3827
        %3860 = vst [vmem:[#allocation2 + $0x80] sm:$0xff] %v3828
        %3861 = vst [vmem:[#allocation2 + $0x88] sm:$0xff] %v3829
        %3862 = vst [vmem:[#allocation2 + $0x90] sm:$0xff] %v3830
        %3863 = vst [vmem:[#allocation2 + $0x98] sm:$0xff] %v3831
        %3864 = vst [vmem:[#allocation2 + $0xa0] sm:$0xff] %v3832
        %3865 = vst [vmem:[#allocation2 + $0xa8] sm:$0xff] %v3833
        %3866 = vst [vmem:[#allocation2 + $0xb0] sm:$0xff] %v3834
        %3867 = vst [vmem:[#allocation2 + $0xb8] sm:$0xff] %v3835
        %3868 = vst [vmem:[#allocation2 + $0xc0] sm:$0xff] %v3836
        %3869 = vst [vmem:[#allocation2 + $0xc8] sm:$0xff] %v3837
        %3870 = vst [vmem:[#allocation2 + $0xd0] sm:$0xff] %v3838
        %3871 = vst [vmem:[#allocation2 + $0xd8] sm:$0xff] %v3839
        %3872 = vst [vmem:[#allocation2 + $0xe0] sm:$0xff] %v3840
        %3873 = vst [vmem:[#allocation2 + $0xe8] sm:$0xff] %v3841
        %3874 = vst [vmem:[#allocation2 + $0xf0] sm:$0xff] %v3842
        %3875 = vst [vmem:[#allocation2 + $0xf8] sm:$0xff] %v3843
        %v3876 = vld [vmem:[#allocation2] sm:$0xff]
        %v3877 = vld [vmem:[#allocation2 + $0x8] sm:$0xff]
        %v3878 = vld [vmem:[#allocation2 + $0x10] sm:$0xff]
        %v3879 = vld [vmem:[#allocation2 + $0x18] sm:$0xff]
        %v3880 = vld [vmem:[#allocation2 + $0x20] sm:$0xff]
        %v3881 = vld [vmem:[#allocation2 + $0x28] sm:$0xff]
        %v3882 = vld [vmem:[#allocation2 + $0x30] sm:$0xff]
        %v3883 = vld [vmem:[#allocation2 + $0x38] sm:$0xff]
        %v3884 = vld [vmem:[#allocation2 + $0x40] sm:$0xff]
        %v3885 = vld [vmem:[#allocation2 + $0x48] sm:$0xff]
        %v3886 = vld [vmem:[#allocation2 + $0x50] sm:$0xff]
        %v3887 = vld [vmem:[#allocation2 + $0x58] sm:$0xff]
        %v3888 = vld [vmem:[#allocation2 + $0x60] sm:$0xff]
        %v3889 = vld [vmem:[#allocation2 + $0x68] sm:$0xff]
        %v3890 = vld [vmem:[#allocation2 + $0x70] sm:$0xff]
        %v3891 = vld [vmem:[#allocation2 + $0x78] sm:$0xff]
        %v3892 = vld [vmem:[#allocation2 + $0x80] sm:$0xff]
        %v3893 = vld [vmem:[#allocation2 + $0x88] sm:$0xff]
        %v3894 = vld [vmem:[#allocation2 + $0x90] sm:$0xff]
        %v3895 = vld [vmem:[#allocation2 + $0x98] sm:$0xff]
        %v3896 = vld [vmem:[#allocation2 + $0xa0] sm:$0xff]
        %v3897 = vld [vmem:[#allocation2 + $0xa8] sm:$0xff]
        %v3898 = vld [vmem:[#allocation2 + $0xb0] sm:$0xff]
        %v3899 = vld [vmem:[#allocation2 + $0xb8] sm:$0xff]
        %v3900 = vld [vmem:[#allocation2 + $0xc0] sm:$0xff]
        %v3901 = vld [vmem:[#allocation2 + $0xc8] sm:$0xff]
        %v3902 = vld [vmem:[#allocation2 + $0xd0] sm:$0xff]
        %v3903 = vld [vmem:[#allocation2 + $0xd8] sm:$0xff]
        %v3904 = vld [vmem:[#allocation2 + $0xe0] sm:$0xff]
        %v3905 = vld [vmem:[#allocation2 + $0xe8] sm:$0xff]
        %v3906 = vld [vmem:[#allocation2 + $0xf0] sm:$0xff]
        %v3907 = vld [vmem:[#allocation2 + $0xf8] sm:$0xff]
        %s3908 = sadd.s32 %s266, 2
        %s3909 = smul.u32 %s3908, 3
        %s3910 = smul.addr %s3909, 4
        %s3911 = scalar_lea.vmem %s253, %s3910
        %v3912 = vld [vmem:[%s3911] sm:$0xf]
        %v3913 = vld [vmem:[%s3911 + $0x4] sm:$0xf]
        %v3914 = vld [vmem:[%s3911 + $0xc] sm:$0xf]
        %v3915 = vld [vmem:[%s3911 + $0x10] sm:$0xf]
        %v3916 = vld [vmem:[%s3911 + $0x18] sm:$0xf]
        %v3917 = vld [vmem:[%s3911 + $0x1c] sm:$0xf]
        %v3918 = vld [vmem:[%s3911 + $0x24] sm:$0xf]
        %v3919 = vld [vmem:[%s3911 + $0x28] sm:$0xf]
        %v3920 = vld [vmem:[%s3911 + $0x30] sm:$0xf]
        %v3921 = vld [vmem:[%s3911 + $0x34] sm:$0xf]
        %v3922 = vld [vmem:[%s3911 + $0x3c] sm:$0xf]
        %v3923 = vld [vmem:[%s3911 + $0x40] sm:$0xf]
        %v3924 = vld [vmem:[%s3911 + $0x48] sm:$0xf]
        %v3925 = vld [vmem:[%s3911 + $0x4c] sm:$0xf]
        %v3926 = vld [vmem:[%s3911 + $0x54] sm:$0xf]
        %v3927 = vld [vmem:[%s3911 + $0x58] sm:$0xf]
        %v3928 = vld [vmem:[%s3911 + $0x60] sm:$0xf]
        %v3929 = vld [vmem:[%s3911 + $0x64] sm:$0xf]
        %v3930 = vld [vmem:[%s3911 + $0x6c] sm:$0xf]
        %v3931 = vld [vmem:[%s3911 + $0x70] sm:$0xf]
        %v3932 = vld [vmem:[%s3911 + $0x78] sm:$0xf]
        %v3933 = vld [vmem:[%s3911 + $0x7c] sm:$0xf]
        %v3934 = vld [vmem:[%s3911 + $0x84] sm:$0xf]
        %v3935 = vld [vmem:[%s3911 + $0x88] sm:$0xf]
        %v3936 = vld [vmem:[%s3911 + $0x90] sm:$0xf]
        %v3937 = vld [vmem:[%s3911 + $0x94] sm:$0xf]
        %v3938 = vld [vmem:[%s3911 + $0x9c] sm:$0xf]
        %v3939 = vld [vmem:[%s3911 + $0xa0] sm:$0xf]
        %v3940 = vld [vmem:[%s3911 + $0xa8] sm:$0xf]
        %v3941 = vld [vmem:[%s3911 + $0xac] sm:$0xf]
        %v3942 = vld [vmem:[%s3911 + $0xb4] sm:$0xf]
        %v3943 = vld [vmem:[%s3911 + $0xb8] sm:$0xf]
        %v3944 = vld [vmem:[%s257 + $0xc] sm:$0x3]
        %v3977 = vunpack.c.l.b16 %v3912
        %v3978 = vunpack.c.l.b16 %v3913
        %v3979 = vunpack.c.l.b16 %v3914
        %v3980 = vunpack.c.l.b16 %v3915
        %v3981 = vunpack.c.l.b16 %v3916
        %v3982 = vunpack.c.l.b16 %v3917
        %v3983 = vunpack.c.l.b16 %v3918
        %v3984 = vunpack.c.l.b16 %v3919
        %v3985 = vunpack.c.l.b16 %v3920
        %v3986 = vunpack.c.l.b16 %v3921
        %v3987 = vunpack.c.l.b16 %v3922
        %v3988 = vunpack.c.l.b16 %v3923
        %v3989 = vunpack.c.l.b16 %v3924
        %v3990 = vunpack.c.l.b16 %v3925
        %v3991 = vunpack.c.l.b16 %v3926
        %v3992 = vunpack.c.l.b16 %v3927
        %v3993 = vunpack.c.l.b16 %v3928
        %v3994 = vunpack.c.l.b16 %v3929
        %v3995 = vunpack.c.l.b16 %v3930
        %v3996 = vunpack.c.l.b16 %v3931
        %v3997 = vunpack.c.l.b16 %v3932
        %v3998 = vunpack.c.l.b16 %v3933
        %v3999 = vunpack.c.l.b16 %v3934
        %v4000 = vunpack.c.l.b16 %v3935
        %v4001 = vunpack.c.l.b16 %v3936
        %v4002 = vunpack.c.l.b16 %v3937
        %v4003 = vunpack.c.l.b16 %v3938
        %v4004 = vunpack.c.l.b16 %v3939
        %v4005 = vunpack.c.l.b16 %v3940
        %v4006 = vunpack.c.l.b16 %v3941
        %v4007 = vunpack.c.l.b16 %v3942
        %v4008 = vunpack.c.l.b16 %v3943
        %v4009 = vpack.c.b16 %v3978, %v3977
        %v4010 = vpack.c.b16 %v3980, %v3979
        %v4011 = vpack.c.b16 %v3982, %v3981
        %v4012 = vpack.c.b16 %v3984, %v3983
        %v4013 = vpack.c.b16 %v3986, %v3985
        %v4014 = vpack.c.b16 %v3988, %v3987
        %v4015 = vpack.c.b16 %v3990, %v3989
        %v4016 = vpack.c.b16 %v3992, %v3991
        %v4017 = vpack.c.b16 %v3994, %v3993
        %v4018 = vpack.c.b16 %v3996, %v3995
        %v4019 = vpack.c.b16 %v3998, %v3997
        %v4020 = vpack.c.b16 %v4000, %v3999
        %v4021 = vpack.c.b16 %v4002, %v4001
        %v4022 = vpack.c.b16 %v4004, %v4003
        %v4023 = vpack.c.b16 %v4006, %v4005
        %v4024 = vpack.c.b16 %v4008, %v4007
        %v4026 = vsel %vm447, %v4009, 0
        %v4029 = vsel %vm447, %v4010, 0
        %v4032 = vsel %vm447, %v4011, 0
        %v4035 = vsel %vm447, %v4012, 0
        %v4038 = vsel %vm447, %v4013, 0
        %v4041 = vsel %vm447, %v4014, 0
        %v4044 = vsel %vm447, %v4015, 0
        %v4047 = vsel %vm447, %v4016, 0
        %v4050 = vsel %vm447, %v4017, 0
        %v4053 = vsel %vm447, %v4018, 0
        %v4056 = vsel %vm447, %v4019, 0
        %v4059 = vsel %vm447, %v4020, 0
        %v4062 = vsel %vm447, %v4021, 0
        %v4065 = vsel %vm447, %v4022, 0
        %v4068 = vsel %vm447, %v4023, 0
        %v4071 = vsel %vm447, %v4024, 0
        %v4074 = vsel %vm496, %v3944, 0
        %4076 = vmatprep.subr.bf16.mxu0 0
        %4077 = vmatpush1.bf16.msra.mxu0 %v4074
        %4078 = vmatprep.subr.bf16.mxu0 0
        %4079 = vmatpush1.bf16.msra.mxu0 0
        %4080 = vmatprep.subr.bf16.mxu0 0
        %4081 = vmatpush1.bf16.msra.mxu0 0
        %4082 = vmatprep.subr.bf16.mxu0 0
        %4083 = vmatpush1.bf16.msra.mxu0 0
        %4084 = vmatprep.subr.bf16.mxu0 0
        %4085 = vmatpush1.bf16.msra.mxu0 0
        %4086 = vmatprep.subr.bf16.mxu0 0
        %4087 = vmatpush1.bf16.msra.mxu0 0
        %4088 = vmatprep.subr.bf16.mxu0 0
        %4089 = vmatpush1.bf16.msra.mxu0 0
        %4090 = vmatprep.subr.bf16.mxu0 0
        %4091 = vmatpush1.bf16.msra.mxu0 0
        %4092 = vmatprep.subr.bf16.mxu0 0
        %4093 = vmatpush1.bf16.msra.mxu0 0
        %4094 = vmatprep.subr.bf16.mxu0 0
        %4095 = vmatpush1.bf16.msra.mxu0 0
        %4096 = vmatprep.subr.bf16.mxu0 0
        %4097 = vmatpush1.bf16.msra.mxu0 0
        %4098 = vmatprep.subr.bf16.mxu0 0
        %4099 = vmatpush1.bf16.msra.mxu0 0
        %4100 = vmatprep.subr.bf16.mxu0 0
        %4101 = vmatpush1.bf16.msra.mxu0 0
        %4102 = vmatprep.subr.bf16.mxu0 0
        %4103 = vmatpush1.bf16.msra.mxu0 0
        %4104 = vmatprep.subr.bf16.mxu0 0
        %4105 = vmatpush1.bf16.msra.mxu0 0
        %4106 = vmatprep.subr.bf16.mxu0 0
        %4107 = vmatpush1.bf16.msra.mxu0 0
        %4108 = vmatprep.mubr.bf16.mxu0 0
        %4109 = vmatmul.mubr.bf16.gmra.mrb[0].mxu0 %v4026
        %v4110 = vpop.f32.mrb[0].mxu0
        %v4111 = vadd.f32 0.0, %v4110
        %v4112 = vpop.f32.mrb[0].mxu0
        %v4113 = vpop.f32.mrb[0].mxu0
        %v4114 = vadd.f32 0.0, %v4113
        %v4115 = vpop.f32.mrb[0].mxu0
        %4116 = vmatprep.mubr.bf16.mxu0 0
        %4117 = vmatmul.mubr.bf16.gmra.mrb[0].mxu0 %v4029
        %v4118 = vpop.f32.mrb[0].mxu0
        %v4119 = vadd.f32 0.0, %v4118
        %v4120 = vpop.f32.mrb[0].mxu0
        %v4121 = vpop.f32.mrb[0].mxu0
        %v4122 = vadd.f32 0.0, %v4121
        %v4123 = vpop.f32.mrb[0].mxu0
        %4124 = vmatprep.mubr.bf16.mxu0 0
        %4125 = vmatmul.mubr.bf16.gmra.mrb[0].mxu0 %v4032
        %v4126 = vpop.f32.mrb[0].mxu0
        %v4127 = vadd.f32 0.0, %v4126
        %v4128 = vpop.f32.mrb[0].mxu0
        %v4129 = vpop.f32.mrb[0].mxu0
        %v4130 = vadd.f32 0.0, %v4129
        %v4131 = vpop.f32.mrb[0].mxu0
        %4132 = vmatprep.mubr.bf16.mxu0 0
        %4133 = vmatmul.mubr.bf16.gmra.mrb[0].mxu0 %v4035
        %v4134 = vpop.f32.mrb[0].mxu0
        %v4135 = vadd.f32 0.0, %v4134
        %v4136 = vpop.f32.mrb[0].mxu0
        %v4137 = vpop.f32.mrb[0].mxu0
        %v4138 = vadd.f32 0.0, %v4137
        %v4139 = vpop.f32.mrb[0].mxu0
        %4140 = vmatprep.mubr.bf16.mxu0 0
        %4141 = vmatmul.mubr.bf16.gmra.mrb[0].mxu0 %v4038
        %v4142 = vpop.f32.mrb[0].mxu0
        %v4143 = vadd.f32 0.0, %v4142
        %v4144 = vpop.f32.mrb[0].mxu0
        %v4145 = vpop.f32.mrb[0].mxu0
        %v4146 = vadd.f32 0.0, %v4145
        %v4147 = vpop.f32.mrb[0].mxu0
        %4148 = vmatprep.mubr.bf16.mxu0 0
        %4149 = vmatmul.mubr.bf16.gmra.mrb[0].mxu0 %v4041
        %v4150 = vpop.f32.mrb[0].mxu0
        %v4151 = vadd.f32 0.0, %v4150
        %v4152 = vpop.f32.mrb[0].mxu0
        %v4153 = vpop.f32.mrb[0].mxu0
        %v4154 = vadd.f32 0.0, %v4153
        %v4155 = vpop.f32.mrb[0].mxu0
        %4156 = vmatprep.mubr.bf16.mxu0 0
        %4157 = vmatmul.mubr.bf16.gmra.mrb[0].mxu0 %v4044
        %v4158 = vpop.f32.mrb[0].mxu0
        %v4159 = vadd.f32 0.0, %v4158
        %v4160 = vpop.f32.mrb[0].mxu0
        %v4161 = vpop.f32.mrb[0].mxu0
        %v4162 = vadd.f32 0.0, %v4161
        %v4163 = vpop.f32.mrb[0].mxu0
        %4164 = vmatprep.mubr.bf16.mxu0 0
        %4165 = vmatmul.mubr.bf16.gmra.mrb[0].mxu0 %v4047
        %v4166 = vpop.f32.mrb[0].mxu0
        %v4167 = vadd.f32 0.0, %v4166
        %v4168 = vpop.f32.mrb[0].mxu0
        %v4169 = vpop.f32.mrb[0].mxu0
        %v4170 = vadd.f32 0.0, %v4169
        %v4171 = vpop.f32.mrb[0].mxu0
        %4172 = vmatprep.mubr.bf16.mxu0 0
        %4173 = vmatmul.mubr.bf16.gmra.mrb[0].mxu0 %v4050
        %v4174 = vpop.f32.mrb[0].mxu0
        %v4175 = vadd.f32 0.0, %v4174
        %v4176 = vpop.f32.mrb[0].mxu0
        %v4177 = vpop.f32.mrb[0].mxu0
        %v4178 = vadd.f32 0.0, %v4177
        %v4179 = vpop.f32.mrb[0].mxu0
        %4180 = vmatprep.mubr.bf16.mxu0 0
        %4181 = vmatmul.mubr.bf16.gmra.mrb[0].mxu0 %v4053
        %v4182 = vpop.f32.mrb[0].mxu0
        %v4183 = vadd.f32 0.0, %v4182
        %v4184 = vpop.f32.mrb[0].mxu0
        %v4185 = vpop.f32.mrb[0].mxu0
        %v4186 = vadd.f32 0.0, %v4185
        %v4187 = vpop.f32.mrb[0].mxu0
        %4188 = vmatprep.mubr.bf16.mxu0 0
        %4189 = vmatmul.mubr.bf16.gmra.mrb[0].mxu0 %v4056
        %v4190 = vpop.f32.mrb[0].mxu0
        %v4191 = vadd.f32 0.0, %v4190
        %v4192 = vpop.f32.mrb[0].mxu0
        %v4193 = vpop.f32.mrb[0].mxu0
        %v4194 = vadd.f32 0.0, %v4193
        %v4195 = vpop.f32.mrb[0].mxu0
        %4196 = vmatprep.mubr.bf16.mxu0 0
        %4197 = vmatmul.mubr.bf16.gmra.mrb[0].mxu0 %v4059
        %v4198 = vpop.f32.mrb[0].mxu0
        %v4199 = vadd.f32 0.0, %v4198
        %v4200 = vpop.f32.mrb[0].mxu0
        %v4201 = vpop.f32.mrb[0].mxu0
        %v4202 = vadd.f32 0.0, %v4201
        %v4203 = vpop.f32.mrb[0].mxu0
        %4204 = vmatprep.mubr.bf16.mxu0 0
        %4205 = vmatmul.mubr.bf16.gmra.mrb[0].mxu0 %v4062
        %v4206 = vpop.f32.mrb[0].mxu0
        %v4207 = vadd.f32 0.0, %v4206
        %v4208 = vpop.f32.mrb[0].mxu0
        %v4209 = vpop.f32.mrb[0].mxu0
        %v4210 = vadd.f32 0.0, %v4209
        %v4211 = vpop.f32.mrb[0].mxu0
        %4212 = vmatprep.mubr.bf16.mxu0 0
        %4213 = vmatmul.mubr.bf16.gmra.mrb[0].mxu0 %v4065
        %v4214 = vpop.f32.mrb[0].mxu0
        %v4215 = vadd.f32 0.0, %v4214
        %v4216 = vpop.f32.mrb[0].mxu0
        %v4217 = vpop.f32.mrb[0].mxu0
        %v4218 = vadd.f32 0.0, %v4217
        %v4219 = vpop.f32.mrb[0].mxu0
        %4220 = vmatprep.mubr.bf16.mxu0 0
        %4221 = vmatmul.mubr.bf16.gmra.mrb[0].mxu0 %v4068
        %v4222 = vpop.f32.mrb[0].mxu0
        %v4223 = vadd.f32 0.0, %v4222
        %v4224 = vpop.f32.mrb[0].mxu0
        %v4225 = vpop.f32.mrb[0].mxu0
        %v4226 = vadd.f32 0.0, %v4225
        %v4227 = vpop.f32.mrb[0].mxu0
        %4228 = vmatprep.mubr.bf16.mxu0 0
        %4229 = vmatmul.mubr.bf16.gmra.mrb[0].mxu0 %v4071
        %v4230 = vpop.f32.mrb[0].mxu0
        %v4231 = vadd.f32 0.0, %v4230
        %v4232 = vpop.f32.mrb[0].mxu0
        %v4233 = vpop.f32.mrb[0].mxu0
        %v4234 = vadd.f32 0.0, %v4233
        %v4235 = vpop.f32.mrb[0].mxu0
        %4236 = vdwg.mxu0
        %v4237 = vadd.f32 %v3876, %v4111
        %v4238 = vadd.f32 %v3877, %v4114
        %v4239 = vadd.f32 %v3878, %v4119
        %v4240 = vadd.f32 %v3879, %v4122
        %v4241 = vadd.f32 %v3880, %v4127
        %v4242 = vadd.f32 %v3881, %v4130
        %v4243 = vadd.f32 %v3882, %v4135
        %v4244 = vadd.f32 %v3883, %v4138
        %v4245 = vadd.f32 %v3884, %v4143
        %v4246 = vadd.f32 %v3885, %v4146
        %v4247 = vadd.f32 %v3886, %v4151
        %v4248 = vadd.f32 %v3887, %v4154
        %v4249 = vadd.f32 %v3888, %v4159
        %v4250 = vadd.f32 %v3889, %v4162
        %v4251 = vadd.f32 %v3890, %v4167
        %v4252 = vadd.f32 %v3891, %v4170
        %v4253 = vadd.f32 %v3892, %v4175
        %v4254 = vadd.f32 %v3893, %v4178
        %v4255 = vadd.f32 %v3894, %v4183
        %v4256 = vadd.f32 %v3895, %v4186
        %v4257 = vadd.f32 %v3896, %v4191
        %v4258 = vadd.f32 %v3897, %v4194
        %v4259 = vadd.f32 %v3898, %v4199
        %v4260 = vadd.f32 %v3899, %v4202
        %v4261 = vadd.f32 %v3900, %v4207
        %v4262 = vadd.f32 %v3901, %v4210
        %v4263 = vadd.f32 %v3902, %v4215
        %v4264 = vadd.f32 %v3903, %v4218
        %v4265 = vadd.f32 %v3904, %v4223
        %v4266 = vadd.f32 %v3905, %v4226
        %v4267 = vadd.f32 %v3906, %v4231
        %v4268 = vadd.f32 %v3907, %v4234
        %4269 = vst [vmem:[#allocation2] sm:$0xff] %v4237
        %4270 = vst [vmem:[#allocation2 + $0x8] sm:$0xff] %v4238
        %4271 = vst [vmem:[#allocation2 + $0x10] sm:$0xff] %v4239
        %4272 = vst [vmem:[#allocation2 + $0x18] sm:$0xff] %v4240
        %4273 = vst [vmem:[#allocation2 + $0x20] sm:$0xff] %v4241
        %4274 = vst [vmem:[#allocation2 + $0x28] sm:$0xff] %v4242
        %4275 = vst [vmem:[#allocation2 + $0x30] sm:$0xff] %v4243
        %4276 = vst [vmem:[#allocation2 + $0x38] sm:$0xff] %v4244
        %4277 = vst [vmem:[#allocation2 + $0x40] sm:$0xff] %v4245
        %4278 = vst [vmem:[#allocation2 + $0x48] sm:$0xff] %v4246
        %4279 = vst [vmem:[#allocation2 + $0x50] sm:$0xff] %v4247
        %4280 = vst [vmem:[#allocation2 + $0x58] sm:$0xff] %v4248
        %4281 = vst [vmem:[#allocation2 + $0x60] sm:$0xff] %v4249
        %4282 = vst [vmem:[#allocation2 + $0x68] sm:$0xff] %v4250
        %4283 = vst [vmem:[#allocation2 + $0x70] sm:$0xff] %v4251
        %4284 = vst [vmem:[#allocation2 + $0x78] sm:$0xff] %v4252
        %4285 = vst [vmem:[#allocation2 + $0x80] sm:$0xff] %v4253
        %4286 = vst [vmem:[#allocation2 + $0x88] sm:$0xff] %v4254
        %4287 = vst [vmem:[#allocation2 + $0x90] sm:$0xff] %v4255
        %4288 = vst [vmem:[#allocation2 + $0x98] sm:$0xff] %v4256
        %4289 = vst [vmem:[#allocation2 + $0xa0] sm:$0xff] %v4257
        %4290 = vst [vmem:[#allocation2 + $0xa8] sm:$0xff] %v4258
        %4291 = vst [vmem:[#allocation2 + $0xb0] sm:$0xff] %v4259
        %4292 = vst [vmem:[#allocation2 + $0xb8] sm:$0xff] %v4260
        %4293 = vst [vmem:[#allocation2 + $0xc0] sm:$0xff] %v4261
        %4294 = vst [vmem:[#allocation2 + $0xc8] sm:$0xff] %v4262
        %4295 = vst [vmem:[#allocation2 + $0xd0] sm:$0xff] %v4263
        %4296 = vst [vmem:[#allocation2 + $0xd8] sm:$0xff] %v4264
        %4297 = vst [vmem:[#allocation2 + $0xe0] sm:$0xff] %v4265
        %4298 = vst [vmem:[#allocation2 + $0xe8] sm:$0xff] %v4266
        %4299 = vst [vmem:[#allocation2 + $0xf0] sm:$0xff] %v4267
        %4300 = vst [vmem:[#allocation2 + $0xf8] sm:$0xff] %v4268
        %v4301 = vld [vmem:[#allocation2] sm:$0xff]
        %v4302 = vld [vmem:[#allocation2 + $0x8] sm:$0xff]
        %v4303 = vld [vmem:[#allocation2 + $0x10] sm:$0xff]
        %v4304 = vld [vmem:[#allocation2 + $0x18] sm:$0xff]
        %v4305 = vld [vmem:[#allocation2 + $0x20] sm:$0xff]
        %v4306 = vld [vmem:[#allocation2 + $0x28] sm:$0xff]
        %v4307 = vld [vmem:[#allocation2 + $0x30] sm:$0xff]
        %v4308 = vld [vmem:[#allocation2 + $0x38] sm:$0xff]
        %v4309 = vld [vmem:[#allocation2 + $0x40] sm:$0xff]
        %v4310 = vld [vmem:[#allocation2 + $0x48] sm:$0xff]
        %v4311 = vld [vmem:[#allocation2 + $0x50] sm:$0xff]
        %v4312 = vld [vmem:[#allocation2 + $0x58] sm:$0xff]
        %v4313 = vld [vmem:[#allocation2 + $0x60] sm:$0xff]
        %v4314 = vld [vmem:[#allocation2 + $0x68] sm:$0xff]
        %v4315 = vld [vmem:[#allocation2 + $0x70] sm:$0xff]
        %v4316 = vld [vmem:[#allocation2 + $0x78] sm:$0xff]
        %v4317 = vld [vmem:[#allocation2 + $0x80] sm:$0xff]
        %v4318 = vld [vmem:[#allocation2 + $0x88] sm:$0xff]
        %v4319 = vld [vmem:[#allocation2 + $0x90] sm:$0xff]
        %v4320 = vld [vmem:[#allocation2 + $0x98] sm:$0xff]
        %v4321 = vld [vmem:[#allocation2 + $0xa0] sm:$0xff]
        %v4322 = vld [vmem:[#allocation2 + $0xa8] sm:$0xff]
        %v4323 = vld [vmem:[#allocation2 + $0xb0] sm:$0xff]
        %v4324 = vld [vmem:[#allocation2 + $0xb8] sm:$0xff]
        %v4325 = vld [vmem:[#allocation2 + $0xc0] sm:$0xff]
        %v4326 = vld [vmem:[#allocation2 + $0xc8] sm:$0xff]
        %v4327 = vld [vmem:[#allocation2 + $0xd0] sm:$0xff]
        %v4328 = vld [vmem:[#allocation2 + $0xd8] sm:$0xff]
        %v4329 = vld [vmem:[#allocation2 + $0xe0] sm:$0xff]
        %v4330 = vld [vmem:[#allocation2 + $0xe8] sm:$0xff]
        %v4331 = vld [vmem:[#allocation2 + $0xf0] sm:$0xff]
        %v4332 = vld [vmem:[#allocation2 + $0xf8] sm:$0xff]
        %v4333 = vld [vmem:[%s3911] sm:$0xf]
        %v4334 = vld [vmem:[%s3911 + $0x4] sm:$0xf]
        %v4335 = vld [vmem:[%s3911 + $0x8] sm:$0x1]
        %v4336 = vld [vmem:[%s3911 + $0xc] sm:$0xf]
        %v4337 = vld [vmem:[%s3911 + $0x10] sm:$0xf]
        %v4338 = vld [vmem:[%s3911 + $0x14] sm:$0x1]
        %v4339 = vld [vmem:[%s3911 + $0x18] sm:$0xf]
        %v4340 = vld [vmem:[%s3911 + $0x1c] sm:$0xf]
        %v4341 = vld [vmem:[%s3911 + $0x20] sm:$0x1]
        %v4342 = vld [vmem:[%s3911 + $0x24] sm:$0xf]
        %v4343 = vld [vmem:[%s3911 + $0x28] sm:$0xf]
        %v4344 = vld [vmem:[%s3911 + $0x2c] sm:$0x1]
        %v4345 = vld [vmem:[%s3911 + $0x30] sm:$0xf]
        %v4346 = vld [vmem:[%s3911 + $0x34] sm:$0xf]
        %v4347 = vld [vmem:[%s3911 + $0x38] sm:$0x1]
        %v4348 = vld [vmem:[%s3911 + $0x3c] sm:$0xf]
        %v4349 = vld [vmem:[%s3911 + $0x40] sm:$0xf]
        %v4350 = vld [vmem:[%s3911 + $0x44] sm:$0x1]
        %v4351 = vld [vmem:[%s3911 + $0x48] sm:$0xf]
        %v4352 = vld [vmem:[%s3911 + $0x4c] sm:$0xf]
        %v4353 = vld [vmem:[%s3911 + $0x50] sm:$0x1]
        %v4354 = vld [vmem:[%s3911 + $0x54] sm:$0xf]
        %v4355 = vld [vmem:[%s3911 + $0x58] sm:$0xf]
        %v4356 = vld [vmem:[%s3911 + $0x5c] sm:$0x1]
        %v4357 = vld [vmem:[%s3911 + $0x60] sm:$0xf]
        %v4358 = vld [vmem:[%s3911 + $0x64] sm:$0xf]
        %v4359 = vld [vmem:[%s3911 + $0x68] sm:$0x1]
        %v4360 = vld [vmem:[%s3911 + $0x6c] sm:$0xf]
        %v4361 = vld [vmem:[%s3911 + $0x70] sm:$0xf]
        %v4362 = vld [vmem:[%s3911 + $0x74] sm:$0x1]
        %v4363 = vld [vmem:[%s3911 + $0x78] sm:$0xf]
        %v4364 = vld [vmem:[%s3911 + $0x7c] sm:$0xf]
        %v4365 = vld [vmem:[%s3911 + $0x80] sm:$0x1]
        %v4366 = vld [vmem:[%s3911 + $0x84] sm:$0xf]
        %v4367 = vld [vmem:[%s3911 + $0x88] sm:$0xf]
        %v4368 = vld [vmem:[%s3911 + $0x8c] sm:$0x1]
        %v4369 = vld [vmem:[%s3911 + $0x90] sm:$0xf]
        %v4370 = vld [vmem:[%s3911 + $0x94] sm:$0xf]
        %v4371 = vld [vmem:[%s3911 + $0x98] sm:$0x1]
        %v4372 = vld [vmem:[%s3911 + $0x9c] sm:$0xf]
        %v4373 = vld [vmem:[%s3911 + $0xa0] sm:$0xf]
        %v4374 = vld [vmem:[%s3911 + $0xa4] sm:$0x1]
        %v4375 = vld [vmem:[%s3911 + $0xa8] sm:$0xf]
        %v4376 = vld [vmem:[%s3911 + $0xac] sm:$0xf]
        %v4377 = vld [vmem:[%s3911 + $0xb0] sm:$0x1]
        %v4378 = vld [vmem:[%s3911 + $0xb4] sm:$0xf]
        %v4379 = vld [vmem:[%s3911 + $0xb8] sm:$0xf]
        %v4380 = vld [vmem:[%s3911 + $0xbc] sm:$0x1]
        %v4382 = vshrl.u32 %v4333, 16
        %v4384 = vrot.slane %v4382, 4
        %v4385 = vshll.u32 %v4333, 16
        %v4387 = vrot.slane %v4385, 5
        %v4388 = vor.u32 %v4384, %v4387
        %v4389 = vrot.slane %v4388, 4
        %v4391 = vshll.u32 %v4334, 16
        %v4393 = vrot.slane %v4391, 5
        %v4394 = vsel %vm807, %v4389, %v4393
        %v4395 = vshrl.u32 %v4334, 16
        %v4397 = vrot.slane %v4395, 4
        %v4398 = vor.u32 %v4397, %v4393
        %v4399 = vrot.slane %v4398, 4
        %v4401 = vshll.u32 %v4335, 16
        %v4403 = vrot.slane %v4401, 5
        %v4404 = vsel %vm807, %v4399, %v4403
        %v4406 = vshrl.u32 %v4336, 16
        %v4408 = vrot.slane %v4406, 4
        %v4409 = vshll.u32 %v4336, 16
        %v4411 = vrot.slane %v4409, 5
        %v4412 = vor.u32 %v4408, %v4411
        %v4413 = vrot.slane %v4412, 4
        %v4415 = vshll.u32 %v4337, 16
        %v4417 = vrot.slane %v4415, 5
        %v4418 = vsel %vm807, %v4413, %v4417
        %v4419 = vshrl.u32 %v4337, 16
        %v4421 = vrot.slane %v4419, 4
        %v4422 = vor.u32 %v4421, %v4417
        %v4423 = vrot.slane %v4422, 4
        %v4425 = vshll.u32 %v4338, 16
        %v4427 = vrot.slane %v4425, 5
        %v4428 = vsel %vm807, %v4423, %v4427
        %v4430 = vshrl.u32 %v4339, 16
        %v4432 = vrot.slane %v4430, 4
        %v4433 = vshll.u32 %v4339, 16
        %v4435 = vrot.slane %v4433, 5
        %v4436 = vor.u32 %v4432, %v4435
        %v4437 = vrot.slane %v4436, 4
        %v4439 = vshll.u32 %v4340, 16
        %v4441 = vrot.slane %v4439, 5
        %v4442 = vsel %vm807, %v4437, %v4441
        %v4443 = vshrl.u32 %v4340, 16
        %v4445 = vrot.slane %v4443, 4
        %v4446 = vor.u32 %v4445, %v4441
        %v4447 = vrot.slane %v4446, 4
        %v4449 = vshll.u32 %v4341, 16
        %v4451 = vrot.slane %v4449, 5
        %v4452 = vsel %vm807, %v4447, %v4451
        %v4454 = vshrl.u32 %v4342, 16
        %v4456 = vrot.slane %v4454, 4
        %v4457 = vshll.u32 %v4342, 16
        %v4459 = vrot.slane %v4457, 5
        %v4460 = vor.u32 %v4456, %v4459
        %v4461 = vrot.slane %v4460, 4
        %v4463 = vshll.u32 %v4343, 16
        %v4465 = vrot.slane %v4463, 5
        %v4466 = vsel %vm807, %v4461, %v4465
        %v4467 = vshrl.u32 %v4343, 16
        %v4469 = vrot.slane %v4467, 4
        %v4470 = vor.u32 %v4469, %v4465
        %v4471 = vrot.slane %v4470, 4
        %v4473 = vshll.u32 %v4344, 16
        %v4475 = vrot.slane %v4473, 5
        %v4476 = vsel %vm807, %v4471, %v4475
        %v4478 = vshrl.u32 %v4345, 16
        %v4480 = vrot.slane %v4478, 4
        %v4481 = vshll.u32 %v4345, 16
        %v4483 = vrot.slane %v4481, 5
        %v4484 = vor.u32 %v4480, %v4483
        %v4485 = vrot.slane %v4484, 4
        %v4487 = vshll.u32 %v4346, 16
        %v4489 = vrot.slane %v4487, 5
        %v4490 = vsel %vm807, %v4485, %v4489
        %v4491 = vshrl.u32 %v4346, 16
        %v4493 = vrot.slane %v4491, 4
        %v4494 = vor.u32 %v4493, %v4489
        %v4495 = vrot.slane %v4494, 4
        %v4497 = vshll.u32 %v4347, 16
        %v4499 = vrot.slane %v4497, 5
        %v4500 = vsel %vm807, %v4495, %v4499
        %v4502 = vshrl.u32 %v4348, 16
        %v4504 = vrot.slane %v4502, 4
        %v4505 = vshll.u32 %v4348, 16
        %v4507 = vrot.slane %v4505, 5
        %v4508 = vor.u32 %v4504, %v4507
        %v4509 = vrot.slane %v4508, 4
        %v4511 = vshll.u32 %v4349, 16
        %v4513 = vrot.slane %v4511, 5
        %v4514 = vsel %vm807, %v4509, %v4513
        %v4515 = vshrl.u32 %v4349, 16
        %v4517 = vrot.slane %v4515, 4
        %v4518 = vor.u32 %v4517, %v4513
        %v4519 = vrot.slane %v4518, 4
        %v4521 = vshll.u32 %v4350, 16
        %v4523 = vrot.slane %v4521, 5
        %v4524 = vsel %vm807, %v4519, %v4523
        %v4526 = vshrl.u32 %v4351, 16
        %v4528 = vrot.slane %v4526, 4
        %v4529 = vshll.u32 %v4351, 16
        %v4531 = vrot.slane %v4529, 5
        %v4532 = vor.u32 %v4528, %v4531
        %v4533 = vrot.slane %v4532, 4
        %v4535 = vshll.u32 %v4352, 16
        %v4537 = vrot.slane %v4535, 5
        %v4538 = vsel %vm807, %v4533, %v4537
        %v4539 = vshrl.u32 %v4352, 16
        %v4541 = vrot.slane %v4539, 4
        %v4542 = vor.u32 %v4541, %v4537
        %v4543 = vrot.slane %v4542, 4
        %v4545 = vshll.u32 %v4353, 16
        %v4547 = vrot.slane %v4545, 5
        %v4548 = vsel %vm807, %v4543, %v4547
        %v4550 = vshrl.u32 %v4354, 16
        %v4552 = vrot.slane %v4550, 4
        %v4553 = vshll.u32 %v4354, 16
        %v4555 = vrot.slane %v4553, 5
        %v4556 = vor.u32 %v4552, %v4555
        %v4557 = vrot.slane %v4556, 4
        %v4559 = vshll.u32 %v4355, 16
        %v4561 = vrot.slane %v4559, 5
        %v4562 = vsel %vm807, %v4557, %v4561
        %v4563 = vshrl.u32 %v4355, 16
        %v4565 = vrot.slane %v4563, 4
        %v4566 = vor.u32 %v4565, %v4561
        %v4567 = vrot.slane %v4566, 4
        %v4569 = vshll.u32 %v4356, 16
        %v4571 = vrot.slane %v4569, 5
        %v4572 = vsel %vm807, %v4567, %v4571
        %v4574 = vshrl.u32 %v4357, 16
        %v4576 = vrot.slane %v4574, 4
        %v4577 = vshll.u32 %v4357, 16
        %v4579 = vrot.slane %v4577, 5
        %v4580 = vor.u32 %v4576, %v4579
        %v4581 = vrot.slane %v4580, 4
        %v4583 = vshll.u32 %v4358, 16
        %v4585 = vrot.slane %v4583, 5
        %v4586 = vsel %vm807, %v4581, %v4585
        %v4587 = vshrl.u32 %v4358, 16
        %v4589 = vrot.slane %v4587, 4
        %v4590 = vor.u32 %v4589, %v4585
        %v4591 = vrot.slane %v4590, 4
        %v4593 = vshll.u32 %v4359, 16
        %v4595 = vrot.slane %v4593, 5
        %v4596 = vsel %vm807, %v4591, %v4595
        %v4598 = vshrl.u32 %v4360, 16
        %v4600 = vrot.slane %v4598, 4
        %v4601 = vshll.u32 %v4360, 16
        %v4603 = vrot.slane %v4601, 5
        %v4604 = vor.u32 %v4600, %v4603
        %v4605 = vrot.slane %v4604, 4
        %v4607 = vshll.u32 %v4361, 16
        %v4609 = vrot.slane %v4607, 5
        %v4610 = vsel %vm807, %v4605, %v4609
        %v4611 = vshrl.u32 %v4361, 16
        %v4613 = vrot.slane %v4611, 4
        %v4614 = vor.u32 %v4613, %v4609
        %v4615 = vrot.slane %v4614, 4
        %v4617 = vshll.u32 %v4362, 16
        %v4619 = vrot.slane %v4617, 5
        %v4620 = vsel %vm807, %v4615, %v4619
        %v4622 = vshrl.u32 %v4363, 16
        %v4624 = vrot.slane %v4622, 4
        %v4625 = vshll.u32 %v4363, 16
        %v4627 = vrot.slane %v4625, 5
        %v4628 = vor.u32 %v4624, %v4627
        %v4629 = vrot.slane %v4628, 4
        %v4631 = vshll.u32 %v4364, 16
        %v4633 = vrot.slane %v4631, 5
        %v4634 = vsel %vm807, %v4629, %v4633
        %v4635 = vshrl.u32 %v4364, 16
        %v4637 = vrot.slane %v4635, 4
        %v4638 = vor.u32 %v4637, %v4633
        %v4639 = vrot.slane %v4638, 4
        %v4641 = vshll.u32 %v4365, 16
        %v4643 = vrot.slane %v4641, 5
        %v4644 = vsel %vm807, %v4639, %v4643
        %v4646 = vshrl.u32 %v4366, 16
        %v4648 = vrot.slane %v4646, 4
        %v4649 = vshll.u32 %v4366, 16
        %v4651 = vrot.slane %v4649, 5
        %v4652 = vor.u32 %v4648, %v4651
        %v4653 = vrot.slane %v4652, 4
        %v4655 = vshll.u32 %v4367, 16
        %v4657 = vrot.slane %v4655, 5
        %v4658 = vsel %vm807, %v4653, %v4657
        %v4659 = vshrl.u32 %v4367, 16
        %v4661 = vrot.slane %v4659, 4
        %v4662 = vor.u32 %v4661, %v4657
        %v4663 = vrot.slane %v4662, 4
        %v4665 = vshll.u32 %v4368, 16
        %v4667 = vrot.slane %v4665, 5
        %v4668 = vsel %vm807, %v4663, %v4667
        %v4670 = vshrl.u32 %v4369, 16
        %v4672 = vrot.slane %v4670, 4
        %v4673 = vshll.u32 %v4369, 16
        %v4675 = vrot.slane %v4673, 5
        %v4676 = vor.u32 %v4672, %v4675
        %v4677 = vrot.slane %v4676, 4
        %v4679 = vshll.u32 %v4370, 16
        %v4681 = vrot.slane %v4679, 5
        %v4682 = vsel %vm807, %v4677, %v4681
        %v4683 = vshrl.u32 %v4370, 16
        %v4685 = vrot.slane %v4683, 4
        %v4686 = vor.u32 %v4685, %v4681
        %v4687 = vrot.slane %v4686, 4
        %v4689 = vshll.u32 %v4371, 16
        %v4691 = vrot.slane %v4689, 5
        %v4692 = vsel %vm807, %v4687, %v4691
        %v4694 = vshrl.u32 %v4372, 16
        %v4696 = vrot.slane %v4694, 4
        %v4697 = vshll.u32 %v4372, 16
        %v4699 = vrot.slane %v4697, 5
        %v4700 = vor.u32 %v4696, %v4699
        %v4701 = vrot.slane %v4700, 4
        %v4703 = vshll.u32 %v4373, 16
        %v4705 = vrot.slane %v4703, 5
        %v4706 = vsel %vm807, %v4701, %v4705
        %v4707 = vshrl.u32 %v4373, 16
        %v4709 = vrot.slane %v4707, 4
        %v4710 = vor.u32 %v4709, %v4705
        %v4711 = vrot.slane %v4710, 4
        %v4713 = vshll.u32 %v4374, 16
        %v4715 = vrot.slane %v4713, 5
        %v4716 = vsel %vm807, %v4711, %v4715
        %v4718 = vshrl.u32 %v4375, 16
        %v4720 = vrot.slane %v4718, 4
        %v4721 = vshll.u32 %v4375, 16
        %v4723 = vrot.slane %v4721, 5
        %v4724 = vor.u32 %v4720, %v4723
        %v4725 = vrot.slane %v4724, 4
        %v4727 = vshll.u32 %v4376, 16
        %v4729 = vrot.slane %v4727, 5
        %v4730 = vsel %vm807, %v4725, %v4729
        %v4731 = vshrl.u32 %v4376, 16
        %v4733 = vrot.slane %v4731, 4
        %v4734 = vor.u32 %v4733, %v4729
        %v4735 = vrot.slane %v4734, 4
        %v4737 = vshll.u32 %v4377, 16
        %v4739 = vrot.slane %v4737, 5
        %v4740 = vsel %vm807, %v4735, %v4739
        %v4742 = vshrl.u32 %v4378, 16
        %v4744 = vrot.slane %v4742, 4
        %v4745 = vshll.u32 %v4378, 16
        %v4747 = vrot.slane %v4745, 5
        %v4748 = vor.u32 %v4744, %v4747
        %v4749 = vrot.slane %v4748, 4
        %v4751 = vshll.u32 %v4379, 16
        %v4753 = vrot.slane %v4751, 5
        %v4754 = vsel %vm807, %v4749, %v4753
        %v4755 = vshrl.u32 %v4379, 16
        %v4757 = vrot.slane %v4755, 4
        %v4758 = vor.u32 %v4757, %v4753
        %v4759 = vrot.slane %v4758, 4
        %v4761 = vshll.u32 %v4380, 16
        %v4763 = vrot.slane %v4761, 5
        %v4764 = vsel %vm807, %v4759, %v4763
        %v4765 = vld [vmem:[%s257 + $0xc] sm:$0xc]
        %v4766 = vunpack.c.l.b16 %v4394
        %v4767 = vunpack.c.l.b16 %v4404
        %v4768 = vunpack.c.l.b16 %v4418
        %v4769 = vunpack.c.l.b16 %v4428
        %v4770 = vunpack.c.l.b16 %v4442
        %v4771 = vunpack.c.l.b16 %v4452
        %v4772 = vunpack.c.l.b16 %v4466
        %v4773 = vunpack.c.l.b16 %v4476
        %v4774 = vunpack.c.l.b16 %v4490
        %v4775 = vunpack.c.l.b16 %v4500
        %v4776 = vunpack.c.l.b16 %v4514
        %v4777 = vunpack.c.l.b16 %v4524
        %v4778 = vunpack.c.l.b16 %v4538
        %v4779 = vunpack.c.l.b16 %v4548
        %v4780 = vunpack.c.l.b16 %v4562
        %v4781 = vunpack.c.l.b16 %v4572
        %v4782 = vunpack.c.l.b16 %v4586
        %v4783 = vunpack.c.l.b16 %v4596
        %v4784 = vunpack.c.l.b16 %v4610
        %v4785 = vunpack.c.l.b16 %v4620
        %v4786 = vunpack.c.l.b16 %v4634
        %v4787 = vunpack.c.l.b16 %v4644
        %v4788 = vunpack.c.l.b16 %v4658
        %v4789 = vunpack.c.l.b16 %v4668
        %v4790 = vunpack.c.l.b16 %v4682
        %v4791 = vunpack.c.l.b16 %v4692
        %v4792 = vunpack.c.l.b16 %v4706
        %v4793 = vunpack.c.l.b16 %v4716
        %v4794 = vunpack.c.l.b16 %v4730
        %v4795 = vunpack.c.l.b16 %v4740
        %v4796 = vunpack.c.l.b16 %v4754
        %v4797 = vunpack.c.l.b16 %v4764
        %v4798 = vpack.c.b16 %v4767, %v4766
        %v4799 = vpack.c.b16 %v4769, %v4768
        %v4800 = vpack.c.b16 %v4771, %v4770
        %v4801 = vpack.c.b16 %v4773, %v4772
        %v4802 = vpack.c.b16 %v4775, %v4774
        %v4803 = vpack.c.b16 %v4777, %v4776
        %v4804 = vpack.c.b16 %v4779, %v4778
        %v4805 = vpack.c.b16 %v4781, %v4780
        %v4806 = vpack.c.b16 %v4783, %v4782
        %v4807 = vpack.c.b16 %v4785, %v4784
        %v4808 = vpack.c.b16 %v4787, %v4786
        %v4809 = vpack.c.b16 %v4789, %v4788
        %v4810 = vpack.c.b16 %v4791, %v4790
        %v4811 = vpack.c.b16 %v4793, %v4792
        %v4812 = vpack.c.b16 %v4795, %v4794
        %v4813 = vpack.c.b16 %v4797, %v4796
        %v4815 = vunpack.c.l.b16 %v4765
        %v4816 = vpack.c.b16 %v4815, %v4815
        %v4817 = vrot.slane %v4816, 2
        %v4819 = vsel %vm447, %v4798, 0
        %v4822 = vsel %vm447, %v4799, 0
        %v4825 = vsel %vm447, %v4800, 0
        %v4828 = vsel %vm447, %v4801, 0
        %v4831 = vsel %vm447, %v4802, 0
        %v4834 = vsel %vm447, %v4803, 0
        %v4837 = vsel %vm447, %v4804, 0
        %v4840 = vsel %vm447, %v4805, 0
        %v4843 = vsel %vm447, %v4806, 0
        %v4846 = vsel %vm447, %v4807, 0
        %v4849 = vsel %vm447, %v4808, 0
        %v4852 = vsel %vm447, %v4809, 0
        %v4855 = vsel %vm447, %v4810, 0
        %v4858 = vsel %vm447, %v4811, 0
        %v4861 = vsel %vm447, %v4812, 0
        %v4864 = vsel %vm447, %v4813, 0
        %v4867 = vsel %vm496, %v4817, 0
        %4869 = vmatprep.subr.bf16.mxu0 0
        %4870 = vmatpush1.bf16.msra.mxu0 %v4867
        %4871 = vmatprep.subr.bf16.mxu0 0
        %4872 = vmatpush1.bf16.msra.mxu0 0
        %4873 = vmatprep.subr.bf16.mxu0 0
        %4874 = vmatpush1.bf16.msra.mxu0 0
        %4875 = vmatprep.subr.bf16.mxu0 0
        %4876 = vmatpush1.bf16.msra.mxu0 0
        %4877 = vmatprep.subr.bf16.mxu0 0
        %4878 = vmatpush1.bf16.msra.mxu0 0
        %4879 = vmatprep.subr.bf16.mxu0 0
        %4880 = vmatpush1.bf16.msra.mxu0 0
        %4881 = vmatprep.subr.bf16.mxu0 0
        %4882 = vmatpush1.bf16.msra.mxu0 0
        %4883 = vmatprep.subr.bf16.mxu0 0
        %4884 = vmatpush1.bf16.msra.mxu0 0
        %4885 = vmatprep.subr.bf16.mxu0 0
        %4886 = vmatpush1.bf16.msra.mxu0 0
        %4887 = vmatprep.subr.bf16.mxu0 0
        %4888 = vmatpush1.bf16.msra.mxu0 0
        %4889 = vmatprep.subr.bf16.mxu0 0
        %4890 = vmatpush1.bf16.msra.mxu0 0
        %4891 = vmatprep.subr.bf16.mxu0 0
        %4892 = vmatpush1.bf16.msra.mxu0 0
        %4893 = vmatprep.subr.bf16.mxu0 0
        %4894 = vmatpush1.bf16.msra.mxu0 0
        %4895 = vmatprep.subr.bf16.mxu0 0
        %4896 = vmatpush1.bf16.msra.mxu0 0
        %4897 = vmatprep.subr.bf16.mxu0 0
        %4898 = vmatpush1.bf16.msra.mxu0 0
        %4899 = vmatprep.subr.bf16.mxu0 0
        %4900 = vmatpush1.bf16.msra.mxu0 0
        %4901 = vmatprep.mubr.bf16.mxu0 0
        %4902 = vmatmul.mubr.bf16.gmra.mrb[0].mxu0 %v4819
        %v4903 = vpop.f32.mrb[0].mxu0
        %v4904 = vadd.f32 0.0, %v4903
        %v4905 = vpop.f32.mrb[0].mxu0
        %v4906 = vpop.f32.mrb[0].mxu0
        %v4907 = vadd.f32 0.0, %v4906
        %v4908 = vpop.f32.mrb[0].mxu0
        %4909 = vmatprep.mubr.bf16.mxu0 0
        %4910 = vmatmul.mubr.bf16.gmra.mrb[0].mxu0 %v4822
        %v4911 = vpop.f32.mrb[0].mxu0
        %v4912 = vadd.f32 0.0, %v4911
        %v4913 = vpop.f32.mrb[0].mxu0
        %v4914 = vpop.f32.mrb[0].mxu0
        %v4915 = vadd.f32 0.0, %v4914
        %v4916 = vpop.f32.mrb[0].mxu0
        %4917 = vmatprep.mubr.bf16.mxu0 0
        %4918 = vmatmul.mubr.bf16.gmra.mrb[0].mxu0 %v4825
        %v4919 = vpop.f32.mrb[0].mxu0
        %v4920 = vadd.f32 0.0, %v4919
        %v4921 = vpop.f32.mrb[0].mxu0
        %v4922 = vpop.f32.mrb[0].mxu0
        %v4923 = vadd.f32 0.0, %v4922
        %v4924 = vpop.f32.mrb[0].mxu0
        %4925 = vmatprep.mubr.bf16.mxu0 0
        %4926 = vmatmul.mubr.bf16.gmra.mrb[0].mxu0 %v4828
        %v4927 = vpop.f32.mrb[0].mxu0
        %v4928 = vadd.f32 0.0, %v4927
        %v4929 = vpop.f32.mrb[0].mxu0
        %v4930 = vpop.f32.mrb[0].mxu0
        %v4931 = vadd.f32 0.0, %v4930
        %v4932 = vpop.f32.mrb[0].mxu0
        %4933 = vmatprep.mubr.bf16.mxu0 0
        %4934 = vmatmul.mubr.bf16.gmra.mrb[0].mxu0 %v4831
        %v4935 = vpop.f32.mrb[0].mxu0
        %v4936 = vadd.f32 0.0, %v4935
        %v4937 = vpop.f32.mrb[0].mxu0
        %v4938 = vpop.f32.mrb[0].mxu0
        %v4939 = vadd.f32 0.0, %v4938
        %v4940 = vpop.f32.mrb[0].mxu0
        %4941 = vmatprep.mubr.bf16.mxu0 0
        %4942 = vmatmul.mubr.bf16.gmra.mrb[0].mxu0 %v4834
        %v4943 = vpop.f32.mrb[0].mxu0
        %v4944 = vadd.f32 0.0, %v4943
        %v4945 = vpop.f32.mrb[0].mxu0
        %v4946 = vpop.f32.mrb[0].mxu0
        %v4947 = vadd.f32 0.0, %v4946
        %v4948 = vpop.f32.mrb[0].mxu0
        %4949 = vmatprep.mubr.bf16.mxu0 0
        %4950 = vmatmul.mubr.bf16.gmra.mrb[0].mxu0 %v4837
        %v4951 = vpop.f32.mrb[0].mxu0
        %v4952 = vadd.f32 0.0, %v4951
        %v4953 = vpop.f32.mrb[0].mxu0
        %v4954 = vpop.f32.mrb[0].mxu0
        %v4955 = vadd.f32 0.0, %v4954
        %v4956 = vpop.f32.mrb[0].mxu0
        %4957 = vmatprep.mubr.bf16.mxu0 0
        %4958 = vmatmul.mubr.bf16.gmra.mrb[0].mxu0 %v4840
        %v4959 = vpop.f32.mrb[0].mxu0
        %v4960 = vadd.f32 0.0, %v4959
        %v4961 = vpop.f32.mrb[0].mxu0
        %v4962 = vpop.f32.mrb[0].mxu0
        %v4963 = vadd.f32 0.0, %v4962
        %v4964 = vpop.f32.mrb[0].mxu0
        %4965 = vmatprep.mubr.bf16.mxu0 0
        %4966 = vmatmul.mubr.bf16.gmra.mrb[0].mxu0 %v4843
        %v4967 = vpop.f32.mrb[0].mxu0
        %v4968 = vadd.f32 0.0, %v4967
        %v4969 = vpop.f32.mrb[0].mxu0
        %v4970 = vpop.f32.mrb[0].mxu0
        %v4971 = vadd.f32 0.0, %v4970
        %v4972 = vpop.f32.mrb[0].mxu0
        %4973 = vmatprep.mubr.bf16.mxu0 0
        %4974 = vmatmul.mubr.bf16.gmra.mrb[0].mxu0 %v4846
        %v4975 = vpop.f32.mrb[0].mxu0
        %v4976 = vadd.f32 0.0, %v4975
        %v4977 = vpop.f32.mrb[0].mxu0
        %v4978 = vpop.f32.mrb[0].mxu0
        %v4979 = vadd.f32 0.0, %v4978
        %v4980 = vpop.f32.mrb[0].mxu0
        %4981 = vmatprep.mubr.bf16.mxu0 0
        %4982 = vmatmul.mubr.bf16.gmra.mrb[0].mxu0 %v4849
        %v4983 = vpop.f32.mrb[0].mxu0
        %v4984 = vadd.f32 0.0, %v4983
        %v4985 = vpop.f32.mrb[0].mxu0
        %v4986 = vpop.f32.mrb[0].mxu0
        %v4987 = vadd.f32 0.0, %v4986
        %v4988 = vpop.f32.mrb[0].mxu0
        %4989 = vmatprep.mubr.bf16.mxu0 0
        %4990 = vmatmul.mubr.bf16.gmra.mrb[0].mxu0 %v4852
        %v4991 = vpop.f32.mrb[0].mxu0
        %v4992 = vadd.f32 0.0, %v4991
        %v4993 = vpop.f32.mrb[0].mxu0
        %v4994 = vpop.f32.mrb[0].mxu0
        %v4995 = vadd.f32 0.0, %v4994
        %v4996 = vpop.f32.mrb[0].mxu0
        %4997 = vmatprep.mubr.bf16.mxu0 0
        %4998 = vmatmul.mubr.bf16.gmra.mrb[0].mxu0 %v4855
        %v4999 = vpop.f32.mrb[0].mxu0
        %v5000 = vadd.f32 0.0, %v4999
        %v5001 = vpop.f32.mrb[0].mxu0
        %v5002 = vpop.f32.mrb[0].mxu0
        %v5003 = vadd.f32 0.0, %v5002
        %v5004 = vpop.f32.mrb[0].mxu0
        %5005 = vmatprep.mubr.bf16.mxu0 0
        %5006 = vmatmul.mubr.bf16.gmra.mrb[0].mxu0 %v4858
        %v5007 = vpop.f32.mrb[0].mxu0
        %v5008 = vadd.f32 0.0, %v5007
        %v5009 = vpop.f32.mrb[0].mxu0
        %v5010 = vpop.f32.mrb[0].mxu0
        %v5011 = vadd.f32 0.0, %v5010
        %v5012 = vpop.f32.mrb[0].mxu0
        %5013 = vmatprep.mubr.bf16.mxu0 0
        %5014 = vmatmul.mubr.bf16.gmra.mrb[0].mxu0 %v4861
        %v5015 = vpop.f32.mrb[0].mxu0
        %v5016 = vadd.f32 0.0, %v5015
        %v5017 = vpop.f32.mrb[0].mxu0
        %v5018 = vpop.f32.mrb[0].mxu0
        %v5019 = vadd.f32 0.0, %v5018
        %v5020 = vpop.f32.mrb[0].mxu0
        %5021 = vmatprep.mubr.bf16.mxu0 0
        %5022 = vmatmul.mubr.bf16.gmra.mrb[0].mxu0 %v4864
        %v5023 = vpop.f32.mrb[0].mxu0
        %v5024 = vadd.f32 0.0, %v5023
        %v5025 = vpop.f32.mrb[0].mxu0
        %v5026 = vpop.f32.mrb[0].mxu0
        %v5027 = vadd.f32 0.0, %v5026
        %v5028 = vpop.f32.mrb[0].mxu0
        %5029 = vdwg.mxu0
        %v5030 = vadd.f32 %v4301, %v4904
        %v5031 = vadd.f32 %v4302, %v4907
        %v5032 = vadd.f32 %v4303, %v4912
        %v5033 = vadd.f32 %v4304, %v4915
        %v5034 = vadd.f32 %v4305, %v4920
        %v5035 = vadd.f32 %v4306, %v4923
        %v5036 = vadd.f32 %v4307, %v4928
        %v5037 = vadd.f32 %v4308, %v4931
        %v5038 = vadd.f32 %v4309, %v4936
        %v5039 = vadd.f32 %v4310, %v4939
        %v5040 = vadd.f32 %v4311, %v4944
        %v5041 = vadd.f32 %v4312, %v4947
        %v5042 = vadd.f32 %v4313, %v4952
        %v5043 = vadd.f32 %v4314, %v4955
        %v5044 = vadd.f32 %v4315, %v4960
        %v5045 = vadd.f32 %v4316, %v4963
        %v5046 = vadd.f32 %v4317, %v4968
        %v5047 = vadd.f32 %v4318, %v4971
        %v5048 = vadd.f32 %v4319, %v4976
        %v5049 = vadd.f32 %v4320, %v4979
        %v5050 = vadd.f32 %v4321, %v4984
        %v5051 = vadd.f32 %v4322, %v4987
        %v5052 = vadd.f32 %v4323, %v4992
        %v5053 = vadd.f32 %v4324, %v4995
        %v5054 = vadd.f32 %v4325, %v5000
        %v5055 = vadd.f32 %v4326, %v5003
        %v5056 = vadd.f32 %v4327, %v5008
        %v5057 = vadd.f32 %v4328, %v5011
        %v5058 = vadd.f32 %v4329, %v5016
        %v5059 = vadd.f32 %v4330, %v5019
        %v5060 = vadd.f32 %v4331, %v5024
        %v5061 = vadd.f32 %v4332, %v5027
        %5062 = vst [vmem:[#allocation2] sm:$0xff] %v5030
        %5063 = vst [vmem:[#allocation2 + $0x8] sm:$0xff] %v5031
        %5064 = vst [vmem:[#allocation2 + $0x10] sm:$0xff] %v5032
        %5065 = vst [vmem:[#allocation2 + $0x18] sm:$0xff] %v5033
        %5066 = vst [vmem:[#allocation2 + $0x20] sm:$0xff] %v5034
        %5067 = vst [vmem:[#allocation2 + $0x28] sm:$0xff] %v5035
        %5068 = vst [vmem:[#allocation2 + $0x30] sm:$0xff] %v5036
        %5069 = vst [vmem:[#allocation2 + $0x38] sm:$0xff] %v5037
        %5070 = vst [vmem:[#allocation2 + $0x40] sm:$0xff] %v5038
        %5071 = vst [vmem:[#allocation2 + $0x48] sm:$0xff] %v5039
        %5072 = vst [vmem:[#allocation2 + $0x50] sm:$0xff] %v5040
        %5073 = vst [vmem:[#allocation2 + $0x58] sm:$0xff] %v5041
        %5074 = vst [vmem:[#allocation2 + $0x60] sm:$0xff] %v5042
        %5075 = vst [vmem:[#allocation2 + $0x68] sm:$0xff] %v5043
        %5076 = vst [vmem:[#allocation2 + $0x70] sm:$0xff] %v5044
        %5077 = vst [vmem:[#allocation2 + $0x78] sm:$0xff] %v5045
        %5078 = vst [vmem:[#allocation2 + $0x80] sm:$0xff] %v5046
        %5079 = vst [vmem:[#allocation2 + $0x88] sm:$0xff] %v5047
        %5080 = vst [vmem:[#allocation2 + $0x90] sm:$0xff] %v5048
        %5081 = vst [vmem:[#allocation2 + $0x98] sm:$0xff] %v5049
        %5082 = vst [vmem:[#allocation2 + $0xa0] sm:$0xff] %v5050
        %5083 = vst [vmem:[#allocation2 + $0xa8] sm:$0xff] %v5051
        %5084 = vst [vmem:[#allocation2 + $0xb0] sm:$0xff] %v5052
        %5085 = vst [vmem:[#allocation2 + $0xb8] sm:$0xff] %v5053
        %5086 = vst [vmem:[#allocation2 + $0xc0] sm:$0xff] %v5054
        %5087 = vst [vmem:[#allocation2 + $0xc8] sm:$0xff] %v5055
        %5088 = vst [vmem:[#allocation2 + $0xd0] sm:$0xff] %v5056
        %5089 = vst [vmem:[#allocation2 + $0xd8] sm:$0xff] %v5057
        %5090 = vst [vmem:[#allocation2 + $0xe0] sm:$0xff] %v5058
        %5091 = vst [vmem:[#allocation2 + $0xe8] sm:$0xff] %v5059
        %5092 = vst [vmem:[#allocation2 + $0xf0] sm:$0xff] %v5060
        %5093 = vst [vmem:[#allocation2 + $0xf8] sm:$0xff] %v5061
        %v5094 = vld [vmem:[#allocation2] sm:$0xff]
        %v5095 = vld [vmem:[#allocation2 + $0x8] sm:$0xff]
        %v5096 = vld [vmem:[#allocation2 + $0x10] sm:$0xff]
        %v5097 = vld [vmem:[#allocation2 + $0x18] sm:$0xff]
        %v5098 = vld [vmem:[#allocation2 + $0x20] sm:$0xff]
        %v5099 = vld [vmem:[#allocation2 + $0x28] sm:$0xff]
        %v5100 = vld [vmem:[#allocation2 + $0x30] sm:$0xff]
        %v5101 = vld [vmem:[#allocation2 + $0x38] sm:$0xff]
        %v5102 = vld [vmem:[#allocation2 + $0x40] sm:$0xff]
        %v5103 = vld [vmem:[#allocation2 + $0x48] sm:$0xff]
        %v5104 = vld [vmem:[#allocation2 + $0x50] sm:$0xff]
        %v5105 = vld [vmem:[#allocation2 + $0x58] sm:$0xff]
        %v5106 = vld [vmem:[#allocation2 + $0x60] sm:$0xff]
        %v5107 = vld [vmem:[#allocation2 + $0x68] sm:$0xff]
        %v5108 = vld [vmem:[#allocation2 + $0x70] sm:$0xff]
        %v5109 = vld [vmem:[#allocation2 + $0x78] sm:$0xff]
        %v5110 = vld [vmem:[#allocation2 + $0x80] sm:$0xff]
        %v5111 = vld [vmem:[#allocation2 + $0x88] sm:$0xff]
        %v5112 = vld [vmem:[#allocation2 + $0x90] sm:$0xff]
        %v5113 = vld [vmem:[#allocation2 + $0x98] sm:$0xff]
        %v5114 = vld [vmem:[#allocation2 + $0xa0] sm:$0xff]
        %v5115 = vld [vmem:[#allocation2 + $0xa8] sm:$0xff]
        %v5116 = vld [vmem:[#allocation2 + $0xb0] sm:$0xff]
        %v5117 = vld [vmem:[#allocation2 + $0xb8] sm:$0xff]
        %v5118 = vld [vmem:[#allocation2 + $0xc0] sm:$0xff]
        %v5119 = vld [vmem:[#allocation2 + $0xc8] sm:$0xff]
        %v5120 = vld [vmem:[#allocation2 + $0xd0] sm:$0xff]
        %v5121 = vld [vmem:[#allocation2 + $0xd8] sm:$0xff]
        %v5122 = vld [vmem:[#allocation2 + $0xe0] sm:$0xff]
        %v5123 = vld [vmem:[#allocation2 + $0xe8] sm:$0xff]
        %v5124 = vld [vmem:[#allocation2 + $0xf0] sm:$0xff]
        %v5125 = vld [vmem:[#allocation2 + $0xf8] sm:$0xff]
        %v5126 = vld [vmem:[%s3911] sm:$0xe]
        %v5127 = vld [vmem:[%s3911 + $0x4] sm:$0xf]
        %v5128 = vld [vmem:[%s3911 + $0x8] sm:$0x1]
        %v5129 = vld [vmem:[%s3911 + $0xc] sm:$0xe]
        %v5130 = vld [vmem:[%s3911 + $0x10] sm:$0xf]
        %v5131 = vld [vmem:[%s3911 + $0x14] sm:$0x1]
        %v5132 = vld [vmem:[%s3911 + $0x18] sm:$0xe]
        %v5133 = vld [vmem:[%s3911 + $0x1c] sm:$0xf]
        %v5134 = vld [vmem:[%s3911 + $0x20] sm:$0x1]
        %v5135 = vld [vmem:[%s3911 + $0x24] sm:$0xe]
        %v5136 = vld [vmem:[%s3911 + $0x28] sm:$0xf]
        %v5137 = vld [vmem:[%s3911 + $0x2c] sm:$0x1]
        %v5138 = vld [vmem:[%s3911 + $0x30] sm:$0xe]
        %v5139 = vld [vmem:[%s3911 + $0x34] sm:$0xf]
        %v5140 = vld [vmem:[%s3911 + $0x38] sm:$0x1]
        %v5141 = vld [vmem:[%s3911 + $0x3c] sm:$0xe]
        %v5142 = vld [vmem:[%s3911 + $0x40] sm:$0xf]
        %v5143 = vld [vmem:[%s3911 + $0x44] sm:$0x1]
        %v5144 = vld [vmem:[%s3911 + $0x48] sm:$0xe]
        %v5145 = vld [vmem:[%s3911 + $0x4c] sm:$0xf]
        %v5146 = vld [vmem:[%s3911 + $0x50] sm:$0x1]
        %v5147 = vld [vmem:[%s3911 + $0x54] sm:$0xe]
        %v5148 = vld [vmem:[%s3911 + $0x58] sm:$0xf]
        %v5149 = vld [vmem:[%s3911 + $0x5c] sm:$0x1]
        %v5150 = vld [vmem:[%s3911 + $0x60] sm:$0xe]
        %v5151 = vld [vmem:[%s3911 + $0x64] sm:$0xf]
        %v5152 = vld [vmem:[%s3911 + $0x68] sm:$0x1]
        %v5153 = vld [vmem:[%s3911 + $0x6c] sm:$0xe]
        %v5154 = vld [vmem:[%s3911 + $0x70] sm:$0xf]
        %v5155 = vld [vmem:[%s3911 + $0x74] sm:$0x1]
        %v5156 = vld [vmem:[%s3911 + $0x78] sm:$0xe]
        %v5157 = vld [vmem:[%s3911 + $0x7c] sm:$0xf]
        %v5158 = vld [vmem:[%s3911 + $0x80] sm:$0x1]
        %v5159 = vld [vmem:[%s3911 + $0x84] sm:$0xe]
        %v5160 = vld [vmem:[%s3911 + $0x88] sm:$0xf]
        %v5161 = vld [vmem:[%s3911 + $0x8c] sm:$0x1]
        %v5162 = vld [vmem:[%s3911 + $0x90] sm:$0xe]
        %v5163 = vld [vmem:[%s3911 + $0x94] sm:$0xf]
        %v5164 = vld [vmem:[%s3911 + $0x98] sm:$0x1]
        %v5165 = vld [vmem:[%s3911 + $0x9c] sm:$0xe]
        %v5166 = vld [vmem:[%s3911 + $0xa0] sm:$0xf]
        %v5167 = vld [vmem:[%s3911 + $0xa4] sm:$0x1]
        %v5168 = vld [vmem:[%s3911 + $0xa8] sm:$0xe]
        %v5169 = vld [vmem:[%s3911 + $0xac] sm:$0xf]
        %v5170 = vld [vmem:[%s3911 + $0xb0] sm:$0x1]
        %v5171 = vld [vmem:[%s3911 + $0xb4] sm:$0xe]
        %v5172 = vld [vmem:[%s3911 + $0xb8] sm:$0xf]
        %v5173 = vld [vmem:[%s3911 + $0xbc] sm:$0x1]
        %v5222 = vrot.slane %v5126, 5
        %v5223 = vrot.slane %v5222, 4
        %v5224 = vrot.slane %v5127, 5
        %v5225 = vsel %vm1651, %v5223, %v5224
        %v5226 = vrot.slane %v5224, 4
        %v5227 = vrot.slane %v5128, 5
        %v5228 = vsel %vm1651, %v5226, %v5227
        %v5229 = vrot.slane %v5129, 5
        %v5230 = vrot.slane %v5229, 4
        %v5231 = vrot.slane %v5130, 5
        %v5232 = vsel %vm1651, %v5230, %v5231
        %v5233 = vrot.slane %v5231, 4
        %v5234 = vrot.slane %v5131, 5
        %v5235 = vsel %vm1651, %v5233, %v5234
        %v5236 = vrot.slane %v5132, 5
        %v5237 = vrot.slane %v5236, 4
        %v5238 = vrot.slane %v5133, 5
        %v5239 = vsel %vm1651, %v5237, %v5238
        %v5240 = vrot.slane %v5238, 4
        %v5241 = vrot.slane %v5134, 5
        %v5242 = vsel %vm1651, %v5240, %v5241
        %v5243 = vrot.slane %v5135, 5
        %v5244 = vrot.slane %v5243, 4
        %v5245 = vrot.slane %v5136, 5
        %v5246 = vsel %vm1651, %v5244, %v5245
        %v5247 = vrot.slane %v5245, 4
        %v5248 = vrot.slane %v5137, 5
        %v5249 = vsel %vm1651, %v5247, %v5248
        %v5250 = vrot.slane %v5138, 5
        %v5251 = vrot.slane %v5250, 4
        %v5252 = vrot.slane %v5139, 5
        %v5253 = vsel %vm1651, %v5251, %v5252
        %v5254 = vrot.slane %v5252, 4
        %v5255 = vrot.slane %v5140, 5
        %v5256 = vsel %vm1651, %v5254, %v5255
        %v5257 = vrot.slane %v5141, 5
        %v5258 = vrot.slane %v5257, 4
        %v5259 = vrot.slane %v5142, 5
        %v5260 = vsel %vm1651, %v5258, %v5259
        %v5261 = vrot.slane %v5259, 4
        %v5262 = vrot.slane %v5143, 5
        %v5263 = vsel %vm1651, %v5261, %v5262
        %v5264 = vrot.slane %v5144, 5
        %v5265 = vrot.slane %v5264, 4
        %v5266 = vrot.slane %v5145, 5
        %v5267 = vsel %vm1651, %v5265, %v5266
        %v5268 = vrot.slane %v5266, 4
        %v5269 = vrot.slane %v5146, 5
        %v5270 = vsel %vm1651, %v5268, %v5269
        %v5271 = vrot.slane %v5147, 5
        %v5272 = vrot.slane %v5271, 4
        %v5273 = vrot.slane %v5148, 5
        %v5274 = vsel %vm1651, %v5272, %v5273
        %v5275 = vrot.slane %v5273, 4
        %v5276 = vrot.slane %v5149, 5
        %v5277 = vsel %vm1651, %v5275, %v5276
        %v5278 = vrot.slane %v5150, 5
        %v5279 = vrot.slane %v5278, 4
        %v5280 = vrot.slane %v5151, 5
        %v5281 = vsel %vm1651, %v5279, %v5280
        %v5282 = vrot.slane %v5280, 4
        %v5283 = vrot.slane %v5152, 5
        %v5284 = vsel %vm1651, %v5282, %v5283
        %v5285 = vrot.slane %v5153, 5
        %v5286 = vrot.slane %v5285, 4
        %v5287 = vrot.slane %v5154, 5
        %v5288 = vsel %vm1651, %v5286, %v5287
        %v5289 = vrot.slane %v5287, 4
        %v5290 = vrot.slane %v5155, 5
        %v5291 = vsel %vm1651, %v5289, %v5290
        %v5292 = vrot.slane %v5156, 5
        %v5293 = vrot.slane %v5292, 4
        %v5294 = vrot.slane %v5157, 5
        %v5295 = vsel %vm1651, %v5293, %v5294
        %v5296 = vrot.slane %v5294, 4
        %v5297 = vrot.slane %v5158, 5
        %v5298 = vsel %vm1651, %v5296, %v5297
        %v5299 = vrot.slane %v5159, 5
        %v5300 = vrot.slane %v5299, 4
        %v5301 = vrot.slane %v5160, 5
        %v5302 = vsel %vm1651, %v5300, %v5301
        %v5303 = vrot.slane %v5301, 4
        %v5304 = vrot.slane %v5161, 5
        %v5305 = vsel %vm1651, %v5303, %v5304
        %v5306 = vrot.slane %v5162, 5
        %v5307 = vrot.slane %v5306, 4
        %v5308 = vrot.slane %v5163, 5
        %v5309 = vsel %vm1651, %v5307, %v5308
        %v5310 = vrot.slane %v5308, 4
        %v5311 = vrot.slane %v5164, 5
        %v5312 = vsel %vm1651, %v5310, %v5311
        %v5313 = vrot.slane %v5165, 5
        %v5314 = vrot.slane %v5313, 4
        %v5315 = vrot.slane %v5166, 5
        %v5316 = vsel %vm1651, %v5314, %v5315
        %v5317 = vrot.slane %v5315, 4
        %v5318 = vrot.slane %v5167, 5
        %v5319 = vsel %vm1651, %v5317, %v5318
        %v5320 = vrot.slane %v5168, 5
        %v5321 = vrot.slane %v5320, 4
        %v5322 = vrot.slane %v5169, 5
        %v5323 = vsel %vm1651, %v5321, %v5322
        %v5324 = vrot.slane %v5322, 4
        %v5325 = vrot.slane %v5170, 5
        %v5326 = vsel %vm1651, %v5324, %v5325
        %v5327 = vrot.slane %v5171, 5
        %v5328 = vrot.slane %v5327, 4
        %v5329 = vrot.slane %v5172, 5
        %v5330 = vsel %vm1651, %v5328, %v5329
        %v5331 = vrot.slane %v5329, 4
        %v5332 = vrot.slane %v5173, 5
        %v5333 = vsel %vm1651, %v5331, %v5332
        %v5334 = vld [vmem:[%s257 + $0x10] sm:$0x3]
        %v5335 = vunpack.c.l.b16 %v5225
        %v5336 = vunpack.c.l.b16 %v5228
        %v5337 = vunpack.c.l.b16 %v5232
        %v5338 = vunpack.c.l.b16 %v5235
        %v5339 = vunpack.c.l.b16 %v5239
        %v5340 = vunpack.c.l.b16 %v5242
        %v5341 = vunpack.c.l.b16 %v5246
        %v5342 = vunpack.c.l.b16 %v5249
        %v5343 = vunpack.c.l.b16 %v5253
        %v5344 = vunpack.c.l.b16 %v5256
        %v5345 = vunpack.c.l.b16 %v5260
        %v5346 = vunpack.c.l.b16 %v5263
        %v5347 = vunpack.c.l.b16 %v5267
        %v5348 = vunpack.c.l.b16 %v5270
        %v5349 = vunpack.c.l.b16 %v5274
        %v5350 = vunpack.c.l.b16 %v5277
        %v5351 = vunpack.c.l.b16 %v5281
        %v5352 = vunpack.c.l.b16 %v5284
        %v5353 = vunpack.c.l.b16 %v5288
        %v5354 = vunpack.c.l.b16 %v5291
        %v5355 = vunpack.c.l.b16 %v5295
        %v5356 = vunpack.c.l.b16 %v5298
        %v5357 = vunpack.c.l.b16 %v5302
        %v5358 = vunpack.c.l.b16 %v5305
        %v5359 = vunpack.c.l.b16 %v5309
        %v5360 = vunpack.c.l.b16 %v5312
        %v5361 = vunpack.c.l.b16 %v5316
        %v5362 = vunpack.c.l.b16 %v5319
        %v5363 = vunpack.c.l.b16 %v5323
        %v5364 = vunpack.c.l.b16 %v5326
        %v5365 = vunpack.c.l.b16 %v5330
        %v5366 = vunpack.c.l.b16 %v5333
        %v5367 = vpack.c.b16 %v5336, %v5335
        %v5368 = vpack.c.b16 %v5338, %v5337
        %v5369 = vpack.c.b16 %v5340, %v5339
        %v5370 = vpack.c.b16 %v5342, %v5341
        %v5371 = vpack.c.b16 %v5344, %v5343
        %v5372 = vpack.c.b16 %v5346, %v5345
        %v5373 = vpack.c.b16 %v5348, %v5347
        %v5374 = vpack.c.b16 %v5350, %v5349
        %v5375 = vpack.c.b16 %v5352, %v5351
        %v5376 = vpack.c.b16 %v5354, %v5353
        %v5377 = vpack.c.b16 %v5356, %v5355
        %v5378 = vpack.c.b16 %v5358, %v5357
        %v5379 = vpack.c.b16 %v5360, %v5359
        %v5380 = vpack.c.b16 %v5362, %v5361
        %v5381 = vpack.c.b16 %v5364, %v5363
        %v5382 = vpack.c.b16 %v5366, %v5365
        %v5384 = vsel %vm447, %v5367, 0
        %v5387 = vsel %vm447, %v5368, 0
        %v5390 = vsel %vm447, %v5369, 0
        %v5393 = vsel %vm447, %v5370, 0
        %v5396 = vsel %vm447, %v5371, 0
        %v5399 = vsel %vm447, %v5372, 0
        %v5402 = vsel %vm447, %v5373, 0
        %v5405 = vsel %vm447, %v5374, 0
        %v5408 = vsel %vm447, %v5375, 0
        %v5411 = vsel %vm447, %v5376, 0
        %v5414 = vsel %vm447, %v5377, 0
        %v5417 = vsel %vm447, %v5378, 0
        %v5420 = vsel %vm447, %v5379, 0
        %v5423 = vsel %vm447, %v5380, 0
        %v5426 = vsel %vm447, %v5381, 0
        %v5429 = vsel %vm447, %v5382, 0
        %v5432 = vsel %vm496, %v5334, 0
        %5434 = vmatprep.subr.bf16.mxu0 0
        %5435 = vmatpush1.bf16.msra.mxu0 %v5432
        %5436 = vmatprep.subr.bf16.mxu0 0
        %5437 = vmatpush1.bf16.msra.mxu0 0
        %5438 = vmatprep.subr.bf16.mxu0 0
        %5439 = vmatpush1.bf16.msra.mxu0 0
        %5440 = vmatprep.subr.bf16.mxu0 0
        %5441 = vmatpush1.bf16.msra.mxu0 0
        %5442 = vmatprep.subr.bf16.mxu0 0
        %5443 = vmatpush1.bf16.msra.mxu0 0
        %5444 = vmatprep.subr.bf16.mxu0 0
        %5445 = vmatpush1.bf16.msra.mxu0 0
        %5446 = vmatprep.subr.bf16.mxu0 0
        %5447 = vmatpush1.bf16.msra.mxu0 0
        %5448 = vmatprep.subr.bf16.mxu0 0
        %5449 = vmatpush1.bf16.msra.mxu0 0
        %5450 = vmatprep.subr.bf16.mxu0 0
        %5451 = vmatpush1.bf16.msra.mxu0 0
        %5452 = vmatprep.subr.bf16.mxu0 0
        %5453 = vmatpush1.bf16.msra.mxu0 0
        %5454 = vmatprep.subr.bf16.mxu0 0
        %5455 = vmatpush1.bf16.msra.mxu0 0
        %5456 = vmatprep.subr.bf16.mxu0 0
        %5457 = vmatpush1.bf16.msra.mxu0 0
        %5458 = vmatprep.subr.bf16.mxu0 0
        %5459 = vmatpush1.bf16.msra.mxu0 0
        %5460 = vmatprep.subr.bf16.mxu0 0
        %5461 = vmatpush1.bf16.msra.mxu0 0
        %5462 = vmatprep.subr.bf16.mxu0 0
        %5463 = vmatpush1.bf16.msra.mxu0 0
        %5464 = vmatprep.subr.bf16.mxu0 0
        %5465 = vmatpush1.bf16.msra.mxu0 0
        %5466 = vmatprep.mubr.bf16.mxu0 0
        %5467 = vmatmul.mubr.bf16.gmra.mrb[0].mxu0 %v5384
        %v5468 = vpop.f32.mrb[0].mxu0
        %v5469 = vadd.f32 0.0, %v5468
        %v5470 = vpop.f32.mrb[0].mxu0
        %v5471 = vpop.f32.mrb[0].mxu0
        %v5472 = vadd.f32 0.0, %v5471
        %v5473 = vpop.f32.mrb[0].mxu0
        %5474 = vmatprep.mubr.bf16.mxu0 0
        %5475 = vmatmul.mubr.bf16.gmra.mrb[0].mxu0 %v5387
        %v5476 = vpop.f32.mrb[0].mxu0
        %v5477 = vadd.f32 0.0, %v5476
        %v5478 = vpop.f32.mrb[0].mxu0
        %v5479 = vpop.f32.mrb[0].mxu0
        %v5480 = vadd.f32 0.0, %v5479
        %v5481 = vpop.f32.mrb[0].mxu0
        %5482 = vmatprep.mubr.bf16.mxu0 0
        %5483 = vmatmul.mubr.bf16.gmra.mrb[0].mxu0 %v5390
        %v5484 = vpop.f32.mrb[0].mxu0
        %v5485 = vadd.f32 0.0, %v5484
        %v5486 = vpop.f32.mrb[0].mxu0
        %v5487 = vpop.f32.mrb[0].mxu0
        %v5488 = vadd.f32 0.0, %v5487
        %v5489 = vpop.f32.mrb[0].mxu0
        %5490 = vmatprep.mubr.bf16.mxu0 0
        %5491 = vmatmul.mubr.bf16.gmra.mrb[0].mxu0 %v5393
        %v5492 = vpop.f32.mrb[0].mxu0
        %v5493 = vadd.f32 0.0, %v5492
        %v5494 = vpop.f32.mrb[0].mxu0
        %v5495 = vpop.f32.mrb[0].mxu0
        %v5496 = vadd.f32 0.0, %v5495
        %v5497 = vpop.f32.mrb[0].mxu0
        %5498 = vmatprep.mubr.bf16.mxu0 0
        %5499 = vmatmul.mubr.bf16.gmra.mrb[0].mxu0 %v5396
        %v5500 = vpop.f32.mrb[0].mxu0
        %v5501 = vadd.f32 0.0, %v5500
        %v5502 = vpop.f32.mrb[0].mxu0
        %v5503 = vpop.f32.mrb[0].mxu0
        %v5504 = vadd.f32 0.0, %v5503
        %v5505 = vpop.f32.mrb[0].mxu0
        %5506 = vmatprep.mubr.bf16.mxu0 0
        %5507 = vmatmul.mubr.bf16.gmra.mrb[0].mxu0 %v5399
        %v5508 = vpop.f32.mrb[0].mxu0
        %v5509 = vadd.f32 0.0, %v5508
        %v5510 = vpop.f32.mrb[0].mxu0
        %v5511 = vpop.f32.mrb[0].mxu0
        %v5512 = vadd.f32 0.0, %v5511
        %v5513 = vpop.f32.mrb[0].mxu0
        %5514 = vmatprep.mubr.bf16.mxu0 0
        %5515 = vmatmul.mubr.bf16.gmra.mrb[0].mxu0 %v5402
        %v5516 = vpop.f32.mrb[0].mxu0
        %v5517 = vadd.f32 0.0, %v5516
        %v5518 = vpop.f32.mrb[0].mxu0
        %v5519 = vpop.f32.mrb[0].mxu0
        %v5520 = vadd.f32 0.0, %v5519
        %v5521 = vpop.f32.mrb[0].mxu0
        %5522 = vmatprep.mubr.bf16.mxu0 0
        %5523 = vmatmul.mubr.bf16.gmra.mrb[0].mxu0 %v5405
        %v5524 = vpop.f32.mrb[0].mxu0
        %v5525 = vadd.f32 0.0, %v5524
        %v5526 = vpop.f32.mrb[0].mxu0
        %v5527 = vpop.f32.mrb[0].mxu0
        %v5528 = vadd.f32 0.0, %v5527
        %v5529 = vpop.f32.mrb[0].mxu0
        %5530 = vmatprep.mubr.bf16.mxu0 0
        %5531 = vmatmul.mubr.bf16.gmra.mrb[0].mxu0 %v5408
        %v5532 = vpop.f32.mrb[0].mxu0
        %v5533 = vadd.f32 0.0, %v5532
        %v5534 = vpop.f32.mrb[0].mxu0
        %v5535 = vpop.f32.mrb[0].mxu0
        %v5536 = vadd.f32 0.0, %v5535
        %v5537 = vpop.f32.mrb[0].mxu0
        %5538 = vmatprep.mubr.bf16.mxu0 0
        %5539 = vmatmul.mubr.bf16.gmra.mrb[0].mxu0 %v5411
        %v5540 = vpop.f32.mrb[0].mxu0
        %v5541 = vadd.f32 0.0, %v5540
        %v5542 = vpop.f32.mrb[0].mxu0
        %v5543 = vpop.f32.mrb[0].mxu0
        %v5544 = vadd.f32 0.0, %v5543
        %v5545 = vpop.f32.mrb[0].mxu0
        %5546 = vmatprep.mubr.bf16.mxu0 0
        %5547 = vmatmul.mubr.bf16.gmra.mrb[0].mxu0 %v5414
        %v5548 = vpop.f32.mrb[0].mxu0
        %v5549 = vadd.f32 0.0, %v5548
        %v5550 = vpop.f32.mrb[0].mxu0
        %v5551 = vpop.f32.mrb[0].mxu0
        %v5552 = vadd.f32 0.0, %v5551
        %v5553 = vpop.f32.mrb[0].mxu0
        %5554 = vmatprep.mubr.bf16.mxu0 0
        %5555 = vmatmul.mubr.bf16.gmra.mrb[0].mxu0 %v5417
        %v5556 = vpop.f32.mrb[0].mxu0
        %v5557 = vadd.f32 0.0, %v5556
        %v5558 = vpop.f32.mrb[0].mxu0
        %v5559 = vpop.f32.mrb[0].mxu0
        %v5560 = vadd.f32 0.0, %v5559
        %v5561 = vpop.f32.mrb[0].mxu0
        %5562 = vmatprep.mubr.bf16.mxu0 0
        %5563 = vmatmul.mubr.bf16.gmra.mrb[0].mxu0 %v5420
        %v5564 = vpop.f32.mrb[0].mxu0
        %v5565 = vadd.f32 0.0, %v5564
        %v5566 = vpop.f32.mrb[0].mxu0
        %v5567 = vpop.f32.mrb[0].mxu0
        %v5568 = vadd.f32 0.0, %v5567
        %v5569 = vpop.f32.mrb[0].mxu0
        %5570 = vmatprep.mubr.bf16.mxu0 0
        %5571 = vmatmul.mubr.bf16.gmra.mrb[0].mxu0 %v5423
        %v5572 = vpop.f32.mrb[0].mxu0
        %v5573 = vadd.f32 0.0, %v5572
        %v5574 = vpop.f32.mrb[0].mxu0
        %v5575 = vpop.f32.mrb[0].mxu0
        %v5576 = vadd.f32 0.0, %v5575
        %v5577 = vpop.f32.mrb[0].mxu0
        %5578 = vmatprep.mubr.bf16.mxu0 0
        %5579 = vmatmul.mubr.bf16.gmra.mrb[0].mxu0 %v5426
        %v5580 = vpop.f32.mrb[0].mxu0
        %v5581 = vadd.f32 0.0, %v5580
        %v5582 = vpop.f32.mrb[0].mxu0
        %v5583 = vpop.f32.mrb[0].mxu0
        %v5584 = vadd.f32 0.0, %v5583
        %v5585 = vpop.f32.mrb[0].mxu0
        %5586 = vmatprep.mubr.bf16.mxu0 0
        %5587 = vmatmul.mubr.bf16.gmra.mrb[0].mxu0 %v5429
        %v5588 = vpop.f32.mrb[0].mxu0
        %v5589 = vadd.f32 0.0, %v5588
        %v5590 = vpop.f32.mrb[0].mxu0
        %v5591 = vpop.f32.mrb[0].mxu0
        %v5592 = vadd.f32 0.0, %v5591
        %v5593 = vpop.f32.mrb[0].mxu0
        %5594 = vdwg.mxu0
        %v5595 = vadd.f32 %v5094, %v5469
        %v5596 = vadd.f32 %v5095, %v5472
        %v5597 = vadd.f32 %v5096, %v5477
        %v5598 = vadd.f32 %v5097, %v5480
        %v5599 = vadd.f32 %v5098, %v5485
        %v5600 = vadd.f32 %v5099, %v5488
        %v5601 = vadd.f32 %v5100, %v5493
        %v5602 = vadd.f32 %v5101, %v5496
        %v5603 = vadd.f32 %v5102, %v5501
        %v5604 = vadd.f32 %v5103, %v5504
        %v5605 = vadd.f32 %v5104, %v5509
        %v5606 = vadd.f32 %v5105, %v5512
        %v5607 = vadd.f32 %v5106, %v5517
        %v5608 = vadd.f32 %v5107, %v5520
        %v5609 = vadd.f32 %v5108, %v5525
        %v5610 = vadd.f32 %v5109, %v5528
        %v5611 = vadd.f32 %v5110, %v5533
        %v5612 = vadd.f32 %v5111, %v5536
        %v5613 = vadd.f32 %v5112, %v5541
        %v5614 = vadd.f32 %v5113, %v5544
        %v5615 = vadd.f32 %v5114, %v5549
        %v5616 = vadd.f32 %v5115, %v5552
        %v5617 = vadd.f32 %v5116, %v5557
        %v5618 = vadd.f32 %v5117, %v5560
        %v5619 = vadd.f32 %v5118, %v5565
        %v5620 = vadd.f32 %v5119, %v5568
        %v5621 = vadd.f32 %v5120, %v5573
        %v5622 = vadd.f32 %v5121, %v5576
        %v5623 = vadd.f32 %v5122, %v5581
        %v5624 = vadd.f32 %v5123, %v5584
        %v5625 = vadd.f32 %v5124, %v5589
        %v5626 = vadd.f32 %v5125, %v5592
        %5627 = vst [vmem:[#allocation2] sm:$0xff] %v5595
        %5628 = vst [vmem:[#allocation2 + $0x8] sm:$0xff] %v5596
        %5629 = vst [vmem:[#allocation2 + $0x10] sm:$0xff] %v5597
        %5630 = vst [vmem:[#allocation2 + $0x18] sm:$0xff] %v5598
        %5631 = vst [vmem:[#allocation2 + $0x20] sm:$0xff] %v5599
        %5632 = vst [vmem:[#allocation2 + $0x28] sm:$0xff] %v5600
        %5633 = vst [vmem:[#allocation2 + $0x30] sm:$0xff] %v5601
        %5634 = vst [vmem:[#allocation2 + $0x38] sm:$0xff] %v5602
        %5635 = vst [vmem:[#allocation2 + $0x40] sm:$0xff] %v5603
        %5636 = vst [vmem:[#allocation2 + $0x48] sm:$0xff] %v5604
        %5637 = vst [vmem:[#allocation2 + $0x50] sm:$0xff] %v5605
        %5638 = vst [vmem:[#allocation2 + $0x58] sm:$0xff] %v5606
        %5639 = vst [vmem:[#allocation2 + $0x60] sm:$0xff] %v5607
        %5640 = vst [vmem:[#allocation2 + $0x68] sm:$0xff] %v5608
        %5641 = vst [vmem:[#allocation2 + $0x70] sm:$0xff] %v5609
        %5642 = vst [vmem:[#allocation2 + $0x78] sm:$0xff] %v5610
        %5643 = vst [vmem:[#allocation2 + $0x80] sm:$0xff] %v5611
        %5644 = vst [vmem:[#allocation2 + $0x88] sm:$0xff] %v5612
        %5645 = vst [vmem:[#allocation2 + $0x90] sm:$0xff] %v5613
        %5646 = vst [vmem:[#allocation2 + $0x98] sm:$0xff] %v5614
        %5647 = vst [vmem:[#allocation2 + $0xa0] sm:$0xff] %v5615
        %5648 = vst [vmem:[#allocation2 + $0xa8] sm:$0xff] %v5616
        %5649 = vst [vmem:[#allocation2 + $0xb0] sm:$0xff] %v5617
        %5650 = vst [vmem:[#allocation2 + $0xb8] sm:$0xff] %v5618
        %5651 = vst [vmem:[#allocation2 + $0xc0] sm:$0xff] %v5619
        %5652 = vst [vmem:[#allocation2 + $0xc8] sm:$0xff] %v5620
        %5653 = vst [vmem:[#allocation2 + $0xd0] sm:$0xff] %v5621
        %5654 = vst [vmem:[#allocation2 + $0xd8] sm:$0xff] %v5622
        %5655 = vst [vmem:[#allocation2 + $0xe0] sm:$0xff] %v5623
        %5656 = vst [vmem:[#allocation2 + $0xe8] sm:$0xff] %v5624
        %5657 = vst [vmem:[#allocation2 + $0xf0] sm:$0xff] %v5625
        %5658 = vst [vmem:[#allocation2 + $0xf8] sm:$0xff] %v5626
        %v5659 = vld [vmem:[#allocation2] sm:$0xff]
        %v5660 = vld [vmem:[#allocation2 + $0x8] sm:$0xff]
        %v5661 = vld [vmem:[#allocation2 + $0x10] sm:$0xff]
        %v5662 = vld [vmem:[#allocation2 + $0x18] sm:$0xff]
        %v5663 = vld [vmem:[#allocation2 + $0x20] sm:$0xff]
        %v5664 = vld [vmem:[#allocation2 + $0x28] sm:$0xff]
        %v5665 = vld [vmem:[#allocation2 + $0x30] sm:$0xff]
        %v5666 = vld [vmem:[#allocation2 + $0x38] sm:$0xff]
        %v5667 = vld [vmem:[#allocation2 + $0x40] sm:$0xff]
        %v5668 = vld [vmem:[#allocation2 + $0x48] sm:$0xff]
        %v5669 = vld [vmem:[#allocation2 + $0x50] sm:$0xff]
        %v5670 = vld [vmem:[#allocation2 + $0x58] sm:$0xff]
        %v5671 = vld [vmem:[#allocation2 + $0x60] sm:$0xff]
        %v5672 = vld [vmem:[#allocation2 + $0x68] sm:$0xff]
        %v5673 = vld [vmem:[#allocation2 + $0x70] sm:$0xff]
        %v5674 = vld [vmem:[#allocation2 + $0x78] sm:$0xff]
        %v5675 = vld [vmem:[#allocation2 + $0x80] sm:$0xff]
        %v5676 = vld [vmem:[#allocation2 + $0x88] sm:$0xff]
        %v5677 = vld [vmem:[#allocation2 + $0x90] sm:$0xff]
        %v5678 = vld [vmem:[#allocation2 + $0x98] sm:$0xff]
        %v5679 = vld [vmem:[#allocation2 + $0xa0] sm:$0xff]
        %v5680 = vld [vmem:[#allocation2 + $0xa8] sm:$0xff]
        %v5681 = vld [vmem:[#allocation2 + $0xb0] sm:$0xff]
        %v5682 = vld [vmem:[#allocation2 + $0xb8] sm:$0xff]
        %v5683 = vld [vmem:[#allocation2 + $0xc0] sm:$0xff]
        %v5684 = vld [vmem:[#allocation2 + $0xc8] sm:$0xff]
        %v5685 = vld [vmem:[#allocation2 + $0xd0] sm:$0xff]
        %v5686 = vld [vmem:[#allocation2 + $0xd8] sm:$0xff]
        %v5687 = vld [vmem:[#allocation2 + $0xe0] sm:$0xff]
        %v5688 = vld [vmem:[#allocation2 + $0xe8] sm:$0xff]
        %v5689 = vld [vmem:[#allocation2 + $0xf0] sm:$0xff]
        %v5690 = vld [vmem:[#allocation2 + $0xf8] sm:$0xff]
        %v5691 = vld [vmem:[%s260] sm:$0x1]
        %v5693 = vlaneseq
        %v5694 = vshrl.u32 %v5693, 7
        %v5695 = vsub.s32 0, %v5694
        %v5696 = vrot.slane %v5691, %v5695
        %v5698 = vmul.f32 %v5659, %v5696
        %v5699 = vmul.f32 %v5660, %v5696
        %v5700 = vmul.f32 %v5661, %v5696
        %v5701 = vmul.f32 %v5662, %v5696
        %v5702 = vmul.f32 %v5663, %v5696
        %v5703 = vmul.f32 %v5664, %v5696
        %v5704 = vmul.f32 %v5665, %v5696
        %v5705 = vmul.f32 %v5666, %v5696
        %v5706 = vmul.f32 %v5667, %v5696
        %v5707 = vmul.f32 %v5668, %v5696
        %v5708 = vmul.f32 %v5669, %v5696
        %v5709 = vmul.f32 %v5670, %v5696
        %v5710 = vmul.f32 %v5671, %v5696
        %v5711 = vmul.f32 %v5672, %v5696
        %v5712 = vmul.f32 %v5673, %v5696
        %v5713 = vmul.f32 %v5674, %v5696
        %v5714 = vmul.f32 %v5675, %v5696
        %v5715 = vmul.f32 %v5676, %v5696
        %v5716 = vmul.f32 %v5677, %v5696
        %v5717 = vmul.f32 %v5678, %v5696
        %v5718 = vmul.f32 %v5679, %v5696
        %v5719 = vmul.f32 %v5680, %v5696
        %v5720 = vmul.f32 %v5681, %v5696
        %v5721 = vmul.f32 %v5682, %v5696
        %v5722 = vmul.f32 %v5683, %v5696
        %v5723 = vmul.f32 %v5684, %v5696
        %v5724 = vmul.f32 %v5685, %v5696
        %v5725 = vmul.f32 %v5686, %v5696
        %v5726 = vmul.f32 %v5687, %v5696
        %v5727 = vmul.f32 %v5688, %v5696
        %v5728 = vmul.f32 %v5689, %v5696
        %v5729 = vmul.f32 %v5690, %v5696
        %v5730 = vld [vmem:[%s263] sm:$0x1]
        %v5732 = vlaneseq
        %v5733 = vshrl.u32 %v5732, 7
        %v5734 = vsub.s32 0, %v5733
        %v5735 = vrot.slane %v5730, %v5734
        %v5737 = vadd.f32 %v5698, %v5735
        %v5738 = vadd.f32 %v5699, %v5735
        %v5739 = vadd.f32 %v5700, %v5735
        %v5740 = vadd.f32 %v5701, %v5735
        %v5741 = vadd.f32 %v5702, %v5735
        %v5742 = vadd.f32 %v5703, %v5735
        %v5743 = vadd.f32 %v5704, %v5735
        %v5744 = vadd.f32 %v5705, %v5735
        %v5745 = vadd.f32 %v5706, %v5735
        %v5746 = vadd.f32 %v5707, %v5735
        %v5747 = vadd.f32 %v5708, %v5735
        %v5748 = vadd.f32 %v5709, %v5735
        %v5749 = vadd.f32 %v5710, %v5735
        %v5750 = vadd.f32 %v5711, %v5735
        %v5751 = vadd.f32 %v5712, %v5735
        %v5752 = vadd.f32 %v5713, %v5735
        %v5753 = vadd.f32 %v5714, %v5735
        %v5754 = vadd.f32 %v5715, %v5735
        %v5755 = vadd.f32 %v5716, %v5735
        %v5756 = vadd.f32 %v5717, %v5735
        %v5757 = vadd.f32 %v5718, %v5735
        %v5758 = vadd.f32 %v5719, %v5735
        %v5759 = vadd.f32 %v5720, %v5735
        %v5760 = vadd.f32 %v5721, %v5735
        %v5761 = vadd.f32 %v5722, %v5735
        %v5762 = vadd.f32 %v5723, %v5735
        %v5763 = vadd.f32 %v5724, %v5735
        %v5764 = vadd.f32 %v5725, %v5735
        %v5765 = vadd.f32 %v5726, %v5735
        %v5766 = vadd.f32 %v5727, %v5735
        %v5767 = vadd.f32 %v5728, %v5735
        %v5768 = vadd.f32 %v5729, %v5735
        %v5769 = vmax.f32 %v5737, 0.0
        %v5770 = vmax.f32 %v5738, 0.0
        %v5771 = vmax.f32 %v5739, 0.0
        %v5772 = vmax.f32 %v5740, 0.0
        %v5773 = vmax.f32 %v5741, 0.0
        %v5774 = vmax.f32 %v5742, 0.0
        %v5775 = vmax.f32 %v5743, 0.0
        %v5776 = vmax.f32 %v5744, 0.0
        %v5777 = vmax.f32 %v5745, 0.0
        %v5778 = vmax.f32 %v5746, 0.0
        %v5779 = vmax.f32 %v5747, 0.0
        %v5780 = vmax.f32 %v5748, 0.0
        %v5781 = vmax.f32 %v5749, 0.0
        %v5782 = vmax.f32 %v5750, 0.0
        %v5783 = vmax.f32 %v5751, 0.0
        %v5784 = vmax.f32 %v5752, 0.0
        %v5785 = vmax.f32 %v5753, 0.0
        %v5786 = vmax.f32 %v5754, 0.0
        %v5787 = vmax.f32 %v5755, 0.0
        %v5788 = vmax.f32 %v5756, 0.0
        %v5789 = vmax.f32 %v5757, 0.0
        %v5790 = vmax.f32 %v5758, 0.0
        %v5791 = vmax.f32 %v5759, 0.0
        %v5792 = vmax.f32 %v5760, 0.0
        %v5793 = vmax.f32 %v5761, 0.0
        %v5794 = vmax.f32 %v5762, 0.0
        %v5795 = vmax.f32 %v5763, 0.0
        %v5796 = vmax.f32 %v5764, 0.0
        %v5797 = vmax.f32 %v5765, 0.0
        %v5798 = vmax.f32 %v5766, 0.0
        %v5799 = vmax.f32 %v5767, 0.0
        %v5800 = vmax.f32 %v5768, 0.0
        %5801 = vst [vmem:[%s248] sm:$0xff] %v5769
        %5802 = vst [vmem:[%s248 + $0x8] sm:$0xff] %v5770
        %5803 = vst [vmem:[%s248 + $0x10] sm:$0xff] %v5771
        %5804 = vst [vmem:[%s248 + $0x18] sm:$0xff] %v5772
        %5805 = vst [vmem:[%s248 + $0x20] sm:$0xff] %v5773
        %5806 = vst [vmem:[%s248 + $0x28] sm:$0xff] %v5774
        %5807 = vst [vmem:[%s248 + $0x30] sm:$0xff] %v5775
        %5808 = vst [vmem:[%s248 + $0x38] sm:$0xff] %v5776
        %5809 = vst [vmem:[%s248 + $0x40] sm:$0xff] %v5777
        %5810 = vst [vmem:[%s248 + $0x48] sm:$0xff] %v5778
        %5811 = vst [vmem:[%s248 + $0x50] sm:$0xff] %v5779
        %5812 = vst [vmem:[%s248 + $0x58] sm:$0xff] %v5780
        %5813 = vst [vmem:[%s248 + $0x60] sm:$0xff] %v5781
        %5814 = vst [vmem:[%s248 + $0x68] sm:$0xff] %v5782
        %5815 = vst [vmem:[%s248 + $0x70] sm:$0xff] %v5783
        %5816 = vst [vmem:[%s248 + $0x78] sm:$0xff] %v5784
        %5817 = vst [vmem:[%s248 + $0x80] sm:$0xff] %v5785
        %5818 = vst [vmem:[%s248 + $0x88] sm:$0xff] %v5786
        %5819 = vst [vmem:[%s248 + $0x90] sm:$0xff] %v5787
        %5820 = vst [vmem:[%s248 + $0x98] sm:$0xff] %v5788
        %5821 = vst [vmem:[%s248 + $0xa0] sm:$0xff] %v5789
        %5822 = vst [vmem:[%s248 + $0xa8] sm:$0xff] %v5790
        %5823 = vst [vmem:[%s248 + $0xb0] sm:$0xff] %v5791
        %5824 = vst [vmem:[%s248 + $0xb8] sm:$0xff] %v5792
        %5825 = vst [vmem:[%s248 + $0xc0] sm:$0xff] %v5793
        %5826 = vst [vmem:[%s248 + $0xc8] sm:$0xff] %v5794
        %5827 = vst [vmem:[%s248 + $0xd0] sm:$0xff] %v5795
        %5828 = vst [vmem:[%s248 + $0xd8] sm:$0xff] %v5796
        %5829 = vst [vmem:[%s248 + $0xe0] sm:$0xff] %v5797
        %5830 = vst [vmem:[%s248 + $0xe8] sm:$0xff] %v5798
        %5831 = vst [vmem:[%s248 + $0xf0] sm:$0xff] %v5799
        %5832 = vst [vmem:[%s248 + $0xf8] sm:$0xff] %v5800
        %s5833 = sand.u32 %s153, 1
        %s5834 = scalar_lea.sflag [#allocation4], %s5833
        %s5835 = sand.u32 %s153, 1
        %s5836 = smul.addr %s5835, 256
        %s5837 = scalar_lea.vmem [#allocation3], %s5836
        // Predicated region
        $region37: #{tpu_custom_call.1} parent=35 // pred_check
          %p5838 = pneg %p163
        $region38: #{tpu_custom_call.1} parent=35 // pred_check_branch
          %5840 = sbr.rel (%p5838) target = $region40
        $region39: #{tpu_custom_call.1} parent=35 // pred_region
          %s5841 = smul.u32 16, %s25
          %s5843 = ssub.s32 4096, 4096
          %5844 = vsyncadd %s5834, %s5843
          %s5845 = smul.addr %s5841, 2
          %s5846 = sadd.s32 %s24, %s5845
          %s5847 = smul.addr %s23, 32
          %s5848 = sadd.s32 %s5846, %s5847
          %s5849 = smul.addr %s5848, 128
          %s5850 = scalar_lea.hbm %s4, %s5849
          %s5851 = sshll.u32 %s5837, 4
          %s5852 = int_to_ptr.vmem [resolvable:$true] %s5851
          %5857 = dma.vmem_to_hbm [thread:$0]  %s5852, 4096, %s5850, %s5834, 128, 128, 8
        $region40: #{tpu_custom_call.1} parent=35 // pred_fallthru
          _
      $region36: #{tpu_custom_call.1} parent=5 // pred_fallthru
        _
      %p5858 = scmp.le.s32.totalorder 2, %s13
      // Predicated region
      $region41: #{tpu_custom_call.1} parent=5 // pred_check
        %p5859 = pneg %p5858
      $region42: #{tpu_custom_call.1} parent=5 // pred_check_branch
        %5861 = sbr.rel (%p5859) target = $region44
      $region43: #{tpu_custom_call.1} parent=5 // pred_region
        %s5862 = ssub.s32 %s13, 2
        // Predicated region
        $region45: #{tpu_custom_call.1} parent=43 // pred_check
          %p5863 = pneg %p169
        $region46: #{tpu_custom_call.1} parent=43 // pred_check_branch
          %5865 = sbr.rel (%p5863) target = $region48
        $region47: #{tpu_custom_call.1} parent=43 // pred_region
          %s5866 = sand.u32 %s154, 1
          %s5867 = scalar_lea.sflag [#allocation4], %s5866
          %s5868 = sand.u32 %s154, 1
          %s5869 = smul.addr %s5868, 256
          %s5870 = scalar_lea.vmem [#allocation3], %s5869
          %5871 = dma.done %s5867, 4096
        $region48: #{tpu_custom_call.1} parent=43 // pred_fallthru
          _
      $region44: #{tpu_custom_call.1} parent=5 // pred_fallthru
        _
    $region6: #{tpu_custom_call.1} parent=1 // loop_footer
      %s17 = sadd.s32 1, %s13
    $region7: #{tpu_custom_call.1} parent=1 // loop_footer_branch
      %12 = sbr.rel target = $region3
    $region8: #{tpu_custom_call.1} parent=1 // loop_exit
      _
    %5872 = vsyncpa [#allocation4], 1
    %s5873 = scalar_lea.sflag [#allocation4], 1
    %5874 = vsyncpa %s5873, 1

</llo_original>
